<compile_context>
chip_gen: v5e
topology: v5e:2x2
jax: 0.10.0
libtpu: 0.0.40
codegen_flags: <defaults>
</compile_context>

<pallas_src>
import jax
import jax.numpy as jnp
from jax.experimental import pallas as pl
from jax.experimental.pallas import tpu as pltpu


# ----------------------------------------------------------------------------
# In-kernel helpers (operate on VMEM-resident jnp values, NHWC per batch elem).
# ----------------------------------------------------------------------------
def _pad1(x):
    """Zero pad by 1 on H and W: (H, W, C) -> (H+2, W+2, C)."""
    H, W, C = x.shape
    zr = jnp.zeros((1, W, C), x.dtype)
    x = jnp.concatenate([zr, x, zr], axis=0)
    zc = jnp.zeros((H + 2, 1, C), x.dtype)
    return jnp.concatenate([zc, x, zc], axis=1)


def _conv3x3(x, w_ref, b_ref, relu=True):
    """3x3 conv (stride 1, pad 1) + bias (+ReLU) as one im2col matmul.

    x: (H, W, Cin) value; w_ref: (9*Cin, Cout) ref; b_ref: (1, Cout) ref.
    """
    H, W, Cin = x.shape
    Cout = w_ref.shape[-1]
    xp = _pad1(x)
    # im2col: column order is (kh, kw, cin) — matches weight row order.
    cols = jnp.concatenate(
        [xp[kh:kh + H, kw:kw + W, :] for kh in range(3) for kw in range(3)],
        axis=-1,
    ).reshape(H * W, 9 * Cin)
    y = jnp.dot(cols, w_ref[...], preferred_element_type=jnp.float32)
    y = y + b_ref[...]
    if relu:
        y = jnp.maximum(y, 0.0)
    return y.reshape(H, W, Cout)


def _down2(x):
    """Nearest downsample x0.5: keep even rows / cols."""
    H, W, _ = x.shape
    x = jnp.concatenate([x[i:i + 1] for i in range(0, H, 2)], axis=0)
    x = jnp.concatenate([x[:, j:j + 1] for j in range(0, W, 2)], axis=1)
    return x


def _up2(x):
    """Nearest upsample x2: out[i, j] = in[i // 2, j // 2]."""
    H, W, _ = x.shape
    x = jnp.concatenate([x[i // 2:i // 2 + 1] for i in range(2 * H)], axis=0)
    x = jnp.concatenate([x[:, j // 2:j // 2 + 1] for j in range(2 * W)], axis=1)
    return x


# ----------------------------------------------------------------------------
# Fused UNet kernel: one grid step = one batch element, everything in VMEM.
#   refs: x_ref, (w, b) x 10 convs (20 refs), clf_w, clf_b, o_ref
# ----------------------------------------------------------------------------
def _unet_kernel(x_ref, *refs):
    o_ref = refs[-1]
    p = refs[:-1]

    def conv_block(x, i):
        w0, b0, w1, b1 = p[4 * i], p[4 * i + 1], p[4 * i + 2], p[4 * i + 3]
        return _conv3x3(_conv3x3(x, w0, b0), w1, b1)

    x = x_ref[...].astype(jnp.float32)              # (16, 16, 4)

    # Encoders
    s1 = conv_block(x, 0)                           # (16, 16, 8)
    s2 = conv_block(_down2(s1), 1)                  # (8, 8, 16)

    # Bottleneck
    x = conv_block(_down2(s2), 2)                   # (4, 4, 32)

    # Decoders (skip first, matching torch.cat((skip, x), dim=1))
    x = conv_block(jnp.concatenate([s2, _up2(x)], axis=-1), 3)   # (8, 8, 16)
    x = conv_block(jnp.concatenate([s1, _up2(x)], axis=-1), 4)   # (16, 16, 8)

    # Classifier epilogue: 1x1 conv, no ReLU.
    H, W, C = x.shape
    w_clf, b_clf = p[20], p[21]
    y = jnp.dot(x.reshape(H * W, C), w_clf[...],
                preferred_element_type=jnp.float32) + b_clf[...]
    o_ref[...] = y.astype(o_ref.dtype)              # (H*W, 3)


# ----------------------------------------------------------------------------
# Parameter init (xavier_uniform weights / uniform(0,1) biases as in
# _weight_init, jax PRNG). Weights stored directly in im2col layout
# (k*k*Cin, Cout), row order (kh, kw, cin).
# ----------------------------------------------------------------------------
def _init_conv(key, cin, cout, k):
    kw_key, kb_key = jax.random.split(key)
    fan_in, fan_out = cin * k * k, cout * k * k
    bound = (6.0 / (fan_in + fan_out)) ** 0.5
    w = jax.random.uniform(kw_key, (k * k * cin, cout), jnp.float32,
                           -bound, bound)
    b = jax.random.uniform(kb_key, (cout,), jnp.float32, 0.0, 1.0)
    return w, b


def init_unet_params(key):
    block_cfg = {
        "enc1": (4, 8, 8),
        "enc2": (8, 16, 16),
        "bottleneck": (16, 32, 32),
        "dec1": (32 + 16, 16, 16),
        "dec2": (16 + 8, 8, 8),
    }
    params = {}
    keys = jax.random.split(key, 2 * len(block_cfg) + 1)
    i = 0
    for name, (cin, cmid, cout) in block_cfg.items():
        w0, b0 = _init_conv(keys[i], cin, cmid, 3)
        w1, b1 = _init_conv(keys[i + 1], cmid, cout, 3)
        params[name] = [(w0, b0), (w1, b1)]
        i += 2
    params["clf"] = _init_conv(keys[i], 8, 3, 1)
    return params


# ----------------------------------------------------------------------------
# Wrapper: NCHW -> NHWC, one fused pallas_call, NHWC -> NCHW.
# ----------------------------------------------------------------------------
def unet_forward(x_nchw, params):
    N, C, H, W = x_nchw.shape
    x = jnp.transpose(x_nchw, (0, 2, 3, 1))          # NCHW -> NHWC

    flat_params = []
    for name in ("enc1", "enc2", "bottleneck", "dec1", "dec2"):
        for (w, b) in params[name]:
            flat_params += [w, b.reshape(1, -1)]
    w_clf, b_clf = params["clf"]
    flat_params += [w_clf, b_clf.reshape(1, -1)]
    n_clf = w_clf.shape[-1]

    in_specs = [pl.BlockSpec((None, H, W, C), lambda n: (n, 0, 0, 0))]
    for a in flat_params:
        in_specs.append(pl.BlockSpec(a.shape, lambda n: (0, 0)))

    out = pl.pallas_call(
        _unet_kernel,
        out_shape=jax.ShapeDtypeStruct((N, H * W, n_clf), x.dtype),
        grid=(N,),
        in_specs=in_specs,
        out_specs=pl.BlockSpec((None, H * W, n_clf), lambda n: (n, 0, 0)),
        compiler_params=pltpu.CompilerParams(
            dimension_semantics=("parallel",)),
    )(x, *flat_params)

    out = out.reshape(N, H, W, n_clf)
    return jnp.transpose(out, (0, 3, 1, 2))          # NHWC -> NCHW


if __name__ == "__main__":
    key = jax.random.PRNGKey(0)
    kx, kp = jax.random.split(key)
    x = jax.random.normal(kx, (2, 4, 16, 16), jnp.float32)  # NCHW like PyTorch
    params = init_unet_params(kp)

    out = jax.jit(unet_forward)(x, params)
    out = jax.block_until_ready(out)

    assert out.shape == (2, 3, 16, 16), out.shape
    assert out.dtype == jnp.float32
    assert bool(jnp.all(jnp.isfinite(out)))
    print("KERNEL_OK")
</pallas_src>

<mosaic_0001>
module attributes {stable_mosaic.version = 11 : i64} {
  func.func @_unet_kernel(%arg0: i32, %arg1: memref<1x16x16x4xf32, #tpu.memory_space<vmem>>, %arg2: memref<36x8xf32, #tpu.memory_space<vmem>>, %arg3: memref<1x8xf32, #tpu.memory_space<vmem>>, %arg4: memref<72x8xf32, #tpu.memory_space<vmem>>, %arg5: memref<1x8xf32, #tpu.memory_space<vmem>>, %arg6: memref<72x16xf32, #tpu.memory_space<vmem>>, %arg7: memref<1x16xf32, #tpu.memory_space<vmem>>, %arg8: memref<144x16xf32, #tpu.memory_space<vmem>>, %arg9: memref<1x16xf32, #tpu.memory_space<vmem>>, %arg10: memref<144x32xf32, #tpu.memory_space<vmem>>, %arg11: memref<1x32xf32, #tpu.memory_space<vmem>>, %arg12: memref<288x32xf32, #tpu.memory_space<vmem>>, %arg13: memref<1x32xf32, #tpu.memory_space<vmem>>, %arg14: memref<432x16xf32, #tpu.memory_space<vmem>>, %arg15: memref<1x16xf32, #tpu.memory_space<vmem>>, %arg16: memref<144x16xf32, #tpu.memory_space<vmem>>, %arg17: memref<1x16xf32, #tpu.memory_space<vmem>>, %arg18: memref<216x8xf32, #tpu.memory_space<vmem>>, %arg19: memref<1x8xf32, #tpu.memory_space<vmem>>, %arg20: memref<72x8xf32, #tpu.memory_space<vmem>>, %arg21: memref<1x8xf32, #tpu.memory_space<vmem>>, %arg22: memref<8x3xf32, #tpu.memory_space<vmem>>, %arg23: memref<1x3xf32, #tpu.memory_space<vmem>>, %arg24: memref<1x256x3xf32, #tpu.memory_space<vmem>>) attributes {dimension_semantics = [#tpu.dimension_semantics<parallel>], iteration_bounds = array<i64: 2>, scalar_prefetch = 0 : i64, scratch_operands = 0 : i64, tpu.core_type = #tpu.core_type<tc>, window_params = [{transform_indices = @transform_0, window_bounds = array<i64: 1, 16, 16, 4>}, {pipeline_mode = #tpu.pipeline_mode<synchronous>, transform_indices = @transform_1, window_bounds = array<i64: 36, 8>}, {pipeline_mode = #tpu.pipeline_mode<synchronous>, transform_indices = @transform_2, window_bounds = array<i64: 1, 8>}, {pipeline_mode = #tpu.pipeline_mode<synchronous>, transform_indices = @transform_3, window_bounds = array<i64: 72, 8>}, {pipeline_mode = #tpu.pipeline_mode<synchronous>, transform_indices = @transform_4, window_bounds = array<i64: 1, 8>}, {pipeline_mode = #tpu.pipeline_mode<synchronous>, transform_indices = @transform_5, window_bounds = array<i64: 72, 16>}, {pipeline_mode = #tpu.pipeline_mode<synchronous>, transform_indices = @transform_6, window_bounds = array<i64: 1, 16>}, {pipeline_mode = #tpu.pipeline_mode<synchronous>, transform_indices = @transform_7, window_bounds = array<i64: 144, 16>}, {pipeline_mode = #tpu.pipeline_mode<synchronous>, transform_indices = @transform_8, window_bounds = array<i64: 1, 16>}, {pipeline_mode = #tpu.pipeline_mode<synchronous>, transform_indices = @transform_9, window_bounds = array<i64: 144, 32>}, {pipeline_mode = #tpu.pipeline_mode<synchronous>, transform_indices = @transform_10, window_bounds = array<i64: 1, 32>}, {pipeline_mode = #tpu.pipeline_mode<synchronous>, transform_indices = @transform_11, window_bounds = array<i64: 288, 32>}, {pipeline_mode = #tpu.pipeline_mode<synchronous>, transform_indices = @transform_12, window_bounds = array<i64: 1, 32>}, {pipeline_mode = #tpu.pipeline_mode<synchronous>, transform_indices = @transform_13, window_bounds = array<i64: 432, 16>}, {pipeline_mode = #tpu.pipeline_mode<synchronous>, transform_indices = @transform_14, window_bounds = array<i64: 1, 16>}, {pipeline_mode = #tpu.pipeline_mode<synchronous>, transform_indices = @transform_15, window_bounds = array<i64: 144, 16>}, {pipeline_mode = #tpu.pipeline_mode<synchronous>, transform_indices = @transform_16, window_bounds = array<i64: 1, 16>}, {pipeline_mode = #tpu.pipeline_mode<synchronous>, transform_indices = @transform_17, window_bounds = array<i64: 216, 8>}, {pipeline_mode = #tpu.pipeline_mode<synchronous>, transform_indices = @transform_18, window_bounds = array<i64: 1, 8>}, {pipeline_mode = #tpu.pipeline_mode<synchronous>, transform_indices = @transform_19, window_bounds = array<i64: 72, 8>}, {pipeline_mode = #tpu.pipeline_mode<synchronous>, transform_indices = @transform_20, window_bounds = array<i64: 1, 8>}, {pipeline_mode = #tpu.pipeline_mode<synchronous>, transform_indices = @transform_21, window_bounds = array<i64: 8, 3>}, {pipeline_mode = #tpu.pipeline_mode<synchronous>, transform_indices = @transform_22, window_bounds = array<i64: 1, 3>}, {transform_indices = @transform_23, window_bounds = array<i64: 1, 256, 3>}]} {
    %c0 = arith.constant 0 : index
    %c0_0 = arith.constant 0 : index
    %c0_1 = arith.constant 0 : index
    %c0_2 = arith.constant 0 : index
    %0 = vector.load %arg1[%c0, %c0_0, %c0_1, %c0_2] : memref<1x16x16x4xf32, #tpu.memory_space<vmem>>, vector<1x16x16x4xf32>
    %1 = vector.shape_cast %0 : vector<1x16x16x4xf32> to vector<16x16x4xf32>
    %cst = arith.constant 0.000000e+00 : f32
    %2 = vector.broadcast %cst : f32 to vector<1x16x4xf32>
    %3 = tpu.concatenate %2, %1, %2 in 0 : vector<1x16x4xf32>, vector<16x16x4xf32>, vector<1x16x4xf32> -> vector<18x16x4xf32>
    %cst_3 = arith.constant 0.000000e+00 : f32
    %4 = vector.broadcast %cst_3 : f32 to vector<18x1x4xf32>
    %5 = tpu.concatenate %4, %3, %4 in 1 : vector<18x1x4xf32>, vector<18x16x4xf32>, vector<18x1x4xf32> -> vector<18x18x4xf32>
    %6 = vector.extract_strided_slice %5 {offsets = [0, 0, 0], sizes = [16, 16, 4], strides = [1, 1, 1]} : vector<18x18x4xf32> to vector<16x16x4xf32>
    %7 = vector.extract_strided_slice %5 {offsets = [0, 1, 0], sizes = [16, 16, 4], strides = [1, 1, 1]} : vector<18x18x4xf32> to vector<16x16x4xf32>
    %8 = vector.extract_strided_slice %5 {offsets = [0, 2, 0], sizes = [16, 16, 4], strides = [1, 1, 1]} : vector<18x18x4xf32> to vector<16x16x4xf32>
    %9 = vector.extract_strided_slice %5 {offsets = [1, 0, 0], sizes = [16, 16, 4], strides = [1, 1, 1]} : vector<18x18x4xf32> to vector<16x16x4xf32>
    %10 = vector.extract_strided_slice %5 {offsets = [1, 1, 0], sizes = [16, 16, 4], strides = [1, 1, 1]} : vector<18x18x4xf32> to vector<16x16x4xf32>
    %11 = vector.extract_strided_slice %5 {offsets = [1, 2, 0], sizes = [16, 16, 4], strides = [1, 1, 1]} : vector<18x18x4xf32> to vector<16x16x4xf32>
    %12 = vector.extract_strided_slice %5 {offsets = [2, 0, 0], sizes = [16, 16, 4], strides = [1, 1, 1]} : vector<18x18x4xf32> to vector<16x16x4xf32>
    %13 = vector.extract_strided_slice %5 {offsets = [2, 1, 0], sizes = [16, 16, 4], strides = [1, 1, 1]} : vector<18x18x4xf32> to vector<16x16x4xf32>
    %14 = vector.extract_strided_slice %5 {offsets = [2, 2, 0], sizes = [16, 16, 4], strides = [1, 1, 1]} : vector<18x18x4xf32> to vector<16x16x4xf32>
    %15 = tpu.concatenate %6, %7, %8, %9, %10, %11, %12, %13, %14 in 2 : vector<16x16x4xf32>, vector<16x16x4xf32>, vector<16x16x4xf32>, vector<16x16x4xf32>, vector<16x16x4xf32>, vector<16x16x4xf32>, vector<16x16x4xf32>, vector<16x16x4xf32>, vector<16x16x4xf32> -> vector<16x16x36xf32>
    %16 = vector.shape_cast %15 : vector<16x16x36xf32> to vector<256x36xf32>
    %c0_4 = arith.constant 0 : index
    %c0_5 = arith.constant 0 : index
    %17 = vector.load %arg2[%c0_4, %c0_5] : memref<36x8xf32, #tpu.memory_space<vmem>>, vector<36x8xf32>
    %cst_6 = arith.constant dense<0.000000e+00> : vector<256x8xf32>
    %18 = tpu.matmul %16, %17, %cst_6 {dimension_numbers = #tpu.dot_dimension_numbers<[1], [0], [0], [1], [0, 0, 1, 1], [], []>} : vector<256x36xf32>, vector<36x8xf32>, vector<256x8xf32> -> vector<256x8xf32>
    %c0_7 = arith.constant 0 : index
    %c0_8 = arith.constant 0 : index
    %19 = vector.load %arg3[%c0_7, %c0_8] : memref<1x8xf32, #tpu.memory_space<vmem>>, vector<1x8xf32>
    %20 = vector.broadcast %19 : vector<1x8xf32> to vector<256x8xf32>
    %21 = arith.addf %18, %20 : vector<256x8xf32>
    %cst_9 = arith.constant 0.000000e+00 : f32
    %22 = vector.broadcast %cst_9 : f32 to vector<256x8xf32>
    %23 = arith.maximumf %21, %22 : vector<256x8xf32>
    %24 = vector.shape_cast %23 : vector<256x8xf32> to vector<16x16x8xf32>
    %cst_10 = arith.constant 0.000000e+00 : f32
    %25 = vector.broadcast %cst_10 : f32 to vector<1x16x8xf32>
    %26 = tpu.concatenate %25, %24, %25 in 0 : vector<1x16x8xf32>, vector<16x16x8xf32>, vector<1x16x8xf32> -> vector<18x16x8xf32>
    %cst_11 = arith.constant 0.000000e+00 : f32
    %27 = vector.broadcast %cst_11 : f32 to vector<18x1x8xf32>
    %28 = tpu.concatenate %27, %26, %27 in 1 : vector<18x1x8xf32>, vector<18x16x8xf32>, vector<18x1x8xf32> -> vector<18x18x8xf32>
    %29 = vector.extract_strided_slice %28 {offsets = [0, 0, 0], sizes = [16, 16, 8], strides = [1, 1, 1]} : vector<18x18x8xf32> to vector<16x16x8xf32>
    %30 = vector.extract_strided_slice %28 {offsets = [0, 1, 0], sizes = [16, 16, 8], strides = [1, 1, 1]} : vector<18x18x8xf32> to vector<16x16x8xf32>
    %31 = vector.extract_strided_slice %28 {offsets = [0, 2, 0], sizes = [16, 16, 8], strides = [1, 1, 1]} : vector<18x18x8xf32> to vector<16x16x8xf32>
    %32 = vector.extract_strided_slice %28 {offsets = [1, 0, 0], sizes = [16, 16, 8], strides = [1, 1, 1]} : vector<18x18x8xf32> to vector<16x16x8xf32>
    %33 = vector.extract_strided_slice %28 {offsets = [1, 1, 0], sizes = [16, 16, 8], strides = [1, 1, 1]} : vector<18x18x8xf32> to vector<16x16x8xf32>
    %34 = vector.extract_strided_slice %28 {offsets = [1, 2, 0], sizes = [16, 16, 8], strides = [1, 1, 1]} : vector<18x18x8xf32> to vector<16x16x8xf32>
    %35 = vector.extract_strided_slice %28 {offsets = [2, 0, 0], sizes = [16, 16, 8], strides = [1, 1, 1]} : vector<18x18x8xf32> to vector<16x16x8xf32>
    %36 = vector.extract_strided_slice %28 {offsets = [2, 1, 0], sizes = [16, 16, 8], strides = [1, 1, 1]} : vector<18x18x8xf32> to vector<16x16x8xf32>
    %37 = vector.extract_strided_slice %28 {offsets = [2, 2, 0], sizes = [16, 16, 8], strides = [1, 1, 1]} : vector<18x18x8xf32> to vector<16x16x8xf32>
    %38 = tpu.concatenate %29, %30, %31, %32, %33, %34, %35, %36, %37 in 2 : vector<16x16x8xf32>, vector<16x16x8xf32>, vector<16x16x8xf32>, vector<16x16x8xf32>, vector<16x16x8xf32>, vector<16x16x8xf32>, vector<16x16x8xf32>, vector<16x16x8xf32>, vector<16x16x8xf32> -> vector<16x16x72xf32>
    %39 = vector.shape_cast %38 : vector<16x16x72xf32> to vector<256x72xf32>
    %c0_12 = arith.constant 0 : index
    %c0_13 = arith.constant 0 : index
    %40 = vector.load %arg4[%c0_12, %c0_13] : memref<72x8xf32, #tpu.memory_space<vmem>>, vector<72x8xf32>
    %cst_14 = arith.constant dense<0.000000e+00> : vector<256x8xf32>
    %41 = tpu.matmul %39, %40, %cst_14 {dimension_numbers = #tpu.dot_dimension_numbers<[1], [0], [0], [1], [0, 0, 1, 1], [], []>} : vector<256x72xf32>, vector<72x8xf32>, vector<256x8xf32> -> vector<256x8xf32>
    %c0_15 = arith.constant 0 : index
    %c0_16 = arith.constant 0 : index
    %42 = vector.load %arg5[%c0_15, %c0_16] : memref<1x8xf32, #tpu.memory_space<vmem>>, vector<1x8xf32>
    %43 = vector.broadcast %42 : vector<1x8xf32> to vector<256x8xf32>
    %44 = arith.addf %41, %43 : vector<256x8xf32>
    %cst_17 = arith.constant 0.000000e+00 : f32
    %45 = vector.broadcast %cst_17 : f32 to vector<256x8xf32>
    %46 = arith.maximumf %44, %45 : vector<256x8xf32>
    %47 = vector.shape_cast %46 : vector<256x8xf32> to vector<16x16x8xf32>
    %48 = vector.extract_strided_slice %47 {offsets = [0, 0, 0], sizes = [1, 16, 8], strides = [1, 1, 1]} : vector<16x16x8xf32> to vector<1x16x8xf32>
    %49 = vector.extract_strided_slice %47 {offsets = [2, 0, 0], sizes = [1, 16, 8], strides = [1, 1, 1]} : vector<16x16x8xf32> to vector<1x16x8xf32>
    %50 = vector.extract_strided_slice %47 {offsets = [4, 0, 0], sizes = [1, 16, 8], strides = [1, 1, 1]} : vector<16x16x8xf32> to vector<1x16x8xf32>
    %51 = vector.extract_strided_slice %47 {offsets = [6, 0, 0], sizes = [1, 16, 8], strides = [1, 1, 1]} : vector<16x16x8xf32> to vector<1x16x8xf32>
    %52 = vector.extract_strided_slice %47 {offsets = [8, 0, 0], sizes = [1, 16, 8], strides = [1, 1, 1]} : vector<16x16x8xf32> to vector<1x16x8xf32>
    %53 = vector.extract_strided_slice %47 {offsets = [10, 0, 0], sizes = [1, 16, 8], strides = [1, 1, 1]} : vector<16x16x8xf32> to vector<1x16x8xf32>
    %54 = vector.extract_strided_slice %47 {offsets = [12, 0, 0], sizes = [1, 16, 8], strides = [1, 1, 1]} : vector<16x16x8xf32> to vector<1x16x8xf32>
    %55 = vector.extract_strided_slice %47 {offsets = [14, 0, 0], sizes = [1, 16, 8], strides = [1, 1, 1]} : vector<16x16x8xf32> to vector<1x16x8xf32>
    %56 = tpu.concatenate %48, %49, %50, %51, %52, %53, %54, %55 in 0 : vector<1x16x8xf32>, vector<1x16x8xf32>, vector<1x16x8xf32>, vector<1x16x8xf32>, vector<1x16x8xf32>, vector<1x16x8xf32>, vector<1x16x8xf32>, vector<1x16x8xf32> -> vector<8x16x8xf32>
    %57 = vector.extract_strided_slice %56 {offsets = [0, 0, 0], sizes = [8, 1, 8], strides = [1, 1, 1]} : vector<8x16x8xf32> to vector<8x1x8xf32>
    %58 = vector.extract_strided_slice %56 {offsets = [0, 2, 0], sizes = [8, 1, 8], strides = [1, 1, 1]} : vector<8x16x8xf32> to vector<8x1x8xf32>
    %59 = vector.extract_strided_slice %56 {offsets = [0, 4, 0], sizes = [8, 1, 8], strides = [1, 1, 1]} : vector<8x16x8xf32> to vector<8x1x8xf32>
    %60 = vector.extract_strided_slice %56 {offsets = [0, 6, 0], sizes = [8, 1, 8], strides = [1, 1, 1]} : vector<8x16x8xf32> to vector<8x1x8xf32>
    %61 = vector.extract_strided_slice %56 {offsets = [0, 8, 0], sizes = [8, 1, 8], strides = [1, 1, 1]} : vector<8x16x8xf32> to vector<8x1x8xf32>
    %62 = vector.extract_strided_slice %56 {offsets = [0, 10, 0], sizes = [8, 1, 8], strides = [1, 1, 1]} : vector<8x16x8xf32> to vector<8x1x8xf32>
    %63 = vector.extract_strided_slice %56 {offsets = [0, 12, 0], sizes = [8, 1, 8], strides = [1, 1, 1]} : vector<8x16x8xf32> to vector<8x1x8xf32>
    %64 = vector.extract_strided_slice %56 {offsets = [0, 14, 0], sizes = [8, 1, 8], strides = [1, 1, 1]} : vector<8x16x8xf32> to vector<8x1x8xf32>
    %65 = tpu.concatenate %57, %58, %59, %60, %61, %62, %63, %64 in 1 : vector<8x1x8xf32>, vector<8x1x8xf32>, vector<8x1x8xf32>, vector<8x1x8xf32>, vector<8x1x8xf32>, vector<8x1x8xf32>, vector<8x1x8xf32>, vector<8x1x8xf32> -> vector<8x8x8xf32>
    %cst_18 = arith.constant 0.000000e+00 : f32
    %66 = vector.broadcast %cst_18 : f32 to vector<1x8x8xf32>
    %67 = tpu.concatenate %66, %65, %66 in 0 : vector<1x8x8xf32>, vector<8x8x8xf32>, vector<1x8x8xf32> -> vector<10x8x8xf32>
    %cst_19 = arith.constant 0.000000e+00 : f32
    %68 = vector.broadcast %cst_19 : f32 to vector<10x1x8xf32>
    %69 = tpu.concatenate %68, %67, %68 in 1 : vector<10x1x8xf32>, vector<10x8x8xf32>, vector<10x1x8xf32> -> vector<10x10x8xf32>
    %70 = vector.extract_strided_slice %69 {offsets = [0, 0, 0], sizes = [8, 8, 8], strides = [1, 1, 1]} : vector<10x10x8xf32> to vector<8x8x8xf32>
    %71 = vector.extract_strided_slice %69 {offsets = [0, 1, 0], sizes = [8, 8, 8], strides = [1, 1, 1]} : vector<10x10x8xf32> to vector<8x8x8xf32>
    %72 = vector.extract_strided_slice %69 {offsets = [0, 2, 0], sizes = [8, 8, 8], strides = [1, 1, 1]} : vector<10x10x8xf32> to vector<8x8x8xf32>
    %73 = vector.extract_strided_slice %69 {offsets = [1, 0, 0], sizes = [8, 8, 8], strides = [1, 1, 1]} : vector<10x10x8xf32> to vector<8x8x8xf32>
    %74 = vector.extract_strided_slice %69 {offsets = [1, 1, 0], sizes = [8, 8, 8], strides = [1, 1, 1]} : vector<10x10x8xf32> to vector<8x8x8xf32>
    %75 = vector.extract_strided_slice %69 {offsets = [1, 2, 0], sizes = [8, 8, 8], strides = [1, 1, 1]} : vector<10x10x8xf32> to vector<8x8x8xf32>
    %76 = vector.extract_strided_slice %69 {offsets = [2, 0, 0], sizes = [8, 8, 8], strides = [1, 1, 1]} : vector<10x10x8xf32> to vector<8x8x8xf32>
    %77 = vector.extract_strided_slice %69 {offsets = [2, 1, 0], sizes = [8, 8, 8], strides = [1, 1, 1]} : vector<10x10x8xf32> to vector<8x8x8xf32>
    %78 = vector.extract_strided_slice %69 {offsets = [2, 2, 0], sizes = [8, 8, 8], strides = [1, 1, 1]} : vector<10x10x8xf32> to vector<8x8x8xf32>
    %79 = tpu.concatenate %70, %71, %72, %73, %74, %75, %76, %77, %78 in 2 : vector<8x8x8xf32>, vector<8x8x8xf32>, vector<8x8x8xf32>, vector<8x8x8xf32>, vector<8x8x8xf32>, vector<8x8x8xf32>, vector<8x8x8xf32>, vector<8x8x8xf32>, vector<8x8x8xf32> -> vector<8x8x72xf32>
    %80 = vector.shape_cast %79 : vector<8x8x72xf32> to vector<64x72xf32>
    %c0_20 = arith.constant 0 : index
    %c0_21 = arith.constant 0 : index
    %81 = vector.load %arg6[%c0_20, %c0_21] : memref<72x16xf32, #tpu.memory_space<vmem>>, vector<72x16xf32>
    %cst_22 = arith.constant dense<0.000000e+00> : vector<64x16xf32>
    %82 = tpu.matmul %80, %81, %cst_22 {dimension_numbers = #tpu.dot_dimension_numbers<[1], [0], [0], [1], [0, 0, 1, 1], [], []>} : vector<64x72xf32>, vector<72x16xf32>, vector<64x16xf32> -> vector<64x16xf32>
    %c0_23 = arith.constant 0 : index
    %c0_24 = arith.constant 0 : index
    %83 = vector.load %arg7[%c0_23, %c0_24] : memref<1x16xf32, #tpu.memory_space<vmem>>, vector<1x16xf32>
    %84 = vector.broadcast %83 : vector<1x16xf32> to vector<64x16xf32>
    %85 = arith.addf %82, %84 : vector<64x16xf32>
    %cst_25 = arith.constant 0.000000e+00 : f32
    %86 = vector.broadcast %cst_25 : f32 to vector<64x16xf32>
    %87 = arith.maximumf %85, %86 : vector<64x16xf32>
    %88 = vector.shape_cast %87 : vector<64x16xf32> to vector<8x8x16xf32>
    %cst_26 = arith.constant 0.000000e+00 : f32
    %89 = vector.broadcast %cst_26 : f32 to vector<1x8x16xf32>
    %90 = tpu.concatenate %89, %88, %89 in 0 : vector<1x8x16xf32>, vector<8x8x16xf32>, vector<1x8x16xf32> -> vector<10x8x16xf32>
    %cst_27 = arith.constant 0.000000e+00 : f32
    %91 = vector.broadcast %cst_27 : f32 to vector<10x1x16xf32>
    %92 = tpu.concatenate %91, %90, %91 in 1 : vector<10x1x16xf32>, vector<10x8x16xf32>, vector<10x1x16xf32> -> vector<10x10x16xf32>
    %93 = vector.extract_strided_slice %92 {offsets = [0, 0, 0], sizes = [8, 8, 16], strides = [1, 1, 1]} : vector<10x10x16xf32> to vector<8x8x16xf32>
    %94 = vector.extract_strided_slice %92 {offsets = [0, 1, 0], sizes = [8, 8, 16], strides = [1, 1, 1]} : vector<10x10x16xf32> to vector<8x8x16xf32>
    %95 = vector.extract_strided_slice %92 {offsets = [0, 2, 0], sizes = [8, 8, 16], strides = [1, 1, 1]} : vector<10x10x16xf32> to vector<8x8x16xf32>
    %96 = vector.extract_strided_slice %92 {offsets = [1, 0, 0], sizes = [8, 8, 16], strides = [1, 1, 1]} : vector<10x10x16xf32> to vector<8x8x16xf32>
    %97 = vector.extract_strided_slice %92 {offsets = [1, 1, 0], sizes = [8, 8, 16], strides = [1, 1, 1]} : vector<10x10x16xf32> to vector<8x8x16xf32>
    %98 = vector.extract_strided_slice %92 {offsets = [1, 2, 0], sizes = [8, 8, 16], strides = [1, 1, 1]} : vector<10x10x16xf32> to vector<8x8x16xf32>
    %99 = vector.extract_strided_slice %92 {offsets = [2, 0, 0], sizes = [8, 8, 16], strides = [1, 1, 1]} : vector<10x10x16xf32> to vector<8x8x16xf32>
    %100 = vector.extract_strided_slice %92 {offsets = [2, 1, 0], sizes = [8, 8, 16], strides = [1, 1, 1]} : vector<10x10x16xf32> to vector<8x8x16xf32>
    %101 = vector.extract_strided_slice %92 {offsets = [2, 2, 0], sizes = [8, 8, 16], strides = [1, 1, 1]} : vector<10x10x16xf32> to vector<8x8x16xf32>
    %102 = tpu.concatenate %93, %94, %95, %96, %97, %98, %99, %100, %101 in 2 : vector<8x8x16xf32>, vector<8x8x16xf32>, vector<8x8x16xf32>, vector<8x8x16xf32>, vector<8x8x16xf32>, vector<8x8x16xf32>, vector<8x8x16xf32>, vector<8x8x16xf32>, vector<8x8x16xf32> -> vector<8x8x144xf32>
    %103 = vector.shape_cast %102 : vector<8x8x144xf32> to vector<64x144xf32>
    %c0_28 = arith.constant 0 : index
    %c0_29 = arith.constant 0 : index
    %104 = vector.load %arg8[%c0_28, %c0_29] : memref<144x16xf32, #tpu.memory_space<vmem>>, vector<144x16xf32>
    %cst_30 = arith.constant dense<0.000000e+00> : vector<64x16xf32>
    %105 = tpu.matmul %103, %104, %cst_30 {dimension_numbers = #tpu.dot_dimension_numbers<[1], [0], [0], [1], [0, 0, 1, 1], [], []>} : vector<64x144xf32>, vector<144x16xf32>, vector<64x16xf32> -> vector<64x16xf32>
    %c0_31 = arith.constant 0 : index
    %c0_32 = arith.constant 0 : index
    %106 = vector.load %arg9[%c0_31, %c0_32] : memref<1x16xf32, #tpu.memory_space<vmem>>, vector<1x16xf32>
    %107 = vector.broadcast %106 : vector<1x16xf32> to vector<64x16xf32>
    %108 = arith.addf %105, %107 : vector<64x16xf32>
    %cst_33 = arith.constant 0.000000e+00 : f32
    %109 = vector.broadcast %cst_33 : f32 to vector<64x16xf32>
    %110 = arith.maximumf %108, %109 : vector<64x16xf32>
    %111 = vector.shape_cast %110 : vector<64x16xf32> to vector<8x8x16xf32>
    %112 = vector.extract_strided_slice %111 {offsets = [0, 0, 0], sizes = [1, 8, 16], strides = [1, 1, 1]} : vector<8x8x16xf32> to vector<1x8x16xf32>
    %113 = vector.extract_strided_slice %111 {offsets = [2, 0, 0], sizes = [1, 8, 16], strides = [1, 1, 1]} : vector<8x8x16xf32> to vector<1x8x16xf32>
    %114 = vector.extract_strided_slice %111 {offsets = [4, 0, 0], sizes = [1, 8, 16], strides = [1, 1, 1]} : vector<8x8x16xf32> to vector<1x8x16xf32>
    %115 = vector.extract_strided_slice %111 {offsets = [6, 0, 0], sizes = [1, 8, 16], strides = [1, 1, 1]} : vector<8x8x16xf32> to vector<1x8x16xf32>
    %116 = tpu.concatenate %112, %113, %114, %115 in 0 : vector<1x8x16xf32>, vector<1x8x16xf32>, vector<1x8x16xf32>, vector<1x8x16xf32> -> vector<4x8x16xf32>
    %117 = vector.extract_strided_slice %116 {offsets = [0, 0, 0], sizes = [4, 1, 16], strides = [1, 1, 1]} : vector<4x8x16xf32> to vector<4x1x16xf32>
    %118 = vector.extract_strided_slice %116 {offsets = [0, 2, 0], sizes = [4, 1, 16], strides = [1, 1, 1]} : vector<4x8x16xf32> to vector<4x1x16xf32>
    %119 = vector.extract_strided_slice %116 {offsets = [0, 4, 0], sizes = [4, 1, 16], strides = [1, 1, 1]} : vector<4x8x16xf32> to vector<4x1x16xf32>
    %120 = vector.extract_strided_slice %116 {offsets = [0, 6, 0], sizes = [4, 1, 16], strides = [1, 1, 1]} : vector<4x8x16xf32> to vector<4x1x16xf32>
    %121 = tpu.concatenate %117, %118, %119, %120 in 1 : vector<4x1x16xf32>, vector<4x1x16xf32>, vector<4x1x16xf32>, vector<4x1x16xf32> -> vector<4x4x16xf32>
    %cst_34 = arith.constant 0.000000e+00 : f32
    %122 = vector.broadcast %cst_34 : f32 to vector<1x4x16xf32>
    %123 = tpu.concatenate %122, %121, %122 in 0 : vector<1x4x16xf32>, vector<4x4x16xf32>, vector<1x4x16xf32> -> vector<6x4x16xf32>
    %cst_35 = arith.constant 0.000000e+00 : f32
    %124 = vector.broadcast %cst_35 : f32 to vector<6x1x16xf32>
    %125 = tpu.concatenate %124, %123, %124 in 1 : vector<6x1x16xf32>, vector<6x4x16xf32>, vector<6x1x16xf32> -> vector<6x6x16xf32>
    %126 = vector.extract_strided_slice %125 {offsets = [0, 0, 0], sizes = [4, 4, 16], strides = [1, 1, 1]} : vector<6x6x16xf32> to vector<4x4x16xf32>
    %127 = vector.extract_strided_slice %125 {offsets = [0, 1, 0], sizes = [4, 4, 16], strides = [1, 1, 1]} : vector<6x6x16xf32> to vector<4x4x16xf32>
    %128 = vector.extract_strided_slice %125 {offsets = [0, 2, 0], sizes = [4, 4, 16], strides = [1, 1, 1]} : vector<6x6x16xf32> to vector<4x4x16xf32>
    %129 = vector.extract_strided_slice %125 {offsets = [1, 0, 0], sizes = [4, 4, 16], strides = [1, 1, 1]} : vector<6x6x16xf32> to vector<4x4x16xf32>
    %130 = vector.extract_strided_slice %125 {offsets = [1, 1, 0], sizes = [4, 4, 16], strides = [1, 1, 1]} : vector<6x6x16xf32> to vector<4x4x16xf32>
    %131 = vector.extract_strided_slice %125 {offsets = [1, 2, 0], sizes = [4, 4, 16], strides = [1, 1, 1]} : vector<6x6x16xf32> to vector<4x4x16xf32>
    %132 = vector.extract_strided_slice %125 {offsets = [2, 0, 0], sizes = [4, 4, 16], strides = [1, 1, 1]} : vector<6x6x16xf32> to vector<4x4x16xf32>
    %133 = vector.extract_strided_slice %125 {offsets = [2, 1, 0], sizes = [4, 4, 16], strides = [1, 1, 1]} : vector<6x6x16xf32> to vector<4x4x16xf32>
    %134 = vector.extract_strided_slice %125 {offsets = [2, 2, 0], sizes = [4, 4, 16], strides = [1, 1, 1]} : vector<6x6x16xf32> to vector<4x4x16xf32>
    %135 = tpu.concatenate %126, %127, %128, %129, %130, %131, %132, %133, %134 in 2 : vector<4x4x16xf32>, vector<4x4x16xf32>, vector<4x4x16xf32>, vector<4x4x16xf32>, vector<4x4x16xf32>, vector<4x4x16xf32>, vector<4x4x16xf32>, vector<4x4x16xf32>, vector<4x4x16xf32> -> vector<4x4x144xf32>
    %136 = vector.shape_cast %135 : vector<4x4x144xf32> to vector<16x144xf32>
    %c0_36 = arith.constant 0 : index
    %c0_37 = arith.constant 0 : index
    %137 = vector.load %arg10[%c0_36, %c0_37] : memref<144x32xf32, #tpu.memory_space<vmem>>, vector<144x32xf32>
    %cst_38 = arith.constant dense<0.000000e+00> : vector<16x32xf32>
    %138 = tpu.matmul %136, %137, %cst_38 {dimension_numbers = #tpu.dot_dimension_numbers<[1], [0], [0], [1], [0, 0, 1, 1], [], []>} : vector<16x144xf32>, vector<144x32xf32>, vector<16x32xf32> -> vector<16x32xf32>
    %c0_39 = arith.constant 0 : index
    %c0_40 = arith.constant 0 : index
    %139 = vector.load %arg11[%c0_39, %c0_40] : memref<1x32xf32, #tpu.memory_space<vmem>>, vector<1x32xf32>
    %140 = vector.broadcast %139 : vector<1x32xf32> to vector<16x32xf32>
    %141 = arith.addf %138, %140 : vector<16x32xf32>
    %cst_41 = arith.constant 0.000000e+00 : f32
    %142 = vector.broadcast %cst_41 : f32 to vector<16x32xf32>
    %143 = arith.maximumf %141, %142 : vector<16x32xf32>
    %144 = vector.shape_cast %143 : vector<16x32xf32> to vector<4x4x32xf32>
    %cst_42 = arith.constant 0.000000e+00 : f32
    %145 = vector.broadcast %cst_42 : f32 to vector<1x4x32xf32>
    %146 = tpu.concatenate %145, %144, %145 in 0 : vector<1x4x32xf32>, vector<4x4x32xf32>, vector<1x4x32xf32> -> vector<6x4x32xf32>
    %cst_43 = arith.constant 0.000000e+00 : f32
    %147 = vector.broadcast %cst_43 : f32 to vector<6x1x32xf32>
    %148 = tpu.concatenate %147, %146, %147 in 1 : vector<6x1x32xf32>, vector<6x4x32xf32>, vector<6x1x32xf32> -> vector<6x6x32xf32>
    %149 = vector.extract_strided_slice %148 {offsets = [0, 0, 0], sizes = [4, 4, 32], strides = [1, 1, 1]} : vector<6x6x32xf32> to vector<4x4x32xf32>
    %150 = vector.extract_strided_slice %148 {offsets = [0, 1, 0], sizes = [4, 4, 32], strides = [1, 1, 1]} : vector<6x6x32xf32> to vector<4x4x32xf32>
    %151 = vector.extract_strided_slice %148 {offsets = [0, 2, 0], sizes = [4, 4, 32], strides = [1, 1, 1]} : vector<6x6x32xf32> to vector<4x4x32xf32>
    %152 = vector.extract_strided_slice %148 {offsets = [1, 0, 0], sizes = [4, 4, 32], strides = [1, 1, 1]} : vector<6x6x32xf32> to vector<4x4x32xf32>
    %153 = vector.extract_strided_slice %148 {offsets = [1, 1, 0], sizes = [4, 4, 32], strides = [1, 1, 1]} : vector<6x6x32xf32> to vector<4x4x32xf32>
    %154 = vector.extract_strided_slice %148 {offsets = [1, 2, 0], sizes = [4, 4, 32], strides = [1, 1, 1]} : vector<6x6x32xf32> to vector<4x4x32xf32>
    %155 = vector.extract_strided_slice %148 {offsets = [2, 0, 0], sizes = [4, 4, 32], strides = [1, 1, 1]} : vector<6x6x32xf32> to vector<4x4x32xf32>
    %156 = vector.extract_strided_slice %148 {offsets = [2, 1, 0], sizes = [4, 4, 32], strides = [1, 1, 1]} : vector<6x6x32xf32> to vector<4x4x32xf32>
    %157 = vector.extract_strided_slice %148 {offsets = [2, 2, 0], sizes = [4, 4, 32], strides = [1, 1, 1]} : vector<6x6x32xf32> to vector<4x4x32xf32>
    %158 = tpu.concatenate %149, %150, %151, %152, %153, %154, %155, %156, %157 in 2 : vector<4x4x32xf32>, vector<4x4x32xf32>, vector<4x4x32xf32>, vector<4x4x32xf32>, vector<4x4x32xf32>, vector<4x4x32xf32>, vector<4x4x32xf32>, vector<4x4x32xf32>, vector<4x4x32xf32> -> vector<4x4x288xf32>
    %159 = vector.shape_cast %158 : vector<4x4x288xf32> to vector<16x288xf32>
    %c0_44 = arith.constant 0 : index
    %c0_45 = arith.constant 0 : index
    %160 = vector.load %arg12[%c0_44, %c0_45] : memref<288x32xf32, #tpu.memory_space<vmem>>, vector<288x32xf32>
    %cst_46 = arith.constant dense<0.000000e+00> : vector<16x32xf32>
    %161 = tpu.matmul %159, %160, %cst_46 {dimension_numbers = #tpu.dot_dimension_numbers<[1], [0], [0], [1], [0, 0, 1, 1], [], []>} : vector<16x288xf32>, vector<288x32xf32>, vector<16x32xf32> -> vector<16x32xf32>
    %c0_47 = arith.constant 0 : index
    %c0_48 = arith.constant 0 : index
    %162 = vector.load %arg13[%c0_47, %c0_48] : memref<1x32xf32, #tpu.memory_space<vmem>>, vector<1x32xf32>
    %163 = vector.broadcast %162 : vector<1x32xf32> to vector<16x32xf32>
    %164 = arith.addf %161, %163 : vector<16x32xf32>
    %cst_49 = arith.constant 0.000000e+00 : f32
    %165 = vector.broadcast %cst_49 : f32 to vector<16x32xf32>
    %166 = arith.maximumf %164, %165 : vector<16x32xf32>
    %167 = vector.shape_cast %166 : vector<16x32xf32> to vector<4x4x32xf32>
    %168 = vector.extract_strided_slice %167 {offsets = [0, 0, 0], sizes = [1, 4, 32], strides = [1, 1, 1]} : vector<4x4x32xf32> to vector<1x4x32xf32>
    %169 = vector.extract_strided_slice %167 {offsets = [0, 0, 0], sizes = [1, 4, 32], strides = [1, 1, 1]} : vector<4x4x32xf32> to vector<1x4x32xf32>
    %170 = vector.extract_strided_slice %167 {offsets = [1, 0, 0], sizes = [1, 4, 32], strides = [1, 1, 1]} : vector<4x4x32xf32> to vector<1x4x32xf32>
    %171 = vector.extract_strided_slice %167 {offsets = [1, 0, 0], sizes = [1, 4, 32], strides = [1, 1, 1]} : vector<4x4x32xf32> to vector<1x4x32xf32>
    %172 = vector.extract_strided_slice %167 {offsets = [2, 0, 0], sizes = [1, 4, 32], strides = [1, 1, 1]} : vector<4x4x32xf32> to vector<1x4x32xf32>
    %173 = vector.extract_strided_slice %167 {offsets = [2, 0, 0], sizes = [1, 4, 32], strides = [1, 1, 1]} : vector<4x4x32xf32> to vector<1x4x32xf32>
    %174 = vector.extract_strided_slice %167 {offsets = [3, 0, 0], sizes = [1, 4, 32], strides = [1, 1, 1]} : vector<4x4x32xf32> to vector<1x4x32xf32>
    %175 = vector.extract_strided_slice %167 {offsets = [3, 0, 0], sizes = [1, 4, 32], strides = [1, 1, 1]} : vector<4x4x32xf32> to vector<1x4x32xf32>
    %176 = tpu.concatenate %168, %169, %170, %171, %172, %173, %174, %175 in 0 : vector<1x4x32xf32>, vector<1x4x32xf32>, vector<1x4x32xf32>, vector<1x4x32xf32>, vector<1x4x32xf32>, vector<1x4x32xf32>, vector<1x4x32xf32>, vector<1x4x32xf32> -> vector<8x4x32xf32>
    %177 = vector.extract_strided_slice %176 {offsets = [0, 0, 0], sizes = [8, 1, 32], strides = [1, 1, 1]} : vector<8x4x32xf32> to vector<8x1x32xf32>
    %178 = vector.extract_strided_slice %176 {offsets = [0, 0, 0], sizes = [8, 1, 32], strides = [1, 1, 1]} : vector<8x4x32xf32> to vector<8x1x32xf32>
    %179 = vector.extract_strided_slice %176 {offsets = [0, 1, 0], sizes = [8, 1, 32], strides = [1, 1, 1]} : vector<8x4x32xf32> to vector<8x1x32xf32>
    %180 = vector.extract_strided_slice %176 {offsets = [0, 1, 0], sizes = [8, 1, 32], strides = [1, 1, 1]} : vector<8x4x32xf32> to vector<8x1x32xf32>
    %181 = vector.extract_strided_slice %176 {offsets = [0, 2, 0], sizes = [8, 1, 32], strides = [1, 1, 1]} : vector<8x4x32xf32> to vector<8x1x32xf32>
    %182 = vector.extract_strided_slice %176 {offsets = [0, 2, 0], sizes = [8, 1, 32], strides = [1, 1, 1]} : vector<8x4x32xf32> to vector<8x1x32xf32>
    %183 = vector.extract_strided_slice %176 {offsets = [0, 3, 0], sizes = [8, 1, 32], strides = [1, 1, 1]} : vector<8x4x32xf32> to vector<8x1x32xf32>
    %184 = vector.extract_strided_slice %176 {offsets = [0, 3, 0], sizes = [8, 1, 32], strides = [1, 1, 1]} : vector<8x4x32xf32> to vector<8x1x32xf32>
    %185 = tpu.concatenate %177, %178, %179, %180, %181, %182, %183, %184 in 1 : vector<8x1x32xf32>, vector<8x1x32xf32>, vector<8x1x32xf32>, vector<8x1x32xf32>, vector<8x1x32xf32>, vector<8x1x32xf32>, vector<8x1x32xf32>, vector<8x1x32xf32> -> vector<8x8x32xf32>
    %186 = tpu.concatenate %111, %185 in 2 : vector<8x8x16xf32>, vector<8x8x32xf32> -> vector<8x8x48xf32>
    %cst_50 = arith.constant 0.000000e+00 : f32
    %187 = vector.broadcast %cst_50 : f32 to vector<1x8x48xf32>
    %188 = tpu.concatenate %187, %186, %187 in 0 : vector<1x8x48xf32>, vector<8x8x48xf32>, vector<1x8x48xf32> -> vector<10x8x48xf32>
    %cst_51 = arith.constant 0.000000e+00 : f32
    %189 = vector.broadcast %cst_51 : f32 to vector<10x1x48xf32>
    %190 = tpu.concatenate %189, %188, %189 in 1 : vector<10x1x48xf32>, vector<10x8x48xf32>, vector<10x1x48xf32> -> vector<10x10x48xf32>
    %191 = vector.extract_strided_slice %190 {offsets = [0, 0, 0], sizes = [8, 8, 48], strides = [1, 1, 1]} : vector<10x10x48xf32> to vector<8x8x48xf32>
    %192 = vector.extract_strided_slice %190 {offsets = [0, 1, 0], sizes = [8, 8, 48], strides = [1, 1, 1]} : vector<10x10x48xf32> to vector<8x8x48xf32>
    %193 = vector.extract_strided_slice %190 {offsets = [0, 2, 0], sizes = [8, 8, 48], strides = [1, 1, 1]} : vector<10x10x48xf32> to vector<8x8x48xf32>
    %194 = vector.extract_strided_slice %190 {offsets = [1, 0, 0], sizes = [8, 8, 48], strides = [1, 1, 1]} : vector<10x10x48xf32> to vector<8x8x48xf32>
    %195 = vector.extract_strided_slice %190 {offsets = [1, 1, 0], sizes = [8, 8, 48], strides = [1, 1, 1]} : vector<10x10x48xf32> to vector<8x8x48xf32>
    %196 = vector.extract_strided_slice %190 {offsets = [1, 2, 0], sizes = [8, 8, 48], strides = [1, 1, 1]} : vector<10x10x48xf32> to vector<8x8x48xf32>
    %197 = vector.extract_strided_slice %190 {offsets = [2, 0, 0], sizes = [8, 8, 48], strides = [1, 1, 1]} : vector<10x10x48xf32> to vector<8x8x48xf32>
    %198 = vector.extract_strided_slice %190 {offsets = [2, 1, 0], sizes = [8, 8, 48], strides = [1, 1, 1]} : vector<10x10x48xf32> to vector<8x8x48xf32>
    %199 = vector.extract_strided_slice %190 {offsets = [2, 2, 0], sizes = [8, 8, 48], strides = [1, 1, 1]} : vector<10x10x48xf32> to vector<8x8x48xf32>
    %200 = tpu.concatenate %191, %192, %193, %194, %195, %196, %197, %198, %199 in 2 : vector<8x8x48xf32>, vector<8x8x48xf32>, vector<8x8x48xf32>, vector<8x8x48xf32>, vector<8x8x48xf32>, vector<8x8x48xf32>, vector<8x8x48xf32>, vector<8x8x48xf32>, vector<8x8x48xf32> -> vector<8x8x432xf32>
    %201 = vector.shape_cast %200 : vector<8x8x432xf32> to vector<64x432xf32>
    %c0_52 = arith.constant 0 : index
    %c0_53 = arith.constant 0 : index
    %202 = vector.load %arg14[%c0_52, %c0_53] : memref<432x16xf32, #tpu.memory_space<vmem>>, vector<432x16xf32>
    %cst_54 = arith.constant dense<0.000000e+00> : vector<64x16xf32>
    %203 = tpu.matmul %201, %202, %cst_54 {dimension_numbers = #tpu.dot_dimension_numbers<[1], [0], [0], [1], [0, 0, 1, 1], [], []>} : vector<64x432xf32>, vector<432x16xf32>, vector<64x16xf32> -> vector<64x16xf32>
    %c0_55 = arith.constant 0 : index
    %c0_56 = arith.constant 0 : index
    %204 = vector.load %arg15[%c0_55, %c0_56] : memref<1x16xf32, #tpu.memory_space<vmem>>, vector<1x16xf32>
    %205 = vector.broadcast %204 : vector<1x16xf32> to vector<64x16xf32>
    %206 = arith.addf %203, %205 : vector<64x16xf32>
    %cst_57 = arith.constant 0.000000e+00 : f32
    %207 = vector.broadcast %cst_57 : f32 to vector<64x16xf32>
    %208 = arith.maximumf %206, %207 : vector<64x16xf32>
    %209 = vector.shape_cast %208 : vector<64x16xf32> to vector<8x8x16xf32>
    %cst_58 = arith.constant 0.000000e+00 : f32
    %210 = vector.broadcast %cst_58 : f32 to vector<1x8x16xf32>
    %211 = tpu.concatenate %210, %209, %210 in 0 : vector<1x8x16xf32>, vector<8x8x16xf32>, vector<1x8x16xf32> -> vector<10x8x16xf32>
    %cst_59 = arith.constant 0.000000e+00 : f32
    %212 = vector.broadcast %cst_59 : f32 to vector<10x1x16xf32>
    %213 = tpu.concatenate %212, %211, %212 in 1 : vector<10x1x16xf32>, vector<10x8x16xf32>, vector<10x1x16xf32> -> vector<10x10x16xf32>
    %214 = vector.extract_strided_slice %213 {offsets = [0, 0, 0], sizes = [8, 8, 16], strides = [1, 1, 1]} : vector<10x10x16xf32> to vector<8x8x16xf32>
    %215 = vector.extract_strided_slice %213 {offsets = [0, 1, 0], sizes = [8, 8, 16], strides = [1, 1, 1]} : vector<10x10x16xf32> to vector<8x8x16xf32>
    %216 = vector.extract_strided_slice %213 {offsets = [0, 2, 0], sizes = [8, 8, 16], strides = [1, 1, 1]} : vector<10x10x16xf32> to vector<8x8x16xf32>
    %217 = vector.extract_strided_slice %213 {offsets = [1, 0, 0], sizes = [8, 8, 16], strides = [1, 1, 1]} : vector<10x10x16xf32> to vector<8x8x16xf32>
    %218 = vector.extract_strided_slice %213 {offsets = [1, 1, 0], sizes = [8, 8, 16], strides = [1, 1, 1]} : vector<10x10x16xf32> to vector<8x8x16xf32>
    %219 = vector.extract_strided_slice %213 {offsets = [1, 2, 0], sizes = [8, 8, 16], strides = [1, 1, 1]} : vector<10x10x16xf32> to vector<8x8x16xf32>
    %220 = vector.extract_strided_slice %213 {offsets = [2, 0, 0], sizes = [8, 8, 16], strides = [1, 1, 1]} : vector<10x10x16xf32> to vector<8x8x16xf32>
    %221 = vector.extract_strided_slice %213 {offsets = [2, 1, 0], sizes = [8, 8, 16], strides = [1, 1, 1]} : vector<10x10x16xf32> to vector<8x8x16xf32>
    %222 = vector.extract_strided_slice %213 {offsets = [2, 2, 0], sizes = [8, 8, 16], strides = [1, 1, 1]} : vector<10x10x16xf32> to vector<8x8x16xf32>
    %223 = tpu.concatenate %214, %215, %216, %217, %218, %219, %220, %221, %222 in 2 : vector<8x8x16xf32>, vector<8x8x16xf32>, vector<8x8x16xf32>, vector<8x8x16xf32>, vector<8x8x16xf32>, vector<8x8x16xf32>, vector<8x8x16xf32>, vector<8x8x16xf32>, vector<8x8x16xf32> -> vector<8x8x144xf32>
    %224 = vector.shape_cast %223 : vector<8x8x144xf32> to vector<64x144xf32>
    %c0_60 = arith.constant 0 : index
    %c0_61 = arith.constant 0 : index
    %225 = vector.load %arg16[%c0_60, %c0_61] : memref<144x16xf32, #tpu.memory_space<vmem>>, vector<144x16xf32>
    %cst_62 = arith.constant dense<0.000000e+00> : vector<64x16xf32>
    %226 = tpu.matmul %224, %225, %cst_62 {dimension_numbers = #tpu.dot_dimension_numbers<[1], [0], [0], [1], [0, 0, 1, 1], [], []>} : vector<64x144xf32>, vector<144x16xf32>, vector<64x16xf32> -> vector<64x16xf32>
    %c0_63 = arith.constant 0 : index
    %c0_64 = arith.constant 0 : index
    %227 = vector.load %arg17[%c0_63, %c0_64] : memref<1x16xf32, #tpu.memory_space<vmem>>, vector<1x16xf32>
    %228 = vector.broadcast %227 : vector<1x16xf32> to vector<64x16xf32>
    %229 = arith.addf %226, %228 : vector<64x16xf32>
    %cst_65 = arith.constant 0.000000e+00 : f32
    %230 = vector.broadcast %cst_65 : f32 to vector<64x16xf32>
    %231 = arith.maximumf %229, %230 : vector<64x16xf32>
    %232 = vector.shape_cast %231 : vector<64x16xf32> to vector<8x8x16xf32>
    %233 = vector.extract_strided_slice %232 {offsets = [0, 0, 0], sizes = [1, 8, 16], strides = [1, 1, 1]} : vector<8x8x16xf32> to vector<1x8x16xf32>
    %234 = vector.extract_strided_slice %232 {offsets = [0, 0, 0], sizes = [1, 8, 16], strides = [1, 1, 1]} : vector<8x8x16xf32> to vector<1x8x16xf32>
    %235 = vector.extract_strided_slice %232 {offsets = [1, 0, 0], sizes = [1, 8, 16], strides = [1, 1, 1]} : vector<8x8x16xf32> to vector<1x8x16xf32>
    %236 = vector.extract_strided_slice %232 {offsets = [1, 0, 0], sizes = [1, 8, 16], strides = [1, 1, 1]} : vector<8x8x16xf32> to vector<1x8x16xf32>
    %237 = vector.extract_strided_slice %232 {offsets = [2, 0, 0], sizes = [1, 8, 16], strides = [1, 1, 1]} : vector<8x8x16xf32> to vector<1x8x16xf32>
    %238 = vector.extract_strided_slice %232 {offsets = [2, 0, 0], sizes = [1, 8, 16], strides = [1, 1, 1]} : vector<8x8x16xf32> to vector<1x8x16xf32>
    %239 = vector.extract_strided_slice %232 {offsets = [3, 0, 0], sizes = [1, 8, 16], strides = [1, 1, 1]} : vector<8x8x16xf32> to vector<1x8x16xf32>
    %240 = vector.extract_strided_slice %232 {offsets = [3, 0, 0], sizes = [1, 8, 16], strides = [1, 1, 1]} : vector<8x8x16xf32> to vector<1x8x16xf32>
    %241 = vector.extract_strided_slice %232 {offsets = [4, 0, 0], sizes = [1, 8, 16], strides = [1, 1, 1]} : vector<8x8x16xf32> to vector<1x8x16xf32>
    %242 = vector.extract_strided_slice %232 {offsets = [4, 0, 0], sizes = [1, 8, 16], strides = [1, 1, 1]} : vector<8x8x16xf32> to vector<1x8x16xf32>
    %243 = vector.extract_strided_slice %232 {offsets = [5, 0, 0], sizes = [1, 8, 16], strides = [1, 1, 1]} : vector<8x8x16xf32> to vector<1x8x16xf32>
    %244 = vector.extract_strided_slice %232 {offsets = [5, 0, 0], sizes = [1, 8, 16], strides = [1, 1, 1]} : vector<8x8x16xf32> to vector<1x8x16xf32>
    %245 = vector.extract_strided_slice %232 {offsets = [6, 0, 0], sizes = [1, 8, 16], strides = [1, 1, 1]} : vector<8x8x16xf32> to vector<1x8x16xf32>
    %246 = vector.extract_strided_slice %232 {offsets = [6, 0, 0], sizes = [1, 8, 16], strides = [1, 1, 1]} : vector<8x8x16xf32> to vector<1x8x16xf32>
    %247 = vector.extract_strided_slice %232 {offsets = [7, 0, 0], sizes = [1, 8, 16], strides = [1, 1, 1]} : vector<8x8x16xf32> to vector<1x8x16xf32>
    %248 = vector.extract_strided_slice %232 {offsets = [7, 0, 0], sizes = [1, 8, 16], strides = [1, 1, 1]} : vector<8x8x16xf32> to vector<1x8x16xf32>
    %249 = tpu.concatenate %233, %234, %235, %236, %237, %238, %239, %240, %241, %242, %243, %244, %245, %246, %247, %248 in 0 : vector<1x8x16xf32>, vector<1x8x16xf32>, vector<1x8x16xf32>, vector<1x8x16xf32>, vector<1x8x16xf32>, vector<1x8x16xf32>, vector<1x8x16xf32>, vector<1x8x16xf32>, vector<1x8x16xf32>, vector<1x8x16xf32>, vector<1x8x16xf32>, vector<1x8x16xf32>, vector<1x8x16xf32>, vector<1x8x16xf32>, vector<1x8x16xf32>, vector<1x8x16xf32> -> vector<16x8x16xf32>
    %250 = vector.extract_strided_slice %249 {offsets = [0, 0, 0], sizes = [16, 1, 16], strides = [1, 1, 1]} : vector<16x8x16xf32> to vector<16x1x16xf32>
    %251 = vector.extract_strided_slice %249 {offsets = [0, 0, 0], sizes = [16, 1, 16], strides = [1, 1, 1]} : vector<16x8x16xf32> to vector<16x1x16xf32>
    %252 = vector.extract_strided_slice %249 {offsets = [0, 1, 0], sizes = [16, 1, 16], strides = [1, 1, 1]} : vector<16x8x16xf32> to vector<16x1x16xf32>
    %253 = vector.extract_strided_slice %249 {offsets = [0, 1, 0], sizes = [16, 1, 16], strides = [1, 1, 1]} : vector<16x8x16xf32> to vector<16x1x16xf32>
    %254 = vector.extract_strided_slice %249 {offsets = [0, 2, 0], sizes = [16, 1, 16], strides = [1, 1, 1]} : vector<16x8x16xf32> to vector<16x1x16xf32>
    %255 = vector.extract_strided_slice %249 {offsets = [0, 2, 0], sizes = [16, 1, 16], strides = [1, 1, 1]} : vector<16x8x16xf32> to vector<16x1x16xf32>
    %256 = vector.extract_strided_slice %249 {offsets = [0, 3, 0], sizes = [16, 1, 16], strides = [1, 1, 1]} : vector<16x8x16xf32> to vector<16x1x16xf32>
    %257 = vector.extract_strided_slice %249 {offsets = [0, 3, 0], sizes = [16, 1, 16], strides = [1, 1, 1]} : vector<16x8x16xf32> to vector<16x1x16xf32>
    %258 = vector.extract_strided_slice %249 {offsets = [0, 4, 0], sizes = [16, 1, 16], strides = [1, 1, 1]} : vector<16x8x16xf32> to vector<16x1x16xf32>
    %259 = vector.extract_strided_slice %249 {offsets = [0, 4, 0], sizes = [16, 1, 16], strides = [1, 1, 1]} : vector<16x8x16xf32> to vector<16x1x16xf32>
    %260 = vector.extract_strided_slice %249 {offsets = [0, 5, 0], sizes = [16, 1, 16], strides = [1, 1, 1]} : vector<16x8x16xf32> to vector<16x1x16xf32>
    %261 = vector.extract_strided_slice %249 {offsets = [0, 5, 0], sizes = [16, 1, 16], strides = [1, 1, 1]} : vector<16x8x16xf32> to vector<16x1x16xf32>
    %262 = vector.extract_strided_slice %249 {offsets = [0, 6, 0], sizes = [16, 1, 16], strides = [1, 1, 1]} : vector<16x8x16xf32> to vector<16x1x16xf32>
    %263 = vector.extract_strided_slice %249 {offsets = [0, 6, 0], sizes = [16, 1, 16], strides = [1, 1, 1]} : vector<16x8x16xf32> to vector<16x1x16xf32>
    %264 = vector.extract_strided_slice %249 {offsets = [0, 7, 0], sizes = [16, 1, 16], strides = [1, 1, 1]} : vector<16x8x16xf32> to vector<16x1x16xf32>
    %265 = vector.extract_strided_slice %249 {offsets = [0, 7, 0], sizes = [16, 1, 16], strides = [1, 1, 1]} : vector<16x8x16xf32> to vector<16x1x16xf32>
    %266 = tpu.concatenate %250, %251, %252, %253, %254, %255, %256, %257, %258, %259, %260, %261, %262, %263, %264, %265 in 1 : vector<16x1x16xf32>, vector<16x1x16xf32>, vector<16x1x16xf32>, vector<16x1x16xf32>, vector<16x1x16xf32>, vector<16x1x16xf32>, vector<16x1x16xf32>, vector<16x1x16xf32>, vector<16x1x16xf32>, vector<16x1x16xf32>, vector<16x1x16xf32>, vector<16x1x16xf32>, vector<16x1x16xf32>, vector<16x1x16xf32>, vector<16x1x16xf32>, vector<16x1x16xf32> -> vector<16x16x16xf32>
    %267 = tpu.concatenate %47, %266 in 2 : vector<16x16x8xf32>, vector<16x16x16xf32> -> vector<16x16x24xf32>
    %cst_66 = arith.constant 0.000000e+00 : f32
    %268 = vector.broadcast %cst_66 : f32 to vector<1x16x24xf32>
    %269 = tpu.concatenate %268, %267, %268 in 0 : vector<1x16x24xf32>, vector<16x16x24xf32>, vector<1x16x24xf32> -> vector<18x16x24xf32>
    %cst_67 = arith.constant 0.000000e+00 : f32
    %270 = vector.broadcast %cst_67 : f32 to vector<18x1x24xf32>
    %271 = tpu.concatenate %270, %269, %270 in 1 : vector<18x1x24xf32>, vector<18x16x24xf32>, vector<18x1x24xf32> -> vector<18x18x24xf32>
    %272 = vector.extract_strided_slice %271 {offsets = [0, 0, 0], sizes = [16, 16, 24], strides = [1, 1, 1]} : vector<18x18x24xf32> to vector<16x16x24xf32>
    %273 = vector.extract_strided_slice %271 {offsets = [0, 1, 0], sizes = [16, 16, 24], strides = [1, 1, 1]} : vector<18x18x24xf32> to vector<16x16x24xf32>
    %274 = vector.extract_strided_slice %271 {offsets = [0, 2, 0], sizes = [16, 16, 24], strides = [1, 1, 1]} : vector<18x18x24xf32> to vector<16x16x24xf32>
    %275 = vector.extract_strided_slice %271 {offsets = [1, 0, 0], sizes = [16, 16, 24], strides = [1, 1, 1]} : vector<18x18x24xf32> to vector<16x16x24xf32>
    %276 = vector.extract_strided_slice %271 {offsets = [1, 1, 0], sizes = [16, 16, 24], strides = [1, 1, 1]} : vector<18x18x24xf32> to vector<16x16x24xf32>
    %277 = vector.extract_strided_slice %271 {offsets = [1, 2, 0], sizes = [16, 16, 24], strides = [1, 1, 1]} : vector<18x18x24xf32> to vector<16x16x24xf32>
    %278 = vector.extract_strided_slice %271 {offsets = [2, 0, 0], sizes = [16, 16, 24], strides = [1, 1, 1]} : vector<18x18x24xf32> to vector<16x16x24xf32>
    %279 = vector.extract_strided_slice %271 {offsets = [2, 1, 0], sizes = [16, 16, 24], strides = [1, 1, 1]} : vector<18x18x24xf32> to vector<16x16x24xf32>
    %280 = vector.extract_strided_slice %271 {offsets = [2, 2, 0], sizes = [16, 16, 24], strides = [1, 1, 1]} : vector<18x18x24xf32> to vector<16x16x24xf32>
    %281 = tpu.concatenate %272, %273, %274, %275, %276, %277, %278, %279, %280 in 2 : vector<16x16x24xf32>, vector<16x16x24xf32>, vector<16x16x24xf32>, vector<16x16x24xf32>, vector<16x16x24xf32>, vector<16x16x24xf32>, vector<16x16x24xf32>, vector<16x16x24xf32>, vector<16x16x24xf32> -> vector<16x16x216xf32>
    %282 = vector.shape_cast %281 : vector<16x16x216xf32> to vector<256x216xf32>
    %c0_68 = arith.constant 0 : index
    %c0_69 = arith.constant 0 : index
    %283 = vector.load %arg18[%c0_68, %c0_69] : memref<216x8xf32, #tpu.memory_space<vmem>>, vector<216x8xf32>
    %cst_70 = arith.constant dense<0.000000e+00> : vector<256x8xf32>
    %284 = tpu.matmul %282, %283, %cst_70 {dimension_numbers = #tpu.dot_dimension_numbers<[1], [0], [0], [1], [0, 0, 1, 1], [], []>} : vector<256x216xf32>, vector<216x8xf32>, vector<256x8xf32> -> vector<256x8xf32>
    %c0_71 = arith.constant 0 : index
    %c0_72 = arith.constant 0 : index
    %285 = vector.load %arg19[%c0_71, %c0_72] : memref<1x8xf32, #tpu.memory_space<vmem>>, vector<1x8xf32>
    %286 = vector.broadcast %285 : vector<1x8xf32> to vector<256x8xf32>
    %287 = arith.addf %284, %286 : vector<256x8xf32>
    %cst_73 = arith.constant 0.000000e+00 : f32
    %288 = vector.broadcast %cst_73 : f32 to vector<256x8xf32>
    %289 = arith.maximumf %287, %288 : vector<256x8xf32>
    %290 = vector.shape_cast %289 : vector<256x8xf32> to vector<16x16x8xf32>
    %cst_74 = arith.constant 0.000000e+00 : f32
    %291 = vector.broadcast %cst_74 : f32 to vector<1x16x8xf32>
    %292 = tpu.concatenate %291, %290, %291 in 0 : vector<1x16x8xf32>, vector<16x16x8xf32>, vector<1x16x8xf32> -> vector<18x16x8xf32>
    %cst_75 = arith.constant 0.000000e+00 : f32
    %293 = vector.broadcast %cst_75 : f32 to vector<18x1x8xf32>
    %294 = tpu.concatenate %293, %292, %293 in 1 : vector<18x1x8xf32>, vector<18x16x8xf32>, vector<18x1x8xf32> -> vector<18x18x8xf32>
    %295 = vector.extract_strided_slice %294 {offsets = [0, 0, 0], sizes = [16, 16, 8], strides = [1, 1, 1]} : vector<18x18x8xf32> to vector<16x16x8xf32>
    %296 = vector.extract_strided_slice %294 {offsets = [0, 1, 0], sizes = [16, 16, 8], strides = [1, 1, 1]} : vector<18x18x8xf32> to vector<16x16x8xf32>
    %297 = vector.extract_strided_slice %294 {offsets = [0, 2, 0], sizes = [16, 16, 8], strides = [1, 1, 1]} : vector<18x18x8xf32> to vector<16x16x8xf32>
    %298 = vector.extract_strided_slice %294 {offsets = [1, 0, 0], sizes = [16, 16, 8], strides = [1, 1, 1]} : vector<18x18x8xf32> to vector<16x16x8xf32>
    %299 = vector.extract_strided_slice %294 {offsets = [1, 1, 0], sizes = [16, 16, 8], strides = [1, 1, 1]} : vector<18x18x8xf32> to vector<16x16x8xf32>
    %300 = vector.extract_strided_slice %294 {offsets = [1, 2, 0], sizes = [16, 16, 8], strides = [1, 1, 1]} : vector<18x18x8xf32> to vector<16x16x8xf32>
    %301 = vector.extract_strided_slice %294 {offsets = [2, 0, 0], sizes = [16, 16, 8], strides = [1, 1, 1]} : vector<18x18x8xf32> to vector<16x16x8xf32>
    %302 = vector.extract_strided_slice %294 {offsets = [2, 1, 0], sizes = [16, 16, 8], strides = [1, 1, 1]} : vector<18x18x8xf32> to vector<16x16x8xf32>
    %303 = vector.extract_strided_slice %294 {offsets = [2, 2, 0], sizes = [16, 16, 8], strides = [1, 1, 1]} : vector<18x18x8xf32> to vector<16x16x8xf32>
    %304 = tpu.concatenate %295, %296, %297, %298, %299, %300, %301, %302, %303 in 2 : vector<16x16x8xf32>, vector<16x16x8xf32>, vector<16x16x8xf32>, vector<16x16x8xf32>, vector<16x16x8xf32>, vector<16x16x8xf32>, vector<16x16x8xf32>, vector<16x16x8xf32>, vector<16x16x8xf32> -> vector<16x16x72xf32>
    %305 = vector.shape_cast %304 : vector<16x16x72xf32> to vector<256x72xf32>
    %c0_76 = arith.constant 0 : index
    %c0_77 = arith.constant 0 : index
    %306 = vector.load %arg20[%c0_76, %c0_77] : memref<72x8xf32, #tpu.memory_space<vmem>>, vector<72x8xf32>
    %cst_78 = arith.constant dense<0.000000e+00> : vector<256x8xf32>
    %307 = tpu.matmul %305, %306, %cst_78 {dimension_numbers = #tpu.dot_dimension_numbers<[1], [0], [0], [1], [0, 0, 1, 1], [], []>} : vector<256x72xf32>, vector<72x8xf32>, vector<256x8xf32> -> vector<256x8xf32>
    %c0_79 = arith.constant 0 : index
    %c0_80 = arith.constant 0 : index
    %308 = vector.load %arg21[%c0_79, %c0_80] : memref<1x8xf32, #tpu.memory_space<vmem>>, vector<1x8xf32>
    %309 = vector.broadcast %308 : vector<1x8xf32> to vector<256x8xf32>
    %310 = arith.addf %307, %309 : vector<256x8xf32>
    %cst_81 = arith.constant 0.000000e+00 : f32
    %311 = vector.broadcast %cst_81 : f32 to vector<256x8xf32>
    %312 = arith.maximumf %310, %311 : vector<256x8xf32>
    %313 = vector.shape_cast %312 : vector<256x8xf32> to vector<16x16x8xf32>
    %314 = vector.shape_cast %313 : vector<16x16x8xf32> to vector<256x8xf32>
    %c0_82 = arith.constant 0 : index
    %c0_83 = arith.constant 0 : index
    %315 = vector.load %arg22[%c0_82, %c0_83] : memref<8x3xf32, #tpu.memory_space<vmem>>, vector<8x3xf32>
    %cst_84 = arith.constant dense<0.000000e+00> : vector<256x3xf32>
    %316 = tpu.matmul %314, %315, %cst_84 {dimension_numbers = #tpu.dot_dimension_numbers<[1], [0], [0], [1], [0, 0, 1, 1], [], []>} : vector<256x8xf32>, vector<8x3xf32>, vector<256x3xf32> -> vector<256x3xf32>
    %c0_85 = arith.constant 0 : index
    %c0_86 = arith.constant 0 : index
    %317 = vector.load %arg23[%c0_85, %c0_86] : memref<1x3xf32, #tpu.memory_space<vmem>>, vector<1x3xf32>
    %318 = vector.broadcast %317 : vector<1x3xf32> to vector<256x3xf32>
    %319 = arith.addf %316, %318 : vector<256x3xf32>
    %c0_87 = arith.constant 0 : index
    %c0_88 = arith.constant 0 : index
    %c0_89 = arith.constant 0 : index
    %320 = vector.load %arg24[%c0_87, %c0_88, %c0_89] : memref<1x256x3xf32, #tpu.memory_space<vmem>>, vector<1x256x3xf32>
    %321 = vector.shape_cast %320 : vector<1x256x3xf32> to vector<256x3xf32>
    %322 = vector.shape_cast %319 : vector<256x3xf32> to vector<1x256x3xf32>
    tpu.vector_store %arg24[%c0_87, %c0_88, %c0_89], %322 {strides = array<i32>} : memref<1x256x3xf32, #tpu.memory_space<vmem>>, vector<1x256x3xf32>,
    return
  }
  func.func @transform_0(%arg0: i32) -> (i32, i32, i32, i32) {
    %c0_i32 = arith.constant 0 : i32
    %c0_i32_0 = arith.constant 0 : i32
    %c0_i32_1 = arith.constant 0 : i32
    %c0_i32_2 = arith.constant 0 : i32
    return %arg0, %c0_i32, %c0_i32_0, %c0_i32_1 : i32, i32, i32, i32
  }
  func.func @transform_1(%arg0: i32) -> (i32, i32) {
    %c0_i32 = arith.constant 0 : i32
    %c0_i32_0 = arith.constant 0 : i32
    %c0_i32_1 = arith.constant 0 : i32
    return %c0_i32, %c0_i32_0 : i32, i32
  }
  func.func @transform_2(%arg0: i32) -> (i32, i32) {
    %c0_i32 = arith.constant 0 : i32
    %c0_i32_0 = arith.constant 0 : i32
    %c0_i32_1 = arith.constant 0 : i32
    return %c0_i32, %c0_i32_0 : i32, i32
  }
  func.func @transform_3(%arg0: i32) -> (i32, i32) {
    %c0_i32 = arith.constant 0 : i32
    %c0_i32_0 = arith.constant 0 : i32
    %c0_i32_1 = arith.constant 0 : i32
    return %c0_i32, %c0_i32_0 : i32, i32
  }
  func.func @transform_4(%arg0: i32) -> (i32, i32) {
    %c0_i32 = arith.constant 0 : i32
    %c0_i32_0 = arith.constant 0 : i32
    %c0_i32_1 = arith.constant 0 : i32
    return %c0_i32, %c0_i32_0 : i32, i32
  }
  func.func @transform_5(%arg0: i32) -> (i32, i32) {
    %c0_i32 = arith.constant 0 : i32
    %c0_i32_0 = arith.constant 0 : i32
    %c0_i32_1 = arith.constant 0 : i32
    return %c0_i32, %c0_i32_0 : i32, i32
  }
  func.func @transform_6(%arg0: i32) -> (i32, i32) {
    %c0_i32 = arith.constant 0 : i32
    %c0_i32_0 = arith.constant 0 : i32
    %c0_i32_1 = arith.constant 0 : i32
    return %c0_i32, %c0_i32_0 : i32, i32
  }
  func.func @transform_7(%arg0: i32) -> (i32, i32) {
    %c0_i32 = arith.constant 0 : i32
    %c0_i32_0 = arith.constant 0 : i32
    %c0_i32_1 = arith.constant 0 : i32
    return %c0_i32, %c0_i32_0 : i32, i32
  }
  func.func @transform_8(%arg0: i32) -> (i32, i32) {
    %c0_i32 = arith.constant 0 : i32
    %c0_i32_0 = arith.constant 0 : i32
    %c0_i32_1 = arith.constant 0 : i32
    return %c0_i32, %c0_i32_0 : i32, i32
  }
  func.func @transform_9(%arg0: i32) -> (i32, i32) {
    %c0_i32 = arith.constant 0 : i32
    %c0_i32_0 = arith.constant 0 : i32
    %c0_i32_1 = arith.constant 0 : i32
    return %c0_i32, %c0_i32_0 : i32, i32
  }
  func.func @transform_10(%arg0: i32) -> (i32, i32) {
    %c0_i32 = arith.constant 0 : i32
    %c0_i32_0 = arith.constant 0 : i32
    %c0_i32_1 = arith.constant 0 : i32
    return %c0_i32, %c0_i32_0 : i32, i32
  }
  func.func @transform_11(%arg0: i32) -> (i32, i32) {
    %c0_i32 = arith.constant 0 : i32
    %c0_i32_0 = arith.constant 0 : i32
    %c0_i32_1 = arith.constant 0 : i32
    return %c0_i32, %c0_i32_0 : i32, i32
  }
  func.func @transform_12(%arg0: i32) -> (i32, i32) {
    %c0_i32 = arith.constant 0 : i32
    %c0_i32_0 = arith.constant 0 : i32
    %c0_i32_1 = arith.constant 0 : i32
    return %c0_i32, %c0_i32_0 : i32, i32
  }
  func.func @transform_13(%arg0: i32) -> (i32, i32) {
    %c0_i32 = arith.constant 0 : i32
    %c0_i32_0 = arith.constant 0 : i32
    %c0_i32_1 = arith.constant 0 : i32
    return %c0_i32, %c0_i32_0 : i32, i32
  }
  func.func @transform_14(%arg0: i32) -> (i32, i32) {
    %c0_i32 = arith.constant 0 : i32
    %c0_i32_0 = arith.constant 0 : i32
    %c0_i32_1 = arith.constant 0 : i32
    return %c0_i32, %c0_i32_0 : i32, i32
  }
  func.func @transform_15(%arg0: i32) -> (i32, i32) {
    %c0_i32 = arith.constant 0 : i32
    %c0_i32_0 = arith.constant 0 : i32
    %c0_i32_1 = arith.constant 0 : i32
    return %c0_i32, %c0_i32_0 : i32, i32
  }
  func.func @transform_16(%arg0: i32) -> (i32, i32) {
    %c0_i32 = arith.constant 0 : i32
    %c0_i32_0 = arith.constant 0 : i32
    %c0_i32_1 = arith.constant 0 : i32
    return %c0_i32, %c0_i32_0 : i32, i32
  }
  func.func @transform_17(%arg0: i32) -> (i32, i32) {
    %c0_i32 = arith.constant 0 : i32
    %c0_i32_0 = arith.constant 0 : i32
    %c0_i32_1 = arith.constant 0 : i32
    return %c0_i32, %c0_i32_0 : i32, i32
  }
  func.func @transform_18(%arg0: i32) -> (i32, i32) {
    %c0_i32 = arith.constant 0 : i32
    %c0_i32_0 = arith.constant 0 : i32
    %c0_i32_1 = arith.constant 0 : i32
    return %c0_i32, %c0_i32_0 : i32, i32
  }
  func.func @transform_19(%arg0: i32) -> (i32, i32) {
    %c0_i32 = arith.constant 0 : i32
    %c0_i32_0 = arith.constant 0 : i32
    %c0_i32_1 = arith.constant 0 : i32
    return %c0_i32, %c0_i32_0 : i32, i32
  }
  func.func @transform_20(%arg0: i32) -> (i32, i32) {
    %c0_i32 = arith.constant 0 : i32
    %c0_i32_0 = arith.constant 0 : i32
    %c0_i32_1 = arith.constant 0 : i32
    return %c0_i32, %c0_i32_0 : i32, i32
  }
  func.func @transform_21(%arg0: i32) -> (i32, i32) {
    %c0_i32 = arith.constant 0 : i32
    %c0_i32_0 = arith.constant 0 : i32
    %c0_i32_1 = arith.constant 0 : i32
    return %c0_i32, %c0_i32_0 : i32, i32
  }
  func.func @transform_22(%arg0: i32) -> (i32, i32) {
    %c0_i32 = arith.constant 0 : i32
    %c0_i32_0 = arith.constant 0 : i32
    %c0_i32_1 = arith.constant 0 : i32
    return %c0_i32, %c0_i32_0 : i32, i32
  }
  func.func @transform_23(%arg0: i32) -> (i32, i32, i32) {
    %c0_i32 = arith.constant 0 : i32
    %c0_i32_0 = arith.constant 0 : i32
    %c0_i32_1 = arith.constant 0 : i32
    return %arg0, %c0_i32, %c0_i32_0 : i32, i32, i32
  }
}

</mosaic_0001>

<llo_original>
// kernel: unet_forward.1
$region0: #{unet_forward.1}
  #allocation0 [shape = 'u32[]', space=smem, size = 0x4, offset = 0x4, fixed_abs, tag = 'smem constant byte address 0x4 - core index']
  #allocation1 [shape = 'u32[72,128]{1,0:T(1,128)}', space=vmem, size = 0x9000, scoped, tag = 'internal scratch']
  %s0 = inlined_call_operand.vmem [shape: f32[2,16,16,4], index: 0, kind: input, shape index: {}]
  %s1 = inlined_call_operand.vmem [shape: f32[36,8], index: 1, kind: input, shape index: {}]
  %s2 = inlined_call_operand.vmem [shape: f32[1,8], index: 2, kind: input, shape index: {}]
  %s3 = inlined_call_operand.vmem [shape: f32[72,8], index: 3, kind: input, shape index: {}]
  %s4 = inlined_call_operand.vmem [shape: f32[1,8], index: 4, kind: input, shape index: {}]
  %s5 = inlined_call_operand.vmem [shape: f32[72,16], index: 5, kind: input, shape index: {}]
  %s6 = inlined_call_operand.vmem [shape: f32[1,16], index: 6, kind: input, shape index: {}]
  %s7 = inlined_call_operand.vmem [shape: f32[144,16], index: 7, kind: input, shape index: {}]
  %s8 = inlined_call_operand.vmem [shape: f32[1,16], index: 8, kind: input, shape index: {}]
  %s9 = inlined_call_operand.vmem [shape: f32[144,32], index: 9, kind: input, shape index: {}]
  %s10 = inlined_call_operand.vmem [shape: f32[1,32], index: 10, kind: input, shape index: {}]
  %s11 = inlined_call_operand.vmem [shape: f32[288,32], index: 11, kind: input, shape index: {}]
  %s12 = inlined_call_operand.vmem [shape: f32[1,32], index: 12, kind: input, shape index: {}]
  %s13 = inlined_call_operand.vmem [shape: f32[432,16], index: 13, kind: input, shape index: {}]
  %s14 = inlined_call_operand.vmem [shape: f32[1,16], index: 14, kind: input, shape index: {}]
  %s15 = inlined_call_operand.vmem [shape: f32[144,16], index: 15, kind: input, shape index: {}]
  %s16 = inlined_call_operand.vmem [shape: f32[1,16], index: 16, kind: input, shape index: {}]
  %s17 = inlined_call_operand.vmem [shape: f32[216,8], index: 17, kind: input, shape index: {}]
  %s18 = inlined_call_operand.vmem [shape: f32[1,8], index: 18, kind: input, shape index: {}]
  %s19 = inlined_call_operand.vmem [shape: f32[72,8], index: 19, kind: input, shape index: {}]
  %s20 = inlined_call_operand.vmem [shape: f32[1,8], index: 20, kind: input, shape index: {}]
  %s21 = inlined_call_operand.vmem [shape: f32[8,3], index: 21, kind: input, shape index: {}]
  %s22 = inlined_call_operand.vmem [shape: f32[1,3], index: 22, kind: input, shape index: {}]
  %s23 = inlined_call_operand.vmem [shape: f32[2,256,3], index: 23, kind: output, shape index: {}]
  %s24 = sld [smem:[#allocation0]]
  $region125: #{unet_forward.1} parent=0
    _
  %s26 = ssub.s32 1, %s24
  %s27 = scalar_select 0, %s26, %s24
  loop: start=0, step=1, limit=4
  $region2: #{unet_forward.1} parent=0 // loop_pre_header
    _
  $region3: #{unet_forward.1} parent=0 // loop_header
    %s29 = sphi 0, %s33
    %p30 = scmp.ge.s32.totalorder %s29, 4
    %s39 = sphi 0, %s41
    %s42 = sphi 0, %s39
    %s43 = sphi 0, %s42
    %s59 = sphi 0, %s43
    %s63 = sphi 0, %s63
    %s65 = sphi 0, %s63
    %s66 = sphi 0, %s65
    %s80 = sphi 0, %s66
    %s84 = sphi 0, %s84
    %s86 = sphi 0, %s84
    %s87 = sphi 0, %s86
    %s101 = sphi 0, %s87
    %s105 = sphi 0, %s105
    %s107 = sphi 0, %s105
    %s108 = sphi 0, %s107
    %s122 = sphi 0, %s108
    %s126 = sphi 0, %s126
    %s128 = sphi 0, %s126
    %s129 = sphi 0, %s128
    %s143 = sphi 0, %s129
    %s147 = sphi 0, %s147
    %s149 = sphi 0, %s147
    %s150 = sphi 0, %s149
    %s164 = sphi 0, %s150
    %s168 = sphi 0, %s168
    %s170 = sphi 0, %s168
    %s171 = sphi 0, %s170
    %s185 = sphi 0, %s171
    %s189 = sphi 0, %s189
    %s191 = sphi 0, %s189
    %s192 = sphi 0, %s191
    %s206 = sphi 0, %s192
    %s210 = sphi 0, %s210
    %s212 = sphi 0, %s210
    %s213 = sphi 0, %s212
    %s227 = sphi 0, %s213
    %s231 = sphi 0, %s231
    %s233 = sphi 0, %s231
    %s234 = sphi 0, %s233
    %s248 = sphi 0, %s234
    %s252 = sphi 0, %s252
    %s254 = sphi 0, %s252
    %s255 = sphi 0, %s254
    %s269 = sphi 0, %s255
    %s273 = sphi 0, %s273
    %s275 = sphi 0, %s273
    %s276 = sphi 0, %s275
    %s290 = sphi 0, %s276
    %s294 = sphi 0, %s294
    %s296 = sphi 0, %s294
    %s297 = sphi 0, %s296
    %s311 = sphi 0, %s297
    %s315 = sphi 0, %s315
    %s317 = sphi 0, %s315
    %s318 = sphi 0, %s317
    %s332 = sphi 0, %s318
    %s336 = sphi 0, %s336
    %s338 = sphi 0, %s336
    %s339 = sphi 0, %s338
    %s353 = sphi 0, %s339
    %s357 = sphi 0, %s357
    %s359 = sphi 0, %s357
    %s360 = sphi 0, %s359
    %s374 = sphi 0, %s360
    %s378 = sphi 0, %s378
    %s380 = sphi 0, %s378
    %s381 = sphi 0, %s380
    %s395 = sphi 0, %s381
    %s399 = sphi 0, %s399
    %s401 = sphi 0, %s399
    %s402 = sphi 0, %s401
    %s416 = sphi 0, %s402
    %s420 = sphi 0, %s420
    %s422 = sphi 0, %s420
    %s423 = sphi 0, %s422
    %s437 = sphi 0, %s423
    %s441 = sphi 0, %s441
    %s443 = sphi 0, %s441
    %s444 = sphi 0, %s443
    %s458 = sphi 0, %s444
    %s462 = sphi 0, %s462
    %s464 = sphi 0, %s462
    %s465 = sphi 0, %s464
    %s479 = sphi 0, %s465
    %s483 = sphi 0, %s483
    %s485 = sphi 0, %s483
    %s486 = sphi 0, %s485
    %s500 = sphi 0, %s486
    %s504 = sphi 0, %s504
    %s506 = sphi 0, %s504
    %s507 = sphi 0, %s506
    %s521 = sphi 0, %s507
    %s527 = sphi 0, %s529
    %s530 = sphi 0, %s527
    %s531 = sphi 0, %s530
    %s547 = sphi 0, %s531
  $region4: #{unet_forward.1} parent=0 // loop_header_branch
    %32 = sbr.rel (%p30) target = $region8
  $region5: #{unet_forward.1} parent=0 // loop_body
    %s34 = ssub.s32 %s29, 1
    %s35 = ssub.s32 %s29, 2
    %s36 = sadd.s32 %s29, 1
    %s37 = ssub.s32 %s29, %s36
    %p38 = scmp.eq.s32.totalorder %s37, 0
    %s40 = sadd.s32 %s39, 1
    %s41 = scalar_select %p38, %s39, %s40
    %p44 = pneg %p38
    %p45 = scmp.eq.s32.totalorder %s29, 1
    %p46 = por %p44, %p45
    %p47 = scmp.ne.s32.totalorder %s39, %s42
    %p48 = scmp.eq.s32.totalorder %s29, 0
    %p49 = por %p47, %p48
    %p50 = scmp.ne.s32.totalorder %s39, %s42
    %p51 = scmp.eq.s32.totalorder %s34, 1
    %p52 = por %p50, %p51
    %p53 = scmp.ne.s32.totalorder %s42, %s43
    %p54 = scmp.eq.s32.totalorder %s34, 0
    %p55 = por %p53, %p54
    %p56 = scmp.ne.s32.totalorder %s42, %s43
    %p57 = scmp.eq.s32.totalorder %s35, 1
    %p58 = por %p56, %p57
    %p60 = scmp.ne.s32.totalorder %s43, %s59
    %p61 = scmp.eq.s32.totalorder %s35, 0
    %p62 = por %p60, %p61
    %s64 = sadd.s32 %s63, 1
    %p67 = scmp.eq.s32.totalorder %s29, 1
    %p68 = scmp.ne.s32.totalorder %s63, %s65
    %p69 = scmp.eq.s32.totalorder %s29, 0
    %p70 = por %p68, %p69
    %p71 = scmp.ne.s32.totalorder %s63, %s65
    %p72 = scmp.eq.s32.totalorder %s34, 1
    %p73 = por %p71, %p72
    %p74 = scmp.ne.s32.totalorder %s65, %s66
    %p75 = scmp.eq.s32.totalorder %s34, 0
    %p76 = por %p74, %p75
    %p77 = scmp.ne.s32.totalorder %s65, %s66
    %p78 = scmp.eq.s32.totalorder %s35, 1
    %p79 = por %p77, %p78
    %p81 = scmp.ne.s32.totalorder %s66, %s80
    %p82 = scmp.eq.s32.totalorder %s35, 0
    %p83 = por %p81, %p82
    %s85 = sadd.s32 %s84, 1
    %p88 = scmp.eq.s32.totalorder %s29, 1
    %p89 = scmp.ne.s32.totalorder %s84, %s86
    %p90 = scmp.eq.s32.totalorder %s29, 0
    %p91 = por %p89, %p90
    %p92 = scmp.ne.s32.totalorder %s84, %s86
    %p93 = scmp.eq.s32.totalorder %s34, 1
    %p94 = por %p92, %p93
    %p95 = scmp.ne.s32.totalorder %s86, %s87
    %p96 = scmp.eq.s32.totalorder %s34, 0
    %p97 = por %p95, %p96
    %p98 = scmp.ne.s32.totalorder %s86, %s87
    %p99 = scmp.eq.s32.totalorder %s35, 1
    %p100 = por %p98, %p99
    %p102 = scmp.ne.s32.totalorder %s87, %s101
    %p103 = scmp.eq.s32.totalorder %s35, 0
    %p104 = por %p102, %p103
    %s106 = sadd.s32 %s105, 1
    %p109 = scmp.eq.s32.totalorder %s29, 1
    %p110 = scmp.ne.s32.totalorder %s105, %s107
    %p111 = scmp.eq.s32.totalorder %s29, 0
    %p112 = por %p110, %p111
    %p113 = scmp.ne.s32.totalorder %s105, %s107
    %p114 = scmp.eq.s32.totalorder %s34, 1
    %p115 = por %p113, %p114
    %p116 = scmp.ne.s32.totalorder %s107, %s108
    %p117 = scmp.eq.s32.totalorder %s34, 0
    %p118 = por %p116, %p117
    %p119 = scmp.ne.s32.totalorder %s107, %s108
    %p120 = scmp.eq.s32.totalorder %s35, 1
    %p121 = por %p119, %p120
    %p123 = scmp.ne.s32.totalorder %s108, %s122
    %p124 = scmp.eq.s32.totalorder %s35, 0
    %p125 = por %p123, %p124
    %s127 = sadd.s32 %s126, 1
    %p130 = scmp.eq.s32.totalorder %s29, 1
    %p131 = scmp.ne.s32.totalorder %s126, %s128
    %p132 = scmp.eq.s32.totalorder %s29, 0
    %p133 = por %p131, %p132
    %p134 = scmp.ne.s32.totalorder %s126, %s128
    %p135 = scmp.eq.s32.totalorder %s34, 1
    %p136 = por %p134, %p135
    %p137 = scmp.ne.s32.totalorder %s128, %s129
    %p138 = scmp.eq.s32.totalorder %s34, 0
    %p139 = por %p137, %p138
    %p140 = scmp.ne.s32.totalorder %s128, %s129
    %p141 = scmp.eq.s32.totalorder %s35, 1
    %p142 = por %p140, %p141
    %p144 = scmp.ne.s32.totalorder %s129, %s143
    %p145 = scmp.eq.s32.totalorder %s35, 0
    %p146 = por %p144, %p145
    %s148 = sadd.s32 %s147, 1
    %p151 = scmp.eq.s32.totalorder %s29, 1
    %p152 = scmp.ne.s32.totalorder %s147, %s149
    %p153 = scmp.eq.s32.totalorder %s29, 0
    %p154 = por %p152, %p153
    %p155 = scmp.ne.s32.totalorder %s147, %s149
    %p156 = scmp.eq.s32.totalorder %s34, 1
    %p157 = por %p155, %p156
    %p158 = scmp.ne.s32.totalorder %s149, %s150
    %p159 = scmp.eq.s32.totalorder %s34, 0
    %p160 = por %p158, %p159
    %p161 = scmp.ne.s32.totalorder %s149, %s150
    %p162 = scmp.eq.s32.totalorder %s35, 1
    %p163 = por %p161, %p162
    %p165 = scmp.ne.s32.totalorder %s150, %s164
    %p166 = scmp.eq.s32.totalorder %s35, 0
    %p167 = por %p165, %p166
    %s169 = sadd.s32 %s168, 1
    %p172 = scmp.eq.s32.totalorder %s29, 1
    %p173 = scmp.ne.s32.totalorder %s168, %s170
    %p174 = scmp.eq.s32.totalorder %s29, 0
    %p175 = por %p173, %p174
    %p176 = scmp.ne.s32.totalorder %s168, %s170
    %p177 = scmp.eq.s32.totalorder %s34, 1
    %p178 = por %p176, %p177
    %p179 = scmp.ne.s32.totalorder %s170, %s171
    %p180 = scmp.eq.s32.totalorder %s34, 0
    %p181 = por %p179, %p180
    %p182 = scmp.ne.s32.totalorder %s170, %s171
    %p183 = scmp.eq.s32.totalorder %s35, 1
    %p184 = por %p182, %p183
    %p186 = scmp.ne.s32.totalorder %s171, %s185
    %p187 = scmp.eq.s32.totalorder %s35, 0
    %p188 = por %p186, %p187
    %s190 = sadd.s32 %s189, 1
    %p193 = scmp.eq.s32.totalorder %s29, 1
    %p194 = scmp.ne.s32.totalorder %s189, %s191
    %p195 = scmp.eq.s32.totalorder %s29, 0
    %p196 = por %p194, %p195
    %p197 = scmp.ne.s32.totalorder %s189, %s191
    %p198 = scmp.eq.s32.totalorder %s34, 1
    %p199 = por %p197, %p198
    %p200 = scmp.ne.s32.totalorder %s191, %s192
    %p201 = scmp.eq.s32.totalorder %s34, 0
    %p202 = por %p200, %p201
    %p203 = scmp.ne.s32.totalorder %s191, %s192
    %p204 = scmp.eq.s32.totalorder %s35, 1
    %p205 = por %p203, %p204
    %p207 = scmp.ne.s32.totalorder %s192, %s206
    %p208 = scmp.eq.s32.totalorder %s35, 0
    %p209 = por %p207, %p208
    %s211 = sadd.s32 %s210, 1
    %p214 = scmp.eq.s32.totalorder %s29, 1
    %p215 = scmp.ne.s32.totalorder %s210, %s212
    %p216 = scmp.eq.s32.totalorder %s29, 0
    %p217 = por %p215, %p216
    %p218 = scmp.ne.s32.totalorder %s210, %s212
    %p219 = scmp.eq.s32.totalorder %s34, 1
    %p220 = por %p218, %p219
    %p221 = scmp.ne.s32.totalorder %s212, %s213
    %p222 = scmp.eq.s32.totalorder %s34, 0
    %p223 = por %p221, %p222
    %p224 = scmp.ne.s32.totalorder %s212, %s213
    %p225 = scmp.eq.s32.totalorder %s35, 1
    %p226 = por %p224, %p225
    %p228 = scmp.ne.s32.totalorder %s213, %s227
    %p229 = scmp.eq.s32.totalorder %s35, 0
    %p230 = por %p228, %p229
    %s232 = sadd.s32 %s231, 1
    %p235 = scmp.eq.s32.totalorder %s29, 1
    %p236 = scmp.ne.s32.totalorder %s231, %s233
    %p237 = scmp.eq.s32.totalorder %s29, 0
    %p238 = por %p236, %p237
    %p239 = scmp.ne.s32.totalorder %s231, %s233
    %p240 = scmp.eq.s32.totalorder %s34, 1
    %p241 = por %p239, %p240
    %p242 = scmp.ne.s32.totalorder %s233, %s234
    %p243 = scmp.eq.s32.totalorder %s34, 0
    %p244 = por %p242, %p243
    %p245 = scmp.ne.s32.totalorder %s233, %s234
    %p246 = scmp.eq.s32.totalorder %s35, 1
    %p247 = por %p245, %p246
    %p249 = scmp.ne.s32.totalorder %s234, %s248
    %p250 = scmp.eq.s32.totalorder %s35, 0
    %p251 = por %p249, %p250
    %s253 = sadd.s32 %s252, 1
    %p256 = scmp.eq.s32.totalorder %s29, 1
    %p257 = scmp.ne.s32.totalorder %s252, %s254
    %p258 = scmp.eq.s32.totalorder %s29, 0
    %p259 = por %p257, %p258
    %p260 = scmp.ne.s32.totalorder %s252, %s254
    %p261 = scmp.eq.s32.totalorder %s34, 1
    %p262 = por %p260, %p261
    %p263 = scmp.ne.s32.totalorder %s254, %s255
    %p264 = scmp.eq.s32.totalorder %s34, 0
    %p265 = por %p263, %p264
    %p266 = scmp.ne.s32.totalorder %s254, %s255
    %p267 = scmp.eq.s32.totalorder %s35, 1
    %p268 = por %p266, %p267
    %p270 = scmp.ne.s32.totalorder %s255, %s269
    %p271 = scmp.eq.s32.totalorder %s35, 0
    %p272 = por %p270, %p271
    %s274 = sadd.s32 %s273, 1
    %p277 = scmp.eq.s32.totalorder %s29, 1
    %p278 = scmp.ne.s32.totalorder %s273, %s275
    %p279 = scmp.eq.s32.totalorder %s29, 0
    %p280 = por %p278, %p279
    %p281 = scmp.ne.s32.totalorder %s273, %s275
    %p282 = scmp.eq.s32.totalorder %s34, 1
    %p283 = por %p281, %p282
    %p284 = scmp.ne.s32.totalorder %s275, %s276
    %p285 = scmp.eq.s32.totalorder %s34, 0
    %p286 = por %p284, %p285
    %p287 = scmp.ne.s32.totalorder %s275, %s276
    %p288 = scmp.eq.s32.totalorder %s35, 1
    %p289 = por %p287, %p288
    %p291 = scmp.ne.s32.totalorder %s276, %s290
    %p292 = scmp.eq.s32.totalorder %s35, 0
    %p293 = por %p291, %p292
    %s295 = sadd.s32 %s294, 1
    %p298 = scmp.eq.s32.totalorder %s29, 1
    %p299 = scmp.ne.s32.totalorder %s294, %s296
    %p300 = scmp.eq.s32.totalorder %s29, 0
    %p301 = por %p299, %p300
    %p302 = scmp.ne.s32.totalorder %s294, %s296
    %p303 = scmp.eq.s32.totalorder %s34, 1
    %p304 = por %p302, %p303
    %p305 = scmp.ne.s32.totalorder %s296, %s297
    %p306 = scmp.eq.s32.totalorder %s34, 0
    %p307 = por %p305, %p306
    %p308 = scmp.ne.s32.totalorder %s296, %s297
    %p309 = scmp.eq.s32.totalorder %s35, 1
    %p310 = por %p308, %p309
    %p312 = scmp.ne.s32.totalorder %s297, %s311
    %p313 = scmp.eq.s32.totalorder %s35, 0
    %p314 = por %p312, %p313
    %s316 = sadd.s32 %s315, 1
    %p319 = scmp.eq.s32.totalorder %s29, 1
    %p320 = scmp.ne.s32.totalorder %s315, %s317
    %p321 = scmp.eq.s32.totalorder %s29, 0
    %p322 = por %p320, %p321
    %p323 = scmp.ne.s32.totalorder %s315, %s317
    %p324 = scmp.eq.s32.totalorder %s34, 1
    %p325 = por %p323, %p324
    %p326 = scmp.ne.s32.totalorder %s317, %s318
    %p327 = scmp.eq.s32.totalorder %s34, 0
    %p328 = por %p326, %p327
    %p329 = scmp.ne.s32.totalorder %s317, %s318
    %p330 = scmp.eq.s32.totalorder %s35, 1
    %p331 = por %p329, %p330
    %p333 = scmp.ne.s32.totalorder %s318, %s332
    %p334 = scmp.eq.s32.totalorder %s35, 0
    %p335 = por %p333, %p334
    %s337 = sadd.s32 %s336, 1
    %p340 = scmp.eq.s32.totalorder %s29, 1
    %p341 = scmp.ne.s32.totalorder %s336, %s338
    %p342 = scmp.eq.s32.totalorder %s29, 0
    %p343 = por %p341, %p342
    %p344 = scmp.ne.s32.totalorder %s336, %s338
    %p345 = scmp.eq.s32.totalorder %s34, 1
    %p346 = por %p344, %p345
    %p347 = scmp.ne.s32.totalorder %s338, %s339
    %p348 = scmp.eq.s32.totalorder %s34, 0
    %p349 = por %p347, %p348
    %p350 = scmp.ne.s32.totalorder %s338, %s339
    %p351 = scmp.eq.s32.totalorder %s35, 1
    %p352 = por %p350, %p351
    %p354 = scmp.ne.s32.totalorder %s339, %s353
    %p355 = scmp.eq.s32.totalorder %s35, 0
    %p356 = por %p354, %p355
    %s358 = sadd.s32 %s357, 1
    %p361 = scmp.eq.s32.totalorder %s29, 1
    %p362 = scmp.ne.s32.totalorder %s357, %s359
    %p363 = scmp.eq.s32.totalorder %s29, 0
    %p364 = por %p362, %p363
    %p365 = scmp.ne.s32.totalorder %s357, %s359
    %p366 = scmp.eq.s32.totalorder %s34, 1
    %p367 = por %p365, %p366
    %p368 = scmp.ne.s32.totalorder %s359, %s360
    %p369 = scmp.eq.s32.totalorder %s34, 0
    %p370 = por %p368, %p369
    %p371 = scmp.ne.s32.totalorder %s359, %s360
    %p372 = scmp.eq.s32.totalorder %s35, 1
    %p373 = por %p371, %p372
    %p375 = scmp.ne.s32.totalorder %s360, %s374
    %p376 = scmp.eq.s32.totalorder %s35, 0
    %p377 = por %p375, %p376
    %s379 = sadd.s32 %s378, 1
    %p382 = scmp.eq.s32.totalorder %s29, 1
    %p383 = scmp.ne.s32.totalorder %s378, %s380
    %p384 = scmp.eq.s32.totalorder %s29, 0
    %p385 = por %p383, %p384
    %p386 = scmp.ne.s32.totalorder %s378, %s380
    %p387 = scmp.eq.s32.totalorder %s34, 1
    %p388 = por %p386, %p387
    %p389 = scmp.ne.s32.totalorder %s380, %s381
    %p390 = scmp.eq.s32.totalorder %s34, 0
    %p391 = por %p389, %p390
    %p392 = scmp.ne.s32.totalorder %s380, %s381
    %p393 = scmp.eq.s32.totalorder %s35, 1
    %p394 = por %p392, %p393
    %p396 = scmp.ne.s32.totalorder %s381, %s395
    %p397 = scmp.eq.s32.totalorder %s35, 0
    %p398 = por %p396, %p397
    %s400 = sadd.s32 %s399, 1
    %p403 = scmp.eq.s32.totalorder %s29, 1
    %p404 = scmp.ne.s32.totalorder %s399, %s401
    %p405 = scmp.eq.s32.totalorder %s29, 0
    %p406 = por %p404, %p405
    %p407 = scmp.ne.s32.totalorder %s399, %s401
    %p408 = scmp.eq.s32.totalorder %s34, 1
    %p409 = por %p407, %p408
    %p410 = scmp.ne.s32.totalorder %s401, %s402
    %p411 = scmp.eq.s32.totalorder %s34, 0
    %p412 = por %p410, %p411
    %p413 = scmp.ne.s32.totalorder %s401, %s402
    %p414 = scmp.eq.s32.totalorder %s35, 1
    %p415 = por %p413, %p414
    %p417 = scmp.ne.s32.totalorder %s402, %s416
    %p418 = scmp.eq.s32.totalorder %s35, 0
    %p419 = por %p417, %p418
    %s421 = sadd.s32 %s420, 1
    %p424 = scmp.eq.s32.totalorder %s29, 1
    %p425 = scmp.ne.s32.totalorder %s420, %s422
    %p426 = scmp.eq.s32.totalorder %s29, 0
    %p427 = por %p425, %p426
    %p428 = scmp.ne.s32.totalorder %s420, %s422
    %p429 = scmp.eq.s32.totalorder %s34, 1
    %p430 = por %p428, %p429
    %p431 = scmp.ne.s32.totalorder %s422, %s423
    %p432 = scmp.eq.s32.totalorder %s34, 0
    %p433 = por %p431, %p432
    %p434 = scmp.ne.s32.totalorder %s422, %s423
    %p435 = scmp.eq.s32.totalorder %s35, 1
    %p436 = por %p434, %p435
    %p438 = scmp.ne.s32.totalorder %s423, %s437
    %p439 = scmp.eq.s32.totalorder %s35, 0
    %p440 = por %p438, %p439
    %s442 = sadd.s32 %s441, 1
    %p445 = scmp.eq.s32.totalorder %s29, 1
    %p446 = scmp.ne.s32.totalorder %s441, %s443
    %p447 = scmp.eq.s32.totalorder %s29, 0
    %p448 = por %p446, %p447
    %p449 = scmp.ne.s32.totalorder %s441, %s443
    %p450 = scmp.eq.s32.totalorder %s34, 1
    %p451 = por %p449, %p450
    %p452 = scmp.ne.s32.totalorder %s443, %s444
    %p453 = scmp.eq.s32.totalorder %s34, 0
    %p454 = por %p452, %p453
    %p455 = scmp.ne.s32.totalorder %s443, %s444
    %p456 = scmp.eq.s32.totalorder %s35, 1
    %p457 = por %p455, %p456
    %p459 = scmp.ne.s32.totalorder %s444, %s458
    %p460 = scmp.eq.s32.totalorder %s35, 0
    %p461 = por %p459, %p460
    %s463 = sadd.s32 %s462, 1
    %p466 = scmp.eq.s32.totalorder %s29, 1
    %p467 = scmp.ne.s32.totalorder %s462, %s464
    %p468 = scmp.eq.s32.totalorder %s29, 0
    %p469 = por %p467, %p468
    %p470 = scmp.ne.s32.totalorder %s462, %s464
    %p471 = scmp.eq.s32.totalorder %s34, 1
    %p472 = por %p470, %p471
    %p473 = scmp.ne.s32.totalorder %s464, %s465
    %p474 = scmp.eq.s32.totalorder %s34, 0
    %p475 = por %p473, %p474
    %p476 = scmp.ne.s32.totalorder %s464, %s465
    %p477 = scmp.eq.s32.totalorder %s35, 1
    %p478 = por %p476, %p477
    %p480 = scmp.ne.s32.totalorder %s465, %s479
    %p481 = scmp.eq.s32.totalorder %s35, 0
    %p482 = por %p480, %p481
    %s484 = sadd.s32 %s483, 1
    %p487 = scmp.eq.s32.totalorder %s29, 1
    %p488 = scmp.ne.s32.totalorder %s483, %s485
    %p489 = scmp.eq.s32.totalorder %s29, 0
    %p490 = por %p488, %p489
    %p491 = scmp.ne.s32.totalorder %s483, %s485
    %p492 = scmp.eq.s32.totalorder %s34, 1
    %p493 = por %p491, %p492
    %p494 = scmp.ne.s32.totalorder %s485, %s486
    %p495 = scmp.eq.s32.totalorder %s34, 0
    %p496 = por %p494, %p495
    %p497 = scmp.ne.s32.totalorder %s485, %s486
    %p498 = scmp.eq.s32.totalorder %s35, 1
    %p499 = por %p497, %p498
    %p501 = scmp.ne.s32.totalorder %s486, %s500
    %p502 = scmp.eq.s32.totalorder %s35, 0
    %p503 = por %p501, %p502
    %s505 = sadd.s32 %s504, 1
    %p508 = scmp.eq.s32.totalorder %s29, 1
    %p509 = scmp.ne.s32.totalorder %s504, %s506
    %p510 = scmp.eq.s32.totalorder %s29, 0
    %p511 = por %p509, %p510
    %p512 = scmp.ne.s32.totalorder %s504, %s506
    %p513 = scmp.eq.s32.totalorder %s34, 1
    %p514 = por %p512, %p513
    %p515 = scmp.ne.s32.totalorder %s506, %s507
    %p516 = scmp.eq.s32.totalorder %s34, 0
    %p517 = por %p515, %p516
    %p518 = scmp.ne.s32.totalorder %s506, %s507
    %p519 = scmp.eq.s32.totalorder %s35, 1
    %p520 = por %p518, %p519
    %p522 = scmp.ne.s32.totalorder %s507, %s521
    %p523 = scmp.eq.s32.totalorder %s35, 0
    %p524 = por %p522, %p523
    %s525 = ssub.s32 %s29, %s36
    %p526 = scmp.eq.s32.totalorder %s525, 0
    %s528 = sadd.s32 %s527, 1
    %s529 = scalar_select %p526, %s527, %s528
    %p532 = pneg %p526
    %p533 = scmp.eq.s32.totalorder %s29, 1
    %p534 = por %p532, %p533
    %p535 = scmp.ne.s32.totalorder %s527, %s530
    %p536 = scmp.eq.s32.totalorder %s29, 0
    %p537 = por %p535, %p536
    %p538 = scmp.ne.s32.totalorder %s527, %s530
    %p539 = scmp.eq.s32.totalorder %s34, 1
    %p540 = por %p538, %p539
    %p541 = scmp.ne.s32.totalorder %s530, %s531
    %p542 = scmp.eq.s32.totalorder %s34, 0
    %p543 = por %p541, %p542
    %p544 = scmp.ne.s32.totalorder %s530, %s531
    %p545 = scmp.eq.s32.totalorder %s35, 1
    %p546 = por %p544, %p545
    %p548 = scmp.ne.s32.totalorder %s531, %s547
    %p549 = scmp.eq.s32.totalorder %s35, 0
    %p550 = por %p548, %p549
    %p551 = scmp.le.s32.totalorder 1, %s29
    %p552 = scmp.lt.s32.totalorder %s29, 3
    %p553 = pnand %p551, %p552
    %p554 = pneg %p553
    // Predicated region
    $region9: #{unet_forward.1} parent=5 // pred_check
      _
    $region10: #{unet_forward.1} parent=5 // pred_check_branch
      %556 = sbr.rel (%p553) target = $region12
    $region11: #{unet_forward.1} parent=5 // pred_region
      %s557 = ssub.s32 %s29, 1
      // Predicated region
      $region13: #{unet_forward.1} parent=11 // pred_check
        %p558 = pneg %p76
      $region14: #{unet_forward.1} parent=11 // pred_check_branch
        %560 = sbr.rel (%p558) target = $region16
      $region15: #{unet_forward.1} parent=11 // pred_region
        _
      $region16: #{unet_forward.1} parent=11 // pred_fallthru
        _
      // Predicated region
      $region17: #{unet_forward.1} parent=11 // pred_check
        %p561 = pneg %p97
      $region18: #{unet_forward.1} parent=11 // pred_check_branch
        %563 = sbr.rel (%p561) target = $region20
      $region19: #{unet_forward.1} parent=11 // pred_region
        _
      $region20: #{unet_forward.1} parent=11 // pred_fallthru
        _
      // Predicated region
      $region21: #{unet_forward.1} parent=11 // pred_check
        %p564 = pneg %p118
      $region22: #{unet_forward.1} parent=11 // pred_check_branch
        %566 = sbr.rel (%p564) target = $region24
      $region23: #{unet_forward.1} parent=11 // pred_region
        _
      $region24: #{unet_forward.1} parent=11 // pred_fallthru
        _
      // Predicated region
      $region25: #{unet_forward.1} parent=11 // pred_check
        %p567 = pneg %p139
      $region26: #{unet_forward.1} parent=11 // pred_check_branch
        %569 = sbr.rel (%p567) target = $region28
      $region27: #{unet_forward.1} parent=11 // pred_region
        _
      $region28: #{unet_forward.1} parent=11 // pred_fallthru
        _
      // Predicated region
      $region29: #{unet_forward.1} parent=11 // pred_check
        %p570 = pneg %p160
      $region30: #{unet_forward.1} parent=11 // pred_check_branch
        %572 = sbr.rel (%p570) target = $region32
      $region31: #{unet_forward.1} parent=11 // pred_region
        _
      $region32: #{unet_forward.1} parent=11 // pred_fallthru
        _
      // Predicated region
      $region33: #{unet_forward.1} parent=11 // pred_check
        %p573 = pneg %p181
      $region34: #{unet_forward.1} parent=11 // pred_check_branch
        %575 = sbr.rel (%p573) target = $region36
      $region35: #{unet_forward.1} parent=11 // pred_region
        _
      $region36: #{unet_forward.1} parent=11 // pred_fallthru
        _
      // Predicated region
      $region37: #{unet_forward.1} parent=11 // pred_check
        %p576 = pneg %p202
      $region38: #{unet_forward.1} parent=11 // pred_check_branch
        %578 = sbr.rel (%p576) target = $region40
      $region39: #{unet_forward.1} parent=11 // pred_region
        _
      $region40: #{unet_forward.1} parent=11 // pred_fallthru
        _
      // Predicated region
      $region41: #{unet_forward.1} parent=11 // pred_check
        %p579 = pneg %p223
      $region42: #{unet_forward.1} parent=11 // pred_check_branch
        %581 = sbr.rel (%p579) target = $region44
      $region43: #{unet_forward.1} parent=11 // pred_region
        _
      $region44: #{unet_forward.1} parent=11 // pred_fallthru
        _
      // Predicated region
      $region45: #{unet_forward.1} parent=11 // pred_check
        %p582 = pneg %p244
      $region46: #{unet_forward.1} parent=11 // pred_check_branch
        %584 = sbr.rel (%p582) target = $region48
      $region47: #{unet_forward.1} parent=11 // pred_region
        _
      $region48: #{unet_forward.1} parent=11 // pred_fallthru
        _
      // Predicated region
      $region49: #{unet_forward.1} parent=11 // pred_check
        %p585 = pneg %p265
      $region50: #{unet_forward.1} parent=11 // pred_check_branch
        %587 = sbr.rel (%p585) target = $region52
      $region51: #{unet_forward.1} parent=11 // pred_region
        _
      $region52: #{unet_forward.1} parent=11 // pred_fallthru
        _
      // Predicated region
      $region53: #{unet_forward.1} parent=11 // pred_check
        %p588 = pneg %p286
      $region54: #{unet_forward.1} parent=11 // pred_check_branch
        %590 = sbr.rel (%p588) target = $region56
      $region55: #{unet_forward.1} parent=11 // pred_region
        _
      $region56: #{unet_forward.1} parent=11 // pred_fallthru
        _
      // Predicated region
      $region57: #{unet_forward.1} parent=11 // pred_check
        %p591 = pneg %p307
      $region58: #{unet_forward.1} parent=11 // pred_check_branch
        %593 = sbr.rel (%p591) target = $region60
      $region59: #{unet_forward.1} parent=11 // pred_region
        _
      $region60: #{unet_forward.1} parent=11 // pred_fallthru
        _
      // Predicated region
      $region61: #{unet_forward.1} parent=11 // pred_check
        %p594 = pneg %p328
      $region62: #{unet_forward.1} parent=11 // pred_check_branch
        %596 = sbr.rel (%p594) target = $region64
      $region63: #{unet_forward.1} parent=11 // pred_region
        _
      $region64: #{unet_forward.1} parent=11 // pred_fallthru
        _
      // Predicated region
      $region65: #{unet_forward.1} parent=11 // pred_check
        %p597 = pneg %p349
      $region66: #{unet_forward.1} parent=11 // pred_check_branch
        %599 = sbr.rel (%p597) target = $region68
      $region67: #{unet_forward.1} parent=11 // pred_region
        _
      $region68: #{unet_forward.1} parent=11 // pred_fallthru
        _
      // Predicated region
      $region69: #{unet_forward.1} parent=11 // pred_check
        %p600 = pneg %p370
      $region70: #{unet_forward.1} parent=11 // pred_check_branch
        %602 = sbr.rel (%p600) target = $region72
      $region71: #{unet_forward.1} parent=11 // pred_region
        _
      $region72: #{unet_forward.1} parent=11 // pred_fallthru
        _
      // Predicated region
      $region73: #{unet_forward.1} parent=11 // pred_check
        %p603 = pneg %p391
      $region74: #{unet_forward.1} parent=11 // pred_check_branch
        %605 = sbr.rel (%p603) target = $region76
      $region75: #{unet_forward.1} parent=11 // pred_region
        _
      $region76: #{unet_forward.1} parent=11 // pred_fallthru
        _
      // Predicated region
      $region77: #{unet_forward.1} parent=11 // pred_check
        %p606 = pneg %p412
      $region78: #{unet_forward.1} parent=11 // pred_check_branch
        %608 = sbr.rel (%p606) target = $region80
      $region79: #{unet_forward.1} parent=11 // pred_region
        _
      $region80: #{unet_forward.1} parent=11 // pred_fallthru
        _
      // Predicated region
      $region81: #{unet_forward.1} parent=11 // pred_check
        %p609 = pneg %p433
      $region82: #{unet_forward.1} parent=11 // pred_check_branch
        %611 = sbr.rel (%p609) target = $region84
      $region83: #{unet_forward.1} parent=11 // pred_region
        _
      $region84: #{unet_forward.1} parent=11 // pred_fallthru
        _
      // Predicated region
      $region85: #{unet_forward.1} parent=11 // pred_check
        %p612 = pneg %p454
      $region86: #{unet_forward.1} parent=11 // pred_check_branch
        %614 = sbr.rel (%p612) target = $region88
      $region87: #{unet_forward.1} parent=11 // pred_region
        _
      $region88: #{unet_forward.1} parent=11 // pred_fallthru
        _
      // Predicated region
      $region89: #{unet_forward.1} parent=11 // pred_check
        %p615 = pneg %p475
      $region90: #{unet_forward.1} parent=11 // pred_check_branch
        %617 = sbr.rel (%p615) target = $region92
      $region91: #{unet_forward.1} parent=11 // pred_region
        _
      $region92: #{unet_forward.1} parent=11 // pred_fallthru
        _
      // Predicated region
      $region93: #{unet_forward.1} parent=11 // pred_check
        %p618 = pneg %p496
      $region94: #{unet_forward.1} parent=11 // pred_check_branch
        %620 = sbr.rel (%p618) target = $region96
      $region95: #{unet_forward.1} parent=11 // pred_region
        _
      $region96: #{unet_forward.1} parent=11 // pred_fallthru
        _
      // Predicated region
      $region97: #{unet_forward.1} parent=11 // pred_check
        %p621 = pneg %p517
      $region98: #{unet_forward.1} parent=11 // pred_check_branch
        %623 = sbr.rel (%p621) target = $region100
      $region99: #{unet_forward.1} parent=11 // pred_region
        _
      $region100: #{unet_forward.1} parent=11 // pred_fallthru
        _
    $region12: #{unet_forward.1} parent=5 // pred_fallthru
      _
    %p624 = scmp.lt.s32.totalorder %s29, 2
    // Predicated region
    $region101: #{unet_forward.1} parent=5 // pred_check
      %p625 = pneg %p624
    $region102: #{unet_forward.1} parent=5 // pred_check_branch
      %627 = sbr.rel (%p625) target = $region104
    $region103: #{unet_forward.1} parent=5 // pred_region
      // Predicated region
      $region105: #{unet_forward.1} parent=103 // pred_check
        %p628 = pneg %p49
      $region106: #{unet_forward.1} parent=103 // pred_check_branch
        %630 = sbr.rel (%p628) target = $region108
      $region107: #{unet_forward.1} parent=103 // pred_region
        %p631 = scmp.lt.s32.totalorder %s29, 1
        %s632 = scalar_select %p631, %s29, 1
        %s633 = smul.addr %s632, 32
        %s634 = smul.addr %s633, 8
        %s635 = scalar_lea.vmem %s0, %s634
      $region108: #{unet_forward.1} parent=103 // pred_fallthru
        _
    $region104: #{unet_forward.1} parent=5 // pred_fallthru
      _
    %p636 = scmp.le.s32.totalorder 1, %s29
    %p637 = scmp.lt.s32.totalorder %s29, 3
    %p638 = pnand %p636, %p637
    %p639 = pneg %p638
    // Predicated region
    $region109: #{unet_forward.1} parent=5 // pred_check
      _
    $region110: #{unet_forward.1} parent=5 // pred_check_branch
      %641 = sbr.rel (%p638) target = $region112
    $region111: #{unet_forward.1} parent=5 // pred_region
      %s642 = ssub.s32 %s29, 1
      %p643 = scmp.lt.s32.totalorder %s34, 1
      %s644 = scalar_select %p643, %s34, 1
      %s645 = smul.addr %s644, 32
      %s646 = smul.addr %s645, 8
      %s647 = scalar_lea.vmem %s0, %s646
      %p648 = pneg %p55
      %p649 = pneg %p52
      %p650 = pneg %p76
      %p651 = pneg %p73
      %p652 = pneg %p97
      %p653 = pneg %p94
      %p654 = pneg %p118
      %p655 = pneg %p115
      %p656 = pneg %p139
      %p657 = pneg %p136
      %p658 = pneg %p160
      %p659 = pneg %p157
      %p660 = pneg %p181
      %p661 = pneg %p178
      %p662 = pneg %p202
      %p663 = pneg %p199
      %p664 = pneg %p223
      %p665 = pneg %p220
      %p666 = pneg %p244
      %p667 = pneg %p241
      %p668 = pneg %p265
      %p669 = pneg %p262
      %p670 = pneg %p286
      %p671 = pneg %p283
      %p672 = pneg %p307
      %p673 = pneg %p304
      %p674 = pneg %p328
      %p675 = pneg %p325
      %p676 = pneg %p349
      %p677 = pneg %p346
      %p678 = pneg %p370
      %p679 = pneg %p367
      %p680 = pneg %p391
      %p681 = pneg %p388
      %p682 = pneg %p412
      %p683 = pneg %p409
      %p684 = pneg %p433
      %p685 = pneg %p430
      %p686 = pneg %p454
      %p687 = pneg %p451
      %p688 = pneg %p475
      %p689 = pneg %p472
      %p690 = pneg %p496
      %p691 = pneg %p493
      %p692 = pneg %p517
      %p693 = pneg %p514
      %p694 = pneg %p543
      %p695 = pneg %p540
      %p696 = scmp.lt.s32.totalorder %s34, 1
      %s697 = scalar_select %p696, %s34, 1
      %s698 = smul.addr %s697, 32
      %s699 = smul.addr %s698, 8
      %s700 = scalar_lea.vmem %s23, %s699
      %p701 = scmp.lt.s32.totalorder %s34, 1
      %s702 = scalar_select %p701, %s34, 1
      %s703 = smul.addr %s702, 32
      %s704 = smul.addr %s703, 8
      %s705 = scalar_lea.vmem %s0, %s704
      %p706 = scmp.lt.s32.totalorder %s34, 1
      %s707 = scalar_select %p706, %s34, 1
      %s708 = smul.addr %s707, 32
      %s709 = smul.addr %s708, 8
      %s710 = scalar_lea.vmem %s23, %s709
      %v711 = vld [vmem:[%s705] sm:$0xff]
      %v712 = vld [vmem:[%s705 + $0x8] sm:$0xff]
      %v713 = vld [vmem:[%s705 + $0x10] sm:$0xff]
      %v714 = vld [vmem:[%s705 + $0x18] sm:$0xff]
      %v715 = vld [vmem:[%s705 + $0x20] sm:$0xff]
      %v716 = vld [vmem:[%s705 + $0x28] sm:$0xff]
      %v717 = vld [vmem:[%s705 + $0x30] sm:$0xff]
      %v718 = vld [vmem:[%s705 + $0x38] sm:$0xff]
      %v719 = vld [vmem:[%s705 + $0x40] sm:$0xff]
      %v720 = vld [vmem:[%s705 + $0x48] sm:$0xff]
      %v721 = vld [vmem:[%s705 + $0x50] sm:$0xff]
      %v722 = vld [vmem:[%s705 + $0x58] sm:$0xff]
      %v723 = vld [vmem:[%s705 + $0x60] sm:$0xff]
      %v724 = vld [vmem:[%s705 + $0x68] sm:$0xff]
      %v725 = vld [vmem:[%s705 + $0x70] sm:$0xff]
      %v726 = vld [vmem:[%s705 + $0x78] sm:$0xff]
      %v727 = vld [vmem:[%s705 + $0x80] sm:$0xff]
      %v728 = vld [vmem:[%s705 + $0x88] sm:$0xff]
      %v729 = vld [vmem:[%s705 + $0x90] sm:$0xff]
      %v730 = vld [vmem:[%s705 + $0x98] sm:$0xff]
      %v731 = vld [vmem:[%s705 + $0xa0] sm:$0xff]
      %v732 = vld [vmem:[%s705 + $0xa8] sm:$0xff]
      %v733 = vld [vmem:[%s705 + $0xb0] sm:$0xff]
      %v734 = vld [vmem:[%s705 + $0xb8] sm:$0xff]
      %v735 = vld [vmem:[%s705 + $0xc0] sm:$0xff]
      %v736 = vld [vmem:[%s705 + $0xc8] sm:$0xff]
      %v737 = vld [vmem:[%s705 + $0xd0] sm:$0xff]
      %v738 = vld [vmem:[%s705 + $0xd8] sm:$0xff]
      %v739 = vld [vmem:[%s705 + $0xe0] sm:$0xff]
      %v740 = vld [vmem:[%s705 + $0xe8] sm:$0xff]
      %v741 = vld [vmem:[%s705 + $0xf0] sm:$0xff]
      %v742 = vld [vmem:[%s705 + $0xf8] sm:$0xff]
      %vm776 = vcmask 1040384
      %v777 = vrot.slane 0.0, 7
      %v778 = vsel %vm776, %v777, %v777
      %v779 = vrot.slane %v711, 7
      %v780 = vrot.slane %v712, 7
      %v781 = vsel %vm776, %v779, %v780
      %v782 = vrot.slane %v713, 7
      %v783 = vrot.slane %v714, 7
      %v784 = vsel %vm776, %v782, %v783
      %v785 = vrot.slane %v715, 7
      %v786 = vrot.slane %v716, 7
      %v787 = vsel %vm776, %v785, %v786
      %v788 = vrot.slane %v717, 7
      %v789 = vrot.slane %v718, 7
      %v790 = vsel %vm776, %v788, %v789
      %v791 = vrot.slane %v719, 7
      %v792 = vrot.slane %v720, 7
      %v793 = vsel %vm776, %v791, %v792
      %v794 = vrot.slane %v721, 7
      %v795 = vrot.slane %v722, 7
      %v796 = vsel %vm776, %v794, %v795
      %v797 = vrot.slane %v723, 7
      %v798 = vrot.slane %v724, 7
      %v799 = vsel %vm776, %v797, %v798
      %v800 = vrot.slane %v725, 7
      %v801 = vrot.slane %v726, 7
      %v802 = vsel %vm776, %v800, %v801
      %v803 = vrot.slane %v727, 7
      %v804 = vrot.slane %v728, 7
      %v805 = vsel %vm776, %v803, %v804
      %v806 = vrot.slane %v729, 7
      %v807 = vrot.slane %v730, 7
      %v808 = vsel %vm776, %v806, %v807
      %v809 = vrot.slane %v731, 7
      %v810 = vrot.slane %v732, 7
      %v811 = vsel %vm776, %v809, %v810
      %v812 = vrot.slane %v733, 7
      %v813 = vrot.slane %v734, 7
      %v814 = vsel %vm776, %v812, %v813
      %v815 = vrot.slane %v735, 7
      %v816 = vrot.slane %v736, 7
      %v817 = vsel %vm776, %v815, %v816
      %v818 = vrot.slane %v737, 7
      %v819 = vrot.slane %v738, 7
      %v820 = vsel %vm776, %v818, %v819
      %v821 = vrot.slane %v739, 7
      %v822 = vrot.slane %v740, 7
      %v823 = vsel %vm776, %v821, %v822
      %v824 = vrot.slane %v741, 7
      %v825 = vrot.slane %v742, 7
      %v826 = vsel %vm776, %v824, %v825
      %v876 = vsel %vm776, 0.0, %v777
      %v877 = vsel %vm776, 0.0, %v779
      %v878 = vsel %vm776, 0.0, %v782
      %v879 = vsel %vm776, 0.0, %v785
      %v880 = vsel %vm776, 0.0, %v788
      %v881 = vsel %vm776, 0.0, %v791
      %v882 = vsel %vm776, 0.0, %v794
      %v883 = vsel %vm776, 0.0, %v797
      %v884 = vsel %vm776, 0.0, %v800
      %v885 = vsel %vm776, 0.0, %v803
      %v886 = vsel %vm776, 0.0, %v806
      %v887 = vsel %vm776, 0.0, %v809
      %v888 = vsel %vm776, 0.0, %v812
      %v889 = vsel %vm776, 0.0, %v815
      %v890 = vsel %vm776, 0.0, %v818
      %v891 = vsel %vm776, 0.0, %v821
      %v892 = vsel %vm776, 0.0, %v824
      %v893 = vsel %vm776, %v777, 0.0
      %v894 = vsel %vm776, %v780, 0.0
      %v895 = vsel %vm776, %v783, 0.0
      %v896 = vsel %vm776, %v786, 0.0
      %v897 = vsel %vm776, %v789, 0.0
      %v898 = vsel %vm776, %v792, 0.0
      %v899 = vsel %vm776, %v795, 0.0
      %v900 = vsel %vm776, %v798, 0.0
      %v901 = vsel %vm776, %v801, 0.0
      %v902 = vsel %vm776, %v804, 0.0
      %v903 = vsel %vm776, %v807, 0.0
      %v904 = vsel %vm776, %v810, 0.0
      %v905 = vsel %vm776, %v813, 0.0
      %v906 = vsel %vm776, %v816, 0.0
      %v907 = vsel %vm776, %v819, 0.0
      %v908 = vsel %vm776, %v822, 0.0
      %v909 = vsel %vm776, %v825, 0.0
      %vm942 = vcmask 1046528
      %v943 = vrot.slane %v876, 1
      %v944 = vrot.slane %v778, 1
      %v945 = vsel %vm942, %v943, %v944
      %v946 = vrot.slane %v893, 1
      %v947 = vsel %vm942, %v944, %v946
      %v948 = vrot.slane %v877, 1
      %v949 = vrot.slane %v781, 1
      %v950 = vsel %vm942, %v948, %v949
      %v951 = vrot.slane %v894, 1
      %v952 = vsel %vm942, %v949, %v951
      %v953 = vrot.slane %v878, 1
      %v954 = vrot.slane %v784, 1
      %v955 = vsel %vm942, %v953, %v954
      %v956 = vrot.slane %v895, 1
      %v957 = vsel %vm942, %v954, %v956
      %v958 = vrot.slane %v879, 1
      %v959 = vrot.slane %v787, 1
      %v960 = vsel %vm942, %v958, %v959
      %v961 = vrot.slane %v896, 1
      %v962 = vsel %vm942, %v959, %v961
      %v963 = vrot.slane %v880, 1
      %v964 = vrot.slane %v790, 1
      %v965 = vsel %vm942, %v963, %v964
      %v966 = vrot.slane %v897, 1
      %v967 = vsel %vm942, %v964, %v966
      %v968 = vrot.slane %v881, 1
      %v969 = vrot.slane %v793, 1
      %v970 = vsel %vm942, %v968, %v969
      %v971 = vrot.slane %v898, 1
      %v972 = vsel %vm942, %v969, %v971
      %v973 = vrot.slane %v882, 1
      %v974 = vrot.slane %v796, 1
      %v975 = vsel %vm942, %v973, %v974
      %v976 = vrot.slane %v899, 1
      %v977 = vsel %vm942, %v974, %v976
      %v978 = vrot.slane %v883, 1
      %v979 = vrot.slane %v799, 1
      %v980 = vsel %vm942, %v978, %v979
      %v981 = vrot.slane %v900, 1
      %v982 = vsel %vm942, %v979, %v981
      %v983 = vrot.slane %v884, 1
      %v984 = vrot.slane %v802, 1
      %v985 = vsel %vm942, %v983, %v984
      %v986 = vrot.slane %v901, 1
      %v987 = vsel %vm942, %v984, %v986
      %v988 = vrot.slane %v885, 1
      %v989 = vrot.slane %v805, 1
      %v990 = vsel %vm942, %v988, %v989
      %v991 = vrot.slane %v902, 1
      %v992 = vsel %vm942, %v989, %v991
      %v993 = vrot.slane %v886, 1
      %v994 = vrot.slane %v808, 1
      %v995 = vsel %vm942, %v993, %v994
      %v996 = vrot.slane %v903, 1
      %v997 = vsel %vm942, %v994, %v996
      %v998 = vrot.slane %v887, 1
      %v999 = vrot.slane %v811, 1
      %v1000 = vsel %vm942, %v998, %v999
      %v1001 = vrot.slane %v904, 1
      %v1002 = vsel %vm942, %v999, %v1001
      %v1003 = vrot.slane %v888, 1
      %v1004 = vrot.slane %v814, 1
      %v1005 = vsel %vm942, %v1003, %v1004
      %v1006 = vrot.slane %v905, 1
      %v1007 = vsel %vm942, %v1004, %v1006
      %v1008 = vrot.slane %v889, 1
      %v1009 = vrot.slane %v817, 1
      %v1010 = vsel %vm942, %v1008, %v1009
      %v1011 = vrot.slane %v906, 1
      %v1012 = vsel %vm942, %v1009, %v1011
      %v1013 = vrot.slane %v890, 1
      %v1014 = vrot.slane %v820, 1
      %v1015 = vsel %vm942, %v1013, %v1014
      %v1016 = vrot.slane %v907, 1
      %v1017 = vsel %vm942, %v1014, %v1016
      %v1018 = vrot.slane %v891, 1
      %v1019 = vrot.slane %v823, 1
      %v1020 = vsel %vm942, %v1018, %v1019
      %v1021 = vrot.slane %v908, 1
      %v1022 = vsel %vm942, %v1019, %v1021
      %1023 = vrot.lane.b32.xlu0 %v945, 4
      %v1024 = vpop.permute.xlu0 %1023
      %1025 = vrot.lane.b32.xlu0 %v947, 4
      %v1026 = vpop.permute.xlu0 %1025
      %1027 = vrot.lane.b32.xlu0 %v950, 4
      %v1028 = vpop.permute.xlu0 %1027
      %1029 = vrot.lane.b32.xlu0 %v952, 4
      %v1030 = vpop.permute.xlu0 %1029
      %1031 = vrot.lane.b32.xlu0 %v955, 4
      %v1032 = vpop.permute.xlu0 %1031
      %1033 = vrot.lane.b32.xlu0 %v957, 4
      %v1034 = vpop.permute.xlu0 %1033
      %1035 = vrot.lane.b32.xlu0 %v960, 4
      %v1036 = vpop.permute.xlu0 %1035
      %1037 = vrot.lane.b32.xlu0 %v962, 4
      %v1038 = vpop.permute.xlu0 %1037
      %1039 = vrot.lane.b32.xlu0 %v965, 4
      %v1040 = vpop.permute.xlu0 %1039
      %1041 = vrot.lane.b32.xlu0 %v967, 4
      %v1042 = vpop.permute.xlu0 %1041
      %1043 = vrot.lane.b32.xlu0 %v970, 4
      %v1044 = vpop.permute.xlu0 %1043
      %1045 = vrot.lane.b32.xlu0 %v972, 4
      %v1046 = vpop.permute.xlu0 %1045
      %1047 = vrot.lane.b32.xlu0 %v975, 4
      %v1048 = vpop.permute.xlu0 %1047
      %1049 = vrot.lane.b32.xlu0 %v977, 4
      %v1050 = vpop.permute.xlu0 %1049
      %1051 = vrot.lane.b32.xlu0 %v980, 4
      %v1052 = vpop.permute.xlu0 %1051
      %1053 = vrot.lane.b32.xlu0 %v982, 4
      %v1054 = vpop.permute.xlu0 %1053
      %1055 = vrot.lane.b32.xlu0 %v985, 4
      %v1056 = vpop.permute.xlu0 %1055
      %1057 = vrot.lane.b32.xlu0 %v987, 4
      %v1058 = vpop.permute.xlu0 %1057
      %1059 = vrot.lane.b32.xlu0 %v990, 4
      %v1060 = vpop.permute.xlu0 %1059
      %1061 = vrot.lane.b32.xlu0 %v992, 4
      %v1062 = vpop.permute.xlu0 %1061
      %1063 = vrot.lane.b32.xlu0 %v995, 4
      %v1064 = vpop.permute.xlu0 %1063
      %1065 = vrot.lane.b32.xlu0 %v997, 4
      %v1066 = vpop.permute.xlu0 %1065
      %1067 = vrot.lane.b32.xlu0 %v1000, 4
      %v1068 = vpop.permute.xlu0 %1067
      %1069 = vrot.lane.b32.xlu0 %v1002, 4
      %v1070 = vpop.permute.xlu0 %1069
      %1071 = vrot.lane.b32.xlu0 %v1005, 4
      %v1072 = vpop.permute.xlu0 %1071
      %1073 = vrot.lane.b32.xlu0 %v1007, 4
      %v1074 = vpop.permute.xlu0 %1073
      %1075 = vrot.lane.b32.xlu0 %v1010, 4
      %v1076 = vpop.permute.xlu0 %1075
      %1077 = vrot.lane.b32.xlu0 %v1012, 4
      %v1078 = vpop.permute.xlu0 %1077
      %1079 = vrot.lane.b32.xlu0 %v1015, 4
      %v1080 = vpop.permute.xlu0 %1079
      %1081 = vrot.lane.b32.xlu0 %v1017, 4
      %v1082 = vpop.permute.xlu0 %1081
      %1083 = vrot.lane.b32.xlu0 %v1020, 4
      %v1084 = vpop.permute.xlu0 %1083
      %1085 = vrot.lane.b32.xlu0 %v1022, 4
      %v1086 = vpop.permute.xlu0 %1085
      %vm1119 = vcmask 1045504
      %v1120 = vrot.slane %v876, 2
      %v1121 = vrot.slane %v778, 2
      %v1122 = vsel %vm1119, %v1120, %v1121
      %v1123 = vrot.slane %v893, 2
      %v1124 = vsel %vm1119, %v1121, %v1123
      %v1125 = vrot.slane %v877, 2
      %v1126 = vrot.slane %v781, 2
      %v1127 = vsel %vm1119, %v1125, %v1126
      %v1128 = vrot.slane %v894, 2
      %v1129 = vsel %vm1119, %v1126, %v1128
      %v1130 = vrot.slane %v878, 2
      %v1131 = vrot.slane %v784, 2
      %v1132 = vsel %vm1119, %v1130, %v1131
      %v1133 = vrot.slane %v895, 2
      %v1134 = vsel %vm1119, %v1131, %v1133
      %v1135 = vrot.slane %v879, 2
      %v1136 = vrot.slane %v787, 2
      %v1137 = vsel %vm1119, %v1135, %v1136
      %v1138 = vrot.slane %v896, 2
      %v1139 = vsel %vm1119, %v1136, %v1138
      %v1140 = vrot.slane %v880, 2
      %v1141 = vrot.slane %v790, 2
      %v1142 = vsel %vm1119, %v1140, %v1141
      %v1143 = vrot.slane %v897, 2
      %v1144 = vsel %vm1119, %v1141, %v1143
      %v1145 = vrot.slane %v881, 2
      %v1146 = vrot.slane %v793, 2
      %v1147 = vsel %vm1119, %v1145, %v1146
      %v1148 = vrot.slane %v898, 2
      %v1149 = vsel %vm1119, %v1146, %v1148
      %v1150 = vrot.slane %v882, 2
      %v1151 = vrot.slane %v796, 2
      %v1152 = vsel %vm1119, %v1150, %v1151
      %v1153 = vrot.slane %v899, 2
      %v1154 = vsel %vm1119, %v1151, %v1153
      %v1155 = vrot.slane %v883, 2
      %v1156 = vrot.slane %v799, 2
      %v1157 = vsel %vm1119, %v1155, %v1156
      %v1158 = vrot.slane %v900, 2
      %v1159 = vsel %vm1119, %v1156, %v1158
      %v1160 = vrot.slane %v884, 2
      %v1161 = vrot.slane %v802, 2
      %v1162 = vsel %vm1119, %v1160, %v1161
      %v1163 = vrot.slane %v901, 2
      %v1164 = vsel %vm1119, %v1161, %v1163
      %v1165 = vrot.slane %v885, 2
      %v1166 = vrot.slane %v805, 2
      %v1167 = vsel %vm1119, %v1165, %v1166
      %v1168 = vrot.slane %v902, 2
      %v1169 = vsel %vm1119, %v1166, %v1168
      %v1170 = vrot.slane %v886, 2
      %v1171 = vrot.slane %v808, 2
      %v1172 = vsel %vm1119, %v1170, %v1171
      %v1173 = vrot.slane %v903, 2
      %v1174 = vsel %vm1119, %v1171, %v1173
      %v1175 = vrot.slane %v887, 2
      %v1176 = vrot.slane %v811, 2
      %v1177 = vsel %vm1119, %v1175, %v1176
      %v1178 = vrot.slane %v904, 2
      %v1179 = vsel %vm1119, %v1176, %v1178
      %v1180 = vrot.slane %v888, 2
      %v1181 = vrot.slane %v814, 2
      %v1182 = vsel %vm1119, %v1180, %v1181
      %v1183 = vrot.slane %v905, 2
      %v1184 = vsel %vm1119, %v1181, %v1183
      %v1185 = vrot.slane %v889, 2
      %v1186 = vrot.slane %v817, 2
      %v1187 = vsel %vm1119, %v1185, %v1186
      %v1188 = vrot.slane %v906, 2
      %v1189 = vsel %vm1119, %v1186, %v1188
      %v1190 = vrot.slane %v890, 2
      %v1191 = vrot.slane %v820, 2
      %v1192 = vsel %vm1119, %v1190, %v1191
      %v1193 = vrot.slane %v907, 2
      %v1194 = vsel %vm1119, %v1191, %v1193
      %v1195 = vrot.slane %v891, 2
      %v1196 = vrot.slane %v823, 2
      %v1197 = vsel %vm1119, %v1195, %v1196
      %v1198 = vrot.slane %v908, 2
      %v1199 = vsel %vm1119, %v1196, %v1198
      %1200 = vrot.lane.b32.xlu0 %v1122, 8
      %v1201 = vpop.permute.xlu0 %1200
      %1202 = vrot.lane.b32.xlu0 %v1124, 8
      %v1203 = vpop.permute.xlu0 %1202
      %1204 = vrot.lane.b32.xlu0 %v1127, 8
      %v1205 = vpop.permute.xlu0 %1204
      %1206 = vrot.lane.b32.xlu0 %v1129, 8
      %v1207 = vpop.permute.xlu0 %1206
      %1208 = vrot.lane.b32.xlu0 %v1132, 8
      %v1209 = vpop.permute.xlu0 %1208
      %1210 = vrot.lane.b32.xlu0 %v1134, 8
      %v1211 = vpop.permute.xlu0 %1210
      %1212 = vrot.lane.b32.xlu0 %v1137, 8
      %v1213 = vpop.permute.xlu0 %1212
      %1214 = vrot.lane.b32.xlu0 %v1139, 8
      %v1215 = vpop.permute.xlu0 %1214
      %1216 = vrot.lane.b32.xlu0 %v1142, 8
      %v1217 = vpop.permute.xlu0 %1216
      %1218 = vrot.lane.b32.xlu0 %v1144, 8
      %v1219 = vpop.permute.xlu0 %1218
      %1220 = vrot.lane.b32.xlu0 %v1147, 8
      %v1221 = vpop.permute.xlu0 %1220
      %1222 = vrot.lane.b32.xlu0 %v1149, 8
      %v1223 = vpop.permute.xlu0 %1222
      %1224 = vrot.lane.b32.xlu0 %v1152, 8
      %v1225 = vpop.permute.xlu0 %1224
      %1226 = vrot.lane.b32.xlu0 %v1154, 8
      %v1227 = vpop.permute.xlu0 %1226
      %1228 = vrot.lane.b32.xlu0 %v1157, 8
      %v1229 = vpop.permute.xlu0 %1228
      %1230 = vrot.lane.b32.xlu0 %v1159, 8
      %v1231 = vpop.permute.xlu0 %1230
      %1232 = vrot.lane.b32.xlu0 %v1162, 8
      %v1233 = vpop.permute.xlu0 %1232
      %1234 = vrot.lane.b32.xlu0 %v1164, 8
      %v1235 = vpop.permute.xlu0 %1234
      %1236 = vrot.lane.b32.xlu0 %v1167, 8
      %v1237 = vpop.permute.xlu0 %1236
      %1238 = vrot.lane.b32.xlu0 %v1169, 8
      %v1239 = vpop.permute.xlu0 %1238
      %1240 = vrot.lane.b32.xlu0 %v1172, 8
      %v1241 = vpop.permute.xlu0 %1240
      %1242 = vrot.lane.b32.xlu0 %v1174, 8
      %v1243 = vpop.permute.xlu0 %1242
      %1244 = vrot.lane.b32.xlu0 %v1177, 8
      %v1245 = vpop.permute.xlu0 %1244
      %1246 = vrot.lane.b32.xlu0 %v1179, 8
      %v1247 = vpop.permute.xlu0 %1246
      %1248 = vrot.lane.b32.xlu0 %v1182, 8
      %v1249 = vpop.permute.xlu0 %1248
      %1250 = vrot.lane.b32.xlu0 %v1184, 8
      %v1251 = vpop.permute.xlu0 %1250
      %1252 = vrot.lane.b32.xlu0 %v1187, 8
      %v1253 = vpop.permute.xlu0 %1252
      %1254 = vrot.lane.b32.xlu0 %v1189, 8
      %v1255 = vpop.permute.xlu0 %1254
      %1256 = vrot.lane.b32.xlu0 %v1192, 8
      %v1257 = vpop.permute.xlu0 %1256
      %1258 = vrot.lane.b32.xlu0 %v1194, 8
      %v1259 = vpop.permute.xlu0 %1258
      %1260 = vrot.lane.b32.xlu0 %v1197, 8
      %v1261 = vpop.permute.xlu0 %1260
      %1262 = vrot.lane.b32.xlu0 %v1199, 8
      %v1263 = vpop.permute.xlu0 %1262
      %1297 = vrot.lane.b32.xlu0 %v877, 12
      %v1298 = vpop.permute.xlu0 %1297
      %1299 = vrot.lane.b32.xlu0 %v781, 12
      %v1300 = vpop.permute.xlu0 %1299
      %1301 = vrot.lane.b32.xlu0 %v878, 12
      %v1302 = vpop.permute.xlu0 %1301
      %1303 = vrot.lane.b32.xlu0 %v784, 12
      %v1304 = vpop.permute.xlu0 %1303
      %1305 = vrot.lane.b32.xlu0 %v879, 12
      %v1306 = vpop.permute.xlu0 %1305
      %1307 = vrot.lane.b32.xlu0 %v787, 12
      %v1308 = vpop.permute.xlu0 %1307
      %1309 = vrot.lane.b32.xlu0 %v880, 12
      %v1310 = vpop.permute.xlu0 %1309
      %1311 = vrot.lane.b32.xlu0 %v790, 12
      %v1312 = vpop.permute.xlu0 %1311
      %1313 = vrot.lane.b32.xlu0 %v881, 12
      %v1314 = vpop.permute.xlu0 %1313
      %1315 = vrot.lane.b32.xlu0 %v793, 12
      %v1316 = vpop.permute.xlu0 %1315
      %1317 = vrot.lane.b32.xlu0 %v882, 12
      %v1318 = vpop.permute.xlu0 %1317
      %1319 = vrot.lane.b32.xlu0 %v796, 12
      %v1320 = vpop.permute.xlu0 %1319
      %1321 = vrot.lane.b32.xlu0 %v883, 12
      %v1322 = vpop.permute.xlu0 %1321
      %1323 = vrot.lane.b32.xlu0 %v799, 12
      %v1324 = vpop.permute.xlu0 %1323
      %1325 = vrot.lane.b32.xlu0 %v884, 12
      %v1326 = vpop.permute.xlu0 %1325
      %1327 = vrot.lane.b32.xlu0 %v802, 12
      %v1328 = vpop.permute.xlu0 %1327
      %1329 = vrot.lane.b32.xlu0 %v885, 12
      %v1330 = vpop.permute.xlu0 %1329
      %1331 = vrot.lane.b32.xlu0 %v805, 12
      %v1332 = vpop.permute.xlu0 %1331
      %1333 = vrot.lane.b32.xlu0 %v886, 12
      %v1334 = vpop.permute.xlu0 %1333
      %1335 = vrot.lane.b32.xlu0 %v808, 12
      %v1336 = vpop.permute.xlu0 %1335
      %1337 = vrot.lane.b32.xlu0 %v887, 12
      %v1338 = vpop.permute.xlu0 %1337
      %1339 = vrot.lane.b32.xlu0 %v811, 12
      %v1340 = vpop.permute.xlu0 %1339
      %1341 = vrot.lane.b32.xlu0 %v888, 12
      %v1342 = vpop.permute.xlu0 %1341
      %1343 = vrot.lane.b32.xlu0 %v814, 12
      %v1344 = vpop.permute.xlu0 %1343
      %1345 = vrot.lane.b32.xlu0 %v889, 12
      %v1346 = vpop.permute.xlu0 %1345
      %1347 = vrot.lane.b32.xlu0 %v817, 12
      %v1348 = vpop.permute.xlu0 %1347
      %1349 = vrot.lane.b32.xlu0 %v890, 12
      %v1350 = vpop.permute.xlu0 %1349
      %1351 = vrot.lane.b32.xlu0 %v820, 12
      %v1352 = vpop.permute.xlu0 %1351
      %1353 = vrot.lane.b32.xlu0 %v891, 12
      %v1354 = vpop.permute.xlu0 %1353
      %1355 = vrot.lane.b32.xlu0 %v823, 12
      %v1356 = vpop.permute.xlu0 %1355
      %1357 = vrot.lane.b32.xlu0 %v892, 12
      %v1358 = vpop.permute.xlu0 %1357
      %1359 = vrot.lane.b32.xlu0 %v826, 12
      %v1360 = vpop.permute.xlu0 %1359
      %v1394 = vrot.slane %v892, 1
      %v1395 = vrot.slane %v826, 1
      %v1396 = vsel %vm942, %v1394, %v1395
      %v1397 = vrot.slane %v909, 1
      %v1398 = vsel %vm942, %v1395, %v1397
      %1399 = vrot.lane.b32.xlu0 %v950, 16
      %v1400 = vpop.permute.xlu0 %1399
      %1401 = vrot.lane.b32.xlu0 %v952, 16
      %v1402 = vpop.permute.xlu0 %1401
      %1403 = vrot.lane.b32.xlu0 %v955, 16
      %v1404 = vpop.permute.xlu0 %1403
      %1405 = vrot.lane.b32.xlu0 %v957, 16
      %v1406 = vpop.permute.xlu0 %1405
      %1407 = vrot.lane.b32.xlu0 %v960, 16
      %v1408 = vpop.permute.xlu0 %1407
      %1409 = vrot.lane.b32.xlu0 %v962, 16
      %v1410 = vpop.permute.xlu0 %1409
      %1411 = vrot.lane.b32.xlu0 %v965, 16
      %v1412 = vpop.permute.xlu0 %1411
      %1413 = vrot.lane.b32.xlu0 %v967, 16
      %v1414 = vpop.permute.xlu0 %1413
      %1415 = vrot.lane.b32.xlu0 %v970, 16
      %v1416 = vpop.permute.xlu0 %1415
      %1417 = vrot.lane.b32.xlu0 %v972, 16
      %v1418 = vpop.permute.xlu0 %1417
      %1419 = vrot.lane.b32.xlu0 %v975, 16
      %v1420 = vpop.permute.xlu0 %1419
      %1421 = vrot.lane.b32.xlu0 %v977, 16
      %v1422 = vpop.permute.xlu0 %1421
      %1423 = vrot.lane.b32.xlu0 %v980, 16
      %v1424 = vpop.permute.xlu0 %1423
      %1425 = vrot.lane.b32.xlu0 %v982, 16
      %v1426 = vpop.permute.xlu0 %1425
      %1427 = vrot.lane.b32.xlu0 %v985, 16
      %v1428 = vpop.permute.xlu0 %1427
      %1429 = vrot.lane.b32.xlu0 %v987, 16
      %v1430 = vpop.permute.xlu0 %1429
      %1431 = vrot.lane.b32.xlu0 %v990, 16
      %v1432 = vpop.permute.xlu0 %1431
      %1433 = vrot.lane.b32.xlu0 %v992, 16
      %v1434 = vpop.permute.xlu0 %1433
      %1435 = vrot.lane.b32.xlu0 %v995, 16
      %v1436 = vpop.permute.xlu0 %1435
      %1437 = vrot.lane.b32.xlu0 %v997, 16
      %v1438 = vpop.permute.xlu0 %1437
      %1439 = vrot.lane.b32.xlu0 %v1000, 16
      %v1440 = vpop.permute.xlu0 %1439
      %1441 = vrot.lane.b32.xlu0 %v1002, 16
      %v1442 = vpop.permute.xlu0 %1441
      %1443 = vrot.lane.b32.xlu0 %v1005, 16
      %v1444 = vpop.permute.xlu0 %1443
      %1445 = vrot.lane.b32.xlu0 %v1007, 16
      %v1446 = vpop.permute.xlu0 %1445
      %1447 = vrot.lane.b32.xlu0 %v1010, 16
      %v1448 = vpop.permute.xlu0 %1447
      %1449 = vrot.lane.b32.xlu0 %v1012, 16
      %v1450 = vpop.permute.xlu0 %1449
      %1451 = vrot.lane.b32.xlu0 %v1015, 16
      %v1452 = vpop.permute.xlu0 %1451
      %1453 = vrot.lane.b32.xlu0 %v1017, 16
      %v1454 = vpop.permute.xlu0 %1453
      %1455 = vrot.lane.b32.xlu0 %v1020, 16
      %v1456 = vpop.permute.xlu0 %1455
      %1457 = vrot.lane.b32.xlu0 %v1022, 16
      %v1458 = vpop.permute.xlu0 %1457
      %1459 = vrot.lane.b32.xlu0 %v1396, 16
      %v1460 = vpop.permute.xlu0 %1459
      %1461 = vrot.lane.b32.xlu0 %v1398, 16
      %v1462 = vpop.permute.xlu0 %1461
      %v1495 = vrot.slane %v892, 2
      %v1496 = vrot.slane %v826, 2
      %v1497 = vsel %vm1119, %v1495, %v1496
      %v1498 = vrot.slane %v909, 2
      %v1499 = vsel %vm1119, %v1496, %v1498
      %1500 = vrot.lane.b32.xlu0 %v1127, 20
      %v1501 = vpop.permute.xlu0 %1500
      %1502 = vrot.lane.b32.xlu0 %v1129, 20
      %v1503 = vpop.permute.xlu0 %1502
      %1504 = vrot.lane.b32.xlu0 %v1132, 20
      %v1505 = vpop.permute.xlu0 %1504
      %1506 = vrot.lane.b32.xlu0 %v1134, 20
      %v1507 = vpop.permute.xlu0 %1506
      %1508 = vrot.lane.b32.xlu0 %v1137, 20
      %v1509 = vpop.permute.xlu0 %1508
      %1510 = vrot.lane.b32.xlu0 %v1139, 20
      %v1511 = vpop.permute.xlu0 %1510
      %1512 = vrot.lane.b32.xlu0 %v1142, 20
      %v1513 = vpop.permute.xlu0 %1512
      %1514 = vrot.lane.b32.xlu0 %v1144, 20
      %v1515 = vpop.permute.xlu0 %1514
      %1516 = vrot.lane.b32.xlu0 %v1147, 20
      %v1517 = vpop.permute.xlu0 %1516
      %1518 = vrot.lane.b32.xlu0 %v1149, 20
      %v1519 = vpop.permute.xlu0 %1518
      %1520 = vrot.lane.b32.xlu0 %v1152, 20
      %v1521 = vpop.permute.xlu0 %1520
      %1522 = vrot.lane.b32.xlu0 %v1154, 20
      %v1523 = vpop.permute.xlu0 %1522
      %1524 = vrot.lane.b32.xlu0 %v1157, 20
      %v1525 = vpop.permute.xlu0 %1524
      %1526 = vrot.lane.b32.xlu0 %v1159, 20
      %v1527 = vpop.permute.xlu0 %1526
      %1528 = vrot.lane.b32.xlu0 %v1162, 20
      %v1529 = vpop.permute.xlu0 %1528
      %1530 = vrot.lane.b32.xlu0 %v1164, 20
      %v1531 = vpop.permute.xlu0 %1530
      %1532 = vrot.lane.b32.xlu0 %v1167, 20
      %v1533 = vpop.permute.xlu0 %1532
      %1534 = vrot.lane.b32.xlu0 %v1169, 20
      %v1535 = vpop.permute.xlu0 %1534
      %1536 = vrot.lane.b32.xlu0 %v1172, 20
      %v1537 = vpop.permute.xlu0 %1536
      %1538 = vrot.lane.b32.xlu0 %v1174, 20
      %v1539 = vpop.permute.xlu0 %1538
      %1540 = vrot.lane.b32.xlu0 %v1177, 20
      %v1541 = vpop.permute.xlu0 %1540
      %1542 = vrot.lane.b32.xlu0 %v1179, 20
      %v1543 = vpop.permute.xlu0 %1542
      %1544 = vrot.lane.b32.xlu0 %v1182, 20
      %v1545 = vpop.permute.xlu0 %1544
      %1546 = vrot.lane.b32.xlu0 %v1184, 20
      %v1547 = vpop.permute.xlu0 %1546
      %1548 = vrot.lane.b32.xlu0 %v1187, 20
      %v1549 = vpop.permute.xlu0 %1548
      %1550 = vrot.lane.b32.xlu0 %v1189, 20
      %v1551 = vpop.permute.xlu0 %1550
      %1552 = vrot.lane.b32.xlu0 %v1192, 20
      %v1553 = vpop.permute.xlu0 %1552
      %1554 = vrot.lane.b32.xlu0 %v1194, 20
      %v1555 = vpop.permute.xlu0 %1554
      %1556 = vrot.lane.b32.xlu0 %v1197, 20
      %v1557 = vpop.permute.xlu0 %1556
      %1558 = vrot.lane.b32.xlu0 %v1199, 20
      %v1559 = vpop.permute.xlu0 %1558
      %1560 = vrot.lane.b32.xlu0 %v1497, 20
      %v1561 = vpop.permute.xlu0 %1560
      %1562 = vrot.lane.b32.xlu0 %v1499, 20
      %v1563 = vpop.permute.xlu0 %1562
      %1596 = vrot.lane.b32.xlu0 %v878, 24
      %v1597 = vpop.permute.xlu0 %1596
      %1598 = vrot.lane.b32.xlu0 %v784, 24
      %v1599 = vpop.permute.xlu0 %1598
      %1600 = vrot.lane.b32.xlu0 %v879, 24
      %v1601 = vpop.permute.xlu0 %1600
      %1602 = vrot.lane.b32.xlu0 %v787, 24
      %v1603 = vpop.permute.xlu0 %1602
      %1604 = vrot.lane.b32.xlu0 %v880, 24
      %v1605 = vpop.permute.xlu0 %1604
      %1606 = vrot.lane.b32.xlu0 %v790, 24
      %v1607 = vpop.permute.xlu0 %1606
      %1608 = vrot.lane.b32.xlu0 %v881, 24
      %v1609 = vpop.permute.xlu0 %1608
      %1610 = vrot.lane.b32.xlu0 %v793, 24
      %v1611 = vpop.permute.xlu0 %1610
      %1612 = vrot.lane.b32.xlu0 %v882, 24
      %v1613 = vpop.permute.xlu0 %1612
      %1614 = vrot.lane.b32.xlu0 %v796, 24
      %v1615 = vpop.permute.xlu0 %1614
      %1616 = vrot.lane.b32.xlu0 %v883, 24
      %v1617 = vpop.permute.xlu0 %1616
      %1618 = vrot.lane.b32.xlu0 %v799, 24
      %v1619 = vpop.permute.xlu0 %1618
      %1620 = vrot.lane.b32.xlu0 %v884, 24
      %v1621 = vpop.permute.xlu0 %1620
      %1622 = vrot.lane.b32.xlu0 %v802, 24
      %v1623 = vpop.permute.xlu0 %1622
      %1624 = vrot.lane.b32.xlu0 %v885, 24
      %v1625 = vpop.permute.xlu0 %1624
      %1626 = vrot.lane.b32.xlu0 %v805, 24
      %v1627 = vpop.permute.xlu0 %1626
      %1628 = vrot.lane.b32.xlu0 %v886, 24
      %v1629 = vpop.permute.xlu0 %1628
      %1630 = vrot.lane.b32.xlu0 %v808, 24
      %v1631 = vpop.permute.xlu0 %1630
      %1632 = vrot.lane.b32.xlu0 %v887, 24
      %v1633 = vpop.permute.xlu0 %1632
      %1634 = vrot.lane.b32.xlu0 %v811, 24
      %v1635 = vpop.permute.xlu0 %1634
      %1636 = vrot.lane.b32.xlu0 %v888, 24
      %v1637 = vpop.permute.xlu0 %1636
      %1638 = vrot.lane.b32.xlu0 %v814, 24
      %v1639 = vpop.permute.xlu0 %1638
      %1640 = vrot.lane.b32.xlu0 %v889, 24
      %v1641 = vpop.permute.xlu0 %1640
      %1642 = vrot.lane.b32.xlu0 %v817, 24
      %v1643 = vpop.permute.xlu0 %1642
      %1644 = vrot.lane.b32.xlu0 %v890, 24
      %v1645 = vpop.permute.xlu0 %1644
      %1646 = vrot.lane.b32.xlu0 %v820, 24
      %v1647 = vpop.permute.xlu0 %1646
      %1648 = vrot.lane.b32.xlu0 %v891, 24
      %v1649 = vpop.permute.xlu0 %1648
      %1650 = vrot.lane.b32.xlu0 %v823, 24
      %v1651 = vpop.permute.xlu0 %1650
      %1652 = vrot.lane.b32.xlu0 %v892, 24
      %v1653 = vpop.permute.xlu0 %1652
      %1654 = vrot.lane.b32.xlu0 %v826, 24
      %v1655 = vpop.permute.xlu0 %1654
      %1656 = vrot.lane.b32.xlu0 %v876, 24
      %v1657 = vpop.permute.xlu0 %1656
      %1658 = vrot.lane.b32.xlu0 %v778, 24
      %v1659 = vpop.permute.xlu0 %1658
      %1692 = vrot.lane.b32.xlu0 %v955, 28
      %v1693 = vpop.permute.xlu0 %1692
      %1694 = vrot.lane.b32.xlu0 %v957, 28
      %v1695 = vpop.permute.xlu0 %1694
      %1696 = vrot.lane.b32.xlu0 %v960, 28
      %v1697 = vpop.permute.xlu0 %1696
      %1698 = vrot.lane.b32.xlu0 %v962, 28
      %v1699 = vpop.permute.xlu0 %1698
      %1700 = vrot.lane.b32.xlu0 %v965, 28
      %v1701 = vpop.permute.xlu0 %1700
      %1702 = vrot.lane.b32.xlu0 %v967, 28
      %v1703 = vpop.permute.xlu0 %1702
      %1704 = vrot.lane.b32.xlu0 %v970, 28
      %v1705 = vpop.permute.xlu0 %1704
      %1706 = vrot.lane.b32.xlu0 %v972, 28
      %v1707 = vpop.permute.xlu0 %1706
      %1708 = vrot.lane.b32.xlu0 %v975, 28
      %v1709 = vpop.permute.xlu0 %1708
      %1710 = vrot.lane.b32.xlu0 %v977, 28
      %v1711 = vpop.permute.xlu0 %1710
      %1712 = vrot.lane.b32.xlu0 %v980, 28
      %v1713 = vpop.permute.xlu0 %1712
      %1714 = vrot.lane.b32.xlu0 %v982, 28
      %v1715 = vpop.permute.xlu0 %1714
      %1716 = vrot.lane.b32.xlu0 %v985, 28
      %v1717 = vpop.permute.xlu0 %1716
      %1718 = vrot.lane.b32.xlu0 %v987, 28
      %v1719 = vpop.permute.xlu0 %1718
      %1720 = vrot.lane.b32.xlu0 %v990, 28
      %v1721 = vpop.permute.xlu0 %1720
      %1722 = vrot.lane.b32.xlu0 %v992, 28
      %v1723 = vpop.permute.xlu0 %1722
      %1724 = vrot.lane.b32.xlu0 %v995, 28
      %v1725 = vpop.permute.xlu0 %1724
      %1726 = vrot.lane.b32.xlu0 %v997, 28
      %v1727 = vpop.permute.xlu0 %1726
      %1728 = vrot.lane.b32.xlu0 %v1000, 28
      %v1729 = vpop.permute.xlu0 %1728
      %1730 = vrot.lane.b32.xlu0 %v1002, 28
      %v1731 = vpop.permute.xlu0 %1730
      %1732 = vrot.lane.b32.xlu0 %v1005, 28
      %v1733 = vpop.permute.xlu0 %1732
      %1734 = vrot.lane.b32.xlu0 %v1007, 28
      %v1735 = vpop.permute.xlu0 %1734
      %1736 = vrot.lane.b32.xlu0 %v1010, 28
      %v1737 = vpop.permute.xlu0 %1736
      %1738 = vrot.lane.b32.xlu0 %v1012, 28
      %v1739 = vpop.permute.xlu0 %1738
      %1740 = vrot.lane.b32.xlu0 %v1015, 28
      %v1741 = vpop.permute.xlu0 %1740
      %1742 = vrot.lane.b32.xlu0 %v1017, 28
      %v1743 = vpop.permute.xlu0 %1742
      %1744 = vrot.lane.b32.xlu0 %v1020, 28
      %v1745 = vpop.permute.xlu0 %1744
      %1746 = vrot.lane.b32.xlu0 %v1022, 28
      %v1747 = vpop.permute.xlu0 %1746
      %1748 = vrot.lane.b32.xlu0 %v1396, 28
      %v1749 = vpop.permute.xlu0 %1748
      %1750 = vrot.lane.b32.xlu0 %v1398, 28
      %v1751 = vpop.permute.xlu0 %1750
      %1752 = vrot.lane.b32.xlu0 %v945, 28
      %v1753 = vpop.permute.xlu0 %1752
      %1754 = vrot.lane.b32.xlu0 %v947, 28
      %v1755 = vpop.permute.xlu0 %1754
      %1788 = vrot.lane.b32.xlu0 %v1132, 32
      %v1789 = vpop.permute.xlu0 %1788
      %1790 = vrot.lane.b32.xlu0 %v1134, 32
      %v1791 = vpop.permute.xlu0 %1790
      %1792 = vrot.lane.b32.xlu0 %v1137, 32
      %v1793 = vpop.permute.xlu0 %1792
      %1794 = vrot.lane.b32.xlu0 %v1139, 32
      %v1795 = vpop.permute.xlu0 %1794
      %1796 = vrot.lane.b32.xlu0 %v1142, 32
      %v1797 = vpop.permute.xlu0 %1796
      %1798 = vrot.lane.b32.xlu0 %v1144, 32
      %v1799 = vpop.permute.xlu0 %1798
      %1800 = vrot.lane.b32.xlu0 %v1147, 32
      %v1801 = vpop.permute.xlu0 %1800
      %1802 = vrot.lane.b32.xlu0 %v1149, 32
      %v1803 = vpop.permute.xlu0 %1802
      %1804 = vrot.lane.b32.xlu0 %v1152, 32
      %v1805 = vpop.permute.xlu0 %1804
      %1806 = vrot.lane.b32.xlu0 %v1154, 32
      %v1807 = vpop.permute.xlu0 %1806
      %1808 = vrot.lane.b32.xlu0 %v1157, 32
      %v1809 = vpop.permute.xlu0 %1808
      %1810 = vrot.lane.b32.xlu0 %v1159, 32
      %v1811 = vpop.permute.xlu0 %1810
      %1812 = vrot.lane.b32.xlu0 %v1162, 32
      %v1813 = vpop.permute.xlu0 %1812
      %1814 = vrot.lane.b32.xlu0 %v1164, 32
      %v1815 = vpop.permute.xlu0 %1814
      %1816 = vrot.lane.b32.xlu0 %v1167, 32
      %v1817 = vpop.permute.xlu0 %1816
      %1818 = vrot.lane.b32.xlu0 %v1169, 32
      %v1819 = vpop.permute.xlu0 %1818
      %1820 = vrot.lane.b32.xlu0 %v1172, 32
      %v1821 = vpop.permute.xlu0 %1820
      %1822 = vrot.lane.b32.xlu0 %v1174, 32
      %v1823 = vpop.permute.xlu0 %1822
      %1824 = vrot.lane.b32.xlu0 %v1177, 32
      %v1825 = vpop.permute.xlu0 %1824
      %1826 = vrot.lane.b32.xlu0 %v1179, 32
      %v1827 = vpop.permute.xlu0 %1826
      %1828 = vrot.lane.b32.xlu0 %v1182, 32
      %v1829 = vpop.permute.xlu0 %1828
      %1830 = vrot.lane.b32.xlu0 %v1184, 32
      %v1831 = vpop.permute.xlu0 %1830
      %1832 = vrot.lane.b32.xlu0 %v1187, 32
      %v1833 = vpop.permute.xlu0 %1832
      %1834 = vrot.lane.b32.xlu0 %v1189, 32
      %v1835 = vpop.permute.xlu0 %1834
      %1836 = vrot.lane.b32.xlu0 %v1192, 32
      %v1837 = vpop.permute.xlu0 %1836
      %1838 = vrot.lane.b32.xlu0 %v1194, 32
      %v1839 = vpop.permute.xlu0 %1838
      %1840 = vrot.lane.b32.xlu0 %v1197, 32
      %v1841 = vpop.permute.xlu0 %1840
      %1842 = vrot.lane.b32.xlu0 %v1199, 32
      %v1843 = vpop.permute.xlu0 %1842
      %1844 = vrot.lane.b32.xlu0 %v1497, 32
      %v1845 = vpop.permute.xlu0 %1844
      %1846 = vrot.lane.b32.xlu0 %v1499, 32
      %v1847 = vpop.permute.xlu0 %1846
      %1848 = vrot.lane.b32.xlu0 %v1122, 32
      %v1849 = vpop.permute.xlu0 %1848
      %1850 = vrot.lane.b32.xlu0 %v1124, 32
      %v1851 = vpop.permute.xlu0 %1850
      %vm1884 = vcmask 31744
      %v1885 = vsel %vm1884, %v876, %v1024
      %v1886 = vsel %vm1884, %v778, %v1026
      %v1887 = vsel %vm1884, %v877, %v1028
      %v1888 = vsel %vm1884, %v781, %v1030
      %v1889 = vsel %vm1884, %v878, %v1032
      %v1890 = vsel %vm1884, %v784, %v1034
      %v1891 = vsel %vm1884, %v879, %v1036
      %v1892 = vsel %vm1884, %v787, %v1038
      %v1893 = vsel %vm1884, %v880, %v1040
      %v1894 = vsel %vm1884, %v790, %v1042
      %v1895 = vsel %vm1884, %v881, %v1044
      %v1896 = vsel %vm1884, %v793, %v1046
      %v1897 = vsel %vm1884, %v882, %v1048
      %v1898 = vsel %vm1884, %v796, %v1050
      %v1899 = vsel %vm1884, %v883, %v1052
      %v1900 = vsel %vm1884, %v799, %v1054
      %v1901 = vsel %vm1884, %v884, %v1056
      %v1902 = vsel %vm1884, %v802, %v1058
      %v1903 = vsel %vm1884, %v885, %v1060
      %v1904 = vsel %vm1884, %v805, %v1062
      %v1905 = vsel %vm1884, %v886, %v1064
      %v1906 = vsel %vm1884, %v808, %v1066
      %v1907 = vsel %vm1884, %v887, %v1068
      %v1908 = vsel %vm1884, %v811, %v1070
      %v1909 = vsel %vm1884, %v888, %v1072
      %v1910 = vsel %vm1884, %v814, %v1074
      %v1911 = vsel %vm1884, %v889, %v1076
      %v1912 = vsel %vm1884, %v817, %v1078
      %v1913 = vsel %vm1884, %v890, %v1080
      %v1914 = vsel %vm1884, %v820, %v1082
      %v1915 = vsel %vm1884, %v891, %v1084
      %v1916 = vsel %vm1884, %v823, %v1086
      %vm1917 = vcmask 64512
      %v1918 = vsel %vm1917, %v1885, %v1201
      %v1919 = vsel %vm1917, %v1886, %v1203
      %v1920 = vsel %vm1917, %v1887, %v1205
      %v1921 = vsel %vm1917, %v1888, %v1207
      %v1922 = vsel %vm1917, %v1889, %v1209
      %v1923 = vsel %vm1917, %v1890, %v1211
      %v1924 = vsel %vm1917, %v1891, %v1213
      %v1925 = vsel %vm1917, %v1892, %v1215
      %v1926 = vsel %vm1917, %v1893, %v1217
      %v1927 = vsel %vm1917, %v1894, %v1219
      %v1928 = vsel %vm1917, %v1895, %v1221
      %v1929 = vsel %vm1917, %v1896, %v1223
      %v1930 = vsel %vm1917, %v1897, %v1225
      %v1931 = vsel %vm1917, %v1898, %v1227
      %v1932 = vsel %vm1917, %v1899, %v1229
      %v1933 = vsel %vm1917, %v1900, %v1231
      %v1934 = vsel %vm1917, %v1901, %v1233
      %v1935 = vsel %vm1917, %v1902, %v1235
      %v1936 = vsel %vm1917, %v1903, %v1237
      %v1937 = vsel %vm1917, %v1904, %v1239
      %v1938 = vsel %vm1917, %v1905, %v1241
      %v1939 = vsel %vm1917, %v1906, %v1243
      %v1940 = vsel %vm1917, %v1907, %v1245
      %v1941 = vsel %vm1917, %v1908, %v1247
      %v1942 = vsel %vm1917, %v1909, %v1249
      %v1943 = vsel %vm1917, %v1910, %v1251
      %v1944 = vsel %vm1917, %v1911, %v1253
      %v1945 = vsel %vm1917, %v1912, %v1255
      %v1946 = vsel %vm1917, %v1913, %v1257
      %v1947 = vsel %vm1917, %v1914, %v1259
      %v1948 = vsel %vm1917, %v1915, %v1261
      %v1949 = vsel %vm1917, %v1916, %v1263
      %vm1950 = vcmask 97280
      %v1951 = vsel %vm1950, %v1918, %v1298
      %v1952 = vsel %vm1950, %v1919, %v1300
      %v1953 = vsel %vm1950, %v1920, %v1302
      %v1954 = vsel %vm1950, %v1921, %v1304
      %v1955 = vsel %vm1950, %v1922, %v1306
      %v1956 = vsel %vm1950, %v1923, %v1308
      %v1957 = vsel %vm1950, %v1924, %v1310
      %v1958 = vsel %vm1950, %v1925, %v1312
      %v1959 = vsel %vm1950, %v1926, %v1314
      %v1960 = vsel %vm1950, %v1927, %v1316
      %v1961 = vsel %vm1950, %v1928, %v1318
      %v1962 = vsel %vm1950, %v1929, %v1320
      %v1963 = vsel %vm1950, %v1930, %v1322
      %v1964 = vsel %vm1950, %v1931, %v1324
      %v1965 = vsel %vm1950, %v1932, %v1326
      %v1966 = vsel %vm1950, %v1933, %v1328
      %v1967 = vsel %vm1950, %v1934, %v1330
      %v1968 = vsel %vm1950, %v1935, %v1332
      %v1969 = vsel %vm1950, %v1936, %v1334
      %v1970 = vsel %vm1950, %v1937, %v1336
      %v1971 = vsel %vm1950, %v1938, %v1338
      %v1972 = vsel %vm1950, %v1939, %v1340
      %v1973 = vsel %vm1950, %v1940, %v1342
      %v1974 = vsel %vm1950, %v1941, %v1344
      %v1975 = vsel %vm1950, %v1942, %v1346
      %v1976 = vsel %vm1950, %v1943, %v1348
      %v1977 = vsel %vm1950, %v1944, %v1350
      %v1978 = vsel %vm1950, %v1945, %v1352
      %v1979 = vsel %vm1950, %v1946, %v1354
      %v1980 = vsel %vm1950, %v1947, %v1356
      %v1981 = vsel %vm1950, %v1948, %v1358
      %v1982 = vsel %vm1950, %v1949, %v1360
      %vm1983 = vcmask 130048
      %v1984 = vsel %vm1983, %v1951, %v1400
      %v1985 = vsel %vm1983, %v1952, %v1402
      %v1986 = vsel %vm1983, %v1953, %v1404
      %v1987 = vsel %vm1983, %v1954, %v1406
      %v1988 = vsel %vm1983, %v1955, %v1408
      %v1989 = vsel %vm1983, %v1956, %v1410
      %v1990 = vsel %vm1983, %v1957, %v1412
      %v1991 = vsel %vm1983, %v1958, %v1414
      %v1992 = vsel %vm1983, %v1959, %v1416
      %v1993 = vsel %vm1983, %v1960, %v1418
      %v1994 = vsel %vm1983, %v1961, %v1420
      %v1995 = vsel %vm1983, %v1962, %v1422
      %v1996 = vsel %vm1983, %v1963, %v1424
      %v1997 = vsel %vm1983, %v1964, %v1426
      %v1998 = vsel %vm1983, %v1965, %v1428
      %v1999 = vsel %vm1983, %v1966, %v1430
      %v2000 = vsel %vm1983, %v1967, %v1432
      %v2001 = vsel %vm1983, %v1968, %v1434
      %v2002 = vsel %vm1983, %v1969, %v1436
      %v2003 = vsel %vm1983, %v1970, %v1438
      %v2004 = vsel %vm1983, %v1971, %v1440
      %v2005 = vsel %vm1983, %v1972, %v1442
      %v2006 = vsel %vm1983, %v1973, %v1444
      %v2007 = vsel %vm1983, %v1974, %v1446
      %v2008 = vsel %vm1983, %v1975, %v1448
      %v2009 = vsel %vm1983, %v1976, %v1450
      %v2010 = vsel %vm1983, %v1977, %v1452
      %v2011 = vsel %vm1983, %v1978, %v1454
      %v2012 = vsel %vm1983, %v1979, %v1456
      %v2013 = vsel %vm1983, %v1980, %v1458
      %v2014 = vsel %vm1983, %v1981, %v1460
      %v2015 = vsel %vm1983, %v1982, %v1462
      %vm2016 = vcmask 162816
      %v2017 = vsel %vm2016, %v1984, %v1501
      %v2018 = vsel %vm2016, %v1985, %v1503
      %v2019 = vsel %vm2016, %v1986, %v1505
      %v2020 = vsel %vm2016, %v1987, %v1507
      %v2021 = vsel %vm2016, %v1988, %v1509
      %v2022 = vsel %vm2016, %v1989, %v1511
      %v2023 = vsel %vm2016, %v1990, %v1513
      %v2024 = vsel %vm2016, %v1991, %v1515
      %v2025 = vsel %vm2016, %v1992, %v1517
      %v2026 = vsel %vm2016, %v1993, %v1519
      %v2027 = vsel %vm2016, %v1994, %v1521
      %v2028 = vsel %vm2016, %v1995, %v1523
      %v2029 = vsel %vm2016, %v1996, %v1525
      %v2030 = vsel %vm2016, %v1997, %v1527
      %v2031 = vsel %vm2016, %v1998, %v1529
      %v2032 = vsel %vm2016, %v1999, %v1531
      %v2033 = vsel %vm2016, %v2000, %v1533
      %v2034 = vsel %vm2016, %v2001, %v1535
      %v2035 = vsel %vm2016, %v2002, %v1537
      %v2036 = vsel %vm2016, %v2003, %v1539
      %v2037 = vsel %vm2016, %v2004, %v1541
      %v2038 = vsel %vm2016, %v2005, %v1543
      %v2039 = vsel %vm2016, %v2006, %v1545
      %v2040 = vsel %vm2016, %v2007, %v1547
      %v2041 = vsel %vm2016, %v2008, %v1549
      %v2042 = vsel %vm2016, %v2009, %v1551
      %v2043 = vsel %vm2016, %v2010, %v1553
      %v2044 = vsel %vm2016, %v2011, %v1555
      %v2045 = vsel %vm2016, %v2012, %v1557
      %v2046 = vsel %vm2016, %v2013, %v1559
      %v2047 = vsel %vm2016, %v2014, %v1561
      %v2048 = vsel %vm2016, %v2015, %v1563
      %vm2049 = vcmask 195584
      %v2050 = vsel %vm2049, %v2017, %v1597
      %v2051 = vsel %vm2049, %v2018, %v1599
      %v2052 = vsel %vm2049, %v2019, %v1601
      %v2053 = vsel %vm2049, %v2020, %v1603
      %v2054 = vsel %vm2049, %v2021, %v1605
      %v2055 = vsel %vm2049, %v2022, %v1607
      %v2056 = vsel %vm2049, %v2023, %v1609
      %v2057 = vsel %vm2049, %v2024, %v1611
      %v2058 = vsel %vm2049, %v2025, %v1613
      %v2059 = vsel %vm2049, %v2026, %v1615
      %v2060 = vsel %vm2049, %v2027, %v1617
      %v2061 = vsel %vm2049, %v2028, %v1619
      %v2062 = vsel %vm2049, %v2029, %v1621
      %v2063 = vsel %vm2049, %v2030, %v1623
      %v2064 = vsel %vm2049, %v2031, %v1625
      %v2065 = vsel %vm2049, %v2032, %v1627
      %v2066 = vsel %vm2049, %v2033, %v1629
      %v2067 = vsel %vm2049, %v2034, %v1631
      %v2068 = vsel %vm2049, %v2035, %v1633
      %v2069 = vsel %vm2049, %v2036, %v1635
      %v2070 = vsel %vm2049, %v2037, %v1637
      %v2071 = vsel %vm2049, %v2038, %v1639
      %v2072 = vsel %vm2049, %v2039, %v1641
      %v2073 = vsel %vm2049, %v2040, %v1643
      %v2074 = vsel %vm2049, %v2041, %v1645
      %v2075 = vsel %vm2049, %v2042, %v1647
      %v2076 = vsel %vm2049, %v2043, %v1649
      %v2077 = vsel %vm2049, %v2044, %v1651
      %v2078 = vsel %vm2049, %v2045, %v1653
      %v2079 = vsel %vm2049, %v2046, %v1655
      %v2080 = vsel %vm2049, %v2047, %v1657
      %v2081 = vsel %vm2049, %v2048, %v1659
      %vm2082 = vcmask 228352
      %v2083 = vsel %vm2082, %v2050, %v1693
      %v2084 = vsel %vm2082, %v2051, %v1695
      %v2085 = vsel %vm2082, %v2052, %v1697
      %v2086 = vsel %vm2082, %v2053, %v1699
      %v2087 = vsel %vm2082, %v2054, %v1701
      %v2088 = vsel %vm2082, %v2055, %v1703
      %v2089 = vsel %vm2082, %v2056, %v1705
      %v2090 = vsel %vm2082, %v2057, %v1707
      %v2091 = vsel %vm2082, %v2058, %v1709
      %v2092 = vsel %vm2082, %v2059, %v1711
      %v2093 = vsel %vm2082, %v2060, %v1713
      %v2094 = vsel %vm2082, %v2061, %v1715
      %v2095 = vsel %vm2082, %v2062, %v1717
      %v2096 = vsel %vm2082, %v2063, %v1719
      %v2097 = vsel %vm2082, %v2064, %v1721
      %v2098 = vsel %vm2082, %v2065, %v1723
      %v2099 = vsel %vm2082, %v2066, %v1725
      %v2100 = vsel %vm2082, %v2067, %v1727
      %v2101 = vsel %vm2082, %v2068, %v1729
      %v2102 = vsel %vm2082, %v2069, %v1731
      %v2103 = vsel %vm2082, %v2070, %v1733
      %v2104 = vsel %vm2082, %v2071, %v1735
      %v2105 = vsel %vm2082, %v2072, %v1737
      %v2106 = vsel %vm2082, %v2073, %v1739
      %v2107 = vsel %vm2082, %v2074, %v1741
      %v2108 = vsel %vm2082, %v2075, %v1743
      %v2109 = vsel %vm2082, %v2076, %v1745
      %v2110 = vsel %vm2082, %v2077, %v1747
      %v2111 = vsel %vm2082, %v2078, %v1749
      %v2112 = vsel %vm2082, %v2079, %v1751
      %v2113 = vsel %vm2082, %v2080, %v1753
      %v2114 = vsel %vm2082, %v2081, %v1755
      %vm2115 = vcmask 261120
      %v2116 = vsel %vm2115, %v2083, %v1789
      %v2117 = vsel %vm2115, %v2084, %v1791
      %v2118 = vsel %vm2115, %v2085, %v1793
      %v2119 = vsel %vm2115, %v2086, %v1795
      %v2120 = vsel %vm2115, %v2087, %v1797
      %v2121 = vsel %vm2115, %v2088, %v1799
      %v2122 = vsel %vm2115, %v2089, %v1801
      %v2123 = vsel %vm2115, %v2090, %v1803
      %v2124 = vsel %vm2115, %v2091, %v1805
      %v2125 = vsel %vm2115, %v2092, %v1807
      %v2126 = vsel %vm2115, %v2093, %v1809
      %v2127 = vsel %vm2115, %v2094, %v1811
      %v2128 = vsel %vm2115, %v2095, %v1813
      %v2129 = vsel %vm2115, %v2096, %v1815
      %v2130 = vsel %vm2115, %v2097, %v1817
      %v2131 = vsel %vm2115, %v2098, %v1819
      %v2132 = vsel %vm2115, %v2099, %v1821
      %v2133 = vsel %vm2115, %v2100, %v1823
      %v2134 = vsel %vm2115, %v2101, %v1825
      %v2135 = vsel %vm2115, %v2102, %v1827
      %v2136 = vsel %vm2115, %v2103, %v1829
      %v2137 = vsel %vm2115, %v2104, %v1831
      %v2138 = vsel %vm2115, %v2105, %v1833
      %v2139 = vsel %vm2115, %v2106, %v1835
      %v2140 = vsel %vm2115, %v2107, %v1837
      %v2141 = vsel %vm2115, %v2108, %v1839
      %v2142 = vsel %vm2115, %v2109, %v1841
      %v2143 = vsel %vm2115, %v2110, %v1843
      %v2144 = vsel %vm2115, %v2111, %v1845
      %v2145 = vsel %vm2115, %v2112, %v1847
      %v2146 = vsel %vm2115, %v2113, %v1849
      %v2147 = vsel %vm2115, %v2114, %v1851
      %v2148 = vld [vmem:[%s1] sm:$0xff]
      %v2149 = vld [vmem:[%s1 + $0x8] sm:$0xff]
      %v2150 = vld [vmem:[%s1 + $0x10] sm:$0xff]
      %v2151 = vld [vmem:[%s1 + $0x18] sm:$0xff]
      %v2152 = vld [vmem:[%s1 + $0x20] sm:$0xf]
      %v2153 = vld [vmem:[%s2] sm:$0x1]
      %v2155 = vperm.slane %v2153, 0
      %vm2157 = vcmask 293888
      %v2159 = vsel %vm2157, %v2116, 0
      %v2162 = vsel %vm2157, %v2117, 0
      %v2165 = vsel %vm2157, %v2118, 0
      %v2168 = vsel %vm2157, %v2119, 0
      %v2171 = vsel %vm2157, %v2120, 0
      %v2174 = vsel %vm2157, %v2121, 0
      %v2177 = vsel %vm2157, %v2122, 0
      %v2180 = vsel %vm2157, %v2123, 0
      %v2183 = vsel %vm2157, %v2124, 0
      %v2186 = vsel %vm2157, %v2125, 0
      %v2189 = vsel %vm2157, %v2126, 0
      %v2192 = vsel %vm2157, %v2127, 0
      %v2195 = vsel %vm2157, %v2128, 0
      %v2198 = vsel %vm2157, %v2129, 0
      %v2201 = vsel %vm2157, %v2130, 0
      %v2204 = vsel %vm2157, %v2131, 0
      %v2207 = vsel %vm2157, %v2132, 0
      %v2210 = vsel %vm2157, %v2133, 0
      %v2213 = vsel %vm2157, %v2134, 0
      %v2216 = vsel %vm2157, %v2135, 0
      %v2219 = vsel %vm2157, %v2136, 0
      %v2222 = vsel %vm2157, %v2137, 0
      %v2225 = vsel %vm2157, %v2138, 0
      %v2228 = vsel %vm2157, %v2139, 0
      %v2231 = vsel %vm2157, %v2140, 0
      %v2234 = vsel %vm2157, %v2141, 0
      %v2237 = vsel %vm2157, %v2142, 0
      %v2240 = vsel %vm2157, %v2143, 0
      %v2243 = vsel %vm2157, %v2144, 0
      %v2246 = vsel %vm2157, %v2145, 0
      %v2249 = vsel %vm2157, %v2146, 0
      %v2252 = vsel %vm2157, %v2147, 0
      %vm2254 = vcmask 1043456
      %v2256 = vsel %vm2254, %v2152, 0
      %2258 = vmatpush.msra.mxu0 0.0
      %2259 = vmatpush.msra.mxu0 0.0
      %2260 = vmatpush.msra.mxu0 0.0
      %2261 = vmatpush.msra.mxu0 0.0
      %2262 = vmatpush.msra.mxu0 0.0
      %2263 = vmatpush.msra.mxu0 0.0
      %2264 = vmatpush.msra.mxu0 0.0
      %2265 = vmatpush.msra.mxu0 0.0
      %2266 = vmatpush.msra.mxu0 0.0
      %2267 = vmatpush.msra.mxu0 0.0
      %2268 = vmatpush.msra.mxu0 0.0
      %2269 = vmatpush.msra.mxu0 %v2256
      %2270 = vmatpush.msra.mxu0 %v2151
      %2271 = vmatpush.msra.mxu0 %v2150
      %2272 = vmatpush.msra.mxu0 %v2149
      %2273 = vmatpush.msra.mxu0 %v2148
      %2274 = vmatmul.f32.gmra.mxu0 %v2159
      %v2275 = vpop.f32.mrf.mxu0
      %v2276 = vadd.f32 %v2155, %v2275
      %2277 = vmatmul.f32.gmra.mxu0 %v2162
      %v2278 = vpop.f32.mrf.mxu0
      %v2279 = vadd.f32 %v2155, %v2278
      %2280 = vmatmul.f32.gmra.mxu0 %v2165
      %v2281 = vpop.f32.mrf.mxu0
      %v2282 = vadd.f32 %v2155, %v2281
      %2283 = vmatmul.f32.gmra.mxu0 %v2168
      %v2284 = vpop.f32.mrf.mxu0
      %v2285 = vadd.f32 %v2155, %v2284
      %2286 = vmatmul.f32.gmra.mxu0 %v2171
      %v2287 = vpop.f32.mrf.mxu0
      %v2288 = vadd.f32 %v2155, %v2287
      %2289 = vmatmul.f32.gmra.mxu0 %v2174
      %v2290 = vpop.f32.mrf.mxu0
      %v2291 = vadd.f32 %v2155, %v2290
      %2292 = vmatmul.f32.gmra.mxu0 %v2177
      %v2293 = vpop.f32.mrf.mxu0
      %v2294 = vadd.f32 %v2155, %v2293
      %2295 = vmatmul.f32.gmra.mxu0 %v2180
      %v2296 = vpop.f32.mrf.mxu0
      %v2297 = vadd.f32 %v2155, %v2296
      %2298 = vmatmul.f32.gmra.mxu0 %v2183
      %v2299 = vpop.f32.mrf.mxu0
      %v2300 = vadd.f32 %v2155, %v2299
      %2301 = vmatmul.f32.gmra.mxu0 %v2186
      %v2302 = vpop.f32.mrf.mxu0
      %v2303 = vadd.f32 %v2155, %v2302
      %2304 = vmatmul.f32.gmra.mxu0 %v2189
      %v2305 = vpop.f32.mrf.mxu0
      %v2306 = vadd.f32 %v2155, %v2305
      %2307 = vmatmul.f32.gmra.mxu0 %v2192
      %v2308 = vpop.f32.mrf.mxu0
      %v2309 = vadd.f32 %v2155, %v2308
      %2310 = vmatmul.f32.gmra.mxu0 %v2195
      %v2311 = vpop.f32.mrf.mxu0
      %v2312 = vadd.f32 %v2155, %v2311
      %2313 = vmatmul.f32.gmra.mxu0 %v2198
      %v2314 = vpop.f32.mrf.mxu0
      %v2315 = vadd.f32 %v2155, %v2314
      %2316 = vmatmul.f32.gmra.mxu0 %v2201
      %v2317 = vpop.f32.mrf.mxu0
      %v2318 = vadd.f32 %v2155, %v2317
      %2319 = vmatmul.f32.gmra.mxu0 %v2204
      %v2320 = vpop.f32.mrf.mxu0
      %v2321 = vadd.f32 %v2155, %v2320
      %2322 = vmatmul.f32.gmra.mxu0 %v2207
      %v2323 = vpop.f32.mrf.mxu0
      %v2324 = vadd.f32 %v2155, %v2323
      %2325 = vmatmul.f32.gmra.mxu0 %v2210
      %v2326 = vpop.f32.mrf.mxu0
      %v2327 = vadd.f32 %v2155, %v2326
      %2328 = vmatmul.f32.gmra.mxu0 %v2213
      %v2329 = vpop.f32.mrf.mxu0
      %v2330 = vadd.f32 %v2155, %v2329
      %2331 = vmatmul.f32.gmra.mxu0 %v2216
      %v2332 = vpop.f32.mrf.mxu0
      %v2333 = vadd.f32 %v2155, %v2332
      %2334 = vmatmul.f32.gmra.mxu0 %v2219
      %v2335 = vpop.f32.mrf.mxu0
      %v2336 = vadd.f32 %v2155, %v2335
      %2337 = vmatmul.f32.gmra.mxu0 %v2222
      %v2338 = vpop.f32.mrf.mxu0
      %v2339 = vadd.f32 %v2155, %v2338
      %2340 = vmatmul.f32.gmra.mxu0 %v2225
      %v2341 = vpop.f32.mrf.mxu0
      %v2342 = vadd.f32 %v2155, %v2341
      %2343 = vmatmul.f32.gmra.mxu0 %v2228
      %v2344 = vpop.f32.mrf.mxu0
      %v2345 = vadd.f32 %v2155, %v2344
      %2346 = vmatmul.f32.gmra.mxu0 %v2231
      %v2347 = vpop.f32.mrf.mxu0
      %v2348 = vadd.f32 %v2155, %v2347
      %2349 = vmatmul.f32.gmra.mxu0 %v2234
      %v2350 = vpop.f32.mrf.mxu0
      %v2351 = vadd.f32 %v2155, %v2350
      %2352 = vmatmul.f32.gmra.mxu0 %v2237
      %v2353 = vpop.f32.mrf.mxu0
      %v2354 = vadd.f32 %v2155, %v2353
      %2355 = vmatmul.f32.gmra.mxu0 %v2240
      %v2356 = vpop.f32.mrf.mxu0
      %v2357 = vadd.f32 %v2155, %v2356
      %2358 = vmatmul.f32.gmra.mxu0 %v2243
      %v2359 = vpop.f32.mrf.mxu0
      %v2360 = vadd.f32 %v2155, %v2359
      %2361 = vmatmul.f32.gmra.mxu0 %v2246
      %v2362 = vpop.f32.mrf.mxu0
      %v2363 = vadd.f32 %v2155, %v2362
      %2364 = vmatmul.f32.gmra.mxu0 %v2249
      %v2365 = vpop.f32.mrf.mxu0
      %v2366 = vadd.f32 %v2155, %v2365
      %2367 = vmatmul.f32.gmra.mxu0 %v2252
      %v2368 = vpop.f32.mrf.mxu0
      %v2369 = vadd.f32 %v2155, %v2368
      %2370 = vdwg.mxu0
      %v2371 = vmax.f32 %v2276, 0.0
      %v2372 = vmax.f32 %v2279, 0.0
      %v2373 = vmax.f32 %v2282, 0.0
      %v2374 = vmax.f32 %v2285, 0.0
      %v2375 = vmax.f32 %v2288, 0.0
      %v2376 = vmax.f32 %v2291, 0.0
      %v2377 = vmax.f32 %v2294, 0.0
      %v2378 = vmax.f32 %v2297, 0.0
      %v2379 = vmax.f32 %v2300, 0.0
      %v2380 = vmax.f32 %v2303, 0.0
      %v2381 = vmax.f32 %v2306, 0.0
      %v2382 = vmax.f32 %v2309, 0.0
      %v2383 = vmax.f32 %v2312, 0.0
      %v2384 = vmax.f32 %v2315, 0.0
      %v2385 = vmax.f32 %v2318, 0.0
      %v2386 = vmax.f32 %v2321, 0.0
      %v2387 = vmax.f32 %v2324, 0.0
      %v2388 = vmax.f32 %v2327, 0.0
      %v2389 = vmax.f32 %v2330, 0.0
      %v2390 = vmax.f32 %v2333, 0.0
      %v2391 = vmax.f32 %v2336, 0.0
      %v2392 = vmax.f32 %v2339, 0.0
      %v2393 = vmax.f32 %v2342, 0.0
      %v2394 = vmax.f32 %v2345, 0.0
      %v2395 = vmax.f32 %v2348, 0.0
      %v2396 = vmax.f32 %v2351, 0.0
      %v2397 = vmax.f32 %v2354, 0.0
      %v2398 = vmax.f32 %v2357, 0.0
      %v2399 = vmax.f32 %v2360, 0.0
      %v2400 = vmax.f32 %v2363, 0.0
      %v2401 = vmax.f32 %v2366, 0.0
      %v2402 = vmax.f32 %v2369, 0.0
      %v2435 = vrot.slane %v2371, 7
      %v2436 = vrot.slane %v2372, 7
      %v2437 = vsel %vm776, %v2435, %v2436
      %v2438 = vrot.slane %v2373, 7
      %v2439 = vrot.slane %v2374, 7
      %v2440 = vsel %vm776, %v2438, %v2439
      %v2441 = vrot.slane %v2375, 7
      %v2442 = vrot.slane %v2376, 7
      %v2443 = vsel %vm776, %v2441, %v2442
      %v2444 = vrot.slane %v2377, 7
      %v2445 = vrot.slane %v2378, 7
      %v2446 = vsel %vm776, %v2444, %v2445
      %v2447 = vrot.slane %v2379, 7
      %v2448 = vrot.slane %v2380, 7
      %v2449 = vsel %vm776, %v2447, %v2448
      %v2450 = vrot.slane %v2381, 7
      %v2451 = vrot.slane %v2382, 7
      %v2452 = vsel %vm776, %v2450, %v2451
      %v2453 = vrot.slane %v2383, 7
      %v2454 = vrot.slane %v2384, 7
      %v2455 = vsel %vm776, %v2453, %v2454
      %v2456 = vrot.slane %v2385, 7
      %v2457 = vrot.slane %v2386, 7
      %v2458 = vsel %vm776, %v2456, %v2457
      %v2459 = vrot.slane %v2387, 7
      %v2460 = vrot.slane %v2388, 7
      %v2461 = vsel %vm776, %v2459, %v2460
      %v2462 = vrot.slane %v2389, 7
      %v2463 = vrot.slane %v2390, 7
      %v2464 = vsel %vm776, %v2462, %v2463
      %v2465 = vrot.slane %v2391, 7
      %v2466 = vrot.slane %v2392, 7
      %v2467 = vsel %vm776, %v2465, %v2466
      %v2468 = vrot.slane %v2393, 7
      %v2469 = vrot.slane %v2394, 7
      %v2470 = vsel %vm776, %v2468, %v2469
      %v2471 = vrot.slane %v2395, 7
      %v2472 = vrot.slane %v2396, 7
      %v2473 = vsel %vm776, %v2471, %v2472
      %v2474 = vrot.slane %v2397, 7
      %v2475 = vrot.slane %v2398, 7
      %v2476 = vsel %vm776, %v2474, %v2475
      %v2477 = vrot.slane %v2399, 7
      %v2478 = vrot.slane %v2400, 7
      %v2479 = vsel %vm776, %v2477, %v2478
      %v2480 = vrot.slane %v2401, 7
      %v2481 = vrot.slane %v2402, 7
      %v2482 = vsel %vm776, %v2480, %v2481
      %v2530 = vsel %vm776, 0.0, %v2435
      %v2531 = vsel %vm776, 0.0, %v2438
      %v2532 = vsel %vm776, 0.0, %v2441
      %v2533 = vsel %vm776, 0.0, %v2444
      %v2534 = vsel %vm776, 0.0, %v2447
      %v2535 = vsel %vm776, 0.0, %v2450
      %v2536 = vsel %vm776, 0.0, %v2453
      %v2537 = vsel %vm776, 0.0, %v2456
      %v2538 = vsel %vm776, 0.0, %v2459
      %v2539 = vsel %vm776, 0.0, %v2462
      %v2540 = vsel %vm776, 0.0, %v2465
      %v2541 = vsel %vm776, 0.0, %v2468
      %v2542 = vsel %vm776, 0.0, %v2471
      %v2543 = vsel %vm776, 0.0, %v2474
      %v2544 = vsel %vm776, 0.0, %v2477
      %v2545 = vsel %vm776, 0.0, %v2480
      %v2546 = vsel %vm776, %v2436, 0.0
      %v2547 = vsel %vm776, %v2439, 0.0
      %v2548 = vsel %vm776, %v2442, 0.0
      %v2549 = vsel %vm776, %v2445, 0.0
      %v2550 = vsel %vm776, %v2448, 0.0
      %v2551 = vsel %vm776, %v2451, 0.0
      %v2552 = vsel %vm776, %v2454, 0.0
      %v2553 = vsel %vm776, %v2457, 0.0
      %v2554 = vsel %vm776, %v2460, 0.0
      %v2555 = vsel %vm776, %v2463, 0.0
      %v2556 = vsel %vm776, %v2466, 0.0
      %v2557 = vsel %vm776, %v2469, 0.0
      %v2558 = vsel %vm776, %v2472, 0.0
      %v2559 = vsel %vm776, %v2475, 0.0
      %v2560 = vsel %vm776, %v2478, 0.0
      %v2561 = vsel %vm776, %v2481, 0.0
      %v2592 = vrot.slane %v2530, 1
      %v2593 = vrot.slane %v2437, 1
      %v2594 = vsel %vm942, %v2592, %v2593
      %v2595 = vrot.slane %v2546, 1
      %v2596 = vsel %vm942, %v2593, %v2595
      %v2597 = vrot.slane %v2531, 1
      %v2598 = vrot.slane %v2440, 1
      %v2599 = vsel %vm942, %v2597, %v2598
      %v2600 = vrot.slane %v2547, 1
      %v2601 = vsel %vm942, %v2598, %v2600
      %v2602 = vrot.slane %v2532, 1
      %v2603 = vrot.slane %v2443, 1
      %v2604 = vsel %vm942, %v2602, %v2603
      %v2605 = vrot.slane %v2548, 1
      %v2606 = vsel %vm942, %v2603, %v2605
      %v2607 = vrot.slane %v2533, 1
      %v2608 = vrot.slane %v2446, 1
      %v2609 = vsel %vm942, %v2607, %v2608
      %v2610 = vrot.slane %v2549, 1
      %v2611 = vsel %vm942, %v2608, %v2610
      %v2612 = vrot.slane %v2534, 1
      %v2613 = vrot.slane %v2449, 1
      %v2614 = vsel %vm942, %v2612, %v2613
      %v2615 = vrot.slane %v2550, 1
      %v2616 = vsel %vm942, %v2613, %v2615
      %v2617 = vrot.slane %v2535, 1
      %v2618 = vrot.slane %v2452, 1
      %v2619 = vsel %vm942, %v2617, %v2618
      %v2620 = vrot.slane %v2551, 1
      %v2621 = vsel %vm942, %v2618, %v2620
      %v2622 = vrot.slane %v2536, 1
      %v2623 = vrot.slane %v2455, 1
      %v2624 = vsel %vm942, %v2622, %v2623
      %v2625 = vrot.slane %v2552, 1
      %v2626 = vsel %vm942, %v2623, %v2625
      %v2627 = vrot.slane %v2537, 1
      %v2628 = vrot.slane %v2458, 1
      %v2629 = vsel %vm942, %v2627, %v2628
      %v2630 = vrot.slane %v2553, 1
      %v2631 = vsel %vm942, %v2628, %v2630
      %v2632 = vrot.slane %v2538, 1
      %v2633 = vrot.slane %v2461, 1
      %v2634 = vsel %vm942, %v2632, %v2633
      %v2635 = vrot.slane %v2554, 1
      %v2636 = vsel %vm942, %v2633, %v2635
      %v2637 = vrot.slane %v2539, 1
      %v2638 = vrot.slane %v2464, 1
      %v2639 = vsel %vm942, %v2637, %v2638
      %v2640 = vrot.slane %v2555, 1
      %v2641 = vsel %vm942, %v2638, %v2640
      %v2642 = vrot.slane %v2540, 1
      %v2643 = vrot.slane %v2467, 1
      %v2644 = vsel %vm942, %v2642, %v2643
      %v2645 = vrot.slane %v2556, 1
      %v2646 = vsel %vm942, %v2643, %v2645
      %v2647 = vrot.slane %v2541, 1
      %v2648 = vrot.slane %v2470, 1
      %v2649 = vsel %vm942, %v2647, %v2648
      %v2650 = vrot.slane %v2557, 1
      %v2651 = vsel %vm942, %v2648, %v2650
      %v2652 = vrot.slane %v2542, 1
      %v2653 = vrot.slane %v2473, 1
      %v2654 = vsel %vm942, %v2652, %v2653
      %v2655 = vrot.slane %v2558, 1
      %v2656 = vsel %vm942, %v2653, %v2655
      %v2657 = vrot.slane %v2543, 1
      %v2658 = vrot.slane %v2476, 1
      %v2659 = vsel %vm942, %v2657, %v2658
      %v2660 = vrot.slane %v2559, 1
      %v2661 = vsel %vm942, %v2658, %v2660
      %v2662 = vrot.slane %v2544, 1
      %v2663 = vrot.slane %v2479, 1
      %v2664 = vsel %vm942, %v2662, %v2663
      %v2665 = vrot.slane %v2560, 1
      %v2666 = vsel %vm942, %v2663, %v2665
      %2667 = vrot.lane.b32.xlu0 %v945, 8
      %v2668 = vpop.permute.xlu0 %2667
      %2669 = vrot.lane.b32.xlu0 %v947, 8
      %v2670 = vpop.permute.xlu0 %2669
      %2671 = vrot.lane.b32.xlu0 %v2594, 8
      %v2672 = vpop.permute.xlu0 %2671
      %2673 = vrot.lane.b32.xlu0 %v2596, 8
      %v2674 = vpop.permute.xlu0 %2673
      %2675 = vrot.lane.b32.xlu0 %v2599, 8
      %v2676 = vpop.permute.xlu0 %2675
      %2677 = vrot.lane.b32.xlu0 %v2601, 8
      %v2678 = vpop.permute.xlu0 %2677
      %2679 = vrot.lane.b32.xlu0 %v2604, 8
      %v2680 = vpop.permute.xlu0 %2679
      %2681 = vrot.lane.b32.xlu0 %v2606, 8
      %v2682 = vpop.permute.xlu0 %2681
      %2683 = vrot.lane.b32.xlu0 %v2609, 8
      %v2684 = vpop.permute.xlu0 %2683
      %2685 = vrot.lane.b32.xlu0 %v2611, 8
      %v2686 = vpop.permute.xlu0 %2685
      %2687 = vrot.lane.b32.xlu0 %v2614, 8
      %v2688 = vpop.permute.xlu0 %2687
      %2689 = vrot.lane.b32.xlu0 %v2616, 8
      %v2690 = vpop.permute.xlu0 %2689
      %2691 = vrot.lane.b32.xlu0 %v2619, 8
      %v2692 = vpop.permute.xlu0 %2691
      %2693 = vrot.lane.b32.xlu0 %v2621, 8
      %v2694 = vpop.permute.xlu0 %2693
      %2695 = vrot.lane.b32.xlu0 %v2624, 8
      %v2696 = vpop.permute.xlu0 %2695
      %2697 = vrot.lane.b32.xlu0 %v2626, 8
      %v2698 = vpop.permute.xlu0 %2697
      %2699 = vrot.lane.b32.xlu0 %v2629, 8
      %v2700 = vpop.permute.xlu0 %2699
      %2701 = vrot.lane.b32.xlu0 %v2631, 8
      %v2702 = vpop.permute.xlu0 %2701
      %2703 = vrot.lane.b32.xlu0 %v2634, 8
      %v2704 = vpop.permute.xlu0 %2703
      %2705 = vrot.lane.b32.xlu0 %v2636, 8
      %v2706 = vpop.permute.xlu0 %2705
      %2707 = vrot.lane.b32.xlu0 %v2639, 8
      %v2708 = vpop.permute.xlu0 %2707
      %2709 = vrot.lane.b32.xlu0 %v2641, 8
      %v2710 = vpop.permute.xlu0 %2709
      %2711 = vrot.lane.b32.xlu0 %v2644, 8
      %v2712 = vpop.permute.xlu0 %2711
      %2713 = vrot.lane.b32.xlu0 %v2646, 8
      %v2714 = vpop.permute.xlu0 %2713
      %2715 = vrot.lane.b32.xlu0 %v2649, 8
      %v2716 = vpop.permute.xlu0 %2715
      %2717 = vrot.lane.b32.xlu0 %v2651, 8
      %v2718 = vpop.permute.xlu0 %2717
      %2719 = vrot.lane.b32.xlu0 %v2654, 8
      %v2720 = vpop.permute.xlu0 %2719
      %2721 = vrot.lane.b32.xlu0 %v2656, 8
      %v2722 = vpop.permute.xlu0 %2721
      %2723 = vrot.lane.b32.xlu0 %v2659, 8
      %v2724 = vpop.permute.xlu0 %2723
      %2725 = vrot.lane.b32.xlu0 %v2661, 8
      %v2726 = vpop.permute.xlu0 %2725
      %2727 = vrot.lane.b32.xlu0 %v2664, 8
      %v2728 = vpop.permute.xlu0 %2727
      %2729 = vrot.lane.b32.xlu0 %v2666, 8
      %v2730 = vpop.permute.xlu0 %2729
      %v2763 = vrot.slane %v2530, 2
      %v2764 = vrot.slane %v2437, 2
      %v2765 = vsel %vm1119, %v2763, %v2764
      %v2766 = vrot.slane %v2546, 2
      %v2767 = vsel %vm1119, %v2764, %v2766
      %v2768 = vrot.slane %v2531, 2
      %v2769 = vrot.slane %v2440, 2
      %v2770 = vsel %vm1119, %v2768, %v2769
      %v2771 = vrot.slane %v2547, 2
      %v2772 = vsel %vm1119, %v2769, %v2771
      %v2773 = vrot.slane %v2532, 2
      %v2774 = vrot.slane %v2443, 2
      %v2775 = vsel %vm1119, %v2773, %v2774
      %v2776 = vrot.slane %v2548, 2
      %v2777 = vsel %vm1119, %v2774, %v2776
      %v2778 = vrot.slane %v2533, 2
      %v2779 = vrot.slane %v2446, 2
      %v2780 = vsel %vm1119, %v2778, %v2779
      %v2781 = vrot.slane %v2549, 2
      %v2782 = vsel %vm1119, %v2779, %v2781
      %v2783 = vrot.slane %v2534, 2
      %v2784 = vrot.slane %v2449, 2
      %v2785 = vsel %vm1119, %v2783, %v2784
      %v2786 = vrot.slane %v2550, 2
      %v2787 = vsel %vm1119, %v2784, %v2786
      %v2788 = vrot.slane %v2535, 2
      %v2789 = vrot.slane %v2452, 2
      %v2790 = vsel %vm1119, %v2788, %v2789
      %v2791 = vrot.slane %v2551, 2
      %v2792 = vsel %vm1119, %v2789, %v2791
      %v2793 = vrot.slane %v2536, 2
      %v2794 = vrot.slane %v2455, 2
      %v2795 = vsel %vm1119, %v2793, %v2794
      %v2796 = vrot.slane %v2552, 2
      %v2797 = vsel %vm1119, %v2794, %v2796
      %v2798 = vrot.slane %v2537, 2
      %v2799 = vrot.slane %v2458, 2
      %v2800 = vsel %vm1119, %v2798, %v2799
      %v2801 = vrot.slane %v2553, 2
      %v2802 = vsel %vm1119, %v2799, %v2801
      %v2803 = vrot.slane %v2538, 2
      %v2804 = vrot.slane %v2461, 2
      %v2805 = vsel %vm1119, %v2803, %v2804
      %v2806 = vrot.slane %v2554, 2
      %v2807 = vsel %vm1119, %v2804, %v2806
      %v2808 = vrot.slane %v2539, 2
      %v2809 = vrot.slane %v2464, 2
      %v2810 = vsel %vm1119, %v2808, %v2809
      %v2811 = vrot.slane %v2555, 2
      %v2812 = vsel %vm1119, %v2809, %v2811
      %v2813 = vrot.slane %v2540, 2
      %v2814 = vrot.slane %v2467, 2
      %v2815 = vsel %vm1119, %v2813, %v2814
      %v2816 = vrot.slane %v2556, 2
      %v2817 = vsel %vm1119, %v2814, %v2816
      %v2818 = vrot.slane %v2541, 2
      %v2819 = vrot.slane %v2470, 2
      %v2820 = vsel %vm1119, %v2818, %v2819
      %v2821 = vrot.slane %v2557, 2
      %v2822 = vsel %vm1119, %v2819, %v2821
      %v2823 = vrot.slane %v2542, 2
      %v2824 = vrot.slane %v2473, 2
      %v2825 = vsel %vm1119, %v2823, %v2824
      %v2826 = vrot.slane %v2558, 2
      %v2827 = vsel %vm1119, %v2824, %v2826
      %v2828 = vrot.slane %v2543, 2
      %v2829 = vrot.slane %v2476, 2
      %v2830 = vsel %vm1119, %v2828, %v2829
      %v2831 = vrot.slane %v2559, 2
      %v2832 = vsel %vm1119, %v2829, %v2831
      %v2833 = vrot.slane %v2544, 2
      %v2834 = vrot.slane %v2479, 2
      %v2835 = vsel %vm1119, %v2833, %v2834
      %v2836 = vrot.slane %v2560, 2
      %v2837 = vsel %vm1119, %v2834, %v2836
      %2838 = vrot.lane.b32.xlu0 %v1122, 16
      %v2839 = vpop.permute.xlu0 %2838
      %2840 = vrot.lane.b32.xlu0 %v1124, 16
      %v2841 = vpop.permute.xlu0 %2840
      %2842 = vrot.lane.b32.xlu0 %v2765, 16
      %v2843 = vpop.permute.xlu0 %2842
      %2844 = vrot.lane.b32.xlu0 %v2767, 16
      %v2845 = vpop.permute.xlu0 %2844
      %2846 = vrot.lane.b32.xlu0 %v2770, 16
      %v2847 = vpop.permute.xlu0 %2846
      %2848 = vrot.lane.b32.xlu0 %v2772, 16
      %v2849 = vpop.permute.xlu0 %2848
      %2850 = vrot.lane.b32.xlu0 %v2775, 16
      %v2851 = vpop.permute.xlu0 %2850
      %2852 = vrot.lane.b32.xlu0 %v2777, 16
      %v2853 = vpop.permute.xlu0 %2852
      %2854 = vrot.lane.b32.xlu0 %v2780, 16
      %v2855 = vpop.permute.xlu0 %2854
      %2856 = vrot.lane.b32.xlu0 %v2782, 16
      %v2857 = vpop.permute.xlu0 %2856
      %2858 = vrot.lane.b32.xlu0 %v2785, 16
      %v2859 = vpop.permute.xlu0 %2858
      %2860 = vrot.lane.b32.xlu0 %v2787, 16
      %v2861 = vpop.permute.xlu0 %2860
      %2862 = vrot.lane.b32.xlu0 %v2790, 16
      %v2863 = vpop.permute.xlu0 %2862
      %2864 = vrot.lane.b32.xlu0 %v2792, 16
      %v2865 = vpop.permute.xlu0 %2864
      %2866 = vrot.lane.b32.xlu0 %v2795, 16
      %v2867 = vpop.permute.xlu0 %2866
      %2868 = vrot.lane.b32.xlu0 %v2797, 16
      %v2869 = vpop.permute.xlu0 %2868
      %2870 = vrot.lane.b32.xlu0 %v2800, 16
      %v2871 = vpop.permute.xlu0 %2870
      %2872 = vrot.lane.b32.xlu0 %v2802, 16
      %v2873 = vpop.permute.xlu0 %2872
      %2874 = vrot.lane.b32.xlu0 %v2805, 16
      %v2875 = vpop.permute.xlu0 %2874
      %2876 = vrot.lane.b32.xlu0 %v2807, 16
      %v2877 = vpop.permute.xlu0 %2876
      %2878 = vrot.lane.b32.xlu0 %v2810, 16
      %v2879 = vpop.permute.xlu0 %2878
      %2880 = vrot.lane.b32.xlu0 %v2812, 16
      %v2881 = vpop.permute.xlu0 %2880
      %2882 = vrot.lane.b32.xlu0 %v2815, 16
      %v2883 = vpop.permute.xlu0 %2882
      %2884 = vrot.lane.b32.xlu0 %v2817, 16
      %v2885 = vpop.permute.xlu0 %2884
      %2886 = vrot.lane.b32.xlu0 %v2820, 16
      %v2887 = vpop.permute.xlu0 %2886
      %2888 = vrot.lane.b32.xlu0 %v2822, 16
      %v2889 = vpop.permute.xlu0 %2888
      %2890 = vrot.lane.b32.xlu0 %v2825, 16
      %v2891 = vpop.permute.xlu0 %2890
      %2892 = vrot.lane.b32.xlu0 %v2827, 16
      %v2893 = vpop.permute.xlu0 %2892
      %2894 = vrot.lane.b32.xlu0 %v2830, 16
      %v2895 = vpop.permute.xlu0 %2894
      %2896 = vrot.lane.b32.xlu0 %v2832, 16
      %v2897 = vpop.permute.xlu0 %2896
      %2898 = vrot.lane.b32.xlu0 %v2835, 16
      %v2899 = vpop.permute.xlu0 %2898
      %2900 = vrot.lane.b32.xlu0 %v2837, 16
      %v2901 = vpop.permute.xlu0 %2900
      %2935 = vrot.lane.b32.xlu0 %v2530, 24
      %v2936 = vpop.permute.xlu0 %2935
      %2937 = vrot.lane.b32.xlu0 %v2437, 24
      %v2938 = vpop.permute.xlu0 %2937
      %2939 = vrot.lane.b32.xlu0 %v2531, 24
      %v2940 = vpop.permute.xlu0 %2939
      %2941 = vrot.lane.b32.xlu0 %v2440, 24
      %v2942 = vpop.permute.xlu0 %2941
      %2943 = vrot.lane.b32.xlu0 %v2532, 24
      %v2944 = vpop.permute.xlu0 %2943
      %2945 = vrot.lane.b32.xlu0 %v2443, 24
      %v2946 = vpop.permute.xlu0 %2945
      %2947 = vrot.lane.b32.xlu0 %v2533, 24
      %v2948 = vpop.permute.xlu0 %2947
      %2949 = vrot.lane.b32.xlu0 %v2446, 24
      %v2950 = vpop.permute.xlu0 %2949
      %2951 = vrot.lane.b32.xlu0 %v2534, 24
      %v2952 = vpop.permute.xlu0 %2951
      %2953 = vrot.lane.b32.xlu0 %v2449, 24
      %v2954 = vpop.permute.xlu0 %2953
      %2955 = vrot.lane.b32.xlu0 %v2535, 24
      %v2956 = vpop.permute.xlu0 %2955
      %2957 = vrot.lane.b32.xlu0 %v2452, 24
      %v2958 = vpop.permute.xlu0 %2957
      %2959 = vrot.lane.b32.xlu0 %v2536, 24
      %v2960 = vpop.permute.xlu0 %2959
      %2961 = vrot.lane.b32.xlu0 %v2455, 24
      %v2962 = vpop.permute.xlu0 %2961
      %2963 = vrot.lane.b32.xlu0 %v2537, 24
      %v2964 = vpop.permute.xlu0 %2963
      %2965 = vrot.lane.b32.xlu0 %v2458, 24
      %v2966 = vpop.permute.xlu0 %2965
      %2967 = vrot.lane.b32.xlu0 %v2538, 24
      %v2968 = vpop.permute.xlu0 %2967
      %2969 = vrot.lane.b32.xlu0 %v2461, 24
      %v2970 = vpop.permute.xlu0 %2969
      %2971 = vrot.lane.b32.xlu0 %v2539, 24
      %v2972 = vpop.permute.xlu0 %2971
      %2973 = vrot.lane.b32.xlu0 %v2464, 24
      %v2974 = vpop.permute.xlu0 %2973
      %2975 = vrot.lane.b32.xlu0 %v2540, 24
      %v2976 = vpop.permute.xlu0 %2975
      %2977 = vrot.lane.b32.xlu0 %v2467, 24
      %v2978 = vpop.permute.xlu0 %2977
      %2979 = vrot.lane.b32.xlu0 %v2541, 24
      %v2980 = vpop.permute.xlu0 %2979
      %2981 = vrot.lane.b32.xlu0 %v2470, 24
      %v2982 = vpop.permute.xlu0 %2981
      %2983 = vrot.lane.b32.xlu0 %v2542, 24
      %v2984 = vpop.permute.xlu0 %2983
      %2985 = vrot.lane.b32.xlu0 %v2473, 24
      %v2986 = vpop.permute.xlu0 %2985
      %2987 = vrot.lane.b32.xlu0 %v2543, 24
      %v2988 = vpop.permute.xlu0 %2987
      %2989 = vrot.lane.b32.xlu0 %v2476, 24
      %v2990 = vpop.permute.xlu0 %2989
      %2991 = vrot.lane.b32.xlu0 %v2544, 24
      %v2992 = vpop.permute.xlu0 %2991
      %2993 = vrot.lane.b32.xlu0 %v2479, 24
      %v2994 = vpop.permute.xlu0 %2993
      %2995 = vrot.lane.b32.xlu0 %v2545, 24
      %v2996 = vpop.permute.xlu0 %2995
      %2997 = vrot.lane.b32.xlu0 %v2482, 24
      %v2998 = vpop.permute.xlu0 %2997
      %v3032 = vrot.slane %v2545, 1
      %v3033 = vrot.slane %v2482, 1
      %v3034 = vsel %vm942, %v3032, %v3033
      %v3035 = vrot.slane %v2561, 1
      %v3036 = vsel %vm942, %v3033, %v3035
      %3037 = vrot.lane.b32.xlu0 %v2594, 32
      %v3038 = vpop.permute.xlu0 %3037
      %3039 = vrot.lane.b32.xlu0 %v2596, 32
      %v3040 = vpop.permute.xlu0 %3039
      %3041 = vrot.lane.b32.xlu0 %v2599, 32
      %v3042 = vpop.permute.xlu0 %3041
      %3043 = vrot.lane.b32.xlu0 %v2601, 32
      %v3044 = vpop.permute.xlu0 %3043
      %3045 = vrot.lane.b32.xlu0 %v2604, 32
      %v3046 = vpop.permute.xlu0 %3045
      %3047 = vrot.lane.b32.xlu0 %v2606, 32
      %v3048 = vpop.permute.xlu0 %3047
      %3049 = vrot.lane.b32.xlu0 %v2609, 32
      %v3050 = vpop.permute.xlu0 %3049
      %3051 = vrot.lane.b32.xlu0 %v2611, 32
      %v3052 = vpop.permute.xlu0 %3051
      %3053 = vrot.lane.b32.xlu0 %v2614, 32
      %v3054 = vpop.permute.xlu0 %3053
      %3055 = vrot.lane.b32.xlu0 %v2616, 32
      %v3056 = vpop.permute.xlu0 %3055
      %3057 = vrot.lane.b32.xlu0 %v2619, 32
      %v3058 = vpop.permute.xlu0 %3057
      %3059 = vrot.lane.b32.xlu0 %v2621, 32
      %v3060 = vpop.permute.xlu0 %3059
      %3061 = vrot.lane.b32.xlu0 %v2624, 32
      %v3062 = vpop.permute.xlu0 %3061
      %3063 = vrot.lane.b32.xlu0 %v2626, 32
      %v3064 = vpop.permute.xlu0 %3063
      %3065 = vrot.lane.b32.xlu0 %v2629, 32
      %v3066 = vpop.permute.xlu0 %3065
      %3067 = vrot.lane.b32.xlu0 %v2631, 32
      %v3068 = vpop.permute.xlu0 %3067
      %3069 = vrot.lane.b32.xlu0 %v2634, 32
      %v3070 = vpop.permute.xlu0 %3069
      %3071 = vrot.lane.b32.xlu0 %v2636, 32
      %v3072 = vpop.permute.xlu0 %3071
      %3073 = vrot.lane.b32.xlu0 %v2639, 32
      %v3074 = vpop.permute.xlu0 %3073
      %3075 = vrot.lane.b32.xlu0 %v2641, 32
      %v3076 = vpop.permute.xlu0 %3075
      %3077 = vrot.lane.b32.xlu0 %v2644, 32
      %v3078 = vpop.permute.xlu0 %3077
      %3079 = vrot.lane.b32.xlu0 %v2646, 32
      %v3080 = vpop.permute.xlu0 %3079
      %3081 = vrot.lane.b32.xlu0 %v2649, 32
      %v3082 = vpop.permute.xlu0 %3081
      %3083 = vrot.lane.b32.xlu0 %v2651, 32
      %v3084 = vpop.permute.xlu0 %3083
      %3085 = vrot.lane.b32.xlu0 %v2654, 32
      %v3086 = vpop.permute.xlu0 %3085
      %3087 = vrot.lane.b32.xlu0 %v2656, 32
      %v3088 = vpop.permute.xlu0 %3087
      %3089 = vrot.lane.b32.xlu0 %v2659, 32
      %v3090 = vpop.permute.xlu0 %3089
      %3091 = vrot.lane.b32.xlu0 %v2661, 32
      %v3092 = vpop.permute.xlu0 %3091
      %3093 = vrot.lane.b32.xlu0 %v2664, 32
      %v3094 = vpop.permute.xlu0 %3093
      %3095 = vrot.lane.b32.xlu0 %v2666, 32
      %v3096 = vpop.permute.xlu0 %3095
      %3097 = vrot.lane.b32.xlu0 %v3034, 32
      %v3098 = vpop.permute.xlu0 %3097
      %3099 = vrot.lane.b32.xlu0 %v3036, 32
      %v3100 = vpop.permute.xlu0 %3099
      %v3133 = vrot.slane %v2545, 2
      %v3134 = vrot.slane %v2482, 2
      %v3135 = vsel %vm1119, %v3133, %v3134
      %v3136 = vrot.slane %v2561, 2
      %v3137 = vsel %vm1119, %v3134, %v3136
      %3138 = vrot.lane.b32.xlu0 %v2765, 40
      %v3139 = vpop.permute.xlu0 %3138
      %3140 = vrot.lane.b32.xlu0 %v2767, 40
      %v3141 = vpop.permute.xlu0 %3140
      %3142 = vrot.lane.b32.xlu0 %v2770, 40
      %v3143 = vpop.permute.xlu0 %3142
      %3144 = vrot.lane.b32.xlu0 %v2772, 40
      %v3145 = vpop.permute.xlu0 %3144
      %3146 = vrot.lane.b32.xlu0 %v2775, 40
      %v3147 = vpop.permute.xlu0 %3146
      %3148 = vrot.lane.b32.xlu0 %v2777, 40
      %v3149 = vpop.permute.xlu0 %3148
      %3150 = vrot.lane.b32.xlu0 %v2780, 40
      %v3151 = vpop.permute.xlu0 %3150
      %3152 = vrot.lane.b32.xlu0 %v2782, 40
      %v3153 = vpop.permute.xlu0 %3152
      %3154 = vrot.lane.b32.xlu0 %v2785, 40
      %v3155 = vpop.permute.xlu0 %3154
      %3156 = vrot.lane.b32.xlu0 %v2787, 40
      %v3157 = vpop.permute.xlu0 %3156
      %3158 = vrot.lane.b32.xlu0 %v2790, 40
      %v3159 = vpop.permute.xlu0 %3158
      %3160 = vrot.lane.b32.xlu0 %v2792, 40
      %v3161 = vpop.permute.xlu0 %3160
      %3162 = vrot.lane.b32.xlu0 %v2795, 40
      %v3163 = vpop.permute.xlu0 %3162
      %3164 = vrot.lane.b32.xlu0 %v2797, 40
      %v3165 = vpop.permute.xlu0 %3164
      %3166 = vrot.lane.b32.xlu0 %v2800, 40
      %v3167 = vpop.permute.xlu0 %3166
      %3168 = vrot.lane.b32.xlu0 %v2802, 40
      %v3169 = vpop.permute.xlu0 %3168
      %3170 = vrot.lane.b32.xlu0 %v2805, 40
      %v3171 = vpop.permute.xlu0 %3170
      %3172 = vrot.lane.b32.xlu0 %v2807, 40
      %v3173 = vpop.permute.xlu0 %3172
      %3174 = vrot.lane.b32.xlu0 %v2810, 40
      %v3175 = vpop.permute.xlu0 %3174
      %3176 = vrot.lane.b32.xlu0 %v2812, 40
      %v3177 = vpop.permute.xlu0 %3176
      %3178 = vrot.lane.b32.xlu0 %v2815, 40
      %v3179 = vpop.permute.xlu0 %3178
      %3180 = vrot.lane.b32.xlu0 %v2817, 40
      %v3181 = vpop.permute.xlu0 %3180
      %3182 = vrot.lane.b32.xlu0 %v2820, 40
      %v3183 = vpop.permute.xlu0 %3182
      %3184 = vrot.lane.b32.xlu0 %v2822, 40
      %v3185 = vpop.permute.xlu0 %3184
      %3186 = vrot.lane.b32.xlu0 %v2825, 40
      %v3187 = vpop.permute.xlu0 %3186
      %3188 = vrot.lane.b32.xlu0 %v2827, 40
      %v3189 = vpop.permute.xlu0 %3188
      %3190 = vrot.lane.b32.xlu0 %v2830, 40
      %v3191 = vpop.permute.xlu0 %3190
      %3192 = vrot.lane.b32.xlu0 %v2832, 40
      %v3193 = vpop.permute.xlu0 %3192
      %3194 = vrot.lane.b32.xlu0 %v2835, 40
      %v3195 = vpop.permute.xlu0 %3194
      %3196 = vrot.lane.b32.xlu0 %v2837, 40
      %v3197 = vpop.permute.xlu0 %3196
      %3198 = vrot.lane.b32.xlu0 %v3135, 40
      %v3199 = vpop.permute.xlu0 %3198
      %3200 = vrot.lane.b32.xlu0 %v3137, 40
      %v3201 = vpop.permute.xlu0 %3200
      %3234 = vrot.lane.b32.xlu0 %v2531, 48
      %v3235 = vpop.permute.xlu0 %3234
      %3236 = vrot.lane.b32.xlu0 %v2440, 48
      %v3237 = vpop.permute.xlu0 %3236
      %3238 = vrot.lane.b32.xlu0 %v2532, 48
      %v3239 = vpop.permute.xlu0 %3238
      %3240 = vrot.lane.b32.xlu0 %v2443, 48
      %v3241 = vpop.permute.xlu0 %3240
      %3242 = vrot.lane.b32.xlu0 %v2533, 48
      %v3243 = vpop.permute.xlu0 %3242
      %3244 = vrot.lane.b32.xlu0 %v2446, 48
      %v3245 = vpop.permute.xlu0 %3244
      %3246 = vrot.lane.b32.xlu0 %v2534, 48
      %v3247 = vpop.permute.xlu0 %3246
      %3248 = vrot.lane.b32.xlu0 %v2449, 48
      %v3249 = vpop.permute.xlu0 %3248
      %3250 = vrot.lane.b32.xlu0 %v2535, 48
      %v3251 = vpop.permute.xlu0 %3250
      %3252 = vrot.lane.b32.xlu0 %v2452, 48
      %v3253 = vpop.permute.xlu0 %3252
      %3254 = vrot.lane.b32.xlu0 %v2536, 48
      %v3255 = vpop.permute.xlu0 %3254
      %3256 = vrot.lane.b32.xlu0 %v2455, 48
      %v3257 = vpop.permute.xlu0 %3256
      %3258 = vrot.lane.b32.xlu0 %v2537, 48
      %v3259 = vpop.permute.xlu0 %3258
      %3260 = vrot.lane.b32.xlu0 %v2458, 48
      %v3261 = vpop.permute.xlu0 %3260
      %3262 = vrot.lane.b32.xlu0 %v2538, 48
      %v3263 = vpop.permute.xlu0 %3262
      %3264 = vrot.lane.b32.xlu0 %v2461, 48
      %v3265 = vpop.permute.xlu0 %3264
      %3266 = vrot.lane.b32.xlu0 %v2539, 48
      %v3267 = vpop.permute.xlu0 %3266
      %3268 = vrot.lane.b32.xlu0 %v2464, 48
      %v3269 = vpop.permute.xlu0 %3268
      %3270 = vrot.lane.b32.xlu0 %v2540, 48
      %v3271 = vpop.permute.xlu0 %3270
      %3272 = vrot.lane.b32.xlu0 %v2467, 48
      %v3273 = vpop.permute.xlu0 %3272
      %3274 = vrot.lane.b32.xlu0 %v2541, 48
      %v3275 = vpop.permute.xlu0 %3274
      %3276 = vrot.lane.b32.xlu0 %v2470, 48
      %v3277 = vpop.permute.xlu0 %3276
      %3278 = vrot.lane.b32.xlu0 %v2542, 48
      %v3279 = vpop.permute.xlu0 %3278
      %3280 = vrot.lane.b32.xlu0 %v2473, 48
      %v3281 = vpop.permute.xlu0 %3280
      %3282 = vrot.lane.b32.xlu0 %v2543, 48
      %v3283 = vpop.permute.xlu0 %3282
      %3284 = vrot.lane.b32.xlu0 %v2476, 48
      %v3285 = vpop.permute.xlu0 %3284
      %3286 = vrot.lane.b32.xlu0 %v2544, 48
      %v3287 = vpop.permute.xlu0 %3286
      %3288 = vrot.lane.b32.xlu0 %v2479, 48
      %v3289 = vpop.permute.xlu0 %3288
      %3290 = vrot.lane.b32.xlu0 %v2545, 48
      %v3291 = vpop.permute.xlu0 %3290
      %3292 = vrot.lane.b32.xlu0 %v2482, 48
      %v3293 = vpop.permute.xlu0 %3292
      %3294 = vrot.lane.b32.xlu0 %v876, 48
      %v3295 = vpop.permute.xlu0 %3294
      %3296 = vrot.lane.b32.xlu0 %v778, 48
      %v3297 = vpop.permute.xlu0 %3296
      %3330 = vrot.lane.b32.xlu0 %v2599, 56
      %v3331 = vpop.permute.xlu0 %3330
      %3332 = vrot.lane.b32.xlu0 %v2601, 56
      %v3333 = vpop.permute.xlu0 %3332
      %3334 = vrot.lane.b32.xlu0 %v2604, 56
      %v3335 = vpop.permute.xlu0 %3334
      %3336 = vrot.lane.b32.xlu0 %v2606, 56
      %v3337 = vpop.permute.xlu0 %3336
      %3338 = vrot.lane.b32.xlu0 %v2609, 56
      %v3339 = vpop.permute.xlu0 %3338
      %3340 = vrot.lane.b32.xlu0 %v2611, 56
      %v3341 = vpop.permute.xlu0 %3340
      %3342 = vrot.lane.b32.xlu0 %v2614, 56
      %v3343 = vpop.permute.xlu0 %3342
      %3344 = vrot.lane.b32.xlu0 %v2616, 56
      %v3345 = vpop.permute.xlu0 %3344
      %3346 = vrot.lane.b32.xlu0 %v2619, 56
      %v3347 = vpop.permute.xlu0 %3346
      %3348 = vrot.lane.b32.xlu0 %v2621, 56
      %v3349 = vpop.permute.xlu0 %3348
      %3350 = vrot.lane.b32.xlu0 %v2624, 56
      %v3351 = vpop.permute.xlu0 %3350
      %3352 = vrot.lane.b32.xlu0 %v2626, 56
      %v3353 = vpop.permute.xlu0 %3352
      %3354 = vrot.lane.b32.xlu0 %v2629, 56
      %v3355 = vpop.permute.xlu0 %3354
      %3356 = vrot.lane.b32.xlu0 %v2631, 56
      %v3357 = vpop.permute.xlu0 %3356
      %3358 = vrot.lane.b32.xlu0 %v2634, 56
      %v3359 = vpop.permute.xlu0 %3358
      %3360 = vrot.lane.b32.xlu0 %v2636, 56
      %v3361 = vpop.permute.xlu0 %3360
      %3362 = vrot.lane.b32.xlu0 %v2639, 56
      %v3363 = vpop.permute.xlu0 %3362
      %3364 = vrot.lane.b32.xlu0 %v2641, 56
      %v3365 = vpop.permute.xlu0 %3364
      %3366 = vrot.lane.b32.xlu0 %v2644, 56
      %v3367 = vpop.permute.xlu0 %3366
      %3368 = vrot.lane.b32.xlu0 %v2646, 56
      %v3369 = vpop.permute.xlu0 %3368
      %3370 = vrot.lane.b32.xlu0 %v2649, 56
      %v3371 = vpop.permute.xlu0 %3370
      %3372 = vrot.lane.b32.xlu0 %v2651, 56
      %v3373 = vpop.permute.xlu0 %3372
      %3374 = vrot.lane.b32.xlu0 %v2654, 56
      %v3375 = vpop.permute.xlu0 %3374
      %3376 = vrot.lane.b32.xlu0 %v2656, 56
      %v3377 = vpop.permute.xlu0 %3376
      %3378 = vrot.lane.b32.xlu0 %v2659, 56
      %v3379 = vpop.permute.xlu0 %3378
      %3380 = vrot.lane.b32.xlu0 %v2661, 56
      %v3381 = vpop.permute.xlu0 %3380
      %3382 = vrot.lane.b32.xlu0 %v2664, 56
      %v3383 = vpop.permute.xlu0 %3382
      %3384 = vrot.lane.b32.xlu0 %v2666, 56
      %v3385 = vpop.permute.xlu0 %3384
      %3386 = vrot.lane.b32.xlu0 %v3034, 56
      %v3387 = vpop.permute.xlu0 %3386
      %3388 = vrot.lane.b32.xlu0 %v3036, 56
      %v3389 = vpop.permute.xlu0 %3388
      %3390 = vrot.lane.b32.xlu0 %v945, 56
      %v3391 = vpop.permute.xlu0 %3390
      %3392 = vrot.lane.b32.xlu0 %v947, 56
      %v3393 = vpop.permute.xlu0 %3392
      %3426 = vrot.lane.b32.xlu0 %v2770, 64
      %v3427 = vpop.permute.xlu0 %3426
      %3428 = vrot.lane.b32.xlu0 %v2772, 64
      %v3429 = vpop.permute.xlu0 %3428
      %3430 = vrot.lane.b32.xlu0 %v2775, 64
      %v3431 = vpop.permute.xlu0 %3430
      %3432 = vrot.lane.b32.xlu0 %v2777, 64
      %v3433 = vpop.permute.xlu0 %3432
      %3434 = vrot.lane.b32.xlu0 %v2780, 64
      %v3435 = vpop.permute.xlu0 %3434
      %3436 = vrot.lane.b32.xlu0 %v2782, 64
      %v3437 = vpop.permute.xlu0 %3436
      %3438 = vrot.lane.b32.xlu0 %v2785, 64
      %v3439 = vpop.permute.xlu0 %3438
      %3440 = vrot.lane.b32.xlu0 %v2787, 64
      %v3441 = vpop.permute.xlu0 %3440
      %3442 = vrot.lane.b32.xlu0 %v2790, 64
      %v3443 = vpop.permute.xlu0 %3442
      %3444 = vrot.lane.b32.xlu0 %v2792, 64
      %v3445 = vpop.permute.xlu0 %3444
      %3446 = vrot.lane.b32.xlu0 %v2795, 64
      %v3447 = vpop.permute.xlu0 %3446
      %3448 = vrot.lane.b32.xlu0 %v2797, 64
      %v3449 = vpop.permute.xlu0 %3448
      %3450 = vrot.lane.b32.xlu0 %v2800, 64
      %v3451 = vpop.permute.xlu0 %3450
      %3452 = vrot.lane.b32.xlu0 %v2802, 64
      %v3453 = vpop.permute.xlu0 %3452
      %3454 = vrot.lane.b32.xlu0 %v2805, 64
      %v3455 = vpop.permute.xlu0 %3454
      %3456 = vrot.lane.b32.xlu0 %v2807, 64
      %v3457 = vpop.permute.xlu0 %3456
      %3458 = vrot.lane.b32.xlu0 %v2810, 64
      %v3459 = vpop.permute.xlu0 %3458
      %3460 = vrot.lane.b32.xlu0 %v2812, 64
      %v3461 = vpop.permute.xlu0 %3460
      %3462 = vrot.lane.b32.xlu0 %v2815, 64
      %v3463 = vpop.permute.xlu0 %3462
      %3464 = vrot.lane.b32.xlu0 %v2817, 64
      %v3465 = vpop.permute.xlu0 %3464
      %3466 = vrot.lane.b32.xlu0 %v2820, 64
      %v3467 = vpop.permute.xlu0 %3466
      %3468 = vrot.lane.b32.xlu0 %v2822, 64
      %v3469 = vpop.permute.xlu0 %3468
      %3470 = vrot.lane.b32.xlu0 %v2825, 64
      %v3471 = vpop.permute.xlu0 %3470
      %3472 = vrot.lane.b32.xlu0 %v2827, 64
      %v3473 = vpop.permute.xlu0 %3472
      %3474 = vrot.lane.b32.xlu0 %v2830, 64
      %v3475 = vpop.permute.xlu0 %3474
      %3476 = vrot.lane.b32.xlu0 %v2832, 64
      %v3477 = vpop.permute.xlu0 %3476
      %3478 = vrot.lane.b32.xlu0 %v2835, 64
      %v3479 = vpop.permute.xlu0 %3478
      %3480 = vrot.lane.b32.xlu0 %v2837, 64
      %v3481 = vpop.permute.xlu0 %3480
      %3482 = vrot.lane.b32.xlu0 %v3135, 64
      %v3483 = vpop.permute.xlu0 %3482
      %3484 = vrot.lane.b32.xlu0 %v3137, 64
      %v3485 = vpop.permute.xlu0 %3484
      %3486 = vrot.lane.b32.xlu0 %v1122, 64
      %v3487 = vpop.permute.xlu0 %3486
      %3488 = vrot.lane.b32.xlu0 %v1124, 64
      %v3489 = vpop.permute.xlu0 %3488
      %v3522 = vsel %vm1917, %v876, %v2668
      %v3523 = vsel %vm1917, %v778, %v2670
      %v3524 = vsel %vm1917, %v2530, %v2672
      %v3525 = vsel %vm1917, %v2437, %v2674
      %v3526 = vsel %vm1917, %v2531, %v2676
      %v3527 = vsel %vm1917, %v2440, %v2678
      %v3528 = vsel %vm1917, %v2532, %v2680
      %v3529 = vsel %vm1917, %v2443, %v2682
      %v3530 = vsel %vm1917, %v2533, %v2684
      %v3531 = vsel %vm1917, %v2446, %v2686
      %v3532 = vsel %vm1917, %v2534, %v2688
      %v3533 = vsel %vm1917, %v2449, %v2690
      %v3534 = vsel %vm1917, %v2535, %v2692
      %v3535 = vsel %vm1917, %v2452, %v2694
      %v3536 = vsel %vm1917, %v2536, %v2696
      %v3537 = vsel %vm1917, %v2455, %v2698
      %v3538 = vsel %vm1917, %v2537, %v2700
      %v3539 = vsel %vm1917, %v2458, %v2702
      %v3540 = vsel %vm1917, %v2538, %v2704
      %v3541 = vsel %vm1917, %v2461, %v2706
      %v3542 = vsel %vm1917, %v2539, %v2708
      %v3543 = vsel %vm1917, %v2464, %v2710
      %v3544 = vsel %vm1917, %v2540, %v2712
      %v3545 = vsel %vm1917, %v2467, %v2714
      %v3546 = vsel %vm1917, %v2541, %v2716
      %v3547 = vsel %vm1917, %v2470, %v2718
      %v3548 = vsel %vm1917, %v2542, %v2720
      %v3549 = vsel %vm1917, %v2473, %v2722
      %v3550 = vsel %vm1917, %v2543, %v2724
      %v3551 = vsel %vm1917, %v2476, %v2726
      %v3552 = vsel %vm1917, %v2544, %v2728
      %v3553 = vsel %vm1917, %v2479, %v2730
      %v3554 = vsel %vm1983, %v3522, %v2839
      %v3555 = vsel %vm1983, %v3523, %v2841
      %v3556 = vsel %vm1983, %v3524, %v2843
      %v3557 = vsel %vm1983, %v3525, %v2845
      %v3558 = vsel %vm1983, %v3526, %v2847
      %v3559 = vsel %vm1983, %v3527, %v2849
      %v3560 = vsel %vm1983, %v3528, %v2851
      %v3561 = vsel %vm1983, %v3529, %v2853
      %v3562 = vsel %vm1983, %v3530, %v2855
      %v3563 = vsel %vm1983, %v3531, %v2857
      %v3564 = vsel %vm1983, %v3532, %v2859
      %v3565 = vsel %vm1983, %v3533, %v2861
      %v3566 = vsel %vm1983, %v3534, %v2863
      %v3567 = vsel %vm1983, %v3535, %v2865
      %v3568 = vsel %vm1983, %v3536, %v2867
      %v3569 = vsel %vm1983, %v3537, %v2869
      %v3570 = vsel %vm1983, %v3538, %v2871
      %v3571 = vsel %vm1983, %v3539, %v2873
      %v3572 = vsel %vm1983, %v3540, %v2875
      %v3573 = vsel %vm1983, %v3541, %v2877
      %v3574 = vsel %vm1983, %v3542, %v2879
      %v3575 = vsel %vm1983, %v3543, %v2881
      %v3576 = vsel %vm1983, %v3544, %v2883
      %v3577 = vsel %vm1983, %v3545, %v2885
      %v3578 = vsel %vm1983, %v3546, %v2887
      %v3579 = vsel %vm1983, %v3547, %v2889
      %v3580 = vsel %vm1983, %v3548, %v2891
      %v3581 = vsel %vm1983, %v3549, %v2893
      %v3582 = vsel %vm1983, %v3550, %v2895
      %v3583 = vsel %vm1983, %v3551, %v2897
      %v3584 = vsel %vm1983, %v3552, %v2899
      %v3585 = vsel %vm1983, %v3553, %v2901
      %v3586 = vsel %vm2049, %v3554, %v2936
      %v3587 = vsel %vm2049, %v3555, %v2938
      %v3588 = vsel %vm2049, %v3556, %v2940
      %v3589 = vsel %vm2049, %v3557, %v2942
      %v3590 = vsel %vm2049, %v3558, %v2944
      %v3591 = vsel %vm2049, %v3559, %v2946
      %v3592 = vsel %vm2049, %v3560, %v2948
      %v3593 = vsel %vm2049, %v3561, %v2950
      %v3594 = vsel %vm2049, %v3562, %v2952
      %v3595 = vsel %vm2049, %v3563, %v2954
      %v3596 = vsel %vm2049, %v3564, %v2956
      %v3597 = vsel %vm2049, %v3565, %v2958
      %v3598 = vsel %vm2049, %v3566, %v2960
      %v3599 = vsel %vm2049, %v3567, %v2962
      %v3600 = vsel %vm2049, %v3568, %v2964
      %v3601 = vsel %vm2049, %v3569, %v2966
      %v3602 = vsel %vm2049, %v3570, %v2968
      %v3603 = vsel %vm2049, %v3571, %v2970
      %v3604 = vsel %vm2049, %v3572, %v2972
      %v3605 = vsel %vm2049, %v3573, %v2974
      %v3606 = vsel %vm2049, %v3574, %v2976
      %v3607 = vsel %vm2049, %v3575, %v2978
      %v3608 = vsel %vm2049, %v3576, %v2980
      %v3609 = vsel %vm2049, %v3577, %v2982
      %v3610 = vsel %vm2049, %v3578, %v2984
      %v3611 = vsel %vm2049, %v3579, %v2986
      %v3612 = vsel %vm2049, %v3580, %v2988
      %v3613 = vsel %vm2049, %v3581, %v2990
      %v3614 = vsel %vm2049, %v3582, %v2992
      %v3615 = vsel %vm2049, %v3583, %v2994
      %v3616 = vsel %vm2049, %v3584, %v2996
      %v3617 = vsel %vm2049, %v3585, %v2998
      %v3618 = vsel %vm2115, %v3586, %v3038
      %v3619 = vsel %vm2115, %v3587, %v3040
      %v3620 = vsel %vm2115, %v3588, %v3042
      %v3621 = vsel %vm2115, %v3589, %v3044
      %v3622 = vsel %vm2115, %v3590, %v3046
      %v3623 = vsel %vm2115, %v3591, %v3048
      %v3624 = vsel %vm2115, %v3592, %v3050
      %v3625 = vsel %vm2115, %v3593, %v3052
      %v3626 = vsel %vm2115, %v3594, %v3054
      %v3627 = vsel %vm2115, %v3595, %v3056
      %v3628 = vsel %vm2115, %v3596, %v3058
      %v3629 = vsel %vm2115, %v3597, %v3060
      %v3630 = vsel %vm2115, %v3598, %v3062
      %v3631 = vsel %vm2115, %v3599, %v3064
      %v3632 = vsel %vm2115, %v3600, %v3066
      %v3633 = vsel %vm2115, %v3601, %v3068
      %v3634 = vsel %vm2115, %v3602, %v3070
      %v3635 = vsel %vm2115, %v3603, %v3072
      %v3636 = vsel %vm2115, %v3604, %v3074
      %v3637 = vsel %vm2115, %v3605, %v3076
      %v3638 = vsel %vm2115, %v3606, %v3078
      %v3639 = vsel %vm2115, %v3607, %v3080
      %v3640 = vsel %vm2115, %v3608, %v3082
      %v3641 = vsel %vm2115, %v3609, %v3084
      %v3642 = vsel %vm2115, %v3610, %v3086
      %v3643 = vsel %vm2115, %v3611, %v3088
      %v3644 = vsel %vm2115, %v3612, %v3090
      %v3645 = vsel %vm2115, %v3613, %v3092
      %v3646 = vsel %vm2115, %v3614, %v3094
      %v3647 = vsel %vm2115, %v3615, %v3096
      %v3648 = vsel %vm2115, %v3616, %v3098
      %v3649 = vsel %vm2115, %v3617, %v3100
      %vm3650 = vcmask 326656
      %v3651 = vsel %vm3650, %v3618, %v3139
      %v3652 = vsel %vm3650, %v3619, %v3141
      %v3653 = vsel %vm3650, %v3620, %v3143
      %v3654 = vsel %vm3650, %v3621, %v3145
      %v3655 = vsel %vm3650, %v3622, %v3147
      %v3656 = vsel %vm3650, %v3623, %v3149
      %v3657 = vsel %vm3650, %v3624, %v3151
      %v3658 = vsel %vm3650, %v3625, %v3153
      %v3659 = vsel %vm3650, %v3626, %v3155
      %v3660 = vsel %vm3650, %v3627, %v3157
      %v3661 = vsel %vm3650, %v3628, %v3159
      %v3662 = vsel %vm3650, %v3629, %v3161
      %v3663 = vsel %vm3650, %v3630, %v3163
      %v3664 = vsel %vm3650, %v3631, %v3165
      %v3665 = vsel %vm3650, %v3632, %v3167
      %v3666 = vsel %vm3650, %v3633, %v3169
      %v3667 = vsel %vm3650, %v3634, %v3171
      %v3668 = vsel %vm3650, %v3635, %v3173
      %v3669 = vsel %vm3650, %v3636, %v3175
      %v3670 = vsel %vm3650, %v3637, %v3177
      %v3671 = vsel %vm3650, %v3638, %v3179
      %v3672 = vsel %vm3650, %v3639, %v3181
      %v3673 = vsel %vm3650, %v3640, %v3183
      %v3674 = vsel %vm3650, %v3641, %v3185
      %v3675 = vsel %vm3650, %v3642, %v3187
      %v3676 = vsel %vm3650, %v3643, %v3189
      %v3677 = vsel %vm3650, %v3644, %v3191
      %v3678 = vsel %vm3650, %v3645, %v3193
      %v3679 = vsel %vm3650, %v3646, %v3195
      %v3680 = vsel %vm3650, %v3647, %v3197
      %v3681 = vsel %vm3650, %v3648, %v3199
      %v3682 = vsel %vm3650, %v3649, %v3201
      %vm3683 = vcmask 392192
      %v3684 = vsel %vm3683, %v3651, %v3235
      %v3685 = vsel %vm3683, %v3652, %v3237
      %v3686 = vsel %vm3683, %v3653, %v3239
      %v3687 = vsel %vm3683, %v3654, %v3241
      %v3688 = vsel %vm3683, %v3655, %v3243
      %v3689 = vsel %vm3683, %v3656, %v3245
      %v3690 = vsel %vm3683, %v3657, %v3247
      %v3691 = vsel %vm3683, %v3658, %v3249
      %v3692 = vsel %vm3683, %v3659, %v3251
      %v3693 = vsel %vm3683, %v3660, %v3253
      %v3694 = vsel %vm3683, %v3661, %v3255
      %v3695 = vsel %vm3683, %v3662, %v3257
      %v3696 = vsel %vm3683, %v3663, %v3259
      %v3697 = vsel %vm3683, %v3664, %v3261
      %v3698 = vsel %vm3683, %v3665, %v3263
      %v3699 = vsel %vm3683, %v3666, %v3265
      %v3700 = vsel %vm3683, %v3667, %v3267
      %v3701 = vsel %vm3683, %v3668, %v3269
      %v3702 = vsel %vm3683, %v3669, %v3271
      %v3703 = vsel %vm3683, %v3670, %v3273
      %v3704 = vsel %vm3683, %v3671, %v3275
      %v3705 = vsel %vm3683, %v3672, %v3277
      %v3706 = vsel %vm3683, %v3673, %v3279
      %v3707 = vsel %vm3683, %v3674, %v3281
      %v3708 = vsel %vm3683, %v3675, %v3283
      %v3709 = vsel %vm3683, %v3676, %v3285
      %v3710 = vsel %vm3683, %v3677, %v3287
      %v3711 = vsel %vm3683, %v3678, %v3289
      %v3712 = vsel %vm3683, %v3679, %v3291
      %v3713 = vsel %vm3683, %v3680, %v3293
      %v3714 = vsel %vm3683, %v3681, %v3295
      %v3715 = vsel %vm3683, %v3682, %v3297
      %vm3716 = vcmask 457728
      %v3717 = vsel %vm3716, %v3684, %v3331
      %v3718 = vsel %vm3716, %v3685, %v3333
      %v3719 = vsel %vm3716, %v3686, %v3335
      %v3720 = vsel %vm3716, %v3687, %v3337
      %v3721 = vsel %vm3716, %v3688, %v3339
      %v3722 = vsel %vm3716, %v3689, %v3341
      %v3723 = vsel %vm3716, %v3690, %v3343
      %v3724 = vsel %vm3716, %v3691, %v3345
      %v3725 = vsel %vm3716, %v3692, %v3347
      %v3726 = vsel %vm3716, %v3693, %v3349
      %v3727 = vsel %vm3716, %v3694, %v3351
      %v3728 = vsel %vm3716, %v3695, %v3353
      %v3729 = vsel %vm3716, %v3696, %v3355
      %v3730 = vsel %vm3716, %v3697, %v3357
      %v3731 = vsel %vm3716, %v3698, %v3359
      %v3732 = vsel %vm3716, %v3699, %v3361
      %v3733 = vsel %vm3716, %v3700, %v3363
      %v3734 = vsel %vm3716, %v3701, %v3365
      %v3735 = vsel %vm3716, %v3702, %v3367
      %v3736 = vsel %vm3716, %v3703, %v3369
      %v3737 = vsel %vm3716, %v3704, %v3371
      %v3738 = vsel %vm3716, %v3705, %v3373
      %v3739 = vsel %vm3716, %v3706, %v3375
      %v3740 = vsel %vm3716, %v3707, %v3377
      %v3741 = vsel %vm3716, %v3708, %v3379
      %v3742 = vsel %vm3716, %v3709, %v3381
      %v3743 = vsel %vm3716, %v3710, %v3383
      %v3744 = vsel %vm3716, %v3711, %v3385
      %v3745 = vsel %vm3716, %v3712, %v3387
      %v3746 = vsel %vm3716, %v3713, %v3389
      %v3747 = vsel %vm3716, %v3714, %v3391
      %v3748 = vsel %vm3716, %v3715, %v3393
      %vm3749 = vcmask 523264
      %v3750 = vsel %vm3749, %v3717, %v3427
      %v3751 = vsel %vm3749, %v3718, %v3429
      %v3752 = vsel %vm3749, %v3719, %v3431
      %v3753 = vsel %vm3749, %v3720, %v3433
      %v3754 = vsel %vm3749, %v3721, %v3435
      %v3755 = vsel %vm3749, %v3722, %v3437
      %v3756 = vsel %vm3749, %v3723, %v3439
      %v3757 = vsel %vm3749, %v3724, %v3441
      %v3758 = vsel %vm3749, %v3725, %v3443
      %v3759 = vsel %vm3749, %v3726, %v3445
      %v3760 = vsel %vm3749, %v3727, %v3447
      %v3761 = vsel %vm3749, %v3728, %v3449
      %v3762 = vsel %vm3749, %v3729, %v3451
      %v3763 = vsel %vm3749, %v3730, %v3453
      %v3764 = vsel %vm3749, %v3731, %v3455
      %v3765 = vsel %vm3749, %v3732, %v3457
      %v3766 = vsel %vm3749, %v3733, %v3459
      %v3767 = vsel %vm3749, %v3734, %v3461
      %v3768 = vsel %vm3749, %v3735, %v3463
      %v3769 = vsel %vm3749, %v3736, %v3465
      %v3770 = vsel %vm3749, %v3737, %v3467
      %v3771 = vsel %vm3749, %v3738, %v3469
      %v3772 = vsel %vm3749, %v3739, %v3471
      %v3773 = vsel %vm3749, %v3740, %v3473
      %v3774 = vsel %vm3749, %v3741, %v3475
      %v3775 = vsel %vm3749, %v3742, %v3477
      %v3776 = vsel %vm3749, %v3743, %v3479
      %v3777 = vsel %vm3749, %v3744, %v3481
      %v3778 = vsel %vm3749, %v3745, %v3483
      %v3779 = vsel %vm3749, %v3746, %v3485
      %v3780 = vsel %vm3749, %v3747, %v3487
      %v3781 = vsel %vm3749, %v3748, %v3489
      %v3782 = vld [vmem:[%s3] sm:$0xff]
      %v3783 = vld [vmem:[%s3 + $0x8] sm:$0xff]
      %v3784 = vld [vmem:[%s3 + $0x10] sm:$0xff]
      %v3785 = vld [vmem:[%s3 + $0x18] sm:$0xff]
      %v3786 = vld [vmem:[%s3 + $0x20] sm:$0xff]
      %v3787 = vld [vmem:[%s3 + $0x28] sm:$0xff]
      %v3788 = vld [vmem:[%s3 + $0x30] sm:$0xff]
      %v3789 = vld [vmem:[%s3 + $0x38] sm:$0xff]
      %v3790 = vld [vmem:[%s3 + $0x40] sm:$0xff]
      %v3791 = vld [vmem:[%s4] sm:$0x1]
      %v3793 = vperm.slane %v3791, 0
      %vm3795 = vcmask 588800
      %v3797 = vsel %vm3795, %v3750, 0
      %v3800 = vsel %vm3795, %v3751, 0
      %v3803 = vsel %vm3795, %v3752, 0
      %v3806 = vsel %vm3795, %v3753, 0
      %v3809 = vsel %vm3795, %v3754, 0
      %v3812 = vsel %vm3795, %v3755, 0
      %v3815 = vsel %vm3795, %v3756, 0
      %v3818 = vsel %vm3795, %v3757, 0
      %v3821 = vsel %vm3795, %v3758, 0
      %v3824 = vsel %vm3795, %v3759, 0
      %v3827 = vsel %vm3795, %v3760, 0
      %v3830 = vsel %vm3795, %v3761, 0
      %v3833 = vsel %vm3795, %v3762, 0
      %v3836 = vsel %vm3795, %v3763, 0
      %v3839 = vsel %vm3795, %v3764, 0
      %v3842 = vsel %vm3795, %v3765, 0
      %v3845 = vsel %vm3795, %v3766, 0
      %v3848 = vsel %vm3795, %v3767, 0
      %v3851 = vsel %vm3795, %v3768, 0
      %v3854 = vsel %vm3795, %v3769, 0
      %v3857 = vsel %vm3795, %v3770, 0
      %v3860 = vsel %vm3795, %v3771, 0
      %v3863 = vsel %vm3795, %v3772, 0
      %v3866 = vsel %vm3795, %v3773, 0
      %v3869 = vsel %vm3795, %v3774, 0
      %v3872 = vsel %vm3795, %v3775, 0
      %v3875 = vsel %vm3795, %v3776, 0
      %v3878 = vsel %vm3795, %v3777, 0
      %v3881 = vsel %vm3795, %v3778, 0
      %v3884 = vsel %vm3795, %v3779, 0
      %v3887 = vsel %vm3795, %v3780, 0
      %v3890 = vsel %vm3795, %v3781, 0
      %3892 = vmatpush.msra.mxu0 0.0
      %3893 = vmatpush.msra.mxu0 0.0
      %3894 = vmatpush.msra.mxu0 0.0
      %3895 = vmatpush.msra.mxu0 0.0
      %3896 = vmatpush.msra.mxu0 0.0
      %3897 = vmatpush.msra.mxu0 0.0
      %3898 = vmatpush.msra.mxu0 0.0
      %3899 = vmatpush.msra.mxu0 %v3790
      %3900 = vmatpush.msra.mxu0 %v3789
      %3901 = vmatpush.msra.mxu0 %v3788
      %3902 = vmatpush.msra.mxu0 %v3787
      %3903 = vmatpush.msra.mxu0 %v3786
      %3904 = vmatpush.msra.mxu0 %v3785
      %3905 = vmatpush.msra.mxu0 %v3784
      %3906 = vmatpush.msra.mxu0 %v3783
      %3907 = vmatpush.msra.mxu0 %v3782
      %3908 = vmatmul.f32.gmra.mxu0 %v3797
      %v3909 = vpop.f32.mrf.mxu0
      %v3910 = vadd.f32 %v3793, %v3909
      %3911 = vmatmul.f32.gmra.mxu0 %v3800
      %v3912 = vpop.f32.mrf.mxu0
      %v3913 = vadd.f32 %v3793, %v3912
      %3914 = vmatmul.f32.gmra.mxu0 %v3803
      %v3915 = vpop.f32.mrf.mxu0
      %v3916 = vadd.f32 %v3793, %v3915
      %3917 = vmatmul.f32.gmra.mxu0 %v3806
      %v3918 = vpop.f32.mrf.mxu0
      %v3919 = vadd.f32 %v3793, %v3918
      %3920 = vmatmul.f32.gmra.mxu0 %v3809
      %v3921 = vpop.f32.mrf.mxu0
      %v3922 = vadd.f32 %v3793, %v3921
      %3923 = vmatmul.f32.gmra.mxu0 %v3812
      %v3924 = vpop.f32.mrf.mxu0
      %v3925 = vadd.f32 %v3793, %v3924
      %3926 = vmatmul.f32.gmra.mxu0 %v3815
      %v3927 = vpop.f32.mrf.mxu0
      %v3928 = vadd.f32 %v3793, %v3927
      %3929 = vmatmul.f32.gmra.mxu0 %v3818
      %v3930 = vpop.f32.mrf.mxu0
      %v3931 = vadd.f32 %v3793, %v3930
      %3932 = vmatmul.f32.gmra.mxu0 %v3821
      %v3933 = vpop.f32.mrf.mxu0
      %v3934 = vadd.f32 %v3793, %v3933
      %3935 = vmatmul.f32.gmra.mxu0 %v3824
      %v3936 = vpop.f32.mrf.mxu0
      %v3937 = vadd.f32 %v3793, %v3936
      %3938 = vmatmul.f32.gmra.mxu0 %v3827
      %v3939 = vpop.f32.mrf.mxu0
      %v3940 = vadd.f32 %v3793, %v3939
      %3941 = vmatmul.f32.gmra.mxu0 %v3830
      %v3942 = vpop.f32.mrf.mxu0
      %v3943 = vadd.f32 %v3793, %v3942
      %3944 = vmatmul.f32.gmra.mxu0 %v3833
      %v3945 = vpop.f32.mrf.mxu0
      %v3946 = vadd.f32 %v3793, %v3945
      %3947 = vmatmul.f32.gmra.mxu0 %v3836
      %v3948 = vpop.f32.mrf.mxu0
      %v3949 = vadd.f32 %v3793, %v3948
      %3950 = vmatmul.f32.gmra.mxu0 %v3839
      %v3951 = vpop.f32.mrf.mxu0
      %v3952 = vadd.f32 %v3793, %v3951
      %3953 = vmatmul.f32.gmra.mxu0 %v3842
      %v3954 = vpop.f32.mrf.mxu0
      %v3955 = vadd.f32 %v3793, %v3954
      %3956 = vmatmul.f32.gmra.mxu0 %v3845
      %v3957 = vpop.f32.mrf.mxu0
      %v3958 = vadd.f32 %v3793, %v3957
      %3959 = vmatmul.f32.gmra.mxu0 %v3848
      %v3960 = vpop.f32.mrf.mxu0
      %v3961 = vadd.f32 %v3793, %v3960
      %3962 = vmatmul.f32.gmra.mxu0 %v3851
      %v3963 = vpop.f32.mrf.mxu0
      %v3964 = vadd.f32 %v3793, %v3963
      %3965 = vmatmul.f32.gmra.mxu0 %v3854
      %v3966 = vpop.f32.mrf.mxu0
      %v3967 = vadd.f32 %v3793, %v3966
      %3968 = vmatmul.f32.gmra.mxu0 %v3857
      %v3969 = vpop.f32.mrf.mxu0
      %v3970 = vadd.f32 %v3793, %v3969
      %3971 = vmatmul.f32.gmra.mxu0 %v3860
      %v3972 = vpop.f32.mrf.mxu0
      %v3973 = vadd.f32 %v3793, %v3972
      %3974 = vmatmul.f32.gmra.mxu0 %v3863
      %v3975 = vpop.f32.mrf.mxu0
      %v3976 = vadd.f32 %v3793, %v3975
      %3977 = vmatmul.f32.gmra.mxu0 %v3866
      %v3978 = vpop.f32.mrf.mxu0
      %v3979 = vadd.f32 %v3793, %v3978
      %3980 = vmatmul.f32.gmra.mxu0 %v3869
      %v3981 = vpop.f32.mrf.mxu0
      %v3982 = vadd.f32 %v3793, %v3981
      %3983 = vmatmul.f32.gmra.mxu0 %v3872
      %v3984 = vpop.f32.mrf.mxu0
      %v3985 = vadd.f32 %v3793, %v3984
      %3986 = vmatmul.f32.gmra.mxu0 %v3875
      %v3987 = vpop.f32.mrf.mxu0
      %v3988 = vadd.f32 %v3793, %v3987
      %3989 = vmatmul.f32.gmra.mxu0 %v3878
      %v3990 = vpop.f32.mrf.mxu0
      %v3991 = vadd.f32 %v3793, %v3990
      %3992 = vmatmul.f32.gmra.mxu0 %v3881
      %v3993 = vpop.f32.mrf.mxu0
      %v3994 = vadd.f32 %v3793, %v3993
      %3995 = vmatmul.f32.gmra.mxu0 %v3884
      %v3996 = vpop.f32.mrf.mxu0
      %v3997 = vadd.f32 %v3793, %v3996
      %3998 = vmatmul.f32.gmra.mxu0 %v3887
      %v3999 = vpop.f32.mrf.mxu0
      %v4000 = vadd.f32 %v3793, %v3999
      %4001 = vmatmul.f32.gmra.mxu0 %v3890
      %v4002 = vpop.f32.mrf.mxu0
      %v4003 = vadd.f32 %v3793, %v4002
      %4004 = vdwg.mxu0
      %v4005 = vmax.f32 %v3910, 0.0
      %v4006 = vmax.f32 %v3913, 0.0
      %v4007 = vmax.f32 %v3916, 0.0
      %v4008 = vmax.f32 %v3919, 0.0
      %v4009 = vmax.f32 %v3922, 0.0
      %v4010 = vmax.f32 %v3925, 0.0
      %v4011 = vmax.f32 %v3928, 0.0
      %v4012 = vmax.f32 %v3931, 0.0
      %v4013 = vmax.f32 %v3934, 0.0
      %v4014 = vmax.f32 %v3937, 0.0
      %v4015 = vmax.f32 %v3940, 0.0
      %v4016 = vmax.f32 %v3943, 0.0
      %v4017 = vmax.f32 %v3946, 0.0
      %v4018 = vmax.f32 %v3949, 0.0
      %v4019 = vmax.f32 %v3952, 0.0
      %v4020 = vmax.f32 %v3955, 0.0
      %v4021 = vmax.f32 %v3958, 0.0
      %v4022 = vmax.f32 %v3961, 0.0
      %v4023 = vmax.f32 %v3964, 0.0
      %v4024 = vmax.f32 %v3967, 0.0
      %v4025 = vmax.f32 %v3970, 0.0
      %v4026 = vmax.f32 %v3973, 0.0
      %v4027 = vmax.f32 %v3976, 0.0
      %v4028 = vmax.f32 %v3979, 0.0
      %v4029 = vmax.f32 %v3982, 0.0
      %v4030 = vmax.f32 %v3985, 0.0
      %v4031 = vmax.f32 %v3988, 0.0
      %v4032 = vmax.f32 %v3991, 0.0
      %v4033 = vmax.f32 %v3994, 0.0
      %v4034 = vmax.f32 %v3997, 0.0
      %v4035 = vmax.f32 %v4000, 0.0
      %v4036 = vmax.f32 %v4003, 0.0
      %v4045 = vrot.slane %v4005, 1
      %v4046 = vrot.slane %v4009, 1
      %v4047 = vrot.slane %v4013, 1
      %v4048 = vrot.slane %v4017, 1
      %v4049 = vrot.slane %v4021, 1
      %v4050 = vrot.slane %v4025, 1
      %v4051 = vrot.slane %v4029, 1
      %v4052 = vrot.slane %v4033, 1
      %v4061 = vrot.slane %v4005, 2
      %v4062 = vrot.slane %v4009, 2
      %v4063 = vrot.slane %v4013, 2
      %v4064 = vrot.slane %v4017, 2
      %v4065 = vrot.slane %v4021, 2
      %v4066 = vrot.slane %v4025, 2
      %v4067 = vrot.slane %v4029, 2
      %v4068 = vrot.slane %v4033, 2
      %v4077 = vrot.slane %v4005, 3
      %v4078 = vrot.slane %v4009, 3
      %v4079 = vrot.slane %v4013, 3
      %v4080 = vrot.slane %v4017, 3
      %v4081 = vrot.slane %v4021, 3
      %v4082 = vrot.slane %v4025, 3
      %v4083 = vrot.slane %v4029, 3
      %v4084 = vrot.slane %v4033, 3
      %v4101 = vrot.slane %v4006, 4
      %v4102 = vrot.slane %v4010, 4
      %v4103 = vrot.slane %v4014, 4
      %v4104 = vrot.slane %v4018, 4
      %v4105 = vrot.slane %v4022, 4
      %v4106 = vrot.slane %v4026, 4
      %v4107 = vrot.slane %v4030, 4
      %v4108 = vrot.slane %v4034, 4
      %v4117 = vrot.slane %v4006, 5
      %v4118 = vrot.slane %v4010, 5
      %v4119 = vrot.slane %v4014, 5
      %v4120 = vrot.slane %v4018, 5
      %v4121 = vrot.slane %v4022, 5
      %v4122 = vrot.slane %v4026, 5
      %v4123 = vrot.slane %v4030, 5
      %v4124 = vrot.slane %v4034, 5
      %v4133 = vrot.slane %v4006, 6
      %v4134 = vrot.slane %v4010, 6
      %v4135 = vrot.slane %v4014, 6
      %v4136 = vrot.slane %v4018, 6
      %v4137 = vrot.slane %v4022, 6
      %v4138 = vrot.slane %v4026, 6
      %v4139 = vrot.slane %v4030, 6
      %v4140 = vrot.slane %v4034, 6
      %v4149 = vrot.slane %v4006, 7
      %v4150 = vrot.slane %v4010, 7
      %v4151 = vrot.slane %v4014, 7
      %v4152 = vrot.slane %v4018, 7
      %v4153 = vrot.slane %v4022, 7
      %v4154 = vrot.slane %v4026, 7
      %v4155 = vrot.slane %v4030, 7
      %v4156 = vrot.slane %v4034, 7
      %v4165 = vsel %vm776, %v4005, %v4045
      %v4166 = vsel %vm776, %v4009, %v4046
      %v4167 = vsel %vm776, %v4013, %v4047
      %v4168 = vsel %vm776, %v4017, %v4048
      %v4169 = vsel %vm776, %v4021, %v4049
      %v4170 = vsel %vm776, %v4025, %v4050
      %v4171 = vsel %vm776, %v4029, %v4051
      %v4172 = vsel %vm776, %v4033, %v4052
      %vm4173 = vcmask 1041408
      %v4174 = vsel %vm4173, %v4165, %v4061
      %v4175 = vsel %vm4173, %v4166, %v4062
      %v4176 = vsel %vm4173, %v4167, %v4063
      %v4177 = vsel %vm4173, %v4168, %v4064
      %v4178 = vsel %vm4173, %v4169, %v4065
      %v4179 = vsel %vm4173, %v4170, %v4066
      %v4180 = vsel %vm4173, %v4171, %v4067
      %v4181 = vsel %vm4173, %v4172, %v4068
      %vm4182 = vcmask 1042432
      %v4183 = vsel %vm4182, %v4174, %v4077
      %v4184 = vsel %vm4182, %v4175, %v4078
      %v4185 = vsel %vm4182, %v4176, %v4079
      %v4186 = vsel %vm4182, %v4177, %v4080
      %v4187 = vsel %vm4182, %v4178, %v4081
      %v4188 = vsel %vm4182, %v4179, %v4082
      %v4189 = vsel %vm4182, %v4180, %v4083
      %v4190 = vsel %vm4182, %v4181, %v4084
      %v4191 = vsel %vm2254, %v4183, %v4101
      %v4192 = vsel %vm2254, %v4184, %v4102
      %v4193 = vsel %vm2254, %v4185, %v4103
      %v4194 = vsel %vm2254, %v4186, %v4104
      %v4195 = vsel %vm2254, %v4187, %v4105
      %v4196 = vsel %vm2254, %v4188, %v4106
      %v4197 = vsel %vm2254, %v4189, %v4107
      %v4198 = vsel %vm2254, %v4190, %v4108
      %vm4199 = vcmask 1044480
      %v4200 = vsel %vm4199, %v4191, %v4117
      %v4201 = vsel %vm4199, %v4192, %v4118
      %v4202 = vsel %vm4199, %v4193, %v4119
      %v4203 = vsel %vm4199, %v4194, %v4120
      %v4204 = vsel %vm4199, %v4195, %v4121
      %v4205 = vsel %vm4199, %v4196, %v4122
      %v4206 = vsel %vm4199, %v4197, %v4123
      %v4207 = vsel %vm4199, %v4198, %v4124
      %v4208 = vsel %vm1119, %v4200, %v4133
      %v4209 = vsel %vm1119, %v4201, %v4134
      %v4210 = vsel %vm1119, %v4202, %v4135
      %v4211 = vsel %vm1119, %v4203, %v4136
      %v4212 = vsel %vm1119, %v4204, %v4137
      %v4213 = vsel %vm1119, %v4205, %v4138
      %v4214 = vsel %vm1119, %v4206, %v4139
      %v4215 = vsel %vm1119, %v4207, %v4140
      %v4216 = vsel %vm942, %v4208, %v4149
      %v4217 = vsel %vm942, %v4209, %v4150
      %v4218 = vsel %vm942, %v4210, %v4151
      %v4219 = vsel %vm942, %v4211, %v4152
      %v4220 = vsel %vm942, %v4212, %v4153
      %v4221 = vsel %vm942, %v4213, %v4154
      %v4222 = vsel %vm942, %v4214, %v4155
      %v4223 = vsel %vm942, %v4215, %v4156
      %v4232 = vrot.slane %v4216, 7
      %v4233 = vrot.slane %v4217, 7
      %v4234 = vrot.slane %v4218, 7
      %v4235 = vrot.slane %v4219, 7
      %v4236 = vrot.slane %v4220, 7
      %v4237 = vrot.slane %v4221, 7
      %v4238 = vrot.slane %v4222, 7
      %v4239 = vrot.slane %v4223, 7
      %v4248 = vsel %vm776, 0.0, %v4232
      %v4249 = vsel %vm776, 0.0, %v4233
      %v4250 = vsel %vm776, 0.0, %v4234
      %v4251 = vsel %vm776, 0.0, %v4235
      %v4252 = vsel %vm776, 0.0, %v4236
      %v4253 = vsel %vm776, 0.0, %v4237
      %v4254 = vsel %vm776, 0.0, %v4238
      %v4255 = vsel %vm776, 0.0, %v4239
      %v4256 = vsel %vm776, %v4232, 0.0
      %v4257 = vsel %vm776, %v4233, 0.0
      %v4258 = vsel %vm776, %v4234, 0.0
      %v4259 = vsel %vm776, %v4235, 0.0
      %v4260 = vsel %vm776, %v4236, 0.0
      %v4261 = vsel %vm776, %v4237, 0.0
      %v4262 = vsel %vm776, %v4238, 0.0
      %v4263 = vsel %vm776, %v4239, 0.0
      %v4278 = vsel %vm942, %v943, %v946
      %v4279 = vrot.slane %v4248, 1
      %v4280 = vrot.slane %v4256, 1
      %v4281 = vsel %vm942, %v4279, %v4280
      %v4282 = vrot.slane %v4249, 1
      %v4283 = vrot.slane %v4257, 1
      %v4284 = vsel %vm942, %v4282, %v4283
      %v4285 = vrot.slane %v4250, 1
      %v4286 = vrot.slane %v4258, 1
      %v4287 = vsel %vm942, %v4285, %v4286
      %v4288 = vrot.slane %v4251, 1
      %v4289 = vrot.slane %v4259, 1
      %v4290 = vsel %vm942, %v4288, %v4289
      %v4291 = vrot.slane %v4252, 1
      %v4292 = vrot.slane %v4260, 1
      %v4293 = vsel %vm942, %v4291, %v4292
      %v4294 = vrot.slane %v4253, 1
      %v4295 = vrot.slane %v4261, 1
      %v4296 = vsel %vm942, %v4294, %v4295
      %v4297 = vrot.slane %v4254, 1
      %v4298 = vrot.slane %v4262, 1
      %v4299 = vsel %vm942, %v4297, %v4298
      %4300 = vrot.lane.b32.xlu0 %v4278, 8
      %v4301 = vpop.permute.xlu0 %4300
      %4302 = vrot.lane.b32.xlu0 %v4281, 8
      %v4303 = vpop.permute.xlu0 %4302
      %4304 = vrot.lane.b32.xlu0 %v4284, 8
      %v4305 = vpop.permute.xlu0 %4304
      %4306 = vrot.lane.b32.xlu0 %v4287, 8
      %v4307 = vpop.permute.xlu0 %4306
      %4308 = vrot.lane.b32.xlu0 %v4290, 8
      %v4309 = vpop.permute.xlu0 %4308
      %4310 = vrot.lane.b32.xlu0 %v4293, 8
      %v4311 = vpop.permute.xlu0 %4310
      %4312 = vrot.lane.b32.xlu0 %v4296, 8
      %v4313 = vpop.permute.xlu0 %4312
      %4314 = vrot.lane.b32.xlu0 %v4299, 8
      %v4315 = vpop.permute.xlu0 %4314
      %v4324 = vsel %vm1119, %v1120, %v1123
      %v4325 = vrot.slane %v4248, 2
      %v4326 = vrot.slane %v4256, 2
      %v4327 = vsel %vm1119, %v4325, %v4326
      %v4328 = vrot.slane %v4249, 2
      %v4329 = vrot.slane %v4257, 2
      %v4330 = vsel %vm1119, %v4328, %v4329
      %v4331 = vrot.slane %v4250, 2
      %v4332 = vrot.slane %v4258, 2
      %v4333 = vsel %vm1119, %v4331, %v4332
      %v4334 = vrot.slane %v4251, 2
      %v4335 = vrot.slane %v4259, 2
      %v4336 = vsel %vm1119, %v4334, %v4335
      %v4337 = vrot.slane %v4252, 2
      %v4338 = vrot.slane %v4260, 2
      %v4339 = vsel %vm1119, %v4337, %v4338
      %v4340 = vrot.slane %v4253, 2
      %v4341 = vrot.slane %v4261, 2
      %v4342 = vsel %vm1119, %v4340, %v4341
      %v4343 = vrot.slane %v4254, 2
      %v4344 = vrot.slane %v4262, 2
      %v4345 = vsel %vm1119, %v4343, %v4344
      %4346 = vrot.lane.b32.xlu0 %v4324, 16
      %v4347 = vpop.permute.xlu0 %4346
      %4348 = vrot.lane.b32.xlu0 %v4327, 16
      %v4349 = vpop.permute.xlu0 %4348
      %4350 = vrot.lane.b32.xlu0 %v4330, 16
      %v4351 = vpop.permute.xlu0 %4350
      %4352 = vrot.lane.b32.xlu0 %v4333, 16
      %v4353 = vpop.permute.xlu0 %4352
      %4354 = vrot.lane.b32.xlu0 %v4336, 16
      %v4355 = vpop.permute.xlu0 %4354
      %4356 = vrot.lane.b32.xlu0 %v4339, 16
      %v4357 = vpop.permute.xlu0 %4356
      %4358 = vrot.lane.b32.xlu0 %v4342, 16
      %v4359 = vpop.permute.xlu0 %4358
      %4360 = vrot.lane.b32.xlu0 %v4345, 16
      %v4361 = vpop.permute.xlu0 %4360
      %4371 = vrot.lane.b32.xlu0 %v4248, 24
      %v4372 = vpop.permute.xlu0 %4371
      %4373 = vrot.lane.b32.xlu0 %v4249, 24
      %v4374 = vpop.permute.xlu0 %4373
      %4375 = vrot.lane.b32.xlu0 %v4250, 24
      %v4376 = vpop.permute.xlu0 %4375
      %4377 = vrot.lane.b32.xlu0 %v4251, 24
      %v4378 = vpop.permute.xlu0 %4377
      %4379 = vrot.lane.b32.xlu0 %v4252, 24
      %v4380 = vpop.permute.xlu0 %4379
      %4381 = vrot.lane.b32.xlu0 %v4253, 24
      %v4382 = vpop.permute.xlu0 %4381
      %4383 = vrot.lane.b32.xlu0 %v4254, 24
      %v4384 = vpop.permute.xlu0 %4383
      %4385 = vrot.lane.b32.xlu0 %v4255, 24
      %v4386 = vpop.permute.xlu0 %4385
      %v4396 = vrot.slane %v4255, 1
      %v4397 = vrot.slane %v4263, 1
      %v4398 = vsel %vm942, %v4396, %v4397
      %4399 = vrot.lane.b32.xlu0 %v4281, 32
      %v4400 = vpop.permute.xlu0 %4399
      %4401 = vrot.lane.b32.xlu0 %v4284, 32
      %v4402 = vpop.permute.xlu0 %4401
      %4403 = vrot.lane.b32.xlu0 %v4287, 32
      %v4404 = vpop.permute.xlu0 %4403
      %4405 = vrot.lane.b32.xlu0 %v4290, 32
      %v4406 = vpop.permute.xlu0 %4405
      %4407 = vrot.lane.b32.xlu0 %v4293, 32
      %v4408 = vpop.permute.xlu0 %4407
      %4409 = vrot.lane.b32.xlu0 %v4296, 32
      %v4410 = vpop.permute.xlu0 %4409
      %4411 = vrot.lane.b32.xlu0 %v4299, 32
      %v4412 = vpop.permute.xlu0 %4411
      %4413 = vrot.lane.b32.xlu0 %v4398, 32
      %v4414 = vpop.permute.xlu0 %4413
      %v4423 = vrot.slane %v4255, 2
      %v4424 = vrot.slane %v4263, 2
      %v4425 = vsel %vm1119, %v4423, %v4424
      %4426 = vrot.lane.b32.xlu0 %v4327, 40
      %v4427 = vpop.permute.xlu0 %4426
      %4428 = vrot.lane.b32.xlu0 %v4330, 40
      %v4429 = vpop.permute.xlu0 %4428
      %4430 = vrot.lane.b32.xlu0 %v4333, 40
      %v4431 = vpop.permute.xlu0 %4430
      %4432 = vrot.lane.b32.xlu0 %v4336, 40
      %v4433 = vpop.permute.xlu0 %4432
      %4434 = vrot.lane.b32.xlu0 %v4339, 40
      %v4435 = vpop.permute.xlu0 %4434
      %4436 = vrot.lane.b32.xlu0 %v4342, 40
      %v4437 = vpop.permute.xlu0 %4436
      %4438 = vrot.lane.b32.xlu0 %v4345, 40
      %v4439 = vpop.permute.xlu0 %4438
      %4440 = vrot.lane.b32.xlu0 %v4425, 40
      %v4441 = vpop.permute.xlu0 %4440
      %4450 = vrot.lane.b32.xlu0 %v4249, 48
      %v4451 = vpop.permute.xlu0 %4450
      %4452 = vrot.lane.b32.xlu0 %v4250, 48
      %v4453 = vpop.permute.xlu0 %4452
      %4454 = vrot.lane.b32.xlu0 %v4251, 48
      %v4455 = vpop.permute.xlu0 %4454
      %4456 = vrot.lane.b32.xlu0 %v4252, 48
      %v4457 = vpop.permute.xlu0 %4456
      %4458 = vrot.lane.b32.xlu0 %v4253, 48
      %v4459 = vpop.permute.xlu0 %4458
      %4460 = vrot.lane.b32.xlu0 %v4254, 48
      %v4461 = vpop.permute.xlu0 %4460
      %4462 = vrot.lane.b32.xlu0 %v4255, 48
      %v4463 = vpop.permute.xlu0 %4462
      %4471 = vrot.lane.b32.xlu0 %v4284, 56
      %v4472 = vpop.permute.xlu0 %4471
      %4473 = vrot.lane.b32.xlu0 %v4287, 56
      %v4474 = vpop.permute.xlu0 %4473
      %4475 = vrot.lane.b32.xlu0 %v4290, 56
      %v4476 = vpop.permute.xlu0 %4475
      %4477 = vrot.lane.b32.xlu0 %v4293, 56
      %v4478 = vpop.permute.xlu0 %4477
      %4479 = vrot.lane.b32.xlu0 %v4296, 56
      %v4480 = vpop.permute.xlu0 %4479
      %4481 = vrot.lane.b32.xlu0 %v4299, 56
      %v4482 = vpop.permute.xlu0 %4481
      %4483 = vrot.lane.b32.xlu0 %v4398, 56
      %v4484 = vpop.permute.xlu0 %4483
      %4485 = vrot.lane.b32.xlu0 %v4278, 56
      %v4486 = vpop.permute.xlu0 %4485
      %4495 = vrot.lane.b32.xlu0 %v4330, 64
      %v4496 = vpop.permute.xlu0 %4495
      %4497 = vrot.lane.b32.xlu0 %v4333, 64
      %v4498 = vpop.permute.xlu0 %4497
      %4499 = vrot.lane.b32.xlu0 %v4336, 64
      %v4500 = vpop.permute.xlu0 %4499
      %4501 = vrot.lane.b32.xlu0 %v4339, 64
      %v4502 = vpop.permute.xlu0 %4501
      %4503 = vrot.lane.b32.xlu0 %v4342, 64
      %v4504 = vpop.permute.xlu0 %4503
      %4505 = vrot.lane.b32.xlu0 %v4345, 64
      %v4506 = vpop.permute.xlu0 %4505
      %4507 = vrot.lane.b32.xlu0 %v4425, 64
      %v4508 = vpop.permute.xlu0 %4507
      %4509 = vrot.lane.b32.xlu0 %v4324, 64
      %v4510 = vpop.permute.xlu0 %4509
      %v4519 = vsel %vm1917, %v876, %v4301
      %v4520 = vsel %vm1917, %v4248, %v4303
      %v4521 = vsel %vm1917, %v4249, %v4305
      %v4522 = vsel %vm1917, %v4250, %v4307
      %v4523 = vsel %vm1917, %v4251, %v4309
      %v4524 = vsel %vm1917, %v4252, %v4311
      %v4525 = vsel %vm1917, %v4253, %v4313
      %v4526 = vsel %vm1917, %v4254, %v4315
      %v4527 = vsel %vm1983, %v4519, %v4347
      %v4528 = vsel %vm1983, %v4520, %v4349
      %v4529 = vsel %vm1983, %v4521, %v4351
      %v4530 = vsel %vm1983, %v4522, %v4353
      %v4531 = vsel %vm1983, %v4523, %v4355
      %v4532 = vsel %vm1983, %v4524, %v4357
      %v4533 = vsel %vm1983, %v4525, %v4359
      %v4534 = vsel %vm1983, %v4526, %v4361
      %v4535 = vsel %vm2049, %v4527, %v4372
      %v4536 = vsel %vm2049, %v4528, %v4374
      %v4537 = vsel %vm2049, %v4529, %v4376
      %v4538 = vsel %vm2049, %v4530, %v4378
      %v4539 = vsel %vm2049, %v4531, %v4380
      %v4540 = vsel %vm2049, %v4532, %v4382
      %v4541 = vsel %vm2049, %v4533, %v4384
      %v4542 = vsel %vm2049, %v4534, %v4386
      %v4543 = vsel %vm2115, %v4535, %v4400
      %v4544 = vsel %vm2115, %v4536, %v4402
      %v4545 = vsel %vm2115, %v4537, %v4404
      %v4546 = vsel %vm2115, %v4538, %v4406
      %v4547 = vsel %vm2115, %v4539, %v4408
      %v4548 = vsel %vm2115, %v4540, %v4410
      %v4549 = vsel %vm2115, %v4541, %v4412
      %v4550 = vsel %vm2115, %v4542, %v4414
      %v4551 = vsel %vm3650, %v4543, %v4427
      %v4552 = vsel %vm3650, %v4544, %v4429
      %v4553 = vsel %vm3650, %v4545, %v4431
      %v4554 = vsel %vm3650, %v4546, %v4433
      %v4555 = vsel %vm3650, %v4547, %v4435
      %v4556 = vsel %vm3650, %v4548, %v4437
      %v4557 = vsel %vm3650, %v4549, %v4439
      %v4558 = vsel %vm3650, %v4550, %v4441
      %v4559 = vsel %vm3683, %v4551, %v4451
      %v4560 = vsel %vm3683, %v4552, %v4453
      %v4561 = vsel %vm3683, %v4553, %v4455
      %v4562 = vsel %vm3683, %v4554, %v4457
      %v4563 = vsel %vm3683, %v4555, %v4459
      %v4564 = vsel %vm3683, %v4556, %v4461
      %v4565 = vsel %vm3683, %v4557, %v4463
      %v4566 = vsel %vm3683, %v4558, %v3295
      %v4567 = vsel %vm3716, %v4559, %v4472
      %v4568 = vsel %vm3716, %v4560, %v4474
      %v4569 = vsel %vm3716, %v4561, %v4476
      %v4570 = vsel %vm3716, %v4562, %v4478
      %v4571 = vsel %vm3716, %v4563, %v4480
      %v4572 = vsel %vm3716, %v4564, %v4482
      %v4573 = vsel %vm3716, %v4565, %v4484
      %v4574 = vsel %vm3716, %v4566, %v4486
      %v4575 = vsel %vm3749, %v4567, %v4496
      %v4576 = vsel %vm3749, %v4568, %v4498
      %v4577 = vsel %vm3749, %v4569, %v4500
      %v4578 = vsel %vm3749, %v4570, %v4502
      %v4579 = vsel %vm3749, %v4571, %v4504
      %v4580 = vsel %vm3749, %v4572, %v4506
      %v4581 = vsel %vm3749, %v4573, %v4508
      %v4582 = vsel %vm3749, %v4574, %v4510
      %v4583 = vld [vmem:[%s5] sm:$0xff]
      %v4584 = vld [vmem:[%s5 + $0x8] sm:$0xff]
      %v4585 = vld [vmem:[%s5 + $0x10] sm:$0xff]
      %v4586 = vld [vmem:[%s5 + $0x18] sm:$0xff]
      %v4587 = vld [vmem:[%s5 + $0x20] sm:$0xff]
      %v4588 = vld [vmem:[%s5 + $0x28] sm:$0xff]
      %v4589 = vld [vmem:[%s5 + $0x30] sm:$0xff]
      %v4590 = vld [vmem:[%s5 + $0x38] sm:$0xff]
      %v4591 = vld [vmem:[%s5 + $0x40] sm:$0xff]
      %v4592 = vld [vmem:[%s6] sm:$0x1]
      %v4594 = vperm.slane %v4592, 0
      %v4597 = vsel %vm3795, %v4575, 0
      %v4600 = vsel %vm3795, %v4576, 0
      %v4603 = vsel %vm3795, %v4577, 0
      %v4606 = vsel %vm3795, %v4578, 0
      %v4609 = vsel %vm3795, %v4579, 0
      %v4612 = vsel %vm3795, %v4580, 0
      %v4615 = vsel %vm3795, %v4581, 0
      %v4618 = vsel %vm3795, %v4582, 0
      %4620 = vmatpush.msra.mxu0 0.0
      %4621 = vmatpush.msra.mxu0 0.0
      %4622 = vmatpush.msra.mxu0 0.0
      %4623 = vmatpush.msra.mxu0 0.0
      %4624 = vmatpush.msra.mxu0 0.0
      %4625 = vmatpush.msra.mxu0 0.0
      %4626 = vmatpush.msra.mxu0 0.0
      %4627 = vmatpush.msra.mxu0 %v4591
      %4628 = vmatpush.msra.mxu0 %v4590
      %4629 = vmatpush.msra.mxu0 %v4589
      %4630 = vmatpush.msra.mxu0 %v4588
      %4631 = vmatpush.msra.mxu0 %v4587
      %4632 = vmatpush.msra.mxu0 %v4586
      %4633 = vmatpush.msra.mxu0 %v4585
      %4634 = vmatpush.msra.mxu0 %v4584
      %4635 = vmatpush.msra.mxu0 %v4583
      %4636 = vmatmul.f32.gmra.mxu0 %v4597
      %v4637 = vpop.f32.mrf.mxu0
      %v4638 = vadd.f32 %v4594, %v4637
      %4639 = vmatmul.f32.gmra.mxu0 %v4600
      %v4640 = vpop.f32.mrf.mxu0
      %v4641 = vadd.f32 %v4594, %v4640
      %4642 = vmatmul.f32.gmra.mxu0 %v4603
      %v4643 = vpop.f32.mrf.mxu0
      %v4644 = vadd.f32 %v4594, %v4643
      %4645 = vmatmul.f32.gmra.mxu0 %v4606
      %v4646 = vpop.f32.mrf.mxu0
      %v4647 = vadd.f32 %v4594, %v4646
      %4648 = vmatmul.f32.gmra.mxu0 %v4609
      %v4649 = vpop.f32.mrf.mxu0
      %v4650 = vadd.f32 %v4594, %v4649
      %4651 = vmatmul.f32.gmra.mxu0 %v4612
      %v4652 = vpop.f32.mrf.mxu0
      %v4653 = vadd.f32 %v4594, %v4652
      %4654 = vmatmul.f32.gmra.mxu0 %v4615
      %v4655 = vpop.f32.mrf.mxu0
      %v4656 = vadd.f32 %v4594, %v4655
      %4657 = vmatmul.f32.gmra.mxu0 %v4618
      %v4658 = vpop.f32.mrf.mxu0
      %v4659 = vadd.f32 %v4594, %v4658
      %4660 = vdwg.mxu0
      %v4661 = vmax.f32 %v4638, 0.0
      %v4662 = vmax.f32 %v4641, 0.0
      %v4663 = vmax.f32 %v4644, 0.0
      %v4664 = vmax.f32 %v4647, 0.0
      %v4665 = vmax.f32 %v4650, 0.0
      %v4666 = vmax.f32 %v4653, 0.0
      %v4667 = vmax.f32 %v4656, 0.0
      %v4668 = vmax.f32 %v4659, 0.0
      %v4677 = vrot.slane %v4661, 7
      %v4678 = vrot.slane %v4662, 7
      %v4679 = vrot.slane %v4663, 7
      %v4680 = vrot.slane %v4664, 7
      %v4681 = vrot.slane %v4665, 7
      %v4682 = vrot.slane %v4666, 7
      %v4683 = vrot.slane %v4667, 7
      %v4684 = vrot.slane %v4668, 7
      %v4693 = vsel %vm776, 0.0, %v4677
      %v4694 = vsel %vm776, 0.0, %v4678
      %v4695 = vsel %vm776, 0.0, %v4679
      %v4696 = vsel %vm776, 0.0, %v4680
      %v4697 = vsel %vm776, 0.0, %v4681
      %v4698 = vsel %vm776, 0.0, %v4682
      %v4699 = vsel %vm776, 0.0, %v4683
      %v4700 = vsel %vm776, 0.0, %v4684
      %v4701 = vsel %vm776, %v4677, 0.0
      %v4702 = vsel %vm776, %v4678, 0.0
      %v4703 = vsel %vm776, %v4679, 0.0
      %v4704 = vsel %vm776, %v4680, 0.0
      %v4705 = vsel %vm776, %v4681, 0.0
      %v4706 = vsel %vm776, %v4682, 0.0
      %v4707 = vsel %vm776, %v4683, 0.0
      %v4708 = vsel %vm776, %v4684, 0.0
      %v4723 = vrot.slane %v4693, 1
      %v4724 = vrot.slane %v4701, 1
      %v4725 = vsel %vm942, %v4723, %v4724
      %v4726 = vrot.slane %v4694, 1
      %v4727 = vrot.slane %v4702, 1
      %v4728 = vsel %vm942, %v4726, %v4727
      %v4729 = vrot.slane %v4695, 1
      %v4730 = vrot.slane %v4703, 1
      %v4731 = vsel %vm942, %v4729, %v4730
      %v4732 = vrot.slane %v4696, 1
      %v4733 = vrot.slane %v4704, 1
      %v4734 = vsel %vm942, %v4732, %v4733
      %v4735 = vrot.slane %v4697, 1
      %v4736 = vrot.slane %v4705, 1
      %v4737 = vsel %vm942, %v4735, %v4736
      %v4738 = vrot.slane %v4698, 1
      %v4739 = vrot.slane %v4706, 1
      %v4740 = vsel %vm942, %v4738, %v4739
      %v4741 = vrot.slane %v4699, 1
      %v4742 = vrot.slane %v4707, 1
      %v4743 = vsel %vm942, %v4741, %v4742
      %4744 = vrot.lane.b32.xlu0 %v4278, 16
      %v4745 = vpop.permute.xlu0 %4744
      %4746 = vrot.lane.b32.xlu0 %v4725, 16
      %v4747 = vpop.permute.xlu0 %4746
      %4748 = vrot.lane.b32.xlu0 %v4728, 16
      %v4749 = vpop.permute.xlu0 %4748
      %4750 = vrot.lane.b32.xlu0 %v4731, 16
      %v4751 = vpop.permute.xlu0 %4750
      %4752 = vrot.lane.b32.xlu0 %v4734, 16
      %v4753 = vpop.permute.xlu0 %4752
      %4754 = vrot.lane.b32.xlu0 %v4737, 16
      %v4755 = vpop.permute.xlu0 %4754
      %4756 = vrot.lane.b32.xlu0 %v4740, 16
      %v4757 = vpop.permute.xlu0 %4756
      %4758 = vrot.lane.b32.xlu0 %v4743, 16
      %v4759 = vpop.permute.xlu0 %4758
      %v4768 = vrot.slane %v4693, 2
      %v4769 = vrot.slane %v4701, 2
      %v4770 = vsel %vm1119, %v4768, %v4769
      %v4771 = vrot.slane %v4694, 2
      %v4772 = vrot.slane %v4702, 2
      %v4773 = vsel %vm1119, %v4771, %v4772
      %v4774 = vrot.slane %v4695, 2
      %v4775 = vrot.slane %v4703, 2
      %v4776 = vsel %vm1119, %v4774, %v4775
      %v4777 = vrot.slane %v4696, 2
      %v4778 = vrot.slane %v4704, 2
      %v4779 = vsel %vm1119, %v4777, %v4778
      %v4780 = vrot.slane %v4697, 2
      %v4781 = vrot.slane %v4705, 2
      %v4782 = vsel %vm1119, %v4780, %v4781
      %v4783 = vrot.slane %v4698, 2
      %v4784 = vrot.slane %v4706, 2
      %v4785 = vsel %vm1119, %v4783, %v4784
      %v4786 = vrot.slane %v4699, 2
      %v4787 = vrot.slane %v4707, 2
      %v4788 = vsel %vm1119, %v4786, %v4787
      %4789 = vrot.lane.b32.xlu0 %v4324, 32
      %v4790 = vpop.permute.xlu0 %4789
      %4791 = vrot.lane.b32.xlu0 %v4770, 32
      %v4792 = vpop.permute.xlu0 %4791
      %4793 = vrot.lane.b32.xlu0 %v4773, 32
      %v4794 = vpop.permute.xlu0 %4793
      %4795 = vrot.lane.b32.xlu0 %v4776, 32
      %v4796 = vpop.permute.xlu0 %4795
      %4797 = vrot.lane.b32.xlu0 %v4779, 32
      %v4798 = vpop.permute.xlu0 %4797
      %4799 = vrot.lane.b32.xlu0 %v4782, 32
      %v4800 = vpop.permute.xlu0 %4799
      %4801 = vrot.lane.b32.xlu0 %v4785, 32
      %v4802 = vpop.permute.xlu0 %4801
      %4803 = vrot.lane.b32.xlu0 %v4788, 32
      %v4804 = vpop.permute.xlu0 %4803
      %4814 = vrot.lane.b32.xlu0 %v4693, 48
      %v4815 = vpop.permute.xlu0 %4814
      %4816 = vrot.lane.b32.xlu0 %v4694, 48
      %v4817 = vpop.permute.xlu0 %4816
      %4818 = vrot.lane.b32.xlu0 %v4695, 48
      %v4819 = vpop.permute.xlu0 %4818
      %4820 = vrot.lane.b32.xlu0 %v4696, 48
      %v4821 = vpop.permute.xlu0 %4820
      %4822 = vrot.lane.b32.xlu0 %v4697, 48
      %v4823 = vpop.permute.xlu0 %4822
      %4824 = vrot.lane.b32.xlu0 %v4698, 48
      %v4825 = vpop.permute.xlu0 %4824
      %4826 = vrot.lane.b32.xlu0 %v4699, 48
      %v4827 = vpop.permute.xlu0 %4826
      %4828 = vrot.lane.b32.xlu0 %v4700, 48
      %v4829 = vpop.permute.xlu0 %4828
      %v4839 = vrot.slane %v4700, 1
      %v4840 = vrot.slane %v4708, 1
      %v4841 = vsel %vm942, %v4839, %v4840
      %4842 = vrot.lane.b32.xlu0 %v4725, 64
      %v4843 = vpop.permute.xlu0 %4842
      %4844 = vrot.lane.b32.xlu0 %v4728, 64
      %v4845 = vpop.permute.xlu0 %4844
      %4846 = vrot.lane.b32.xlu0 %v4731, 64
      %v4847 = vpop.permute.xlu0 %4846
      %4848 = vrot.lane.b32.xlu0 %v4734, 64
      %v4849 = vpop.permute.xlu0 %4848
      %4850 = vrot.lane.b32.xlu0 %v4737, 64
      %v4851 = vpop.permute.xlu0 %4850
      %4852 = vrot.lane.b32.xlu0 %v4740, 64
      %v4853 = vpop.permute.xlu0 %4852
      %4854 = vrot.lane.b32.xlu0 %v4743, 64
      %v4855 = vpop.permute.xlu0 %4854
      %4856 = vrot.lane.b32.xlu0 %v4841, 64
      %v4857 = vpop.permute.xlu0 %4856
      %v4866 = vrot.slane %v4700, 2
      %v4867 = vrot.slane %v4708, 2
      %v4868 = vsel %vm1119, %v4866, %v4867
      %4869 = vrot.lane.b32.xlu0 %v4770, 80
      %v4870 = vpop.permute.xlu0 %4869
      %4871 = vrot.lane.b32.xlu0 %v4773, 80
      %v4872 = vpop.permute.xlu0 %4871
      %4873 = vrot.lane.b32.xlu0 %v4776, 80
      %v4874 = vpop.permute.xlu0 %4873
      %4875 = vrot.lane.b32.xlu0 %v4779, 80
      %v4876 = vpop.permute.xlu0 %4875
      %4877 = vrot.lane.b32.xlu0 %v4782, 80
      %v4878 = vpop.permute.xlu0 %4877
      %4879 = vrot.lane.b32.xlu0 %v4785, 80
      %v4880 = vpop.permute.xlu0 %4879
      %4881 = vrot.lane.b32.xlu0 %v4788, 80
      %v4882 = vpop.permute.xlu0 %4881
      %4883 = vrot.lane.b32.xlu0 %v4868, 80
      %v4884 = vpop.permute.xlu0 %4883
      %4893 = vrot.lane.b32.xlu0 %v4694, 96
      %v4894 = vpop.permute.xlu0 %4893
      %4895 = vrot.lane.b32.xlu0 %v4695, 96
      %v4896 = vpop.permute.xlu0 %4895
      %4897 = vrot.lane.b32.xlu0 %v4696, 96
      %v4898 = vpop.permute.xlu0 %4897
      %4899 = vrot.lane.b32.xlu0 %v4697, 96
      %v4900 = vpop.permute.xlu0 %4899
      %4901 = vrot.lane.b32.xlu0 %v4698, 96
      %v4902 = vpop.permute.xlu0 %4901
      %4903 = vrot.lane.b32.xlu0 %v4699, 96
      %v4904 = vpop.permute.xlu0 %4903
      %4905 = vrot.lane.b32.xlu0 %v4700, 96
      %v4906 = vpop.permute.xlu0 %4905
      %4907 = vrot.lane.b32.xlu0 %v876, 96
      %v4908 = vpop.permute.xlu0 %4907
      %4917 = vrot.lane.b32.xlu0 %v4728, 112
      %v4918 = vpop.permute.xlu0 %4917
      %4919 = vrot.lane.b32.xlu0 %v4731, 112
      %v4920 = vpop.permute.xlu0 %4919
      %4921 = vrot.lane.b32.xlu0 %v4734, 112
      %v4922 = vpop.permute.xlu0 %4921
      %4923 = vrot.lane.b32.xlu0 %v4737, 112
      %v4924 = vpop.permute.xlu0 %4923
      %4925 = vrot.lane.b32.xlu0 %v4740, 112
      %v4926 = vpop.permute.xlu0 %4925
      %4927 = vrot.lane.b32.xlu0 %v4743, 112
      %v4928 = vpop.permute.xlu0 %4927
      %4929 = vrot.lane.b32.xlu0 %v4841, 112
      %v4930 = vpop.permute.xlu0 %4929
      %4931 = vrot.lane.b32.xlu0 %v4278, 112
      %v4932 = vpop.permute.xlu0 %4931
      %v4941 = vsel %vm1983, %v876, %v4745
      %v4942 = vsel %vm1983, %v4693, %v4747
      %v4943 = vsel %vm1983, %v4694, %v4749
      %v4944 = vsel %vm1983, %v4695, %v4751
      %v4945 = vsel %vm1983, %v4696, %v4753
      %v4946 = vsel %vm1983, %v4697, %v4755
      %v4947 = vsel %vm1983, %v4698, %v4757
      %v4948 = vsel %vm1983, %v4699, %v4759
      %v4949 = vsel %vm2115, %v4941, %v4790
      %v4950 = vsel %vm2115, %v4942, %v4792
      %v4951 = vsel %vm2115, %v4943, %v4794
      %v4952 = vsel %vm2115, %v4944, %v4796
      %v4953 = vsel %vm2115, %v4945, %v4798
      %v4954 = vsel %vm2115, %v4946, %v4800
      %v4955 = vsel %vm2115, %v4947, %v4802
      %v4956 = vsel %vm2115, %v4948, %v4804
      %v4957 = vsel %vm3683, %v4949, %v4815
      %v4958 = vsel %vm3683, %v4950, %v4817
      %v4959 = vsel %vm3683, %v4951, %v4819
      %v4960 = vsel %vm3683, %v4952, %v4821
      %v4961 = vsel %vm3683, %v4953, %v4823
      %v4962 = vsel %vm3683, %v4954, %v4825
      %v4963 = vsel %vm3683, %v4955, %v4827
      %v4964 = vsel %vm3683, %v4956, %v4829
      %v4965 = vsel %vm3749, %v4957, %v4843
      %v4966 = vsel %vm3749, %v4958, %v4845
      %v4967 = vsel %vm3749, %v4959, %v4847
      %v4968 = vsel %vm3749, %v4960, %v4849
      %v4969 = vsel %vm3749, %v4961, %v4851
      %v4970 = vsel %vm3749, %v4962, %v4853
      %v4971 = vsel %vm3749, %v4963, %v4855
      %v4972 = vsel %vm3749, %v4964, %v4857
      %vm4973 = vcmask 654336
      %v4974 = vsel %vm4973, %v4965, %v4870
      %v4975 = vsel %vm4973, %v4966, %v4872
      %v4976 = vsel %vm4973, %v4967, %v4874
      %v4977 = vsel %vm4973, %v4968, %v4876
      %v4978 = vsel %vm4973, %v4969, %v4878
      %v4979 = vsel %vm4973, %v4970, %v4880
      %v4980 = vsel %vm4973, %v4971, %v4882
      %v4981 = vsel %vm4973, %v4972, %v4884
      %vm4982 = vcmask 785408
      %v4983 = vsel %vm4982, %v4974, %v4894
      %v4984 = vsel %vm4982, %v4975, %v4896
      %v4985 = vsel %vm4982, %v4976, %v4898
      %v4986 = vsel %vm4982, %v4977, %v4900
      %v4987 = vsel %vm4982, %v4978, %v4902
      %v4988 = vsel %vm4982, %v4979, %v4904
      %v4989 = vsel %vm4982, %v4980, %v4906
      %v4990 = vsel %vm4982, %v4981, %v4908
      %vm4991 = vcmask 916480
      %v4992 = vsel %vm4991, %v4983, %v4918
      %v4993 = vsel %vm4991, %v4984, %v4920
      %v4994 = vsel %vm4991, %v4985, %v4922
      %v4995 = vsel %vm4991, %v4986, %v4924
      %v4996 = vsel %vm4991, %v4987, %v4926
      %v4997 = vsel %vm4991, %v4988, %v4928
      %v4998 = vsel %vm4991, %v4989, %v4930
      %v4999 = vsel %vm4991, %v4990, %v4932
      %v5000 = vld [vmem:[%s7] sm:$0xff]
      %v5001 = vld [vmem:[%s7 + $0x8] sm:$0xff]
      %v5002 = vld [vmem:[%s7 + $0x10] sm:$0xff]
      %v5003 = vld [vmem:[%s7 + $0x18] sm:$0xff]
      %v5004 = vld [vmem:[%s7 + $0x20] sm:$0xff]
      %v5005 = vld [vmem:[%s7 + $0x28] sm:$0xff]
      %v5006 = vld [vmem:[%s7 + $0x30] sm:$0xff]
      %v5007 = vld [vmem:[%s7 + $0x38] sm:$0xff]
      %v5008 = vld [vmem:[%s7 + $0x40] sm:$0xff]
      %v5009 = vld [vmem:[%s7 + $0x48] sm:$0xff]
      %v5010 = vld [vmem:[%s7 + $0x50] sm:$0xff]
      %v5011 = vld [vmem:[%s7 + $0x58] sm:$0xff]
      %v5012 = vld [vmem:[%s7 + $0x60] sm:$0xff]
      %v5013 = vld [vmem:[%s7 + $0x68] sm:$0xff]
      %v5014 = vld [vmem:[%s7 + $0x70] sm:$0xff]
      %v5015 = vld [vmem:[%s7 + $0x78] sm:$0xff]
      %v5016 = vld [vmem:[%s7 + $0x80] sm:$0xff]
      %v5017 = vld [vmem:[%s7 + $0x88] sm:$0xff]
      %v5018 = vld [vmem:[%s8] sm:$0x1]
      %v5020 = vperm.slane %v5018, 0
      %v5022 = vsel %vm1983, %v4773, 0
      %v5024 = vsel %vm1983, %v4776, 0
      %v5026 = vsel %vm1983, %v4779, 0
      %v5028 = vsel %vm1983, %v4782, 0
      %v5030 = vsel %vm1983, %v4785, 0
      %v5032 = vsel %vm1983, %v4788, 0
      %v5034 = vsel %vm1983, %v4868, 0
      %v5036 = vsel %vm1983, %v4324, 0
      %5038 = vmatpush.msra.mxu0 %v5015
      %5039 = vmatpush.msra.mxu0 %v5014
      %5040 = vmatpush.msra.mxu0 %v5013
      %5041 = vmatpush.msra.mxu0 %v5012
      %5042 = vmatpush.msra.mxu0 %v5011
      %5043 = vmatpush.msra.mxu0 %v5010
      %5044 = vmatpush.msra.mxu0 %v5009
      %5045 = vmatpush.msra.mxu0 %v5008
      %5046 = vmatpush.msra.mxu0 %v5007
      %5047 = vmatpush.msra.mxu0 %v5006
      %5048 = vmatpush.msra.mxu0 %v5005
      %5049 = vmatpush.msra.mxu0 %v5004
      %5050 = vmatpush.msra.mxu0 %v5003
      %5051 = vmatpush.msra.mxu0 %v5002
      %5052 = vmatpush.msra.mxu0 %v5001
      %5053 = vmatpush.msra.mxu0 %v5000
      %5054 = vmatmul.f32.gmra.mxu0 %v4992
      %v5055 = vpop.f32.mrf.mxu0
      %v5056 = vadd.f32 %v5020, %v5055
      %5057 = vmatmul.f32.gmra.mxu0 %v4993
      %v5058 = vpop.f32.mrf.mxu0
      %v5059 = vadd.f32 %v5020, %v5058
      %5060 = vmatmul.f32.gmra.mxu0 %v4994
      %v5061 = vpop.f32.mrf.mxu0
      %v5062 = vadd.f32 %v5020, %v5061
      %5063 = vmatmul.f32.gmra.mxu0 %v4995
      %v5064 = vpop.f32.mrf.mxu0
      %v5065 = vadd.f32 %v5020, %v5064
      %5066 = vmatmul.f32.gmra.mxu0 %v4996
      %v5067 = vpop.f32.mrf.mxu0
      %v5068 = vadd.f32 %v5020, %v5067
      %5069 = vmatmul.f32.gmra.mxu0 %v4997
      %v5070 = vpop.f32.mrf.mxu0
      %v5071 = vadd.f32 %v5020, %v5070
      %5072 = vmatmul.f32.gmra.mxu0 %v4998
      %v5073 = vpop.f32.mrf.mxu0
      %v5074 = vadd.f32 %v5020, %v5073
      %5075 = vmatmul.f32.gmra.mxu0 %v4999
      %v5076 = vpop.f32.mrf.mxu0
      %v5077 = vadd.f32 %v5020, %v5076
      %5078 = vdwg.mxu0
      %5079 = vmatpush.msra.mxu0 0.0
      %5080 = vmatpush.msra.mxu0 0.0
      %5081 = vmatpush.msra.mxu0 0.0
      %5082 = vmatpush.msra.mxu0 0.0
      %5083 = vmatpush.msra.mxu0 0.0
      %5084 = vmatpush.msra.mxu0 0.0
      %5085 = vmatpush.msra.mxu0 0.0
      %5086 = vmatpush.msra.mxu0 0.0
      %5087 = vmatpush.msra.mxu0 0.0
      %5088 = vmatpush.msra.mxu0 0.0
      %5089 = vmatpush.msra.mxu0 0.0
      %5090 = vmatpush.msra.mxu0 0.0
      %5091 = vmatpush.msra.mxu0 0.0
      %5092 = vmatpush.msra.mxu0 0.0
      %5093 = vmatpush.msra.mxu0 %v5017
      %5094 = vmatpush.msra.mxu0 %v5016
      %5095 = vmatmul.f32.gmra.mxu0 %v5022
      %v5096 = vpop.f32.mrf.mxu0
      %v5097 = vadd.f32 %v5056, %v5096
      %5098 = vmatmul.f32.gmra.mxu0 %v5024
      %v5099 = vpop.f32.mrf.mxu0
      %v5100 = vadd.f32 %v5059, %v5099
      %5101 = vmatmul.f32.gmra.mxu0 %v5026
      %v5102 = vpop.f32.mrf.mxu0
      %v5103 = vadd.f32 %v5062, %v5102
      %5104 = vmatmul.f32.gmra.mxu0 %v5028
      %v5105 = vpop.f32.mrf.mxu0
      %v5106 = vadd.f32 %v5065, %v5105
      %5107 = vmatmul.f32.gmra.mxu0 %v5030
      %v5108 = vpop.f32.mrf.mxu0
      %v5109 = vadd.f32 %v5068, %v5108
      %5110 = vmatmul.f32.gmra.mxu0 %v5032
      %v5111 = vpop.f32.mrf.mxu0
      %v5112 = vadd.f32 %v5071, %v5111
      %5113 = vmatmul.f32.gmra.mxu0 %v5034
      %v5114 = vpop.f32.mrf.mxu0
      %v5115 = vadd.f32 %v5074, %v5114
      %5116 = vmatmul.f32.gmra.mxu0 %v5036
      %v5117 = vpop.f32.mrf.mxu0
      %v5118 = vadd.f32 %v5077, %v5117
      %5119 = vdwg.mxu0
      %v5120 = vmax.f32 %v5097, 0.0
      %v5121 = vmax.f32 %v5100, 0.0
      %v5122 = vmax.f32 %v5103, 0.0
      %v5123 = vmax.f32 %v5106, 0.0
      %v5124 = vmax.f32 %v5109, 0.0
      %v5125 = vmax.f32 %v5112, 0.0
      %v5126 = vmax.f32 %v5115, 0.0
      %v5127 = vmax.f32 %v5118, 0.0
      %v5132 = vrot.slane %v5120, 1
      %v5133 = vrot.slane %v5122, 1
      %v5134 = vrot.slane %v5124, 1
      %v5135 = vrot.slane %v5126, 1
      %v5140 = vrot.slane %v5120, 2
      %v5141 = vrot.slane %v5122, 2
      %v5142 = vrot.slane %v5124, 2
      %v5143 = vrot.slane %v5126, 2
      %v5148 = vrot.slane %v5120, 3
      %v5149 = vrot.slane %v5122, 3
      %v5150 = vrot.slane %v5124, 3
      %v5151 = vrot.slane %v5126, 3
      %v5156 = vsel %vm776, %v5120, %v5132
      %v5157 = vsel %vm776, %v5122, %v5133
      %v5158 = vsel %vm776, %v5124, %v5134
      %v5159 = vsel %vm776, %v5126, %v5135
      %v5160 = vsel %vm4173, %v5156, %v5140
      %v5161 = vsel %vm4173, %v5157, %v5141
      %v5162 = vsel %vm4173, %v5158, %v5142
      %v5163 = vsel %vm4173, %v5159, %v5143
      %v5164 = vsel %vm4182, %v5160, %v5148
      %v5165 = vsel %vm4182, %v5161, %v5149
      %v5166 = vsel %vm4182, %v5162, %v5150
      %v5167 = vsel %vm4182, %v5163, %v5151
      %v5172 = vrot.slane %v5164, 7
      %v5173 = vrot.slane %v5165, 7
      %v5174 = vrot.slane %v5166, 7
      %v5175 = vrot.slane %v5167, 7
      %v5180 = vsel %vm776, 0.0, %v5172
      %v5181 = vsel %vm776, 0.0, %v5173
      %v5182 = vsel %vm776, 0.0, %v5174
      %v5183 = vsel %vm776, 0.0, %v5175
      %v5184 = vsel %vm4199, %v876, 0.0
      %v5185 = vsel %vm4199, %v5180, 0.0
      %v5186 = vsel %vm4199, %v5181, 0.0
      %v5187 = vsel %vm4199, %v5182, 0.0
      %v5188 = vsel %vm4199, %v5183, 0.0
      %v5193 = vrot.slane %v5184, 1
      %v5194 = vrot.slane %v5185, 1
      %v5195 = vrot.slane %v5186, 1
      %v5196 = vrot.slane %v5187, 1
      %5197 = vrot.lane.b32.xlu0 %v5193, 16
      %v5198 = vpop.permute.xlu0 %5197
      %5199 = vrot.lane.b32.xlu0 %v5194, 16
      %v5200 = vpop.permute.xlu0 %5199
      %5201 = vrot.lane.b32.xlu0 %v5195, 16
      %v5202 = vpop.permute.xlu0 %5201
      %5203 = vrot.lane.b32.xlu0 %v5196, 16
      %v5204 = vpop.permute.xlu0 %5203
      %v5209 = vrot.slane %v5184, 2
      %v5210 = vrot.slane %v5185, 2
      %v5211 = vrot.slane %v5186, 2
      %v5212 = vrot.slane %v5187, 2
      %5213 = vrot.lane.b32.xlu0 %v5209, 32
      %v5214 = vpop.permute.xlu0 %5213
      %5215 = vrot.lane.b32.xlu0 %v5210, 32
      %v5216 = vpop.permute.xlu0 %5215
      %5217 = vrot.lane.b32.xlu0 %v5211, 32
      %v5218 = vpop.permute.xlu0 %5217
      %5219 = vrot.lane.b32.xlu0 %v5212, 32
      %v5220 = vpop.permute.xlu0 %5219
      %5226 = vrot.lane.b32.xlu0 %v5185, 48
      %v5227 = vpop.permute.xlu0 %5226
      %5228 = vrot.lane.b32.xlu0 %v5186, 48
      %v5229 = vpop.permute.xlu0 %5228
      %5230 = vrot.lane.b32.xlu0 %v5187, 48
      %v5231 = vpop.permute.xlu0 %5230
      %5232 = vrot.lane.b32.xlu0 %v5188, 48
      %v5233 = vpop.permute.xlu0 %5232
      %v5238 = vrot.slane %v5188, 1
      %5239 = vrot.lane.b32.xlu0 %v5194, 64
      %v5240 = vpop.permute.xlu0 %5239
      %5241 = vrot.lane.b32.xlu0 %v5195, 64
      %v5242 = vpop.permute.xlu0 %5241
      %5243 = vrot.lane.b32.xlu0 %v5196, 64
      %v5244 = vpop.permute.xlu0 %5243
      %5245 = vrot.lane.b32.xlu0 %v5238, 64
      %v5246 = vpop.permute.xlu0 %5245
      %v5251 = vrot.slane %v5188, 2
      %5252 = vrot.lane.b32.xlu0 %v5210, 80
      %v5253 = vpop.permute.xlu0 %5252
      %5254 = vrot.lane.b32.xlu0 %v5211, 80
      %v5255 = vpop.permute.xlu0 %5254
      %5256 = vrot.lane.b32.xlu0 %v5212, 80
      %v5257 = vpop.permute.xlu0 %5256
      %5258 = vrot.lane.b32.xlu0 %v5251, 80
      %v5259 = vpop.permute.xlu0 %5258
      %5264 = vrot.lane.b32.xlu0 %v5186, 96
      %v5265 = vpop.permute.xlu0 %5264
      %5266 = vrot.lane.b32.xlu0 %v5187, 96
      %v5267 = vpop.permute.xlu0 %5266
      %5268 = vrot.lane.b32.xlu0 %v5188, 96
      %v5269 = vpop.permute.xlu0 %5268
      %5270 = vrot.lane.b32.xlu0 %v5184, 96
      %v5271 = vpop.permute.xlu0 %5270
      %5276 = vrot.lane.b32.xlu0 %v5195, 112
      %v5277 = vpop.permute.xlu0 %5276
      %5278 = vrot.lane.b32.xlu0 %v5196, 112
      %v5279 = vpop.permute.xlu0 %5278
      %5280 = vrot.lane.b32.xlu0 %v5238, 112
      %v5281 = vpop.permute.xlu0 %5280
      %5282 = vrot.lane.b32.xlu0 %v5193, 112
      %v5283 = vpop.permute.xlu0 %5282
      %v5288 = vsel %vm1983, %v5184, %v5198
      %v5289 = vsel %vm1983, %v5185, %v5200
      %v5290 = vsel %vm1983, %v5186, %v5202
      %v5291 = vsel %vm1983, %v5187, %v5204
      %v5292 = vsel %vm2115, %v5288, %v5214
      %v5293 = vsel %vm2115, %v5289, %v5216
      %v5294 = vsel %vm2115, %v5290, %v5218
      %v5295 = vsel %vm2115, %v5291, %v5220
      %v5296 = vsel %vm3683, %v5292, %v5227
      %v5297 = vsel %vm3683, %v5293, %v5229
      %v5298 = vsel %vm3683, %v5294, %v5231
      %v5299 = vsel %vm3683, %v5295, %v5233
      %v5300 = vsel %vm3749, %v5296, %v5240
      %v5301 = vsel %vm3749, %v5297, %v5242
      %v5302 = vsel %vm3749, %v5298, %v5244
      %v5303 = vsel %vm3749, %v5299, %v5246
      %v5304 = vsel %vm4973, %v5300, %v5253
      %v5305 = vsel %vm4973, %v5301, %v5255
      %v5306 = vsel %vm4973, %v5302, %v5257
      %v5307 = vsel %vm4973, %v5303, %v5259
      %v5308 = vsel %vm4982, %v5304, %v5265
      %v5309 = vsel %vm4982, %v5305, %v5267
      %v5310 = vsel %vm4982, %v5306, %v5269
      %v5311 = vsel %vm4982, %v5307, %v5271
      %v5312 = vsel %vm4991, %v5308, %v5277
      %v5313 = vsel %vm4991, %v5309, %v5279
      %v5314 = vsel %vm4991, %v5310, %v5281
      %v5315 = vsel %vm4991, %v5311, %v5283
      %v5320 = vrot.slane %v5211, 4
      %v5321 = vrot.slane %v5212, 4
      %v5322 = vrot.slane %v5251, 4
      %v5323 = vrot.slane %v5209, 4
      %v5324 = vsel %vm2254, %v5312, %v5320
      %v5325 = vsel %vm2254, %v5313, %v5321
      %v5326 = vsel %vm2254, %v5314, %v5322
      %v5327 = vsel %vm2254, %v5315, %v5323
      %v5328 = vld [vmem:[%s9] sm:$0xff]
      %v5329 = vld [vmem:[%s9 + $0x8] sm:$0xff]
      %v5330 = vld [vmem:[%s9 + $0x10] sm:$0xff]
      %v5331 = vld [vmem:[%s9 + $0x18] sm:$0xff]
      %v5332 = vld [vmem:[%s9 + $0x20] sm:$0xff]
      %v5333 = vld [vmem:[%s9 + $0x28] sm:$0xff]
      %v5334 = vld [vmem:[%s9 + $0x30] sm:$0xff]
      %v5335 = vld [vmem:[%s9 + $0x38] sm:$0xff]
      %v5336 = vld [vmem:[%s9 + $0x40] sm:$0xff]
      %v5337 = vld [vmem:[%s9 + $0x48] sm:$0xff]
      %v5338 = vld [vmem:[%s9 + $0x50] sm:$0xff]
      %v5339 = vld [vmem:[%s9 + $0x58] sm:$0xff]
      %v5340 = vld [vmem:[%s9 + $0x60] sm:$0xff]
      %v5341 = vld [vmem:[%s9 + $0x68] sm:$0xff]
      %v5342 = vld [vmem:[%s9 + $0x70] sm:$0xff]
      %v5343 = vld [vmem:[%s9 + $0x78] sm:$0xff]
      %v5344 = vld [vmem:[%s9 + $0x80] sm:$0xff]
      %v5345 = vld [vmem:[%s9 + $0x88] sm:$0xff]
      %v5346 = vld [vmem:[%s10] sm:$0x1]
      %v5348 = vperm.slane %v5346, 0
      %5350 = vst [vmem:[#allocation1] ss:$2 sm:$0xff] %v5324
      %s5351 = scalar_lea.vmem [#allocation1], 1
      %5352 = vst [vmem:[%s5351] ss:$2 sm:$0xff] %v5325
      %s5353 = scalar_lea.vmem [#allocation1], 16
      %5354 = vst [vmem:[%s5353] ss:$2 sm:$0xff] %v5326
      %s5355 = scalar_lea.vmem [#allocation1], 17
      %5356 = vst [vmem:[%s5355] ss:$2 sm:$0xff] %v5327
      %v5357 = vld.sshfl [vmem:[#allocation1] sm:$0xff pattern:$0x75316420]
      %v5358 = vld.sshfl [vmem:[#allocation1 + $0x8] sm:$0xff pattern:$0x75316420]
      %v5359 = vld.sshfl [vmem:[#allocation1 + $0x10] sm:$0xff pattern:$0x75316420]
      %v5360 = vld.sshfl [vmem:[#allocation1 + $0x18] sm:$0xff pattern:$0x75316420]
      %v5363 = vsel %vm1983, %v5358, 0
      %v5365 = vsel %vm1983, %v5360, 0
      %5367 = vmatpush.msra.mxu0 %v5343
      %5368 = vmatpush.msra.mxu0 %v5342
      %5369 = vmatpush.msra.mxu0 %v5341
      %5370 = vmatpush.msra.mxu0 %v5340
      %5371 = vmatpush.msra.mxu0 %v5339
      %5372 = vmatpush.msra.mxu0 %v5338
      %5373 = vmatpush.msra.mxu0 %v5337
      %5374 = vmatpush.msra.mxu0 %v5336
      %5375 = vmatpush.msra.mxu0 %v5335
      %5376 = vmatpush.msra.mxu0 %v5334
      %5377 = vmatpush.msra.mxu0 %v5333
      %5378 = vmatpush.msra.mxu0 %v5332
      %5379 = vmatpush.msra.mxu0 %v5331
      %5380 = vmatpush.msra.mxu0 %v5330
      %5381 = vmatpush.msra.mxu0 %v5329
      %5382 = vmatpush.msra.mxu0 %v5328
      %5383 = vmatmul.f32.gmra.mxu0 %v5357
      %v5384 = vpop.f32.mrf.mxu0
      %v5385 = vadd.f32 %v5348, %v5384
      %5386 = vmatmul.f32.gmra.mxu0 %v5359
      %v5387 = vpop.f32.mrf.mxu0
      %v5388 = vadd.f32 %v5348, %v5387
      %5389 = vdwg.mxu0
      %5390 = vmatpush.msra.mxu0 0.0
      %5391 = vmatpush.msra.mxu0 0.0
      %5392 = vmatpush.msra.mxu0 0.0
      %5393 = vmatpush.msra.mxu0 0.0
      %5394 = vmatpush.msra.mxu0 0.0
      %5395 = vmatpush.msra.mxu0 0.0
      %5396 = vmatpush.msra.mxu0 0.0
      %5397 = vmatpush.msra.mxu0 0.0
      %5398 = vmatpush.msra.mxu0 0.0
      %5399 = vmatpush.msra.mxu0 0.0
      %5400 = vmatpush.msra.mxu0 0.0
      %5401 = vmatpush.msra.mxu0 0.0
      %5402 = vmatpush.msra.mxu0 0.0
      %5403 = vmatpush.msra.mxu0 0.0
      %5404 = vmatpush.msra.mxu0 %v5345
      %5405 = vmatpush.msra.mxu0 %v5344
      %5406 = vmatmul.f32.gmra.mxu0 %v5363
      %v5407 = vpop.f32.mrf.mxu0
      %v5408 = vadd.f32 %v5385, %v5407
      %5409 = vmatmul.f32.gmra.mxu0 %v5365
      %v5410 = vpop.f32.mrf.mxu0
      %v5411 = vadd.f32 %v5388, %v5410
      %5412 = vdwg.mxu0
      %v5413 = vmax.f32 %v5408, 0.0
      %v5414 = vmax.f32 %v5411, 0.0
      %v5417 = vrot.slane %v5413, 4
      %v5418 = vrot.slane %v5414, 4
      %v5419 = vrot.slane %v5413, 7
      %v5420 = vrot.slane %v5417, 7
      %v5421 = vrot.slane %v5414, 7
      %v5422 = vrot.slane %v5418, 7
      %v5427 = vsel %vm776, 0.0, %v5419
      %v5428 = vsel %vm776, 0.0, %v5420
      %v5429 = vsel %vm776, 0.0, %v5421
      %v5430 = vsel %vm776, 0.0, %v5422
      %v5431 = vsel %vm4199, %v5427, 0.0
      %v5432 = vsel %vm4199, %v5428, 0.0
      %v5433 = vsel %vm4199, %v5429, 0.0
      %v5434 = vsel %vm4199, %v5430, 0.0
      %v5438 = vrot.slane %v5431, 1
      %v5439 = vrot.slane %v5432, 1
      %v5440 = vrot.slane %v5433, 1
      %5441 = vrot.lane.b32.xlu0 %v5193, 32
      %v5442 = vpop.permute.xlu0 %5441
      %5443 = vrot.lane.b32.xlu0 %v5438, 32
      %v5444 = vpop.permute.xlu0 %5443
      %5445 = vrot.lane.b32.xlu0 %v5439, 32
      %v5446 = vpop.permute.xlu0 %5445
      %5447 = vrot.lane.b32.xlu0 %v5440, 32
      %v5448 = vpop.permute.xlu0 %5447
      %v5453 = vrot.slane %v5431, 2
      %v5454 = vrot.slane %v5432, 2
      %v5455 = vrot.slane %v5433, 2
      %5456 = vrot.lane.b32.xlu0 %v5209, 64
      %v5457 = vpop.permute.xlu0 %5456
      %5458 = vrot.lane.b32.xlu0 %v5453, 64
      %v5459 = vpop.permute.xlu0 %5458
      %5460 = vrot.lane.b32.xlu0 %v5454, 64
      %v5461 = vpop.permute.xlu0 %5460
      %5462 = vrot.lane.b32.xlu0 %v5455, 64
      %v5463 = vpop.permute.xlu0 %5462
      %5469 = vrot.lane.b32.xlu0 %v5431, 96
      %v5470 = vpop.permute.xlu0 %5469
      %5471 = vrot.lane.b32.xlu0 %v5432, 96
      %v5472 = vpop.permute.xlu0 %5471
      %5473 = vrot.lane.b32.xlu0 %v5433, 96
      %v5474 = vpop.permute.xlu0 %5473
      %5475 = vrot.lane.b32.xlu0 %v5434, 96
      %v5476 = vpop.permute.xlu0 %5475
      %v5481 = vrot.slane %v5434, 1
      %v5486 = vrot.slane %v5434, 2
      %5487 = vrot.lane.b32.xlu0 %v5453, 32
      %v5488 = vpop.permute.xlu0 %5487
      %5489 = vrot.lane.b32.xlu0 %v5454, 32
      %v5490 = vpop.permute.xlu0 %5489
      %5491 = vrot.lane.b32.xlu0 %v5455, 32
      %v5492 = vpop.permute.xlu0 %5491
      %5493 = vrot.lane.b32.xlu0 %v5486, 32
      %v5494 = vpop.permute.xlu0 %5493
      %5499 = vrot.lane.b32.xlu0 %v5432, 64
      %v5500 = vpop.permute.xlu0 %5499
      %5501 = vrot.lane.b32.xlu0 %v5433, 64
      %v5502 = vpop.permute.xlu0 %5501
      %5503 = vrot.lane.b32.xlu0 %v5434, 64
      %v5504 = vpop.permute.xlu0 %5503
      %5505 = vrot.lane.b32.xlu0 %v5184, 64
      %v5506 = vpop.permute.xlu0 %5505
      %5511 = vrot.lane.b32.xlu0 %v5439, 96
      %v5512 = vpop.permute.xlu0 %5511
      %5513 = vrot.lane.b32.xlu0 %v5440, 96
      %v5514 = vpop.permute.xlu0 %5513
      %5515 = vrot.lane.b32.xlu0 %v5481, 96
      %v5516 = vpop.permute.xlu0 %5515
      %5517 = vrot.lane.b32.xlu0 %v5193, 96
      %v5518 = vpop.permute.xlu0 %5517
      %v5523 = vsel %vm2115, %v5184, %v5442
      %v5524 = vsel %vm2115, %v5431, %v5444
      %v5525 = vsel %vm2115, %v5432, %v5446
      %v5526 = vsel %vm2115, %v5433, %v5448
      %v5527 = vsel %vm3749, %v5523, %v5457
      %v5528 = vsel %vm3749, %v5524, %v5459
      %v5529 = vsel %vm3749, %v5525, %v5461
      %v5530 = vsel %vm3749, %v5526, %v5463
      %v5531 = vsel %vm4982, %v5527, %v5470
      %v5532 = vsel %vm4982, %v5528, %v5472
      %v5533 = vsel %vm4982, %v5529, %v5474
      %v5534 = vsel %vm4982, %v5530, %v5476
      %v5535 = vsel %vm2115, %v5438, %v5488
      %v5536 = vsel %vm2115, %v5439, %v5490
      %v5537 = vsel %vm2115, %v5440, %v5492
      %v5538 = vsel %vm2115, %v5481, %v5494
      %v5539 = vsel %vm3749, %v5535, %v5500
      %v5540 = vsel %vm3749, %v5536, %v5502
      %v5541 = vsel %vm3749, %v5537, %v5504
      %v5542 = vsel %vm3749, %v5538, %v5506
      %v5543 = vsel %vm4982, %v5539, %v5512
      %v5544 = vsel %vm4982, %v5540, %v5514
      %v5545 = vsel %vm4982, %v5541, %v5516
      %v5546 = vsel %vm4982, %v5542, %v5518
      %v5555 = vrot.slane %v5543, 4
      %v5556 = vrot.slane %v5544, 4
      %v5557 = vrot.slane %v5545, 4
      %v5558 = vrot.slane %v5546, 4
      %v5559 = vsel %vm2254, %v5531, %v5555
      %v5560 = vsel %vm2254, %v5532, %v5556
      %v5561 = vsel %vm2254, %v5533, %v5557
      %v5562 = vsel %vm2254, %v5534, %v5558
      %v5563 = vld [vmem:[%s11] sm:$0xff]
      %v5564 = vld [vmem:[%s11 + $0x8] sm:$0xff]
      %v5565 = vld [vmem:[%s11 + $0x10] sm:$0xff]
      %v5566 = vld [vmem:[%s11 + $0x18] sm:$0xff]
      %v5567 = vld [vmem:[%s11 + $0x20] sm:$0xff]
      %v5568 = vld [vmem:[%s11 + $0x28] sm:$0xff]
      %v5569 = vld [vmem:[%s11 + $0x30] sm:$0xff]
      %v5570 = vld [vmem:[%s11 + $0x38] sm:$0xff]
      %v5571 = vld [vmem:[%s11 + $0x40] sm:$0xff]
      %v5572 = vld [vmem:[%s11 + $0x48] sm:$0xff]
      %v5573 = vld [vmem:[%s11 + $0x50] sm:$0xff]
      %v5574 = vld [vmem:[%s11 + $0x58] sm:$0xff]
      %v5575 = vld [vmem:[%s11 + $0x60] sm:$0xff]
      %v5576 = vld [vmem:[%s11 + $0x68] sm:$0xff]
      %v5577 = vld [vmem:[%s11 + $0x70] sm:$0xff]
      %v5578 = vld [vmem:[%s11 + $0x78] sm:$0xff]
      %v5579 = vld [vmem:[%s11 + $0x80] sm:$0xff]
      %v5580 = vld [vmem:[%s11 + $0x88] sm:$0xff]
      %v5581 = vld [vmem:[%s11 + $0x90] sm:$0xff]
      %v5582 = vld [vmem:[%s11 + $0x98] sm:$0xff]
      %v5583 = vld [vmem:[%s11 + $0xa0] sm:$0xff]
      %v5584 = vld [vmem:[%s11 + $0xa8] sm:$0xff]
      %v5585 = vld [vmem:[%s11 + $0xb0] sm:$0xff]
      %v5586 = vld [vmem:[%s11 + $0xb8] sm:$0xff]
      %v5587 = vld [vmem:[%s11 + $0xc0] sm:$0xff]
      %v5588 = vld [vmem:[%s11 + $0xc8] sm:$0xff]
      %v5589 = vld [vmem:[%s11 + $0xd0] sm:$0xff]
      %v5590 = vld [vmem:[%s11 + $0xd8] sm:$0xff]
      %v5591 = vld [vmem:[%s11 + $0xe0] sm:$0xff]
      %v5592 = vld [vmem:[%s11 + $0xe8] sm:$0xff]
      %v5593 = vld [vmem:[%s11 + $0xf0] sm:$0xff]
      %v5594 = vld [vmem:[%s11 + $0xf8] sm:$0xff]
      %v5595 = vld [vmem:[%s11 + $0x100] sm:$0xff]
      %v5596 = vld [vmem:[%s11 + $0x108] sm:$0xff]
      %v5597 = vld [vmem:[%s11 + $0x110] sm:$0xff]
      %v5598 = vld [vmem:[%s11 + $0x118] sm:$0xff]
      %v5599 = vld [vmem:[%s12] sm:$0x1]
      %v5601 = vperm.slane %v5599, 0
      %5603 = vst [vmem:[#allocation1] ss:$2 sm:$0xff] %v5559
      %s5604 = scalar_lea.vmem [#allocation1], 1
      %5605 = vst [vmem:[%s5604] ss:$2 sm:$0xff] %v5560
      %s5606 = scalar_lea.vmem [#allocation1], 16
      %5607 = vst [vmem:[%s5606] ss:$2 sm:$0xff] %v5454
      %s5608 = scalar_lea.vmem [#allocation1], 17
      %5609 = vst [vmem:[%s5608] ss:$2 sm:$0xff] %v5455
      %s5610 = scalar_lea.vmem [#allocation1], 32
      %5611 = vst [vmem:[%s5610] ss:$2 sm:$0xff] %v5561
      %s5612 = scalar_lea.vmem [#allocation1], 33
      %5613 = vst [vmem:[%s5612] ss:$2 sm:$0xff] %v5562
      %s5614 = scalar_lea.vmem [#allocation1], 48
      %5615 = vst [vmem:[%s5614] ss:$2 sm:$0xff] %v5486
      %s5616 = scalar_lea.vmem [#allocation1], 49
      %5617 = vst [vmem:[%s5616] ss:$2 sm:$0xff] %v5209
      %v5618 = vld.sshfl [vmem:[#allocation1] sm:$0xff pattern:$0x75316420]
      %v5619 = vld.sshfl [vmem:[#allocation1 + $0x8] sm:$0xff pattern:$0x75316420]
      %v5620 = vld.sshfl [vmem:[#allocation1 + $0x10] sm:$0xff pattern:$0x75316420]
      %v5621 = vld.sshfl [vmem:[#allocation1 + $0x20] sm:$0xff pattern:$0x75316420]
      %v5622 = vld.sshfl [vmem:[#allocation1 + $0x28] sm:$0xff pattern:$0x75316420]
      %v5623 = vld.sshfl [vmem:[#allocation1 + $0x30] sm:$0xff pattern:$0x75316420]
      %v5628 = vsel %vm2115, %v5620, 0
      %v5630 = vsel %vm2115, %v5623, 0
      %5632 = vmatpush.msra.mxu0 %v5578
      %5633 = vmatpush.msra.mxu0 %v5577
      %5634 = vmatpush.msra.mxu0 %v5576
      %5635 = vmatpush.msra.mxu0 %v5575
      %5636 = vmatpush.msra.mxu0 %v5574
      %5637 = vmatpush.msra.mxu0 %v5573
      %5638 = vmatpush.msra.mxu0 %v5572
      %5639 = vmatpush.msra.mxu0 %v5571
      %5640 = vmatpush.msra.mxu0 %v5570
      %5641 = vmatpush.msra.mxu0 %v5569
      %5642 = vmatpush.msra.mxu0 %v5568
      %5643 = vmatpush.msra.mxu0 %v5567
      %5644 = vmatpush.msra.mxu0 %v5566
      %5645 = vmatpush.msra.mxu0 %v5565
      %5646 = vmatpush.msra.mxu0 %v5564
      %5647 = vmatpush.msra.mxu0 %v5563
      %5648 = vmatmul.f32.gmra.mxu0 %v5618
      %v5649 = vpop.f32.mrf.mxu0
      %v5650 = vadd.f32 %v5601, %v5649
      %5651 = vmatmul.f32.gmra.mxu0 %v5621
      %v5652 = vpop.f32.mrf.mxu0
      %v5653 = vadd.f32 %v5601, %v5652
      %5654 = vdwg.mxu0
      %5655 = vmatpush.msra.mxu0 %v5594
      %5656 = vmatpush.msra.mxu0 %v5593
      %5657 = vmatpush.msra.mxu0 %v5592
      %5658 = vmatpush.msra.mxu0 %v5591
      %5659 = vmatpush.msra.mxu0 %v5590
      %5660 = vmatpush.msra.mxu0 %v5589
      %5661 = vmatpush.msra.mxu0 %v5588
      %5662 = vmatpush.msra.mxu0 %v5587
      %5663 = vmatpush.msra.mxu0 %v5586
      %5664 = vmatpush.msra.mxu0 %v5585
      %5665 = vmatpush.msra.mxu0 %v5584
      %5666 = vmatpush.msra.mxu0 %v5583
      %5667 = vmatpush.msra.mxu0 %v5582
      %5668 = vmatpush.msra.mxu0 %v5581
      %5669 = vmatpush.msra.mxu0 %v5580
      %5670 = vmatpush.msra.mxu0 %v5579
      %5671 = vmatmul.f32.gmra.mxu0 %v5619
      %v5672 = vpop.f32.mrf.mxu0
      %v5673 = vadd.f32 %v5650, %v5672
      %5674 = vmatmul.f32.gmra.mxu0 %v5622
      %v5675 = vpop.f32.mrf.mxu0
      %v5676 = vadd.f32 %v5653, %v5675
      %5677 = vdwg.mxu0
      %5678 = vmatpush.msra.mxu0 0.0
      %5679 = vmatpush.msra.mxu0 0.0
      %5680 = vmatpush.msra.mxu0 0.0
      %5681 = vmatpush.msra.mxu0 0.0
      %5682 = vmatpush.msra.mxu0 0.0
      %5683 = vmatpush.msra.mxu0 0.0
      %5684 = vmatpush.msra.mxu0 0.0
      %5685 = vmatpush.msra.mxu0 0.0
      %5686 = vmatpush.msra.mxu0 0.0
      %5687 = vmatpush.msra.mxu0 0.0
      %5688 = vmatpush.msra.mxu0 0.0
      %5689 = vmatpush.msra.mxu0 0.0
      %5690 = vmatpush.msra.mxu0 %v5598
      %5691 = vmatpush.msra.mxu0 %v5597
      %5692 = vmatpush.msra.mxu0 %v5596
      %5693 = vmatpush.msra.mxu0 %v5595
      %5694 = vmatmul.f32.gmra.mxu0 %v5628
      %v5695 = vpop.f32.mrf.mxu0
      %v5696 = vadd.f32 %v5673, %v5695
      %5697 = vmatmul.f32.gmra.mxu0 %v5630
      %v5698 = vpop.f32.mrf.mxu0
      %v5699 = vadd.f32 %v5676, %v5698
      %5700 = vdwg.mxu0
      %v5701 = vmax.f32 %v5696, 0.0
      %v5702 = vmax.f32 %v5699, 0.0
      %v5705 = vrot.slane %v5701, 4
      %v5706 = vrot.slane %v5702, 4
      %v5709 = vperm.slane %v5701, 0
      %v5710 = vperm.slane %v5705, 0
      %v5711 = vperm.slane %v5702, 0
      %v5712 = vperm.slane %v5706, 0
      %v5717 = vperm.slane %v5701, 1
      %v5718 = vperm.slane %v5705, 1
      %v5719 = vperm.slane %v5702, 1
      %v5720 = vperm.slane %v5706, 1
      %v5725 = vperm.slane %v5701, 2
      %v5726 = vperm.slane %v5705, 2
      %v5727 = vperm.slane %v5702, 2
      %v5728 = vperm.slane %v5706, 2
      %v5733 = vperm.slane %v5701, 3
      %v5734 = vperm.slane %v5705, 3
      %v5735 = vperm.slane %v5702, 3
      %v5736 = vperm.slane %v5706, 3
      %v5741 = vsel %vm776, %v5701, %v5709
      %v5742 = vsel %vm776, %v5705, %v5710
      %v5743 = vsel %vm776, %v5702, %v5711
      %v5744 = vsel %vm776, %v5706, %v5712
      %v5745 = vsel %vm4173, %v5741, %v5717
      %v5746 = vsel %vm4173, %v5742, %v5718
      %v5747 = vsel %vm4173, %v5743, %v5719
      %v5748 = vsel %vm4173, %v5744, %v5720
      %v5749 = vsel %vm4182, %v5745, %v5717
      %v5750 = vsel %vm4182, %v5746, %v5718
      %v5751 = vsel %vm4182, %v5747, %v5719
      %v5752 = vsel %vm4182, %v5748, %v5720
      %v5753 = vsel %vm2254, %v5749, %v5725
      %v5754 = vsel %vm2254, %v5750, %v5726
      %v5755 = vsel %vm2254, %v5751, %v5727
      %v5756 = vsel %vm2254, %v5752, %v5728
      %v5757 = vsel %vm4199, %v5753, %v5725
      %v5758 = vsel %vm4199, %v5754, %v5726
      %v5759 = vsel %vm4199, %v5755, %v5727
      %v5760 = vsel %vm4199, %v5756, %v5728
      %v5761 = vsel %vm1119, %v5757, %v5733
      %v5762 = vsel %vm1119, %v5758, %v5734
      %v5763 = vsel %vm1119, %v5759, %v5735
      %v5764 = vsel %vm1119, %v5760, %v5736
      %v5765 = vsel %vm942, %v5761, %v5733
      %v5766 = vsel %vm942, %v5762, %v5734
      %v5767 = vsel %vm942, %v5763, %v5735
      %v5768 = vsel %vm942, %v5764, %v5736
      %5773 = vrot.lane.b32.xlu0 %v5765, 16
      %v5774 = vpop.permute.xlu0 %5773
      %5775 = vrot.lane.b32.xlu0 %v5766, 16
      %v5776 = vpop.permute.xlu0 %5775
      %5777 = vrot.lane.b32.xlu0 %v5767, 16
      %v5778 = vpop.permute.xlu0 %5777
      %5779 = vrot.lane.b32.xlu0 %v5768, 16
      %v5780 = vpop.permute.xlu0 %5779
      %v5785 = vsel %vm1983, %v5120, %v5774
      %v5786 = vsel %vm1983, %v5121, %v5774
      %v5787 = vsel %vm1983, %v5122, %v5776
      %v5788 = vsel %vm1983, %v5123, %v5776
      %v5789 = vsel %vm1983, %v5124, %v5778
      %v5790 = vsel %vm1983, %v5125, %v5778
      %v5791 = vsel %vm1983, %v5126, %v5780
      %v5792 = vsel %vm1983, %v5127, %v5780
      %v5801 = vrot.slane %v5785, 7
      %v5802 = vrot.slane %v5786, 7
      %v5803 = vrot.slane %v5787, 7
      %v5804 = vrot.slane %v5788, 7
      %v5805 = vrot.slane %v5789, 7
      %v5806 = vrot.slane %v5790, 7
      %v5807 = vrot.slane %v5791, 7
      %v5808 = vrot.slane %v5792, 7
      %v5817 = vsel %vm776, 0.0, %v5801
      %v5818 = vsel %vm776, 0.0, %v5802
      %v5819 = vsel %vm776, 0.0, %v5803
      %v5820 = vsel %vm776, 0.0, %v5804
      %v5821 = vsel %vm776, 0.0, %v5805
      %v5822 = vsel %vm776, 0.0, %v5806
      %v5823 = vsel %vm776, 0.0, %v5807
      %v5824 = vsel %vm776, 0.0, %v5808
      %v5825 = vsel %vm776, %v5801, 0.0
      %v5826 = vsel %vm776, %v5802, 0.0
      %v5827 = vsel %vm776, %v5803, 0.0
      %v5828 = vsel %vm776, %v5804, 0.0
      %v5829 = vsel %vm776, %v5805, 0.0
      %v5830 = vsel %vm776, %v5806, 0.0
      %v5831 = vsel %vm776, %v5807, 0.0
      %v5832 = vsel %vm776, %v5808, 0.0
      %v5847 = vrot.slane %v5817, 1
      %v5848 = vrot.slane %v5825, 1
      %v5849 = vsel %vm942, %v5847, %v5848
      %v5850 = vrot.slane %v5818, 1
      %v5851 = vrot.slane %v5826, 1
      %v5852 = vsel %vm942, %v5850, %v5851
      %v5853 = vrot.slane %v5819, 1
      %v5854 = vrot.slane %v5827, 1
      %v5855 = vsel %vm942, %v5853, %v5854
      %v5856 = vrot.slane %v5820, 1
      %v5857 = vrot.slane %v5828, 1
      %v5858 = vsel %vm942, %v5856, %v5857
      %v5859 = vrot.slane %v5821, 1
      %v5860 = vrot.slane %v5829, 1
      %v5861 = vsel %vm942, %v5859, %v5860
      %v5862 = vrot.slane %v5822, 1
      %v5863 = vrot.slane %v5830, 1
      %v5864 = vsel %vm942, %v5862, %v5863
      %v5865 = vrot.slane %v5823, 1
      %v5866 = vrot.slane %v5831, 1
      %v5867 = vsel %vm942, %v5865, %v5866
      %5868 = vrot.lane.b32.xlu0 %v4278, 48
      %v5869 = vpop.permute.xlu0 %5868
      %5870 = vrot.lane.b32.xlu0 %v5849, 48
      %v5871 = vpop.permute.xlu0 %5870
      %5872 = vrot.lane.b32.xlu0 %v5852, 48
      %v5873 = vpop.permute.xlu0 %5872
      %5874 = vrot.lane.b32.xlu0 %v5855, 48
      %v5875 = vpop.permute.xlu0 %5874
      %5876 = vrot.lane.b32.xlu0 %v5858, 48
      %v5877 = vpop.permute.xlu0 %5876
      %5878 = vrot.lane.b32.xlu0 %v5861, 48
      %v5879 = vpop.permute.xlu0 %5878
      %5880 = vrot.lane.b32.xlu0 %v5864, 48
      %v5881 = vpop.permute.xlu0 %5880
      %5882 = vrot.lane.b32.xlu0 %v5867, 48
      %v5883 = vpop.permute.xlu0 %5882
      %v5892 = vrot.slane %v5817, 2
      %v5893 = vrot.slane %v5825, 2
      %v5894 = vsel %vm1119, %v5892, %v5893
      %v5895 = vrot.slane %v5818, 2
      %v5896 = vrot.slane %v5826, 2
      %v5897 = vsel %vm1119, %v5895, %v5896
      %v5898 = vrot.slane %v5819, 2
      %v5899 = vrot.slane %v5827, 2
      %v5900 = vsel %vm1119, %v5898, %v5899
      %v5901 = vrot.slane %v5820, 2
      %v5902 = vrot.slane %v5828, 2
      %v5903 = vsel %vm1119, %v5901, %v5902
      %v5904 = vrot.slane %v5821, 2
      %v5905 = vrot.slane %v5829, 2
      %v5906 = vsel %vm1119, %v5904, %v5905
      %v5907 = vrot.slane %v5822, 2
      %v5908 = vrot.slane %v5830, 2
      %v5909 = vsel %vm1119, %v5907, %v5908
      %v5910 = vrot.slane %v5823, 2
      %v5911 = vrot.slane %v5831, 2
      %v5912 = vsel %vm1119, %v5910, %v5911
      %5913 = vrot.lane.b32.xlu0 %v4324, 96
      %v5914 = vpop.permute.xlu0 %5913
      %5915 = vrot.lane.b32.xlu0 %v5894, 96
      %v5916 = vpop.permute.xlu0 %5915
      %5917 = vrot.lane.b32.xlu0 %v5897, 96
      %v5918 = vpop.permute.xlu0 %5917
      %5919 = vrot.lane.b32.xlu0 %v5900, 96
      %v5920 = vpop.permute.xlu0 %5919
      %5921 = vrot.lane.b32.xlu0 %v5903, 96
      %v5922 = vpop.permute.xlu0 %5921
      %5923 = vrot.lane.b32.xlu0 %v5906, 96
      %v5924 = vpop.permute.xlu0 %5923
      %5925 = vrot.lane.b32.xlu0 %v5909, 96
      %v5926 = vpop.permute.xlu0 %5925
      %5927 = vrot.lane.b32.xlu0 %v5912, 96
      %v5928 = vpop.permute.xlu0 %5927
      %5938 = vrot.lane.b32.xlu0 %v5817, 16
      %v5939 = vpop.permute.xlu0 %5938
      %5940 = vrot.lane.b32.xlu0 %v5818, 16
      %v5941 = vpop.permute.xlu0 %5940
      %5942 = vrot.lane.b32.xlu0 %v5819, 16
      %v5943 = vpop.permute.xlu0 %5942
      %5944 = vrot.lane.b32.xlu0 %v5820, 16
      %v5945 = vpop.permute.xlu0 %5944
      %5946 = vrot.lane.b32.xlu0 %v5821, 16
      %v5947 = vpop.permute.xlu0 %5946
      %5948 = vrot.lane.b32.xlu0 %v5822, 16
      %v5949 = vpop.permute.xlu0 %5948
      %5950 = vrot.lane.b32.xlu0 %v5823, 16
      %v5951 = vpop.permute.xlu0 %5950
      %5952 = vrot.lane.b32.xlu0 %v5824, 16
      %v5953 = vpop.permute.xlu0 %5952
      %v5963 = vrot.slane %v5824, 1
      %v5964 = vrot.slane %v5832, 1
      %v5965 = vsel %vm942, %v5963, %v5964
      %5966 = vrot.lane.b32.xlu0 %v5849, 64
      %v5967 = vpop.permute.xlu0 %5966
      %5968 = vrot.lane.b32.xlu0 %v5852, 64
      %v5969 = vpop.permute.xlu0 %5968
      %5970 = vrot.lane.b32.xlu0 %v5855, 64
      %v5971 = vpop.permute.xlu0 %5970
      %5972 = vrot.lane.b32.xlu0 %v5858, 64
      %v5973 = vpop.permute.xlu0 %5972
      %5974 = vrot.lane.b32.xlu0 %v5861, 64
      %v5975 = vpop.permute.xlu0 %5974
      %5976 = vrot.lane.b32.xlu0 %v5864, 64
      %v5977 = vpop.permute.xlu0 %5976
      %5978 = vrot.lane.b32.xlu0 %v5867, 64
      %v5979 = vpop.permute.xlu0 %5978
      %5980 = vrot.lane.b32.xlu0 %v5965, 64
      %v5981 = vpop.permute.xlu0 %5980
      %v5990 = vrot.slane %v5824, 2
      %v5991 = vrot.slane %v5832, 2
      %v5992 = vsel %vm1119, %v5990, %v5991
      %5993 = vrot.lane.b32.xlu0 %v5894, 112
      %v5994 = vpop.permute.xlu0 %5993
      %5995 = vrot.lane.b32.xlu0 %v5897, 112
      %v5996 = vpop.permute.xlu0 %5995
      %5997 = vrot.lane.b32.xlu0 %v5900, 112
      %v5998 = vpop.permute.xlu0 %5997
      %5999 = vrot.lane.b32.xlu0 %v5903, 112
      %v6000 = vpop.permute.xlu0 %5999
      %6001 = vrot.lane.b32.xlu0 %v5906, 112
      %v6002 = vpop.permute.xlu0 %6001
      %6003 = vrot.lane.b32.xlu0 %v5909, 112
      %v6004 = vpop.permute.xlu0 %6003
      %6005 = vrot.lane.b32.xlu0 %v5912, 112
      %v6006 = vpop.permute.xlu0 %6005
      %6007 = vrot.lane.b32.xlu0 %v5992, 112
      %v6008 = vpop.permute.xlu0 %6007
      %6017 = vrot.lane.b32.xlu0 %v5818, 32
      %v6018 = vpop.permute.xlu0 %6017
      %6019 = vrot.lane.b32.xlu0 %v5819, 32
      %v6020 = vpop.permute.xlu0 %6019
      %6021 = vrot.lane.b32.xlu0 %v5820, 32
      %v6022 = vpop.permute.xlu0 %6021
      %6023 = vrot.lane.b32.xlu0 %v5821, 32
      %v6024 = vpop.permute.xlu0 %6023
      %6025 = vrot.lane.b32.xlu0 %v5822, 32
      %v6026 = vpop.permute.xlu0 %6025
      %6027 = vrot.lane.b32.xlu0 %v5823, 32
      %v6028 = vpop.permute.xlu0 %6027
      %6029 = vrot.lane.b32.xlu0 %v5824, 32
      %v6030 = vpop.permute.xlu0 %6029
      %6031 = vrot.lane.b32.xlu0 %v876, 32
      %v6032 = vpop.permute.xlu0 %6031
      %6041 = vrot.lane.b32.xlu0 %v5852, 80
      %v6042 = vpop.permute.xlu0 %6041
      %6043 = vrot.lane.b32.xlu0 %v5855, 80
      %v6044 = vpop.permute.xlu0 %6043
      %6045 = vrot.lane.b32.xlu0 %v5858, 80
      %v6046 = vpop.permute.xlu0 %6045
      %6047 = vrot.lane.b32.xlu0 %v5861, 80
      %v6048 = vpop.permute.xlu0 %6047
      %6049 = vrot.lane.b32.xlu0 %v5864, 80
      %v6050 = vpop.permute.xlu0 %6049
      %6051 = vrot.lane.b32.xlu0 %v5867, 80
      %v6052 = vpop.permute.xlu0 %6051
      %6053 = vrot.lane.b32.xlu0 %v5965, 80
      %v6054 = vpop.permute.xlu0 %6053
      %6055 = vrot.lane.b32.xlu0 %v4278, 80
      %v6056 = vpop.permute.xlu0 %6055
      %v6065 = vsel %vm3683, %v876, %v5869
      %v6066 = vsel %vm3683, %v5817, %v5871
      %v6067 = vsel %vm3683, %v5818, %v5873
      %v6068 = vsel %vm3683, %v5819, %v5875
      %v6069 = vsel %vm3683, %v5820, %v5877
      %v6070 = vsel %vm3683, %v5821, %v5879
      %v6071 = vsel %vm3683, %v5822, %v5881
      %v6072 = vsel %vm3683, %v5823, %v5883
      %v6073 = vsel %vm4982, %v6065, %v5914
      %v6074 = vsel %vm4982, %v6066, %v5916
      %v6075 = vsel %vm4982, %v6067, %v5918
      %v6076 = vsel %vm4982, %v6068, %v5920
      %v6077 = vsel %vm4982, %v6069, %v5922
      %v6078 = vsel %vm4982, %v6070, %v5924
      %v6079 = vsel %vm4982, %v6071, %v5926
      %v6080 = vsel %vm4982, %v6072, %v5928
      %v6081 = vsel %vm1983, %v5914, %v5939
      %v6082 = vsel %vm1983, %v5916, %v5941
      %v6083 = vsel %vm1983, %v5918, %v5943
      %v6084 = vsel %vm1983, %v5920, %v5945
      %v6085 = vsel %vm1983, %v5922, %v5947
      %v6086 = vsel %vm1983, %v5924, %v5949
      %v6087 = vsel %vm1983, %v5926, %v5951
      %v6088 = vsel %vm1983, %v5928, %v5953
      %v6089 = vsel %vm3749, %v6081, %v5967
      %v6090 = vsel %vm3749, %v6082, %v5969
      %v6091 = vsel %vm3749, %v6083, %v5971
      %v6092 = vsel %vm3749, %v6084, %v5973
      %v6093 = vsel %vm3749, %v6085, %v5975
      %v6094 = vsel %vm3749, %v6086, %v5977
      %v6095 = vsel %vm3749, %v6087, %v5979
      %v6096 = vsel %vm3749, %v6088, %v5981
      %v6097 = vsel %vm4991, %v6089, %v5994
      %v6098 = vsel %vm4991, %v6090, %v5996
      %v6099 = vsel %vm4991, %v6091, %v5998
      %v6100 = vsel %vm4991, %v6092, %v6000
      %v6101 = vsel %vm4991, %v6093, %v6002
      %v6102 = vsel %vm4991, %v6094, %v6004
      %v6103 = vsel %vm4991, %v6095, %v6006
      %v6104 = vsel %vm4991, %v6096, %v6008
      %v6105 = vsel %vm2115, %v5994, %v6018
      %v6106 = vsel %vm2115, %v5996, %v6020
      %v6107 = vsel %vm2115, %v5998, %v6022
      %v6108 = vsel %vm2115, %v6000, %v6024
      %v6109 = vsel %vm2115, %v6002, %v6026
      %v6110 = vsel %vm2115, %v6004, %v6028
      %v6111 = vsel %vm2115, %v6006, %v6030
      %v6112 = vsel %vm2115, %v6008, %v6032
      %v6113 = vsel %vm4973, %v6105, %v6042
      %v6114 = vsel %vm4973, %v6106, %v6044
      %v6115 = vsel %vm4973, %v6107, %v6046
      %v6116 = vsel %vm4973, %v6108, %v6048
      %v6117 = vsel %vm4973, %v6109, %v6050
      %v6118 = vsel %vm4973, %v6110, %v6052
      %v6119 = vsel %vm4973, %v6111, %v6054
      %v6120 = vsel %vm4973, %v6112, %v6056
      %v6121 = vld [vmem:[%s13] sm:$0xff]
      %v6122 = vld [vmem:[%s13 + $0x8] sm:$0xff]
      %v6123 = vld [vmem:[%s13 + $0x10] sm:$0xff]
      %v6124 = vld [vmem:[%s13 + $0x18] sm:$0xff]
      %v6125 = vld [vmem:[%s13 + $0x20] sm:$0xff]
      %v6126 = vld [vmem:[%s13 + $0x28] sm:$0xff]
      %v6127 = vld [vmem:[%s13 + $0x30] sm:$0xff]
      %v6128 = vld [vmem:[%s13 + $0x38] sm:$0xff]
      %v6129 = vld [vmem:[%s13 + $0x40] sm:$0xff]
      %v6130 = vld [vmem:[%s13 + $0x48] sm:$0xff]
      %v6131 = vld [vmem:[%s13 + $0x50] sm:$0xff]
      %v6132 = vld [vmem:[%s13 + $0x58] sm:$0xff]
      %v6133 = vld [vmem:[%s13 + $0x60] sm:$0xff]
      %v6134 = vld [vmem:[%s13 + $0x68] sm:$0xff]
      %v6135 = vld [vmem:[%s13 + $0x70] sm:$0xff]
      %v6136 = vld [vmem:[%s13 + $0x78] sm:$0xff]
      %v6137 = vld [vmem:[%s13 + $0x80] sm:$0xff]
      %v6138 = vld [vmem:[%s13 + $0x88] sm:$0xff]
      %v6139 = vld [vmem:[%s13 + $0x90] sm:$0xff]
      %v6140 = vld [vmem:[%s13 + $0x98] sm:$0xff]
      %v6141 = vld [vmem:[%s13 + $0xa0] sm:$0xff]
      %v6142 = vld [vmem:[%s13 + $0xa8] sm:$0xff]
      %v6143 = vld [vmem:[%s13 + $0xb0] sm:$0xff]
      %v6144 = vld [vmem:[%s13 + $0xb8] sm:$0xff]
      %v6145 = vld [vmem:[%s13 + $0xc0] sm:$0xff]
      %v6146 = vld [vmem:[%s13 + $0xc8] sm:$0xff]
      %v6147 = vld [vmem:[%s13 + $0xd0] sm:$0xff]
      %v6148 = vld [vmem:[%s13 + $0xd8] sm:$0xff]
      %v6149 = vld [vmem:[%s13 + $0xe0] sm:$0xff]
      %v6150 = vld [vmem:[%s13 + $0xe8] sm:$0xff]
      %v6151 = vld [vmem:[%s13 + $0xf0] sm:$0xff]
      %v6152 = vld [vmem:[%s13 + $0xf8] sm:$0xff]
      %v6153 = vld [vmem:[%s13 + $0x100] sm:$0xff]
      %v6154 = vld [vmem:[%s13 + $0x108] sm:$0xff]
      %v6155 = vld [vmem:[%s13 + $0x110] sm:$0xff]
      %v6156 = vld [vmem:[%s13 + $0x118] sm:$0xff]
      %v6157 = vld [vmem:[%s13 + $0x120] sm:$0xff]
      %v6158 = vld [vmem:[%s13 + $0x128] sm:$0xff]
      %v6159 = vld [vmem:[%s13 + $0x130] sm:$0xff]
      %v6160 = vld [vmem:[%s13 + $0x138] sm:$0xff]
      %v6161 = vld [vmem:[%s13 + $0x140] sm:$0xff]
      %v6162 = vld [vmem:[%s13 + $0x148] sm:$0xff]
      %v6163 = vld [vmem:[%s13 + $0x150] sm:$0xff]
      %v6164 = vld [vmem:[%s13 + $0x158] sm:$0xff]
      %v6165 = vld [vmem:[%s13 + $0x160] sm:$0xff]
      %v6166 = vld [vmem:[%s13 + $0x168] sm:$0xff]
      %v6167 = vld [vmem:[%s13 + $0x170] sm:$0xff]
      %v6168 = vld [vmem:[%s13 + $0x178] sm:$0xff]
      %v6169 = vld [vmem:[%s13 + $0x180] sm:$0xff]
      %v6170 = vld [vmem:[%s13 + $0x188] sm:$0xff]
      %v6171 = vld [vmem:[%s13 + $0x190] sm:$0xff]
      %v6172 = vld [vmem:[%s13 + $0x198] sm:$0xff]
      %v6173 = vld [vmem:[%s13 + $0x1a0] sm:$0xff]
      %v6174 = vld [vmem:[%s13 + $0x1a8] sm:$0xff]
      %v6175 = vld [vmem:[%s14] sm:$0x1]
      %v6177 = vperm.slane %v6175, 0
      %v6179 = vsel %vm3683, %v5897, 0
      %v6181 = vsel %vm3683, %v5900, 0
      %v6183 = vsel %vm3683, %v5903, 0
      %v6185 = vsel %vm3683, %v5906, 0
      %v6187 = vsel %vm3683, %v5909, 0
      %v6189 = vsel %vm3683, %v5912, 0
      %v6191 = vsel %vm3683, %v5992, 0
      %v6193 = vsel %vm3683, %v4324, 0
      %6195 = vmatpush.msra.mxu0 %v6136
      %6196 = vmatpush.msra.mxu0 %v6135
      %6197 = vmatpush.msra.mxu0 %v6134
      %6198 = vmatpush.msra.mxu0 %v6133
      %6199 = vmatpush.msra.mxu0 %v6132
      %6200 = vmatpush.msra.mxu0 %v6131
      %6201 = vmatpush.msra.mxu0 %v6130
      %6202 = vmatpush.msra.mxu0 %v6129
      %6203 = vmatpush.msra.mxu0 %v6128
      %6204 = vmatpush.msra.mxu0 %v6127
      %6205 = vmatpush.msra.mxu0 %v6126
      %6206 = vmatpush.msra.mxu0 %v6125
      %6207 = vmatpush.msra.mxu0 %v6124
      %6208 = vmatpush.msra.mxu0 %v6123
      %6209 = vmatpush.msra.mxu0 %v6122
      %6210 = vmatpush.msra.mxu0 %v6121
      %6211 = vmatmul.f32.gmra.mxu0 %v6073
      %v6212 = vpop.f32.mrf.mxu0
      %v6213 = vadd.f32 %v6177, %v6212
      %6214 = vmatmul.f32.gmra.mxu0 %v6074
      %v6215 = vpop.f32.mrf.mxu0
      %v6216 = vadd.f32 %v6177, %v6215
      %6217 = vmatmul.f32.gmra.mxu0 %v6075
      %v6218 = vpop.f32.mrf.mxu0
      %v6219 = vadd.f32 %v6177, %v6218
      %6220 = vmatmul.f32.gmra.mxu0 %v6076
      %v6221 = vpop.f32.mrf.mxu0
      %v6222 = vadd.f32 %v6177, %v6221
      %6223 = vmatmul.f32.gmra.mxu0 %v6077
      %v6224 = vpop.f32.mrf.mxu0
      %v6225 = vadd.f32 %v6177, %v6224
      %6226 = vmatmul.f32.gmra.mxu0 %v6078
      %v6227 = vpop.f32.mrf.mxu0
      %v6228 = vadd.f32 %v6177, %v6227
      %6229 = vmatmul.f32.gmra.mxu0 %v6079
      %v6230 = vpop.f32.mrf.mxu0
      %v6231 = vadd.f32 %v6177, %v6230
      %6232 = vmatmul.f32.gmra.mxu0 %v6080
      %v6233 = vpop.f32.mrf.mxu0
      %v6234 = vadd.f32 %v6177, %v6233
      %6235 = vdwg.mxu0
      %6236 = vmatpush.msra.mxu0 %v6152
      %6237 = vmatpush.msra.mxu0 %v6151
      %6238 = vmatpush.msra.mxu0 %v6150
      %6239 = vmatpush.msra.mxu0 %v6149
      %6240 = vmatpush.msra.mxu0 %v6148
      %6241 = vmatpush.msra.mxu0 %v6147
      %6242 = vmatpush.msra.mxu0 %v6146
      %6243 = vmatpush.msra.mxu0 %v6145
      %6244 = vmatpush.msra.mxu0 %v6144
      %6245 = vmatpush.msra.mxu0 %v6143
      %6246 = vmatpush.msra.mxu0 %v6142
      %6247 = vmatpush.msra.mxu0 %v6141
      %6248 = vmatpush.msra.mxu0 %v6140
      %6249 = vmatpush.msra.mxu0 %v6139
      %6250 = vmatpush.msra.mxu0 %v6138
      %6251 = vmatpush.msra.mxu0 %v6137
      %6252 = vmatmul.f32.gmra.mxu0 %v6097
      %v6253 = vpop.f32.mrf.mxu0
      %v6254 = vadd.f32 %v6213, %v6253
      %6255 = vmatmul.f32.gmra.mxu0 %v6098
      %v6256 = vpop.f32.mrf.mxu0
      %v6257 = vadd.f32 %v6216, %v6256
      %6258 = vmatmul.f32.gmra.mxu0 %v6099
      %v6259 = vpop.f32.mrf.mxu0
      %v6260 = vadd.f32 %v6219, %v6259
      %6261 = vmatmul.f32.gmra.mxu0 %v6100
      %v6262 = vpop.f32.mrf.mxu0
      %v6263 = vadd.f32 %v6222, %v6262
      %6264 = vmatmul.f32.gmra.mxu0 %v6101
      %v6265 = vpop.f32.mrf.mxu0
      %v6266 = vadd.f32 %v6225, %v6265
      %6267 = vmatmul.f32.gmra.mxu0 %v6102
      %v6268 = vpop.f32.mrf.mxu0
      %v6269 = vadd.f32 %v6228, %v6268
      %6270 = vmatmul.f32.gmra.mxu0 %v6103
      %v6271 = vpop.f32.mrf.mxu0
      %v6272 = vadd.f32 %v6231, %v6271
      %6273 = vmatmul.f32.gmra.mxu0 %v6104
      %v6274 = vpop.f32.mrf.mxu0
      %v6275 = vadd.f32 %v6234, %v6274
      %6276 = vdwg.mxu0
      %6277 = vmatpush.msra.mxu0 %v6168
      %6278 = vmatpush.msra.mxu0 %v6167
      %6279 = vmatpush.msra.mxu0 %v6166
      %6280 = vmatpush.msra.mxu0 %v6165
      %6281 = vmatpush.msra.mxu0 %v6164
      %6282 = vmatpush.msra.mxu0 %v6163
      %6283 = vmatpush.msra.mxu0 %v6162
      %6284 = vmatpush.msra.mxu0 %v6161
      %6285 = vmatpush.msra.mxu0 %v6160
      %6286 = vmatpush.msra.mxu0 %v6159
      %6287 = vmatpush.msra.mxu0 %v6158
      %6288 = vmatpush.msra.mxu0 %v6157
      %6289 = vmatpush.msra.mxu0 %v6156
      %6290 = vmatpush.msra.mxu0 %v6155
      %6291 = vmatpush.msra.mxu0 %v6154
      %6292 = vmatpush.msra.mxu0 %v6153
      %6293 = vmatmul.f32.gmra.mxu0 %v6113
      %v6294 = vpop.f32.mrf.mxu0
      %v6295 = vadd.f32 %v6254, %v6294
      %6296 = vmatmul.f32.gmra.mxu0 %v6114
      %v6297 = vpop.f32.mrf.mxu0
      %v6298 = vadd.f32 %v6257, %v6297
      %6299 = vmatmul.f32.gmra.mxu0 %v6115
      %v6300 = vpop.f32.mrf.mxu0
      %v6301 = vadd.f32 %v6260, %v6300
      %6302 = vmatmul.f32.gmra.mxu0 %v6116
      %v6303 = vpop.f32.mrf.mxu0
      %v6304 = vadd.f32 %v6263, %v6303
      %6305 = vmatmul.f32.gmra.mxu0 %v6117
      %v6306 = vpop.f32.mrf.mxu0
      %v6307 = vadd.f32 %v6266, %v6306
      %6308 = vmatmul.f32.gmra.mxu0 %v6118
      %v6309 = vpop.f32.mrf.mxu0
      %v6310 = vadd.f32 %v6269, %v6309
      %6311 = vmatmul.f32.gmra.mxu0 %v6119
      %v6312 = vpop.f32.mrf.mxu0
      %v6313 = vadd.f32 %v6272, %v6312
      %6314 = vmatmul.f32.gmra.mxu0 %v6120
      %v6315 = vpop.f32.mrf.mxu0
      %v6316 = vadd.f32 %v6275, %v6315
      %6317 = vdwg.mxu0
      %6318 = vmatpush.msra.mxu0 0.0
      %6319 = vmatpush.msra.mxu0 0.0
      %6320 = vmatpush.msra.mxu0 0.0
      %6321 = vmatpush.msra.mxu0 0.0
      %6322 = vmatpush.msra.mxu0 0.0
      %6323 = vmatpush.msra.mxu0 0.0
      %6324 = vmatpush.msra.mxu0 0.0
      %6325 = vmatpush.msra.mxu0 0.0
      %6326 = vmatpush.msra.mxu0 0.0
      %6327 = vmatpush.msra.mxu0 0.0
      %6328 = vmatpush.msra.mxu0 %v6174
      %6329 = vmatpush.msra.mxu0 %v6173
      %6330 = vmatpush.msra.mxu0 %v6172
      %6331 = vmatpush.msra.mxu0 %v6171
      %6332 = vmatpush.msra.mxu0 %v6170
      %6333 = vmatpush.msra.mxu0 %v6169
      %6334 = vmatmul.f32.gmra.mxu0 %v6179
      %v6335 = vpop.f32.mrf.mxu0
      %v6336 = vadd.f32 %v6295, %v6335
      %6337 = vmatmul.f32.gmra.mxu0 %v6181
      %v6338 = vpop.f32.mrf.mxu0
      %v6339 = vadd.f32 %v6298, %v6338
      %6340 = vmatmul.f32.gmra.mxu0 %v6183
      %v6341 = vpop.f32.mrf.mxu0
      %v6342 = vadd.f32 %v6301, %v6341
      %6343 = vmatmul.f32.gmra.mxu0 %v6185
      %v6344 = vpop.f32.mrf.mxu0
      %v6345 = vadd.f32 %v6304, %v6344
      %6346 = vmatmul.f32.gmra.mxu0 %v6187
      %v6347 = vpop.f32.mrf.mxu0
      %v6348 = vadd.f32 %v6307, %v6347
      %6349 = vmatmul.f32.gmra.mxu0 %v6189
      %v6350 = vpop.f32.mrf.mxu0
      %v6351 = vadd.f32 %v6310, %v6350
      %6352 = vmatmul.f32.gmra.mxu0 %v6191
      %v6353 = vpop.f32.mrf.mxu0
      %v6354 = vadd.f32 %v6313, %v6353
      %6355 = vmatmul.f32.gmra.mxu0 %v6193
      %v6356 = vpop.f32.mrf.mxu0
      %v6357 = vadd.f32 %v6316, %v6356
      %6358 = vdwg.mxu0
      %v6359 = vmax.f32 %v6336, 0.0
      %v6360 = vmax.f32 %v6339, 0.0
      %v6361 = vmax.f32 %v6342, 0.0
      %v6362 = vmax.f32 %v6345, 0.0
      %v6363 = vmax.f32 %v6348, 0.0
      %v6364 = vmax.f32 %v6351, 0.0
      %v6365 = vmax.f32 %v6354, 0.0
      %v6366 = vmax.f32 %v6357, 0.0
      %v6375 = vrot.slane %v6359, 7
      %v6376 = vrot.slane %v6360, 7
      %v6377 = vrot.slane %v6361, 7
      %v6378 = vrot.slane %v6362, 7
      %v6379 = vrot.slane %v6363, 7
      %v6380 = vrot.slane %v6364, 7
      %v6381 = vrot.slane %v6365, 7
      %v6382 = vrot.slane %v6366, 7
      %v6391 = vsel %vm776, 0.0, %v6375
      %v6392 = vsel %vm776, 0.0, %v6376
      %v6393 = vsel %vm776, 0.0, %v6377
      %v6394 = vsel %vm776, 0.0, %v6378
      %v6395 = vsel %vm776, 0.0, %v6379
      %v6396 = vsel %vm776, 0.0, %v6380
      %v6397 = vsel %vm776, 0.0, %v6381
      %v6398 = vsel %vm776, 0.0, %v6382
      %v6399 = vsel %vm776, %v6375, 0.0
      %v6400 = vsel %vm776, %v6376, 0.0
      %v6401 = vsel %vm776, %v6377, 0.0
      %v6402 = vsel %vm776, %v6378, 0.0
      %v6403 = vsel %vm776, %v6379, 0.0
      %v6404 = vsel %vm776, %v6380, 0.0
      %v6405 = vsel %vm776, %v6381, 0.0
      %v6406 = vsel %vm776, %v6382, 0.0
      %v6421 = vrot.slane %v6391, 1
      %v6422 = vrot.slane %v6399, 1
      %v6423 = vsel %vm942, %v6421, %v6422
      %v6424 = vrot.slane %v6392, 1
      %v6425 = vrot.slane %v6400, 1
      %v6426 = vsel %vm942, %v6424, %v6425
      %v6427 = vrot.slane %v6393, 1
      %v6428 = vrot.slane %v6401, 1
      %v6429 = vsel %vm942, %v6427, %v6428
      %v6430 = vrot.slane %v6394, 1
      %v6431 = vrot.slane %v6402, 1
      %v6432 = vsel %vm942, %v6430, %v6431
      %v6433 = vrot.slane %v6395, 1
      %v6434 = vrot.slane %v6403, 1
      %v6435 = vsel %vm942, %v6433, %v6434
      %v6436 = vrot.slane %v6396, 1
      %v6437 = vrot.slane %v6404, 1
      %v6438 = vsel %vm942, %v6436, %v6437
      %v6439 = vrot.slane %v6397, 1
      %v6440 = vrot.slane %v6405, 1
      %v6441 = vsel %vm942, %v6439, %v6440
      %6442 = vrot.lane.b32.xlu0 %v6423, 16
      %v6443 = vpop.permute.xlu0 %6442
      %6444 = vrot.lane.b32.xlu0 %v6426, 16
      %v6445 = vpop.permute.xlu0 %6444
      %6446 = vrot.lane.b32.xlu0 %v6429, 16
      %v6447 = vpop.permute.xlu0 %6446
      %6448 = vrot.lane.b32.xlu0 %v6432, 16
      %v6449 = vpop.permute.xlu0 %6448
      %6450 = vrot.lane.b32.xlu0 %v6435, 16
      %v6451 = vpop.permute.xlu0 %6450
      %6452 = vrot.lane.b32.xlu0 %v6438, 16
      %v6453 = vpop.permute.xlu0 %6452
      %6454 = vrot.lane.b32.xlu0 %v6441, 16
      %v6455 = vpop.permute.xlu0 %6454
      %v6463 = vrot.slane %v6391, 2
      %v6464 = vrot.slane %v6399, 2
      %v6465 = vsel %vm1119, %v6463, %v6464
      %v6466 = vrot.slane %v6392, 2
      %v6467 = vrot.slane %v6400, 2
      %v6468 = vsel %vm1119, %v6466, %v6467
      %v6469 = vrot.slane %v6393, 2
      %v6470 = vrot.slane %v6401, 2
      %v6471 = vsel %vm1119, %v6469, %v6470
      %v6472 = vrot.slane %v6394, 2
      %v6473 = vrot.slane %v6402, 2
      %v6474 = vsel %vm1119, %v6472, %v6473
      %v6475 = vrot.slane %v6395, 2
      %v6476 = vrot.slane %v6403, 2
      %v6477 = vsel %vm1119, %v6475, %v6476
      %v6478 = vrot.slane %v6396, 2
      %v6479 = vrot.slane %v6404, 2
      %v6480 = vsel %vm1119, %v6478, %v6479
      %v6481 = vrot.slane %v6397, 2
      %v6482 = vrot.slane %v6405, 2
      %v6483 = vsel %vm1119, %v6481, %v6482
      %6484 = vrot.lane.b32.xlu0 %v6465, 32
      %v6485 = vpop.permute.xlu0 %6484
      %6486 = vrot.lane.b32.xlu0 %v6468, 32
      %v6487 = vpop.permute.xlu0 %6486
      %6488 = vrot.lane.b32.xlu0 %v6471, 32
      %v6489 = vpop.permute.xlu0 %6488
      %6490 = vrot.lane.b32.xlu0 %v6474, 32
      %v6491 = vpop.permute.xlu0 %6490
      %6492 = vrot.lane.b32.xlu0 %v6477, 32
      %v6493 = vpop.permute.xlu0 %6492
      %6494 = vrot.lane.b32.xlu0 %v6480, 32
      %v6495 = vpop.permute.xlu0 %6494
      %6496 = vrot.lane.b32.xlu0 %v6483, 32
      %v6497 = vpop.permute.xlu0 %6496
      %6506 = vrot.lane.b32.xlu0 %v6391, 48
      %v6507 = vpop.permute.xlu0 %6506
      %6508 = vrot.lane.b32.xlu0 %v6392, 48
      %v6509 = vpop.permute.xlu0 %6508
      %6510 = vrot.lane.b32.xlu0 %v6393, 48
      %v6511 = vpop.permute.xlu0 %6510
      %6512 = vrot.lane.b32.xlu0 %v6394, 48
      %v6513 = vpop.permute.xlu0 %6512
      %6514 = vrot.lane.b32.xlu0 %v6395, 48
      %v6515 = vpop.permute.xlu0 %6514
      %6516 = vrot.lane.b32.xlu0 %v6396, 48
      %v6517 = vpop.permute.xlu0 %6516
      %6518 = vrot.lane.b32.xlu0 %v6397, 48
      %v6519 = vpop.permute.xlu0 %6518
      %6520 = vrot.lane.b32.xlu0 %v6398, 48
      %v6521 = vpop.permute.xlu0 %6520
      %v6531 = vrot.slane %v6398, 1
      %v6532 = vrot.slane %v6406, 1
      %v6533 = vsel %vm942, %v6531, %v6532
      %6534 = vrot.lane.b32.xlu0 %v6423, 64
      %v6535 = vpop.permute.xlu0 %6534
      %6536 = vrot.lane.b32.xlu0 %v6426, 64
      %v6537 = vpop.permute.xlu0 %6536
      %6538 = vrot.lane.b32.xlu0 %v6429, 64
      %v6539 = vpop.permute.xlu0 %6538
      %6540 = vrot.lane.b32.xlu0 %v6432, 64
      %v6541 = vpop.permute.xlu0 %6540
      %6542 = vrot.lane.b32.xlu0 %v6435, 64
      %v6543 = vpop.permute.xlu0 %6542
      %6544 = vrot.lane.b32.xlu0 %v6438, 64
      %v6545 = vpop.permute.xlu0 %6544
      %6546 = vrot.lane.b32.xlu0 %v6441, 64
      %v6547 = vpop.permute.xlu0 %6546
      %6548 = vrot.lane.b32.xlu0 %v6533, 64
      %v6549 = vpop.permute.xlu0 %6548
      %v6558 = vrot.slane %v6398, 2
      %v6559 = vrot.slane %v6406, 2
      %v6560 = vsel %vm1119, %v6558, %v6559
      %6561 = vrot.lane.b32.xlu0 %v6465, 80
      %v6562 = vpop.permute.xlu0 %6561
      %6563 = vrot.lane.b32.xlu0 %v6468, 80
      %v6564 = vpop.permute.xlu0 %6563
      %6565 = vrot.lane.b32.xlu0 %v6471, 80
      %v6566 = vpop.permute.xlu0 %6565
      %6567 = vrot.lane.b32.xlu0 %v6474, 80
      %v6568 = vpop.permute.xlu0 %6567
      %6569 = vrot.lane.b32.xlu0 %v6477, 80
      %v6570 = vpop.permute.xlu0 %6569
      %6571 = vrot.lane.b32.xlu0 %v6480, 80
      %v6572 = vpop.permute.xlu0 %6571
      %6573 = vrot.lane.b32.xlu0 %v6483, 80
      %v6574 = vpop.permute.xlu0 %6573
      %6575 = vrot.lane.b32.xlu0 %v6560, 80
      %v6576 = vpop.permute.xlu0 %6575
      %6585 = vrot.lane.b32.xlu0 %v6392, 96
      %v6586 = vpop.permute.xlu0 %6585
      %6587 = vrot.lane.b32.xlu0 %v6393, 96
      %v6588 = vpop.permute.xlu0 %6587
      %6589 = vrot.lane.b32.xlu0 %v6394, 96
      %v6590 = vpop.permute.xlu0 %6589
      %6591 = vrot.lane.b32.xlu0 %v6395, 96
      %v6592 = vpop.permute.xlu0 %6591
      %6593 = vrot.lane.b32.xlu0 %v6396, 96
      %v6594 = vpop.permute.xlu0 %6593
      %6595 = vrot.lane.b32.xlu0 %v6397, 96
      %v6596 = vpop.permute.xlu0 %6595
      %6597 = vrot.lane.b32.xlu0 %v6398, 96
      %v6598 = vpop.permute.xlu0 %6597
      %6606 = vrot.lane.b32.xlu0 %v6426, 112
      %v6607 = vpop.permute.xlu0 %6606
      %6608 = vrot.lane.b32.xlu0 %v6429, 112
      %v6609 = vpop.permute.xlu0 %6608
      %6610 = vrot.lane.b32.xlu0 %v6432, 112
      %v6611 = vpop.permute.xlu0 %6610
      %6612 = vrot.lane.b32.xlu0 %v6435, 112
      %v6613 = vpop.permute.xlu0 %6612
      %6614 = vrot.lane.b32.xlu0 %v6438, 112
      %v6615 = vpop.permute.xlu0 %6614
      %6616 = vrot.lane.b32.xlu0 %v6441, 112
      %v6617 = vpop.permute.xlu0 %6616
      %6618 = vrot.lane.b32.xlu0 %v6533, 112
      %v6619 = vpop.permute.xlu0 %6618
      %v6627 = vsel %vm1983, %v6391, %v6443
      %v6628 = vsel %vm1983, %v6392, %v6445
      %v6629 = vsel %vm1983, %v6393, %v6447
      %v6630 = vsel %vm1983, %v6394, %v6449
      %v6631 = vsel %vm1983, %v6395, %v6451
      %v6632 = vsel %vm1983, %v6396, %v6453
      %v6633 = vsel %vm1983, %v6397, %v6455
      %v6634 = vsel %vm2115, %v6627, %v6485
      %v6635 = vsel %vm2115, %v6628, %v6487
      %v6636 = vsel %vm2115, %v6629, %v6489
      %v6637 = vsel %vm2115, %v6630, %v6491
      %v6638 = vsel %vm2115, %v6631, %v6493
      %v6639 = vsel %vm2115, %v6632, %v6495
      %v6640 = vsel %vm2115, %v6633, %v6497
      %v6641 = vsel %vm3683, %v4949, %v6507
      %v6642 = vsel %vm3683, %v6634, %v6509
      %v6643 = vsel %vm3683, %v6635, %v6511
      %v6644 = vsel %vm3683, %v6636, %v6513
      %v6645 = vsel %vm3683, %v6637, %v6515
      %v6646 = vsel %vm3683, %v6638, %v6517
      %v6647 = vsel %vm3683, %v6639, %v6519
      %v6648 = vsel %vm3683, %v6640, %v6521
      %v6649 = vsel %vm3749, %v6641, %v6535
      %v6650 = vsel %vm3749, %v6642, %v6537
      %v6651 = vsel %vm3749, %v6643, %v6539
      %v6652 = vsel %vm3749, %v6644, %v6541
      %v6653 = vsel %vm3749, %v6645, %v6543
      %v6654 = vsel %vm3749, %v6646, %v6545
      %v6655 = vsel %vm3749, %v6647, %v6547
      %v6656 = vsel %vm3749, %v6648, %v6549
      %v6657 = vsel %vm4973, %v6649, %v6562
      %v6658 = vsel %vm4973, %v6650, %v6564
      %v6659 = vsel %vm4973, %v6651, %v6566
      %v6660 = vsel %vm4973, %v6652, %v6568
      %v6661 = vsel %vm4973, %v6653, %v6570
      %v6662 = vsel %vm4973, %v6654, %v6572
      %v6663 = vsel %vm4973, %v6655, %v6574
      %v6664 = vsel %vm4973, %v6656, %v6576
      %v6665 = vsel %vm4982, %v6657, %v6586
      %v6666 = vsel %vm4982, %v6658, %v6588
      %v6667 = vsel %vm4982, %v6659, %v6590
      %v6668 = vsel %vm4982, %v6660, %v6592
      %v6669 = vsel %vm4982, %v6661, %v6594
      %v6670 = vsel %vm4982, %v6662, %v6596
      %v6671 = vsel %vm4982, %v6663, %v6598
      %v6672 = vsel %vm4982, %v6664, %v4908
      %v6673 = vsel %vm4991, %v6665, %v6607
      %v6674 = vsel %vm4991, %v6666, %v6609
      %v6675 = vsel %vm4991, %v6667, %v6611
      %v6676 = vsel %vm4991, %v6668, %v6613
      %v6677 = vsel %vm4991, %v6669, %v6615
      %v6678 = vsel %vm4991, %v6670, %v6617
      %v6679 = vsel %vm4991, %v6671, %v6619
      %v6680 = vsel %vm4991, %v6672, %v4932
      %v6681 = vld [vmem:[%s15] sm:$0xff]
      %v6682 = vld [vmem:[%s15 + $0x8] sm:$0xff]
      %v6683 = vld [vmem:[%s15 + $0x10] sm:$0xff]
      %v6684 = vld [vmem:[%s15 + $0x18] sm:$0xff]
      %v6685 = vld [vmem:[%s15 + $0x20] sm:$0xff]
      %v6686 = vld [vmem:[%s15 + $0x28] sm:$0xff]
      %v6687 = vld [vmem:[%s15 + $0x30] sm:$0xff]
      %v6688 = vld [vmem:[%s15 + $0x38] sm:$0xff]
      %v6689 = vld [vmem:[%s15 + $0x40] sm:$0xff]
      %v6690 = vld [vmem:[%s15 + $0x48] sm:$0xff]
      %v6691 = vld [vmem:[%s15 + $0x50] sm:$0xff]
      %v6692 = vld [vmem:[%s15 + $0x58] sm:$0xff]
      %v6693 = vld [vmem:[%s15 + $0x60] sm:$0xff]
      %v6694 = vld [vmem:[%s15 + $0x68] sm:$0xff]
      %v6695 = vld [vmem:[%s15 + $0x70] sm:$0xff]
      %v6696 = vld [vmem:[%s15 + $0x78] sm:$0xff]
      %v6697 = vld [vmem:[%s15 + $0x80] sm:$0xff]
      %v6698 = vld [vmem:[%s15 + $0x88] sm:$0xff]
      %v6699 = vld [vmem:[%s16] sm:$0x1]
      %v6701 = vperm.slane %v6699, 0
      %v6703 = vsel %vm1983, %v6468, 0
      %v6705 = vsel %vm1983, %v6471, 0
      %v6707 = vsel %vm1983, %v6474, 0
      %v6709 = vsel %vm1983, %v6477, 0
      %v6711 = vsel %vm1983, %v6480, 0
      %v6713 = vsel %vm1983, %v6483, 0
      %v6715 = vsel %vm1983, %v6560, 0
      %6717 = vmatpush.msra.mxu0 %v6696
      %6718 = vmatpush.msra.mxu0 %v6695
      %6719 = vmatpush.msra.mxu0 %v6694
      %6720 = vmatpush.msra.mxu0 %v6693
      %6721 = vmatpush.msra.mxu0 %v6692
      %6722 = vmatpush.msra.mxu0 %v6691
      %6723 = vmatpush.msra.mxu0 %v6690
      %6724 = vmatpush.msra.mxu0 %v6689
      %6725 = vmatpush.msra.mxu0 %v6688
      %6726 = vmatpush.msra.mxu0 %v6687
      %6727 = vmatpush.msra.mxu0 %v6686
      %6728 = vmatpush.msra.mxu0 %v6685
      %6729 = vmatpush.msra.mxu0 %v6684
      %6730 = vmatpush.msra.mxu0 %v6683
      %6731 = vmatpush.msra.mxu0 %v6682
      %6732 = vmatpush.msra.mxu0 %v6681
      %6733 = vmatmul.f32.gmra.mxu0 %v6673
      %v6734 = vpop.f32.mrf.mxu0
      %v6735 = vadd.f32 %v6701, %v6734
      %6736 = vmatmul.f32.gmra.mxu0 %v6674
      %v6737 = vpop.f32.mrf.mxu0
      %v6738 = vadd.f32 %v6701, %v6737
      %6739 = vmatmul.f32.gmra.mxu0 %v6675
      %v6740 = vpop.f32.mrf.mxu0
      %v6741 = vadd.f32 %v6701, %v6740
      %6742 = vmatmul.f32.gmra.mxu0 %v6676
      %v6743 = vpop.f32.mrf.mxu0
      %v6744 = vadd.f32 %v6701, %v6743
      %6745 = vmatmul.f32.gmra.mxu0 %v6677
      %v6746 = vpop.f32.mrf.mxu0
      %v6747 = vadd.f32 %v6701, %v6746
      %6748 = vmatmul.f32.gmra.mxu0 %v6678
      %v6749 = vpop.f32.mrf.mxu0
      %v6750 = vadd.f32 %v6701, %v6749
      %6751 = vmatmul.f32.gmra.mxu0 %v6679
      %v6752 = vpop.f32.mrf.mxu0
      %v6753 = vadd.f32 %v6701, %v6752
      %6754 = vmatmul.f32.gmra.mxu0 %v6680
      %v6755 = vpop.f32.mrf.mxu0
      %v6756 = vadd.f32 %v6701, %v6755
      %6757 = vdwg.mxu0
      %6758 = vmatpush.msra.mxu0 0.0
      %6759 = vmatpush.msra.mxu0 0.0
      %6760 = vmatpush.msra.mxu0 0.0
      %6761 = vmatpush.msra.mxu0 0.0
      %6762 = vmatpush.msra.mxu0 0.0
      %6763 = vmatpush.msra.mxu0 0.0
      %6764 = vmatpush.msra.mxu0 0.0
      %6765 = vmatpush.msra.mxu0 0.0
      %6766 = vmatpush.msra.mxu0 0.0
      %6767 = vmatpush.msra.mxu0 0.0
      %6768 = vmatpush.msra.mxu0 0.0
      %6769 = vmatpush.msra.mxu0 0.0
      %6770 = vmatpush.msra.mxu0 0.0
      %6771 = vmatpush.msra.mxu0 0.0
      %6772 = vmatpush.msra.mxu0 %v6698
      %6773 = vmatpush.msra.mxu0 %v6697
      %6774 = vmatmul.f32.gmra.mxu0 %v6703
      %v6775 = vpop.f32.mrf.mxu0
      %v6776 = vadd.f32 %v6735, %v6775
      %6777 = vmatmul.f32.gmra.mxu0 %v6705
      %v6778 = vpop.f32.mrf.mxu0
      %v6779 = vadd.f32 %v6738, %v6778
      %6780 = vmatmul.f32.gmra.mxu0 %v6707
      %v6781 = vpop.f32.mrf.mxu0
      %v6782 = vadd.f32 %v6741, %v6781
      %6783 = vmatmul.f32.gmra.mxu0 %v6709
      %v6784 = vpop.f32.mrf.mxu0
      %v6785 = vadd.f32 %v6744, %v6784
      %6786 = vmatmul.f32.gmra.mxu0 %v6711
      %v6787 = vpop.f32.mrf.mxu0
      %v6788 = vadd.f32 %v6747, %v6787
      %6789 = vmatmul.f32.gmra.mxu0 %v6713
      %v6790 = vpop.f32.mrf.mxu0
      %v6791 = vadd.f32 %v6750, %v6790
      %6792 = vmatmul.f32.gmra.mxu0 %v6715
      %v6793 = vpop.f32.mrf.mxu0
      %v6794 = vadd.f32 %v6753, %v6793
      %6795 = vmatmul.f32.gmra.mxu0 %v5036
      %v6796 = vpop.f32.mrf.mxu0
      %v6797 = vadd.f32 %v6756, %v6796
      %6798 = vdwg.mxu0
      %v6799 = vmax.f32 %v6776, 0.0
      %v6800 = vmax.f32 %v6779, 0.0
      %v6801 = vmax.f32 %v6782, 0.0
      %v6802 = vmax.f32 %v6785, 0.0
      %v6803 = vmax.f32 %v6788, 0.0
      %v6804 = vmax.f32 %v6791, 0.0
      %v6805 = vmax.f32 %v6794, 0.0
      %v6806 = vmax.f32 %v6797, 0.0
      %v6815 = vrot.slane %v6799, 7
      %v6816 = vrot.slane %v6800, 7
      %v6817 = vrot.slane %v6801, 7
      %v6818 = vrot.slane %v6802, 7
      %v6819 = vrot.slane %v6803, 7
      %v6820 = vrot.slane %v6804, 7
      %v6821 = vrot.slane %v6805, 7
      %v6822 = vrot.slane %v6806, 7
      %v6831 = vrot.slane %v6799, 6
      %v6832 = vrot.slane %v6800, 6
      %v6833 = vrot.slane %v6801, 6
      %v6834 = vrot.slane %v6802, 6
      %v6835 = vrot.slane %v6803, 6
      %v6836 = vrot.slane %v6804, 6
      %v6837 = vrot.slane %v6805, 6
      %v6838 = vrot.slane %v6806, 6
      %v6847 = vrot.slane %v6799, 5
      %v6848 = vrot.slane %v6800, 5
      %v6849 = vrot.slane %v6801, 5
      %v6850 = vrot.slane %v6802, 5
      %v6851 = vrot.slane %v6803, 5
      %v6852 = vrot.slane %v6804, 5
      %v6853 = vrot.slane %v6805, 5
      %v6854 = vrot.slane %v6806, 5
      %v6863 = vrot.slane %v6799, 4
      %v6864 = vrot.slane %v6800, 4
      %v6865 = vrot.slane %v6801, 4
      %v6866 = vrot.slane %v6802, 4
      %v6867 = vrot.slane %v6803, 4
      %v6868 = vrot.slane %v6804, 4
      %v6869 = vrot.slane %v6805, 4
      %v6870 = vrot.slane %v6806, 4
      %v6879 = vrot.slane %v6799, 3
      %v6880 = vrot.slane %v6800, 3
      %v6881 = vrot.slane %v6801, 3
      %v6882 = vrot.slane %v6802, 3
      %v6883 = vrot.slane %v6803, 3
      %v6884 = vrot.slane %v6804, 3
      %v6885 = vrot.slane %v6805, 3
      %v6886 = vrot.slane %v6806, 3
      %v6895 = vrot.slane %v6799, 2
      %v6896 = vrot.slane %v6800, 2
      %v6897 = vrot.slane %v6801, 2
      %v6898 = vrot.slane %v6802, 2
      %v6899 = vrot.slane %v6803, 2
      %v6900 = vrot.slane %v6804, 2
      %v6901 = vrot.slane %v6805, 2
      %v6902 = vrot.slane %v6806, 2
      %v6911 = vrot.slane %v6799, 1
      %v6912 = vrot.slane %v6800, 1
      %v6913 = vrot.slane %v6801, 1
      %v6914 = vrot.slane %v6802, 1
      %v6915 = vrot.slane %v6803, 1
      %v6916 = vrot.slane %v6804, 1
      %v6917 = vrot.slane %v6805, 1
      %v6918 = vrot.slane %v6806, 1
      %v6927 = vsel %vm776, %v6799, %v6815
      %v6928 = vsel %vm776, %v6800, %v6816
      %v6929 = vsel %vm776, %v6801, %v6817
      %v6930 = vsel %vm776, %v6802, %v6818
      %v6931 = vsel %vm776, %v6803, %v6819
      %v6932 = vsel %vm776, %v6804, %v6820
      %v6933 = vsel %vm776, %v6805, %v6821
      %v6934 = vsel %vm776, %v6806, %v6822
      %v6935 = vsel %vm4173, %v6927, %v6815
      %v6936 = vsel %vm4173, %v6928, %v6816
      %v6937 = vsel %vm4173, %v6929, %v6817
      %v6938 = vsel %vm4173, %v6930, %v6818
      %v6939 = vsel %vm4173, %v6931, %v6819
      %v6940 = vsel %vm4173, %v6932, %v6820
      %v6941 = vsel %vm4173, %v6933, %v6821
      %v6942 = vsel %vm4173, %v6934, %v6822
      %v6943 = vsel %vm4182, %v6935, %v6831
      %v6944 = vsel %vm4182, %v6936, %v6832
      %v6945 = vsel %vm4182, %v6937, %v6833
      %v6946 = vsel %vm4182, %v6938, %v6834
      %v6947 = vsel %vm4182, %v6939, %v6835
      %v6948 = vsel %vm4182, %v6940, %v6836
      %v6949 = vsel %vm4182, %v6941, %v6837
      %v6950 = vsel %vm4182, %v6942, %v6838
      %v6951 = vsel %vm2254, %v6943, %v6831
      %v6952 = vsel %vm2254, %v6944, %v6832
      %v6953 = vsel %vm2254, %v6945, %v6833
      %v6954 = vsel %vm2254, %v6946, %v6834
      %v6955 = vsel %vm2254, %v6947, %v6835
      %v6956 = vsel %vm2254, %v6948, %v6836
      %v6957 = vsel %vm2254, %v6949, %v6837
      %v6958 = vsel %vm2254, %v6950, %v6838
      %v6959 = vsel %vm4199, %v6951, %v6847
      %v6960 = vsel %vm4199, %v6952, %v6848
      %v6961 = vsel %vm4199, %v6953, %v6849
      %v6962 = vsel %vm4199, %v6954, %v6850
      %v6963 = vsel %vm4199, %v6955, %v6851
      %v6964 = vsel %vm4199, %v6956, %v6852
      %v6965 = vsel %vm4199, %v6957, %v6853
      %v6966 = vsel %vm4199, %v6958, %v6854
      %v6967 = vsel %vm1119, %v6959, %v6847
      %v6968 = vsel %vm1119, %v6960, %v6848
      %v6969 = vsel %vm1119, %v6961, %v6849
      %v6970 = vsel %vm1119, %v6962, %v6850
      %v6971 = vsel %vm1119, %v6963, %v6851
      %v6972 = vsel %vm1119, %v6964, %v6852
      %v6973 = vsel %vm1119, %v6965, %v6853
      %v6974 = vsel %vm1119, %v6966, %v6854
      %v6975 = vsel %vm942, %v6967, %v6863
      %v6976 = vsel %vm942, %v6968, %v6864
      %v6977 = vsel %vm942, %v6969, %v6865
      %v6978 = vsel %vm942, %v6970, %v6866
      %v6979 = vsel %vm942, %v6971, %v6867
      %v6980 = vsel %vm942, %v6972, %v6868
      %v6981 = vsel %vm942, %v6973, %v6869
      %v6982 = vsel %vm942, %v6974, %v6870
      %v6983 = vsel %vm776, %v6863, %v6879
      %v6984 = vsel %vm776, %v6864, %v6880
      %v6985 = vsel %vm776, %v6865, %v6881
      %v6986 = vsel %vm776, %v6866, %v6882
      %v6987 = vsel %vm776, %v6867, %v6883
      %v6988 = vsel %vm776, %v6868, %v6884
      %v6989 = vsel %vm776, %v6869, %v6885
      %v6990 = vsel %vm776, %v6870, %v6886
      %v6991 = vsel %vm4173, %v6983, %v6879
      %v6992 = vsel %vm4173, %v6984, %v6880
      %v6993 = vsel %vm4173, %v6985, %v6881
      %v6994 = vsel %vm4173, %v6986, %v6882
      %v6995 = vsel %vm4173, %v6987, %v6883
      %v6996 = vsel %vm4173, %v6988, %v6884
      %v6997 = vsel %vm4173, %v6989, %v6885
      %v6998 = vsel %vm4173, %v6990, %v6886
      %v6999 = vsel %vm4182, %v6991, %v6895
      %v7000 = vsel %vm4182, %v6992, %v6896
      %v7001 = vsel %vm4182, %v6993, %v6897
      %v7002 = vsel %vm4182, %v6994, %v6898
      %v7003 = vsel %vm4182, %v6995, %v6899
      %v7004 = vsel %vm4182, %v6996, %v6900
      %v7005 = vsel %vm4182, %v6997, %v6901
      %v7006 = vsel %vm4182, %v6998, %v6902
      %v7007 = vsel %vm2254, %v6999, %v6895
      %v7008 = vsel %vm2254, %v7000, %v6896
      %v7009 = vsel %vm2254, %v7001, %v6897
      %v7010 = vsel %vm2254, %v7002, %v6898
      %v7011 = vsel %vm2254, %v7003, %v6899
      %v7012 = vsel %vm2254, %v7004, %v6900
      %v7013 = vsel %vm2254, %v7005, %v6901
      %v7014 = vsel %vm2254, %v7006, %v6902
      %v7015 = vsel %vm4199, %v7007, %v6911
      %v7016 = vsel %vm4199, %v7008, %v6912
      %v7017 = vsel %vm4199, %v7009, %v6913
      %v7018 = vsel %vm4199, %v7010, %v6914
      %v7019 = vsel %vm4199, %v7011, %v6915
      %v7020 = vsel %vm4199, %v7012, %v6916
      %v7021 = vsel %vm4199, %v7013, %v6917
      %v7022 = vsel %vm4199, %v7014, %v6918
      %v7023 = vsel %vm1119, %v7015, %v6911
      %v7024 = vsel %vm1119, %v7016, %v6912
      %v7025 = vsel %vm1119, %v7017, %v6913
      %v7026 = vsel %vm1119, %v7018, %v6914
      %v7027 = vsel %vm1119, %v7019, %v6915
      %v7028 = vsel %vm1119, %v7020, %v6916
      %v7029 = vsel %vm1119, %v7021, %v6917
      %v7030 = vsel %vm1119, %v7022, %v6918
      %v7031 = vsel %vm942, %v7023, %v6799
      %v7032 = vsel %vm942, %v7024, %v6800
      %v7033 = vsel %vm942, %v7025, %v6801
      %v7034 = vsel %vm942, %v7026, %v6802
      %v7035 = vsel %vm942, %v7027, %v6803
      %v7036 = vsel %vm942, %v7028, %v6804
      %v7037 = vsel %vm942, %v7029, %v6805
      %v7038 = vsel %vm942, %v7030, %v6806
      %7055 = vrot.lane.b32.xlu0 %v6975, 8
      %v7056 = vpop.permute.xlu0 %7055
      %7057 = vrot.lane.b32.xlu0 %v7031, 8
      %v7058 = vpop.permute.xlu0 %7057
      %7059 = vrot.lane.b32.xlu0 %v6976, 8
      %v7060 = vpop.permute.xlu0 %7059
      %7061 = vrot.lane.b32.xlu0 %v7032, 8
      %v7062 = vpop.permute.xlu0 %7061
      %7063 = vrot.lane.b32.xlu0 %v6977, 8
      %v7064 = vpop.permute.xlu0 %7063
      %7065 = vrot.lane.b32.xlu0 %v7033, 8
      %v7066 = vpop.permute.xlu0 %7065
      %7067 = vrot.lane.b32.xlu0 %v6978, 8
      %v7068 = vpop.permute.xlu0 %7067
      %7069 = vrot.lane.b32.xlu0 %v7034, 8
      %v7070 = vpop.permute.xlu0 %7069
      %7071 = vrot.lane.b32.xlu0 %v6979, 8
      %v7072 = vpop.permute.xlu0 %7071
      %7073 = vrot.lane.b32.xlu0 %v7035, 8
      %v7074 = vpop.permute.xlu0 %7073
      %7075 = vrot.lane.b32.xlu0 %v6980, 8
      %v7076 = vpop.permute.xlu0 %7075
      %7077 = vrot.lane.b32.xlu0 %v7036, 8
      %v7078 = vpop.permute.xlu0 %7077
      %7079 = vrot.lane.b32.xlu0 %v6981, 8
      %v7080 = vpop.permute.xlu0 %7079
      %7081 = vrot.lane.b32.xlu0 %v7037, 8
      %v7082 = vpop.permute.xlu0 %7081
      %7083 = vrot.lane.b32.xlu0 %v6982, 8
      %v7084 = vpop.permute.xlu0 %7083
      %7085 = vrot.lane.b32.xlu0 %v7038, 8
      %v7086 = vpop.permute.xlu0 %7085
      %v7103 = vsel %vm1917, %v4005, %v7056
      %v7104 = vsel %vm1917, %v4006, %v7058
      %v7105 = vsel %vm1917, %v4007, %v7056
      %v7106 = vsel %vm1917, %v4008, %v7058
      %v7107 = vsel %vm1917, %v4009, %v7060
      %v7108 = vsel %vm1917, %v4010, %v7062
      %v7109 = vsel %vm1917, %v4011, %v7060
      %v7110 = vsel %vm1917, %v4012, %v7062
      %v7111 = vsel %vm1917, %v4013, %v7064
      %v7112 = vsel %vm1917, %v4014, %v7066
      %v7113 = vsel %vm1917, %v4015, %v7064
      %v7114 = vsel %vm1917, %v4016, %v7066
      %v7115 = vsel %vm1917, %v4017, %v7068
      %v7116 = vsel %vm1917, %v4018, %v7070
      %v7117 = vsel %vm1917, %v4019, %v7068
      %v7118 = vsel %vm1917, %v4020, %v7070
      %v7119 = vsel %vm1917, %v4021, %v7072
      %v7120 = vsel %vm1917, %v4022, %v7074
      %v7121 = vsel %vm1917, %v4023, %v7072
      %v7122 = vsel %vm1917, %v4024, %v7074
      %v7123 = vsel %vm1917, %v4025, %v7076
      %v7124 = vsel %vm1917, %v4026, %v7078
      %v7125 = vsel %vm1917, %v4027, %v7076
      %v7126 = vsel %vm1917, %v4028, %v7078
      %v7127 = vsel %vm1917, %v4029, %v7080
      %v7128 = vsel %vm1917, %v4030, %v7082
      %v7129 = vsel %vm1917, %v4031, %v7080
      %v7130 = vsel %vm1917, %v4032, %v7082
      %v7131 = vsel %vm1917, %v4033, %v7084
      %v7132 = vsel %vm1917, %v4034, %v7086
      %v7133 = vsel %vm1917, %v4035, %v7084
      %v7134 = vsel %vm1917, %v4036, %v7086
      %v7167 = vrot.slane %v7103, 7
      %v7168 = vrot.slane %v7104, 7
      %v7169 = vsel %vm776, %v7167, %v7168
      %v7170 = vrot.slane %v7105, 7
      %v7171 = vrot.slane %v7106, 7
      %v7172 = vsel %vm776, %v7170, %v7171
      %v7173 = vrot.slane %v7107, 7
      %v7174 = vrot.slane %v7108, 7
      %v7175 = vsel %vm776, %v7173, %v7174
      %v7176 = vrot.slane %v7109, 7
      %v7177 = vrot.slane %v7110, 7
      %v7178 = vsel %vm776, %v7176, %v7177
      %v7179 = vrot.slane %v7111, 7
      %v7180 = vrot.slane %v7112, 7
      %v7181 = vsel %vm776, %v7179, %v7180
      %v7182 = vrot.slane %v7113, 7
      %v7183 = vrot.slane %v7114, 7
      %v7184 = vsel %vm776, %v7182, %v7183
      %v7185 = vrot.slane %v7115, 7
      %v7186 = vrot.slane %v7116, 7
      %v7187 = vsel %vm776, %v7185, %v7186
      %v7188 = vrot.slane %v7117, 7
      %v7189 = vrot.slane %v7118, 7
      %v7190 = vsel %vm776, %v7188, %v7189
      %v7191 = vrot.slane %v7119, 7
      %v7192 = vrot.slane %v7120, 7
      %v7193 = vsel %vm776, %v7191, %v7192
      %v7194 = vrot.slane %v7121, 7
      %v7195 = vrot.slane %v7122, 7
      %v7196 = vsel %vm776, %v7194, %v7195
      %v7197 = vrot.slane %v7123, 7
      %v7198 = vrot.slane %v7124, 7
      %v7199 = vsel %vm776, %v7197, %v7198
      %v7200 = vrot.slane %v7125, 7
      %v7201 = vrot.slane %v7126, 7
      %v7202 = vsel %vm776, %v7200, %v7201
      %v7203 = vrot.slane %v7127, 7
      %v7204 = vrot.slane %v7128, 7
      %v7205 = vsel %vm776, %v7203, %v7204
      %v7206 = vrot.slane %v7129, 7
      %v7207 = vrot.slane %v7130, 7
      %v7208 = vsel %vm776, %v7206, %v7207
      %v7209 = vrot.slane %v7131, 7
      %v7210 = vrot.slane %v7132, 7
      %v7211 = vsel %vm776, %v7209, %v7210
      %v7212 = vrot.slane %v7133, 7
      %v7213 = vrot.slane %v7134, 7
      %v7214 = vsel %vm776, %v7212, %v7213
      %v7262 = vsel %vm776, 0.0, %v7167
      %v7263 = vsel %vm776, 0.0, %v7170
      %v7264 = vsel %vm776, 0.0, %v7173
      %v7265 = vsel %vm776, 0.0, %v7176
      %v7266 = vsel %vm776, 0.0, %v7179
      %v7267 = vsel %vm776, 0.0, %v7182
      %v7268 = vsel %vm776, 0.0, %v7185
      %v7269 = vsel %vm776, 0.0, %v7188
      %v7270 = vsel %vm776, 0.0, %v7191
      %v7271 = vsel %vm776, 0.0, %v7194
      %v7272 = vsel %vm776, 0.0, %v7197
      %v7273 = vsel %vm776, 0.0, %v7200
      %v7274 = vsel %vm776, 0.0, %v7203
      %v7275 = vsel %vm776, 0.0, %v7206
      %v7276 = vsel %vm776, 0.0, %v7209
      %v7277 = vsel %vm776, 0.0, %v7212
      %v7278 = vsel %vm776, %v7168, 0.0
      %v7279 = vsel %vm776, %v7171, 0.0
      %v7280 = vsel %vm776, %v7174, 0.0
      %v7281 = vsel %vm776, %v7177, 0.0
      %v7282 = vsel %vm776, %v7180, 0.0
      %v7283 = vsel %vm776, %v7183, 0.0
      %v7284 = vsel %vm776, %v7186, 0.0
      %v7285 = vsel %vm776, %v7189, 0.0
      %v7286 = vsel %vm776, %v7192, 0.0
      %v7287 = vsel %vm776, %v7195, 0.0
      %v7288 = vsel %vm776, %v7198, 0.0
      %v7289 = vsel %vm776, %v7201, 0.0
      %v7290 = vsel %vm776, %v7204, 0.0
      %v7291 = vsel %vm776, %v7207, 0.0
      %v7292 = vsel %vm776, %v7210, 0.0
      %v7293 = vsel %vm776, %v7213, 0.0
      %v7324 = vrot.slane %v7262, 1
      %v7325 = vrot.slane %v7169, 1
      %v7326 = vsel %vm942, %v7324, %v7325
      %v7327 = vrot.slane %v7278, 1
      %v7328 = vsel %vm942, %v7325, %v7327
      %v7329 = vrot.slane %v7263, 1
      %v7330 = vrot.slane %v7172, 1
      %v7331 = vsel %vm942, %v7329, %v7330
      %v7332 = vrot.slane %v7279, 1
      %v7333 = vsel %vm942, %v7330, %v7332
      %v7334 = vrot.slane %v7264, 1
      %v7335 = vrot.slane %v7175, 1
      %v7336 = vsel %vm942, %v7334, %v7335
      %v7337 = vrot.slane %v7280, 1
      %v7338 = vsel %vm942, %v7335, %v7337
      %v7339 = vrot.slane %v7265, 1
      %v7340 = vrot.slane %v7178, 1
      %v7341 = vsel %vm942, %v7339, %v7340
      %v7342 = vrot.slane %v7281, 1
      %v7343 = vsel %vm942, %v7340, %v7342
      %v7344 = vrot.slane %v7266, 1
      %v7345 = vrot.slane %v7181, 1
      %v7346 = vsel %vm942, %v7344, %v7345
      %v7347 = vrot.slane %v7282, 1
      %v7348 = vsel %vm942, %v7345, %v7347
      %v7349 = vrot.slane %v7267, 1
      %v7350 = vrot.slane %v7184, 1
      %v7351 = vsel %vm942, %v7349, %v7350
      %v7352 = vrot.slane %v7283, 1
      %v7353 = vsel %vm942, %v7350, %v7352
      %v7354 = vrot.slane %v7268, 1
      %v7355 = vrot.slane %v7187, 1
      %v7356 = vsel %vm942, %v7354, %v7355
      %v7357 = vrot.slane %v7284, 1
      %v7358 = vsel %vm942, %v7355, %v7357
      %v7359 = vrot.slane %v7269, 1
      %v7360 = vrot.slane %v7190, 1
      %v7361 = vsel %vm942, %v7359, %v7360
      %v7362 = vrot.slane %v7285, 1
      %v7363 = vsel %vm942, %v7360, %v7362
      %v7364 = vrot.slane %v7270, 1
      %v7365 = vrot.slane %v7193, 1
      %v7366 = vsel %vm942, %v7364, %v7365
      %v7367 = vrot.slane %v7286, 1
      %v7368 = vsel %vm942, %v7365, %v7367
      %v7369 = vrot.slane %v7271, 1
      %v7370 = vrot.slane %v7196, 1
      %v7371 = vsel %vm942, %v7369, %v7370
      %v7372 = vrot.slane %v7287, 1
      %v7373 = vsel %vm942, %v7370, %v7372
      %v7374 = vrot.slane %v7272, 1
      %v7375 = vrot.slane %v7199, 1
      %v7376 = vsel %vm942, %v7374, %v7375
      %v7377 = vrot.slane %v7288, 1
      %v7378 = vsel %vm942, %v7375, %v7377
      %v7379 = vrot.slane %v7273, 1
      %v7380 = vrot.slane %v7202, 1
      %v7381 = vsel %vm942, %v7379, %v7380
      %v7382 = vrot.slane %v7289, 1
      %v7383 = vsel %vm942, %v7380, %v7382
      %v7384 = vrot.slane %v7274, 1
      %v7385 = vrot.slane %v7205, 1
      %v7386 = vsel %vm942, %v7384, %v7385
      %v7387 = vrot.slane %v7290, 1
      %v7388 = vsel %vm942, %v7385, %v7387
      %v7389 = vrot.slane %v7275, 1
      %v7390 = vrot.slane %v7208, 1
      %v7391 = vsel %vm942, %v7389, %v7390
      %v7392 = vrot.slane %v7291, 1
      %v7393 = vsel %vm942, %v7390, %v7392
      %v7394 = vrot.slane %v7276, 1
      %v7395 = vrot.slane %v7211, 1
      %v7396 = vsel %vm942, %v7394, %v7395
      %v7397 = vrot.slane %v7292, 1
      %v7398 = vsel %vm942, %v7395, %v7397
      %7399 = vrot.lane.b32.xlu0 %v945, 24
      %v7400 = vpop.permute.xlu0 %7399
      %7401 = vrot.lane.b32.xlu0 %v947, 24
      %v7402 = vpop.permute.xlu0 %7401
      %7403 = vrot.lane.b32.xlu0 %v7326, 24
      %v7404 = vpop.permute.xlu0 %7403
      %7405 = vrot.lane.b32.xlu0 %v7328, 24
      %v7406 = vpop.permute.xlu0 %7405
      %7407 = vrot.lane.b32.xlu0 %v7331, 24
      %v7408 = vpop.permute.xlu0 %7407
      %7409 = vrot.lane.b32.xlu0 %v7333, 24
      %v7410 = vpop.permute.xlu0 %7409
      %7411 = vrot.lane.b32.xlu0 %v7336, 24
      %v7412 = vpop.permute.xlu0 %7411
      %7413 = vrot.lane.b32.xlu0 %v7338, 24
      %v7414 = vpop.permute.xlu0 %7413
      %7415 = vrot.lane.b32.xlu0 %v7341, 24
      %v7416 = vpop.permute.xlu0 %7415
      %7417 = vrot.lane.b32.xlu0 %v7343, 24
      %v7418 = vpop.permute.xlu0 %7417
      %7419 = vrot.lane.b32.xlu0 %v7346, 24
      %v7420 = vpop.permute.xlu0 %7419
      %7421 = vrot.lane.b32.xlu0 %v7348, 24
      %v7422 = vpop.permute.xlu0 %7421
      %7423 = vrot.lane.b32.xlu0 %v7351, 24
      %v7424 = vpop.permute.xlu0 %7423
      %7425 = vrot.lane.b32.xlu0 %v7353, 24
      %v7426 = vpop.permute.xlu0 %7425
      %7427 = vrot.lane.b32.xlu0 %v7356, 24
      %v7428 = vpop.permute.xlu0 %7427
      %7429 = vrot.lane.b32.xlu0 %v7358, 24
      %v7430 = vpop.permute.xlu0 %7429
      %7431 = vrot.lane.b32.xlu0 %v7361, 24
      %v7432 = vpop.permute.xlu0 %7431
      %7433 = vrot.lane.b32.xlu0 %v7363, 24
      %v7434 = vpop.permute.xlu0 %7433
      %7435 = vrot.lane.b32.xlu0 %v7366, 24
      %v7436 = vpop.permute.xlu0 %7435
      %7437 = vrot.lane.b32.xlu0 %v7368, 24
      %v7438 = vpop.permute.xlu0 %7437
      %7439 = vrot.lane.b32.xlu0 %v7371, 24
      %v7440 = vpop.permute.xlu0 %7439
      %7441 = vrot.lane.b32.xlu0 %v7373, 24
      %v7442 = vpop.permute.xlu0 %7441
      %7443 = vrot.lane.b32.xlu0 %v7376, 24
      %v7444 = vpop.permute.xlu0 %7443
      %7445 = vrot.lane.b32.xlu0 %v7378, 24
      %v7446 = vpop.permute.xlu0 %7445
      %7447 = vrot.lane.b32.xlu0 %v7381, 24
      %v7448 = vpop.permute.xlu0 %7447
      %7449 = vrot.lane.b32.xlu0 %v7383, 24
      %v7450 = vpop.permute.xlu0 %7449
      %7451 = vrot.lane.b32.xlu0 %v7386, 24
      %v7452 = vpop.permute.xlu0 %7451
      %7453 = vrot.lane.b32.xlu0 %v7388, 24
      %v7454 = vpop.permute.xlu0 %7453
      %7455 = vrot.lane.b32.xlu0 %v7391, 24
      %v7456 = vpop.permute.xlu0 %7455
      %7457 = vrot.lane.b32.xlu0 %v7393, 24
      %v7458 = vpop.permute.xlu0 %7457
      %7459 = vrot.lane.b32.xlu0 %v7396, 24
      %v7460 = vpop.permute.xlu0 %7459
      %7461 = vrot.lane.b32.xlu0 %v7398, 24
      %v7462 = vpop.permute.xlu0 %7461
      %v7495 = vrot.slane %v7262, 2
      %v7496 = vrot.slane %v7169, 2
      %v7497 = vsel %vm1119, %v7495, %v7496
      %v7498 = vrot.slane %v7278, 2
      %v7499 = vsel %vm1119, %v7496, %v7498
      %v7500 = vrot.slane %v7263, 2
      %v7501 = vrot.slane %v7172, 2
      %v7502 = vsel %vm1119, %v7500, %v7501
      %v7503 = vrot.slane %v7279, 2
      %v7504 = vsel %vm1119, %v7501, %v7503
      %v7505 = vrot.slane %v7264, 2
      %v7506 = vrot.slane %v7175, 2
      %v7507 = vsel %vm1119, %v7505, %v7506
      %v7508 = vrot.slane %v7280, 2
      %v7509 = vsel %vm1119, %v7506, %v7508
      %v7510 = vrot.slane %v7265, 2
      %v7511 = vrot.slane %v7178, 2
      %v7512 = vsel %vm1119, %v7510, %v7511
      %v7513 = vrot.slane %v7281, 2
      %v7514 = vsel %vm1119, %v7511, %v7513
      %v7515 = vrot.slane %v7266, 2
      %v7516 = vrot.slane %v7181, 2
      %v7517 = vsel %vm1119, %v7515, %v7516
      %v7518 = vrot.slane %v7282, 2
      %v7519 = vsel %vm1119, %v7516, %v7518
      %v7520 = vrot.slane %v7267, 2
      %v7521 = vrot.slane %v7184, 2
      %v7522 = vsel %vm1119, %v7520, %v7521
      %v7523 = vrot.slane %v7283, 2
      %v7524 = vsel %vm1119, %v7521, %v7523
      %v7525 = vrot.slane %v7268, 2
      %v7526 = vrot.slane %v7187, 2
      %v7527 = vsel %vm1119, %v7525, %v7526
      %v7528 = vrot.slane %v7284, 2
      %v7529 = vsel %vm1119, %v7526, %v7528
      %v7530 = vrot.slane %v7269, 2
      %v7531 = vrot.slane %v7190, 2
      %v7532 = vsel %vm1119, %v7530, %v7531
      %v7533 = vrot.slane %v7285, 2
      %v7534 = vsel %vm1119, %v7531, %v7533
      %v7535 = vrot.slane %v7270, 2
      %v7536 = vrot.slane %v7193, 2
      %v7537 = vsel %vm1119, %v7535, %v7536
      %v7538 = vrot.slane %v7286, 2
      %v7539 = vsel %vm1119, %v7536, %v7538
      %v7540 = vrot.slane %v7271, 2
      %v7541 = vrot.slane %v7196, 2
      %v7542 = vsel %vm1119, %v7540, %v7541
      %v7543 = vrot.slane %v7287, 2
      %v7544 = vsel %vm1119, %v7541, %v7543
      %v7545 = vrot.slane %v7272, 2
      %v7546 = vrot.slane %v7199, 2
      %v7547 = vsel %vm1119, %v7545, %v7546
      %v7548 = vrot.slane %v7288, 2
      %v7549 = vsel %vm1119, %v7546, %v7548
      %v7550 = vrot.slane %v7273, 2
      %v7551 = vrot.slane %v7202, 2
      %v7552 = vsel %vm1119, %v7550, %v7551
      %v7553 = vrot.slane %v7289, 2
      %v7554 = vsel %vm1119, %v7551, %v7553
      %v7555 = vrot.slane %v7274, 2
      %v7556 = vrot.slane %v7205, 2
      %v7557 = vsel %vm1119, %v7555, %v7556
      %v7558 = vrot.slane %v7290, 2
      %v7559 = vsel %vm1119, %v7556, %v7558
      %v7560 = vrot.slane %v7275, 2
      %v7561 = vrot.slane %v7208, 2
      %v7562 = vsel %vm1119, %v7560, %v7561
      %v7563 = vrot.slane %v7291, 2
      %v7564 = vsel %vm1119, %v7561, %v7563
      %v7565 = vrot.slane %v7276, 2
      %v7566 = vrot.slane %v7211, 2
      %v7567 = vsel %vm1119, %v7565, %v7566
      %v7568 = vrot.slane %v7292, 2
      %v7569 = vsel %vm1119, %v7566, %v7568
      %7570 = vrot.lane.b32.xlu0 %v1122, 48
      %v7571 = vpop.permute.xlu0 %7570
      %7572 = vrot.lane.b32.xlu0 %v1124, 48
      %v7573 = vpop.permute.xlu0 %7572
      %7574 = vrot.lane.b32.xlu0 %v7497, 48
      %v7575 = vpop.permute.xlu0 %7574
      %7576 = vrot.lane.b32.xlu0 %v7499, 48
      %v7577 = vpop.permute.xlu0 %7576
      %7578 = vrot.lane.b32.xlu0 %v7502, 48
      %v7579 = vpop.permute.xlu0 %7578
      %7580 = vrot.lane.b32.xlu0 %v7504, 48
      %v7581 = vpop.permute.xlu0 %7580
      %7582 = vrot.lane.b32.xlu0 %v7507, 48
      %v7583 = vpop.permute.xlu0 %7582
      %7584 = vrot.lane.b32.xlu0 %v7509, 48
      %v7585 = vpop.permute.xlu0 %7584
      %7586 = vrot.lane.b32.xlu0 %v7512, 48
      %v7587 = vpop.permute.xlu0 %7586
      %7588 = vrot.lane.b32.xlu0 %v7514, 48
      %v7589 = vpop.permute.xlu0 %7588
      %7590 = vrot.lane.b32.xlu0 %v7517, 48
      %v7591 = vpop.permute.xlu0 %7590
      %7592 = vrot.lane.b32.xlu0 %v7519, 48
      %v7593 = vpop.permute.xlu0 %7592
      %7594 = vrot.lane.b32.xlu0 %v7522, 48
      %v7595 = vpop.permute.xlu0 %7594
      %7596 = vrot.lane.b32.xlu0 %v7524, 48
      %v7597 = vpop.permute.xlu0 %7596
      %7598 = vrot.lane.b32.xlu0 %v7527, 48
      %v7599 = vpop.permute.xlu0 %7598
      %7600 = vrot.lane.b32.xlu0 %v7529, 48
      %v7601 = vpop.permute.xlu0 %7600
      %7602 = vrot.lane.b32.xlu0 %v7532, 48
      %v7603 = vpop.permute.xlu0 %7602
      %7604 = vrot.lane.b32.xlu0 %v7534, 48
      %v7605 = vpop.permute.xlu0 %7604
      %7606 = vrot.lane.b32.xlu0 %v7537, 48
      %v7607 = vpop.permute.xlu0 %7606
      %7608 = vrot.lane.b32.xlu0 %v7539, 48
      %v7609 = vpop.permute.xlu0 %7608
      %7610 = vrot.lane.b32.xlu0 %v7542, 48
      %v7611 = vpop.permute.xlu0 %7610
      %7612 = vrot.lane.b32.xlu0 %v7544, 48
      %v7613 = vpop.permute.xlu0 %7612
      %7614 = vrot.lane.b32.xlu0 %v7547, 48
      %v7615 = vpop.permute.xlu0 %7614
      %7616 = vrot.lane.b32.xlu0 %v7549, 48
      %v7617 = vpop.permute.xlu0 %7616
      %7618 = vrot.lane.b32.xlu0 %v7552, 48
      %v7619 = vpop.permute.xlu0 %7618
      %7620 = vrot.lane.b32.xlu0 %v7554, 48
      %v7621 = vpop.permute.xlu0 %7620
      %7622 = vrot.lane.b32.xlu0 %v7557, 48
      %v7623 = vpop.permute.xlu0 %7622
      %7624 = vrot.lane.b32.xlu0 %v7559, 48
      %v7625 = vpop.permute.xlu0 %7624
      %7626 = vrot.lane.b32.xlu0 %v7562, 48
      %v7627 = vpop.permute.xlu0 %7626
      %7628 = vrot.lane.b32.xlu0 %v7564, 48
      %v7629 = vpop.permute.xlu0 %7628
      %7630 = vrot.lane.b32.xlu0 %v7567, 48
      %v7631 = vpop.permute.xlu0 %7630
      %7632 = vrot.lane.b32.xlu0 %v7569, 48
      %v7633 = vpop.permute.xlu0 %7632
      %7667 = vrot.lane.b32.xlu0 %v7262, 72
      %v7668 = vpop.permute.xlu0 %7667
      %7669 = vrot.lane.b32.xlu0 %v7169, 72
      %v7670 = vpop.permute.xlu0 %7669
      %7671 = vrot.lane.b32.xlu0 %v7263, 72
      %v7672 = vpop.permute.xlu0 %7671
      %7673 = vrot.lane.b32.xlu0 %v7172, 72
      %v7674 = vpop.permute.xlu0 %7673
      %7675 = vrot.lane.b32.xlu0 %v7264, 72
      %v7676 = vpop.permute.xlu0 %7675
      %7677 = vrot.lane.b32.xlu0 %v7175, 72
      %v7678 = vpop.permute.xlu0 %7677
      %7679 = vrot.lane.b32.xlu0 %v7265, 72
      %v7680 = vpop.permute.xlu0 %7679
      %7681 = vrot.lane.b32.xlu0 %v7178, 72
      %v7682 = vpop.permute.xlu0 %7681
      %7683 = vrot.lane.b32.xlu0 %v7266, 72
      %v7684 = vpop.permute.xlu0 %7683
      %7685 = vrot.lane.b32.xlu0 %v7181, 72
      %v7686 = vpop.permute.xlu0 %7685
      %7687 = vrot.lane.b32.xlu0 %v7267, 72
      %v7688 = vpop.permute.xlu0 %7687
      %7689 = vrot.lane.b32.xlu0 %v7184, 72
      %v7690 = vpop.permute.xlu0 %7689
      %7691 = vrot.lane.b32.xlu0 %v7268, 72
      %v7692 = vpop.permute.xlu0 %7691
      %7693 = vrot.lane.b32.xlu0 %v7187, 72
      %v7694 = vpop.permute.xlu0 %7693
      %7695 = vrot.lane.b32.xlu0 %v7269, 72
      %v7696 = vpop.permute.xlu0 %7695
      %7697 = vrot.lane.b32.xlu0 %v7190, 72
      %v7698 = vpop.permute.xlu0 %7697
      %7699 = vrot.lane.b32.xlu0 %v7270, 72
      %v7700 = vpop.permute.xlu0 %7699
      %7701 = vrot.lane.b32.xlu0 %v7193, 72
      %v7702 = vpop.permute.xlu0 %7701
      %7703 = vrot.lane.b32.xlu0 %v7271, 72
      %v7704 = vpop.permute.xlu0 %7703
      %7705 = vrot.lane.b32.xlu0 %v7196, 72
      %v7706 = vpop.permute.xlu0 %7705
      %7707 = vrot.lane.b32.xlu0 %v7272, 72
      %v7708 = vpop.permute.xlu0 %7707
      %7709 = vrot.lane.b32.xlu0 %v7199, 72
      %v7710 = vpop.permute.xlu0 %7709
      %7711 = vrot.lane.b32.xlu0 %v7273, 72
      %v7712 = vpop.permute.xlu0 %7711
      %7713 = vrot.lane.b32.xlu0 %v7202, 72
      %v7714 = vpop.permute.xlu0 %7713
      %7715 = vrot.lane.b32.xlu0 %v7274, 72
      %v7716 = vpop.permute.xlu0 %7715
      %7717 = vrot.lane.b32.xlu0 %v7205, 72
      %v7718 = vpop.permute.xlu0 %7717
      %7719 = vrot.lane.b32.xlu0 %v7275, 72
      %v7720 = vpop.permute.xlu0 %7719
      %7721 = vrot.lane.b32.xlu0 %v7208, 72
      %v7722 = vpop.permute.xlu0 %7721
      %7723 = vrot.lane.b32.xlu0 %v7276, 72
      %v7724 = vpop.permute.xlu0 %7723
      %7725 = vrot.lane.b32.xlu0 %v7211, 72
      %v7726 = vpop.permute.xlu0 %7725
      %7727 = vrot.lane.b32.xlu0 %v7277, 72
      %v7728 = vpop.permute.xlu0 %7727
      %7729 = vrot.lane.b32.xlu0 %v7214, 72
      %v7730 = vpop.permute.xlu0 %7729
      %v7764 = vrot.slane %v7277, 1
      %v7765 = vrot.slane %v7214, 1
      %v7766 = vsel %vm942, %v7764, %v7765
      %v7767 = vrot.slane %v7293, 1
      %v7768 = vsel %vm942, %v7765, %v7767
      %7769 = vrot.lane.b32.xlu0 %v7326, 96
      %v7770 = vpop.permute.xlu0 %7769
      %7771 = vrot.lane.b32.xlu0 %v7328, 96
      %v7772 = vpop.permute.xlu0 %7771
      %7773 = vrot.lane.b32.xlu0 %v7331, 96
      %v7774 = vpop.permute.xlu0 %7773
      %7775 = vrot.lane.b32.xlu0 %v7333, 96
      %v7776 = vpop.permute.xlu0 %7775
      %7777 = vrot.lane.b32.xlu0 %v7336, 96
      %v7778 = vpop.permute.xlu0 %7777
      %7779 = vrot.lane.b32.xlu0 %v7338, 96
      %v7780 = vpop.permute.xlu0 %7779
      %7781 = vrot.lane.b32.xlu0 %v7341, 96
      %v7782 = vpop.permute.xlu0 %7781
      %7783 = vrot.lane.b32.xlu0 %v7343, 96
      %v7784 = vpop.permute.xlu0 %7783
      %7785 = vrot.lane.b32.xlu0 %v7346, 96
      %v7786 = vpop.permute.xlu0 %7785
      %7787 = vrot.lane.b32.xlu0 %v7348, 96
      %v7788 = vpop.permute.xlu0 %7787
      %7789 = vrot.lane.b32.xlu0 %v7351, 96
      %v7790 = vpop.permute.xlu0 %7789
      %7791 = vrot.lane.b32.xlu0 %v7353, 96
      %v7792 = vpop.permute.xlu0 %7791
      %7793 = vrot.lane.b32.xlu0 %v7356, 96
      %v7794 = vpop.permute.xlu0 %7793
      %7795 = vrot.lane.b32.xlu0 %v7358, 96
      %v7796 = vpop.permute.xlu0 %7795
      %7797 = vrot.lane.b32.xlu0 %v7361, 96
      %v7798 = vpop.permute.xlu0 %7797
      %7799 = vrot.lane.b32.xlu0 %v7363, 96
      %v7800 = vpop.permute.xlu0 %7799
      %7801 = vrot.lane.b32.xlu0 %v7366, 96
      %v7802 = vpop.permute.xlu0 %7801
      %7803 = vrot.lane.b32.xlu0 %v7368, 96
      %v7804 = vpop.permute.xlu0 %7803
      %7805 = vrot.lane.b32.xlu0 %v7371, 96
      %v7806 = vpop.permute.xlu0 %7805
      %7807 = vrot.lane.b32.xlu0 %v7373, 96
      %v7808 = vpop.permute.xlu0 %7807
      %7809 = vrot.lane.b32.xlu0 %v7376, 96
      %v7810 = vpop.permute.xlu0 %7809
      %7811 = vrot.lane.b32.xlu0 %v7378, 96
      %v7812 = vpop.permute.xlu0 %7811
      %7813 = vrot.lane.b32.xlu0 %v7381, 96
      %v7814 = vpop.permute.xlu0 %7813
      %7815 = vrot.lane.b32.xlu0 %v7383, 96
      %v7816 = vpop.permute.xlu0 %7815
      %7817 = vrot.lane.b32.xlu0 %v7386, 96
      %v7818 = vpop.permute.xlu0 %7817
      %7819 = vrot.lane.b32.xlu0 %v7388, 96
      %v7820 = vpop.permute.xlu0 %7819
      %7821 = vrot.lane.b32.xlu0 %v7391, 96
      %v7822 = vpop.permute.xlu0 %7821
      %7823 = vrot.lane.b32.xlu0 %v7393, 96
      %v7824 = vpop.permute.xlu0 %7823
      %7825 = vrot.lane.b32.xlu0 %v7396, 96
      %v7826 = vpop.permute.xlu0 %7825
      %7827 = vrot.lane.b32.xlu0 %v7398, 96
      %v7828 = vpop.permute.xlu0 %7827
      %7829 = vrot.lane.b32.xlu0 %v7766, 96
      %v7830 = vpop.permute.xlu0 %7829
      %7831 = vrot.lane.b32.xlu0 %v7768, 96
      %v7832 = vpop.permute.xlu0 %7831
      %v7865 = vrot.slane %v7277, 2
      %v7866 = vrot.slane %v7214, 2
      %v7867 = vsel %vm1119, %v7865, %v7866
      %v7868 = vrot.slane %v7293, 2
      %v7869 = vsel %vm1119, %v7866, %v7868
      %7870 = vrot.lane.b32.xlu0 %v7497, 120
      %v7871 = vpop.permute.xlu0 %7870
      %7872 = vrot.lane.b32.xlu0 %v7499, 120
      %v7873 = vpop.permute.xlu0 %7872
      %7874 = vrot.lane.b32.xlu0 %v7502, 120
      %v7875 = vpop.permute.xlu0 %7874
      %7876 = vrot.lane.b32.xlu0 %v7504, 120
      %v7877 = vpop.permute.xlu0 %7876
      %7878 = vrot.lane.b32.xlu0 %v7507, 120
      %v7879 = vpop.permute.xlu0 %7878
      %7880 = vrot.lane.b32.xlu0 %v7509, 120
      %v7881 = vpop.permute.xlu0 %7880
      %7882 = vrot.lane.b32.xlu0 %v7512, 120
      %v7883 = vpop.permute.xlu0 %7882
      %7884 = vrot.lane.b32.xlu0 %v7514, 120
      %v7885 = vpop.permute.xlu0 %7884
      %7886 = vrot.lane.b32.xlu0 %v7517, 120
      %v7887 = vpop.permute.xlu0 %7886
      %7888 = vrot.lane.b32.xlu0 %v7519, 120
      %v7889 = vpop.permute.xlu0 %7888
      %7890 = vrot.lane.b32.xlu0 %v7522, 120
      %v7891 = vpop.permute.xlu0 %7890
      %7892 = vrot.lane.b32.xlu0 %v7524, 120
      %v7893 = vpop.permute.xlu0 %7892
      %7894 = vrot.lane.b32.xlu0 %v7527, 120
      %v7895 = vpop.permute.xlu0 %7894
      %7896 = vrot.lane.b32.xlu0 %v7529, 120
      %v7897 = vpop.permute.xlu0 %7896
      %7898 = vrot.lane.b32.xlu0 %v7532, 120
      %v7899 = vpop.permute.xlu0 %7898
      %7900 = vrot.lane.b32.xlu0 %v7534, 120
      %v7901 = vpop.permute.xlu0 %7900
      %7902 = vrot.lane.b32.xlu0 %v7537, 120
      %v7903 = vpop.permute.xlu0 %7902
      %7904 = vrot.lane.b32.xlu0 %v7539, 120
      %v7905 = vpop.permute.xlu0 %7904
      %7906 = vrot.lane.b32.xlu0 %v7542, 120
      %v7907 = vpop.permute.xlu0 %7906
      %7908 = vrot.lane.b32.xlu0 %v7544, 120
      %v7909 = vpop.permute.xlu0 %7908
      %7910 = vrot.lane.b32.xlu0 %v7547, 120
      %v7911 = vpop.permute.xlu0 %7910
      %7912 = vrot.lane.b32.xlu0 %v7549, 120
      %v7913 = vpop.permute.xlu0 %7912
      %7914 = vrot.lane.b32.xlu0 %v7552, 120
      %v7915 = vpop.permute.xlu0 %7914
      %7916 = vrot.lane.b32.xlu0 %v7554, 120
      %v7917 = vpop.permute.xlu0 %7916
      %7918 = vrot.lane.b32.xlu0 %v7557, 120
      %v7919 = vpop.permute.xlu0 %7918
      %7920 = vrot.lane.b32.xlu0 %v7559, 120
      %v7921 = vpop.permute.xlu0 %7920
      %7922 = vrot.lane.b32.xlu0 %v7562, 120
      %v7923 = vpop.permute.xlu0 %7922
      %7924 = vrot.lane.b32.xlu0 %v7564, 120
      %v7925 = vpop.permute.xlu0 %7924
      %7926 = vrot.lane.b32.xlu0 %v7567, 120
      %v7927 = vpop.permute.xlu0 %7926
      %7928 = vrot.lane.b32.xlu0 %v7569, 120
      %v7929 = vpop.permute.xlu0 %7928
      %7930 = vrot.lane.b32.xlu0 %v7867, 120
      %v7931 = vpop.permute.xlu0 %7930
      %7932 = vrot.lane.b32.xlu0 %v7869, 120
      %v7933 = vpop.permute.xlu0 %7932
      %7966 = vrot.lane.b32.xlu0 %v7263, 16
      %v7967 = vpop.permute.xlu0 %7966
      %7968 = vrot.lane.b32.xlu0 %v7172, 16
      %v7969 = vpop.permute.xlu0 %7968
      %7970 = vrot.lane.b32.xlu0 %v7264, 16
      %v7971 = vpop.permute.xlu0 %7970
      %7972 = vrot.lane.b32.xlu0 %v7175, 16
      %v7973 = vpop.permute.xlu0 %7972
      %7974 = vrot.lane.b32.xlu0 %v7265, 16
      %v7975 = vpop.permute.xlu0 %7974
      %7976 = vrot.lane.b32.xlu0 %v7178, 16
      %v7977 = vpop.permute.xlu0 %7976
      %7978 = vrot.lane.b32.xlu0 %v7266, 16
      %v7979 = vpop.permute.xlu0 %7978
      %7980 = vrot.lane.b32.xlu0 %v7181, 16
      %v7981 = vpop.permute.xlu0 %7980
      %7982 = vrot.lane.b32.xlu0 %v7267, 16
      %v7983 = vpop.permute.xlu0 %7982
      %7984 = vrot.lane.b32.xlu0 %v7184, 16
      %v7985 = vpop.permute.xlu0 %7984
      %7986 = vrot.lane.b32.xlu0 %v7268, 16
      %v7987 = vpop.permute.xlu0 %7986
      %7988 = vrot.lane.b32.xlu0 %v7187, 16
      %v7989 = vpop.permute.xlu0 %7988
      %7990 = vrot.lane.b32.xlu0 %v7269, 16
      %v7991 = vpop.permute.xlu0 %7990
      %7992 = vrot.lane.b32.xlu0 %v7190, 16
      %v7993 = vpop.permute.xlu0 %7992
      %7994 = vrot.lane.b32.xlu0 %v7270, 16
      %v7995 = vpop.permute.xlu0 %7994
      %7996 = vrot.lane.b32.xlu0 %v7193, 16
      %v7997 = vpop.permute.xlu0 %7996
      %7998 = vrot.lane.b32.xlu0 %v7271, 16
      %v7999 = vpop.permute.xlu0 %7998
      %8000 = vrot.lane.b32.xlu0 %v7196, 16
      %v8001 = vpop.permute.xlu0 %8000
      %8002 = vrot.lane.b32.xlu0 %v7272, 16
      %v8003 = vpop.permute.xlu0 %8002
      %8004 = vrot.lane.b32.xlu0 %v7199, 16
      %v8005 = vpop.permute.xlu0 %8004
      %8006 = vrot.lane.b32.xlu0 %v7273, 16
      %v8007 = vpop.permute.xlu0 %8006
      %8008 = vrot.lane.b32.xlu0 %v7202, 16
      %v8009 = vpop.permute.xlu0 %8008
      %8010 = vrot.lane.b32.xlu0 %v7274, 16
      %v8011 = vpop.permute.xlu0 %8010
      %8012 = vrot.lane.b32.xlu0 %v7205, 16
      %v8013 = vpop.permute.xlu0 %8012
      %8014 = vrot.lane.b32.xlu0 %v7275, 16
      %v8015 = vpop.permute.xlu0 %8014
      %8016 = vrot.lane.b32.xlu0 %v7208, 16
      %v8017 = vpop.permute.xlu0 %8016
      %8018 = vrot.lane.b32.xlu0 %v7276, 16
      %v8019 = vpop.permute.xlu0 %8018
      %8020 = vrot.lane.b32.xlu0 %v7211, 16
      %v8021 = vpop.permute.xlu0 %8020
      %8022 = vrot.lane.b32.xlu0 %v7277, 16
      %v8023 = vpop.permute.xlu0 %8022
      %8024 = vrot.lane.b32.xlu0 %v7214, 16
      %v8025 = vpop.permute.xlu0 %8024
      %8026 = vrot.lane.b32.xlu0 %v876, 16
      %v8027 = vpop.permute.xlu0 %8026
      %8028 = vrot.lane.b32.xlu0 %v778, 16
      %v8029 = vpop.permute.xlu0 %8028
      %8062 = vrot.lane.b32.xlu0 %v7331, 40
      %v8063 = vpop.permute.xlu0 %8062
      %8064 = vrot.lane.b32.xlu0 %v7333, 40
      %v8065 = vpop.permute.xlu0 %8064
      %8066 = vrot.lane.b32.xlu0 %v7336, 40
      %v8067 = vpop.permute.xlu0 %8066
      %8068 = vrot.lane.b32.xlu0 %v7338, 40
      %v8069 = vpop.permute.xlu0 %8068
      %8070 = vrot.lane.b32.xlu0 %v7341, 40
      %v8071 = vpop.permute.xlu0 %8070
      %8072 = vrot.lane.b32.xlu0 %v7343, 40
      %v8073 = vpop.permute.xlu0 %8072
      %8074 = vrot.lane.b32.xlu0 %v7346, 40
      %v8075 = vpop.permute.xlu0 %8074
      %8076 = vrot.lane.b32.xlu0 %v7348, 40
      %v8077 = vpop.permute.xlu0 %8076
      %8078 = vrot.lane.b32.xlu0 %v7351, 40
      %v8079 = vpop.permute.xlu0 %8078
      %8080 = vrot.lane.b32.xlu0 %v7353, 40
      %v8081 = vpop.permute.xlu0 %8080
      %8082 = vrot.lane.b32.xlu0 %v7356, 40
      %v8083 = vpop.permute.xlu0 %8082
      %8084 = vrot.lane.b32.xlu0 %v7358, 40
      %v8085 = vpop.permute.xlu0 %8084
      %8086 = vrot.lane.b32.xlu0 %v7361, 40
      %v8087 = vpop.permute.xlu0 %8086
      %8088 = vrot.lane.b32.xlu0 %v7363, 40
      %v8089 = vpop.permute.xlu0 %8088
      %8090 = vrot.lane.b32.xlu0 %v7366, 40
      %v8091 = vpop.permute.xlu0 %8090
      %8092 = vrot.lane.b32.xlu0 %v7368, 40
      %v8093 = vpop.permute.xlu0 %8092
      %8094 = vrot.lane.b32.xlu0 %v7371, 40
      %v8095 = vpop.permute.xlu0 %8094
      %8096 = vrot.lane.b32.xlu0 %v7373, 40
      %v8097 = vpop.permute.xlu0 %8096
      %8098 = vrot.lane.b32.xlu0 %v7376, 40
      %v8099 = vpop.permute.xlu0 %8098
      %8100 = vrot.lane.b32.xlu0 %v7378, 40
      %v8101 = vpop.permute.xlu0 %8100
      %8102 = vrot.lane.b32.xlu0 %v7381, 40
      %v8103 = vpop.permute.xlu0 %8102
      %8104 = vrot.lane.b32.xlu0 %v7383, 40
      %v8105 = vpop.permute.xlu0 %8104
      %8106 = vrot.lane.b32.xlu0 %v7386, 40
      %v8107 = vpop.permute.xlu0 %8106
      %8108 = vrot.lane.b32.xlu0 %v7388, 40
      %v8109 = vpop.permute.xlu0 %8108
      %8110 = vrot.lane.b32.xlu0 %v7391, 40
      %v8111 = vpop.permute.xlu0 %8110
      %8112 = vrot.lane.b32.xlu0 %v7393, 40
      %v8113 = vpop.permute.xlu0 %8112
      %8114 = vrot.lane.b32.xlu0 %v7396, 40
      %v8115 = vpop.permute.xlu0 %8114
      %8116 = vrot.lane.b32.xlu0 %v7398, 40
      %v8117 = vpop.permute.xlu0 %8116
      %8118 = vrot.lane.b32.xlu0 %v7766, 40
      %v8119 = vpop.permute.xlu0 %8118
      %8120 = vrot.lane.b32.xlu0 %v7768, 40
      %v8121 = vpop.permute.xlu0 %8120
      %8122 = vrot.lane.b32.xlu0 %v945, 40
      %v8123 = vpop.permute.xlu0 %8122
      %8124 = vrot.lane.b32.xlu0 %v947, 40
      %v8125 = vpop.permute.xlu0 %8124
      %8158 = vrot.lane.b32.xlu0 %v7502, 64
      %v8159 = vpop.permute.xlu0 %8158
      %8160 = vrot.lane.b32.xlu0 %v7504, 64
      %v8161 = vpop.permute.xlu0 %8160
      %8162 = vrot.lane.b32.xlu0 %v7507, 64
      %v8163 = vpop.permute.xlu0 %8162
      %8164 = vrot.lane.b32.xlu0 %v7509, 64
      %v8165 = vpop.permute.xlu0 %8164
      %8166 = vrot.lane.b32.xlu0 %v7512, 64
      %v8167 = vpop.permute.xlu0 %8166
      %8168 = vrot.lane.b32.xlu0 %v7514, 64
      %v8169 = vpop.permute.xlu0 %8168
      %8170 = vrot.lane.b32.xlu0 %v7517, 64
      %v8171 = vpop.permute.xlu0 %8170
      %8172 = vrot.lane.b32.xlu0 %v7519, 64
      %v8173 = vpop.permute.xlu0 %8172
      %8174 = vrot.lane.b32.xlu0 %v7522, 64
      %v8175 = vpop.permute.xlu0 %8174
      %8176 = vrot.lane.b32.xlu0 %v7524, 64
      %v8177 = vpop.permute.xlu0 %8176
      %8178 = vrot.lane.b32.xlu0 %v7527, 64
      %v8179 = vpop.permute.xlu0 %8178
      %8180 = vrot.lane.b32.xlu0 %v7529, 64
      %v8181 = vpop.permute.xlu0 %8180
      %8182 = vrot.lane.b32.xlu0 %v7532, 64
      %v8183 = vpop.permute.xlu0 %8182
      %8184 = vrot.lane.b32.xlu0 %v7534, 64
      %v8185 = vpop.permute.xlu0 %8184
      %8186 = vrot.lane.b32.xlu0 %v7537, 64
      %v8187 = vpop.permute.xlu0 %8186
      %8188 = vrot.lane.b32.xlu0 %v7539, 64
      %v8189 = vpop.permute.xlu0 %8188
      %8190 = vrot.lane.b32.xlu0 %v7542, 64
      %v8191 = vpop.permute.xlu0 %8190
      %8192 = vrot.lane.b32.xlu0 %v7544, 64
      %v8193 = vpop.permute.xlu0 %8192
      %8194 = vrot.lane.b32.xlu0 %v7547, 64
      %v8195 = vpop.permute.xlu0 %8194
      %8196 = vrot.lane.b32.xlu0 %v7549, 64
      %v8197 = vpop.permute.xlu0 %8196
      %8198 = vrot.lane.b32.xlu0 %v7552, 64
      %v8199 = vpop.permute.xlu0 %8198
      %8200 = vrot.lane.b32.xlu0 %v7554, 64
      %v8201 = vpop.permute.xlu0 %8200
      %8202 = vrot.lane.b32.xlu0 %v7557, 64
      %v8203 = vpop.permute.xlu0 %8202
      %8204 = vrot.lane.b32.xlu0 %v7559, 64
      %v8205 = vpop.permute.xlu0 %8204
      %8206 = vrot.lane.b32.xlu0 %v7562, 64
      %v8207 = vpop.permute.xlu0 %8206
      %8208 = vrot.lane.b32.xlu0 %v7564, 64
      %v8209 = vpop.permute.xlu0 %8208
      %8210 = vrot.lane.b32.xlu0 %v7567, 64
      %v8211 = vpop.permute.xlu0 %8210
      %8212 = vrot.lane.b32.xlu0 %v7569, 64
      %v8213 = vpop.permute.xlu0 %8212
      %8214 = vrot.lane.b32.xlu0 %v7867, 64
      %v8215 = vpop.permute.xlu0 %8214
      %8216 = vrot.lane.b32.xlu0 %v7869, 64
      %v8217 = vpop.permute.xlu0 %8216
      %v8248 = vsel %vm2049, %v876, %v7400
      %v8249 = vsel %vm2049, %v778, %v7402
      %v8250 = vsel %vm2049, %v7262, %v7404
      %v8251 = vsel %vm2049, %v7169, %v7406
      %v8252 = vsel %vm2049, %v7263, %v7408
      %v8253 = vsel %vm2049, %v7172, %v7410
      %v8254 = vsel %vm2049, %v7264, %v7412
      %v8255 = vsel %vm2049, %v7175, %v7414
      %v8256 = vsel %vm2049, %v7265, %v7416
      %v8257 = vsel %vm2049, %v7178, %v7418
      %v8258 = vsel %vm2049, %v7266, %v7420
      %v8259 = vsel %vm2049, %v7181, %v7422
      %v8260 = vsel %vm2049, %v7267, %v7424
      %v8261 = vsel %vm2049, %v7184, %v7426
      %v8262 = vsel %vm2049, %v7268, %v7428
      %v8263 = vsel %vm2049, %v7187, %v7430
      %v8264 = vsel %vm2049, %v7269, %v7432
      %v8265 = vsel %vm2049, %v7190, %v7434
      %v8266 = vsel %vm2049, %v7270, %v7436
      %v8267 = vsel %vm2049, %v7193, %v7438
      %v8268 = vsel %vm2049, %v7271, %v7440
      %v8269 = vsel %vm2049, %v7196, %v7442
      %v8270 = vsel %vm2049, %v7272, %v7444
      %v8271 = vsel %vm2049, %v7199, %v7446
      %v8272 = vsel %vm2049, %v7273, %v7448
      %v8273 = vsel %vm2049, %v7202, %v7450
      %v8274 = vsel %vm2049, %v7274, %v7452
      %v8275 = vsel %vm2049, %v7205, %v7454
      %v8276 = vsel %vm2049, %v7275, %v7456
      %v8277 = vsel %vm2049, %v7208, %v7458
      %v8278 = vsel %vm2049, %v7276, %v7460
      %v8279 = vsel %vm2049, %v7211, %v7462
      %v8280 = vsel %vm3683, %v8248, %v7571
      %v8281 = vsel %vm3683, %v8249, %v7573
      %v8282 = vsel %vm3683, %v8250, %v7575
      %v8283 = vsel %vm3683, %v8251, %v7577
      %v8284 = vsel %vm3683, %v8252, %v7579
      %v8285 = vsel %vm3683, %v8253, %v7581
      %v8286 = vsel %vm3683, %v8254, %v7583
      %v8287 = vsel %vm3683, %v8255, %v7585
      %v8288 = vsel %vm3683, %v8256, %v7587
      %v8289 = vsel %vm3683, %v8257, %v7589
      %v8290 = vsel %vm3683, %v8258, %v7591
      %v8291 = vsel %vm3683, %v8259, %v7593
      %v8292 = vsel %vm3683, %v8260, %v7595
      %v8293 = vsel %vm3683, %v8261, %v7597
      %v8294 = vsel %vm3683, %v8262, %v7599
      %v8295 = vsel %vm3683, %v8263, %v7601
      %v8296 = vsel %vm3683, %v8264, %v7603
      %v8297 = vsel %vm3683, %v8265, %v7605
      %v8298 = vsel %vm3683, %v8266, %v7607
      %v8299 = vsel %vm3683, %v8267, %v7609
      %v8300 = vsel %vm3683, %v8268, %v7611
      %v8301 = vsel %vm3683, %v8269, %v7613
      %v8302 = vsel %vm3683, %v8270, %v7615
      %v8303 = vsel %vm3683, %v8271, %v7617
      %v8304 = vsel %vm3683, %v8272, %v7619
      %v8305 = vsel %vm3683, %v8273, %v7621
      %v8306 = vsel %vm3683, %v8274, %v7623
      %v8307 = vsel %vm3683, %v8275, %v7625
      %v8308 = vsel %vm3683, %v8276, %v7627
      %v8309 = vsel %vm3683, %v8277, %v7629
      %v8310 = vsel %vm3683, %v8278, %v7631
      %v8311 = vsel %vm3683, %v8279, %v7633
      %v8312 = vsel %vm3795, %v8280, %v7668
      %v8313 = vsel %vm3795, %v8281, %v7670
      %v8314 = vsel %vm3795, %v8282, %v7672
      %v8315 = vsel %vm3795, %v8283, %v7674
      %v8316 = vsel %vm3795, %v8284, %v7676
      %v8317 = vsel %vm3795, %v8285, %v7678
      %v8318 = vsel %vm3795, %v8286, %v7680
      %v8319 = vsel %vm3795, %v8287, %v7682
      %v8320 = vsel %vm3795, %v8288, %v7684
      %v8321 = vsel %vm3795, %v8289, %v7686
      %v8322 = vsel %vm3795, %v8290, %v7688
      %v8323 = vsel %vm3795, %v8291, %v7690
      %v8324 = vsel %vm3795, %v8292, %v7692
      %v8325 = vsel %vm3795, %v8293, %v7694
      %v8326 = vsel %vm3795, %v8294, %v7696
      %v8327 = vsel %vm3795, %v8295, %v7698
      %v8328 = vsel %vm3795, %v8296, %v7700
      %v8329 = vsel %vm3795, %v8297, %v7702
      %v8330 = vsel %vm3795, %v8298, %v7704
      %v8331 = vsel %vm3795, %v8299, %v7706
      %v8332 = vsel %vm3795, %v8300, %v7708
      %v8333 = vsel %vm3795, %v8301, %v7710
      %v8334 = vsel %vm3795, %v8302, %v7712
      %v8335 = vsel %vm3795, %v8303, %v7714
      %v8336 = vsel %vm3795, %v8304, %v7716
      %v8337 = vsel %vm3795, %v8305, %v7718
      %v8338 = vsel %vm3795, %v8306, %v7720
      %v8339 = vsel %vm3795, %v8307, %v7722
      %v8340 = vsel %vm3795, %v8308, %v7724
      %v8341 = vsel %vm3795, %v8309, %v7726
      %v8342 = vsel %vm3795, %v8310, %v7728
      %v8343 = vsel %vm3795, %v8311, %v7730
      %v8344 = vsel %vm4982, %v8312, %v7770
      %v8345 = vsel %vm4982, %v8313, %v7772
      %v8346 = vsel %vm4982, %v8314, %v7774
      %v8347 = vsel %vm4982, %v8315, %v7776
      %v8348 = vsel %vm4982, %v8316, %v7778
      %v8349 = vsel %vm4982, %v8317, %v7780
      %v8350 = vsel %vm4982, %v8318, %v7782
      %v8351 = vsel %vm4982, %v8319, %v7784
      %v8352 = vsel %vm4982, %v8320, %v7786
      %v8353 = vsel %vm4982, %v8321, %v7788
      %v8354 = vsel %vm4982, %v8322, %v7790
      %v8355 = vsel %vm4982, %v8323, %v7792
      %v8356 = vsel %vm4982, %v8324, %v7794
      %v8357 = vsel %vm4982, %v8325, %v7796
      %v8358 = vsel %vm4982, %v8326, %v7798
      %v8359 = vsel %vm4982, %v8327, %v7800
      %v8360 = vsel %vm4982, %v8328, %v7802
      %v8361 = vsel %vm4982, %v8329, %v7804
      %v8362 = vsel %vm4982, %v8330, %v7806
      %v8363 = vsel %vm4982, %v8331, %v7808
      %v8364 = vsel %vm4982, %v8332, %v7810
      %v8365 = vsel %vm4982, %v8333, %v7812
      %v8366 = vsel %vm4982, %v8334, %v7814
      %v8367 = vsel %vm4982, %v8335, %v7816
      %v8368 = vsel %vm4982, %v8336, %v7818
      %v8369 = vsel %vm4982, %v8337, %v7820
      %v8370 = vsel %vm4982, %v8338, %v7822
      %v8371 = vsel %vm4982, %v8339, %v7824
      %v8372 = vsel %vm4982, %v8340, %v7826
      %v8373 = vsel %vm4982, %v8341, %v7828
      %v8374 = vsel %vm4982, %v8342, %v7830
      %v8375 = vsel %vm4982, %v8343, %v7832
      %vm8376 = vcmask 982016
      %v8377 = vsel %vm8376, %v8344, %v7871
      %v8378 = vsel %vm8376, %v8345, %v7873
      %v8379 = vsel %vm8376, %v8346, %v7875
      %v8380 = vsel %vm8376, %v8347, %v7877
      %v8381 = vsel %vm8376, %v8348, %v7879
      %v8382 = vsel %vm8376, %v8349, %v7881
      %v8383 = vsel %vm8376, %v8350, %v7883
      %v8384 = vsel %vm8376, %v8351, %v7885
      %v8385 = vsel %vm8376, %v8352, %v7887
      %v8386 = vsel %vm8376, %v8353, %v7889
      %v8387 = vsel %vm8376, %v8354, %v7891
      %v8388 = vsel %vm8376, %v8355, %v7893
      %v8389 = vsel %vm8376, %v8356, %v7895
      %v8390 = vsel %vm8376, %v8357, %v7897
      %v8391 = vsel %vm8376, %v8358, %v7899
      %v8392 = vsel %vm8376, %v8359, %v7901
      %v8393 = vsel %vm8376, %v8360, %v7903
      %v8394 = vsel %vm8376, %v8361, %v7905
      %v8395 = vsel %vm8376, %v8362, %v7907
      %v8396 = vsel %vm8376, %v8363, %v7909
      %v8397 = vsel %vm8376, %v8364, %v7911
      %v8398 = vsel %vm8376, %v8365, %v7913
      %v8399 = vsel %vm8376, %v8366, %v7915
      %v8400 = vsel %vm8376, %v8367, %v7917
      %v8401 = vsel %vm8376, %v8368, %v7919
      %v8402 = vsel %vm8376, %v8369, %v7921
      %v8403 = vsel %vm8376, %v8370, %v7923
      %v8404 = vsel %vm8376, %v8371, %v7925
      %v8405 = vsel %vm8376, %v8372, %v7927
      %v8406 = vsel %vm8376, %v8373, %v7929
      %v8407 = vsel %vm8376, %v8374, %v7931
      %v8408 = vsel %vm8376, %v8375, %v7933
      %v8409 = vsel %vm1983, %v7871, %v7967
      %v8410 = vsel %vm1983, %v7873, %v7969
      %v8411 = vsel %vm1983, %v7875, %v7971
      %v8412 = vsel %vm1983, %v7877, %v7973
      %v8413 = vsel %vm1983, %v7879, %v7975
      %v8414 = vsel %vm1983, %v7881, %v7977
      %v8415 = vsel %vm1983, %v7883, %v7979
      %v8416 = vsel %vm1983, %v7885, %v7981
      %v8417 = vsel %vm1983, %v7887, %v7983
      %v8418 = vsel %vm1983, %v7889, %v7985
      %v8419 = vsel %vm1983, %v7891, %v7987
      %v8420 = vsel %vm1983, %v7893, %v7989
      %v8421 = vsel %vm1983, %v7895, %v7991
      %v8422 = vsel %vm1983, %v7897, %v7993
      %v8423 = vsel %vm1983, %v7899, %v7995
      %v8424 = vsel %vm1983, %v7901, %v7997
      %v8425 = vsel %vm1983, %v7903, %v7999
      %v8426 = vsel %vm1983, %v7905, %v8001
      %v8427 = vsel %vm1983, %v7907, %v8003
      %v8428 = vsel %vm1983, %v7909, %v8005
      %v8429 = vsel %vm1983, %v7911, %v8007
      %v8430 = vsel %vm1983, %v7913, %v8009
      %v8431 = vsel %vm1983, %v7915, %v8011
      %v8432 = vsel %vm1983, %v7917, %v8013
      %v8433 = vsel %vm1983, %v7919, %v8015
      %v8434 = vsel %vm1983, %v7921, %v8017
      %v8435 = vsel %vm1983, %v7923, %v8019
      %v8436 = vsel %vm1983, %v7925, %v8021
      %v8437 = vsel %vm1983, %v7927, %v8023
      %v8438 = vsel %vm1983, %v7929, %v8025
      %v8439 = vsel %vm1983, %v7931, %v8027
      %v8440 = vsel %vm1983, %v7933, %v8029
      %v8441 = vsel %vm3650, %v8409, %v8063
      %v8442 = vsel %vm3650, %v8410, %v8065
      %v8443 = vsel %vm3650, %v8411, %v8067
      %v8444 = vsel %vm3650, %v8412, %v8069
      %v8445 = vsel %vm3650, %v8413, %v8071
      %v8446 = vsel %vm3650, %v8414, %v8073
      %v8447 = vsel %vm3650, %v8415, %v8075
      %v8448 = vsel %vm3650, %v8416, %v8077
      %v8449 = vsel %vm3650, %v8417, %v8079
      %v8450 = vsel %vm3650, %v8418, %v8081
      %v8451 = vsel %vm3650, %v8419, %v8083
      %v8452 = vsel %vm3650, %v8420, %v8085
      %v8453 = vsel %vm3650, %v8421, %v8087
      %v8454 = vsel %vm3650, %v8422, %v8089
      %v8455 = vsel %vm3650, %v8423, %v8091
      %v8456 = vsel %vm3650, %v8424, %v8093
      %v8457 = vsel %vm3650, %v8425, %v8095
      %v8458 = vsel %vm3650, %v8426, %v8097
      %v8459 = vsel %vm3650, %v8427, %v8099
      %v8460 = vsel %vm3650, %v8428, %v8101
      %v8461 = vsel %vm3650, %v8429, %v8103
      %v8462 = vsel %vm3650, %v8430, %v8105
      %v8463 = vsel %vm3650, %v8431, %v8107
      %v8464 = vsel %vm3650, %v8432, %v8109
      %v8465 = vsel %vm3650, %v8433, %v8111
      %v8466 = vsel %vm3650, %v8434, %v8113
      %v8467 = vsel %vm3650, %v8435, %v8115
      %v8468 = vsel %vm3650, %v8436, %v8117
      %v8469 = vsel %vm3650, %v8437, %v8119
      %v8470 = vsel %vm3650, %v8438, %v8121
      %v8471 = vsel %vm3650, %v8439, %v8123
      %v8472 = vsel %vm3650, %v8440, %v8125
      %v8473 = vsel %vm3749, %v8441, %v8159
      %v8474 = vsel %vm3749, %v8442, %v8161
      %v8475 = vsel %vm3749, %v8443, %v8163
      %v8476 = vsel %vm3749, %v8444, %v8165
      %v8477 = vsel %vm3749, %v8445, %v8167
      %v8478 = vsel %vm3749, %v8446, %v8169
      %v8479 = vsel %vm3749, %v8447, %v8171
      %v8480 = vsel %vm3749, %v8448, %v8173
      %v8481 = vsel %vm3749, %v8449, %v8175
      %v8482 = vsel %vm3749, %v8450, %v8177
      %v8483 = vsel %vm3749, %v8451, %v8179
      %v8484 = vsel %vm3749, %v8452, %v8181
      %v8485 = vsel %vm3749, %v8453, %v8183
      %v8486 = vsel %vm3749, %v8454, %v8185
      %v8487 = vsel %vm3749, %v8455, %v8187
      %v8488 = vsel %vm3749, %v8456, %v8189
      %v8489 = vsel %vm3749, %v8457, %v8191
      %v8490 = vsel %vm3749, %v8458, %v8193
      %v8491 = vsel %vm3749, %v8459, %v8195
      %v8492 = vsel %vm3749, %v8460, %v8197
      %v8493 = vsel %vm3749, %v8461, %v8199
      %v8494 = vsel %vm3749, %v8462, %v8201
      %v8495 = vsel %vm3749, %v8463, %v8203
      %v8496 = vsel %vm3749, %v8464, %v8205
      %v8497 = vsel %vm3749, %v8465, %v8207
      %v8498 = vsel %vm3749, %v8466, %v8209
      %v8499 = vsel %vm3749, %v8467, %v8211
      %v8500 = vsel %vm3749, %v8468, %v8213
      %v8501 = vsel %vm3749, %v8469, %v8215
      %v8502 = vsel %vm3749, %v8470, %v8217
      %v8503 = vsel %vm3749, %v8471, %v3487
      %v8504 = vsel %vm3749, %v8472, %v3489
      %v8505 = vld [vmem:[%s17] sm:$0xff]
      %v8506 = vld [vmem:[%s17 + $0x8] sm:$0xff]
      %v8507 = vld [vmem:[%s17 + $0x10] sm:$0xff]
      %v8508 = vld [vmem:[%s17 + $0x18] sm:$0xff]
      %v8509 = vld [vmem:[%s17 + $0x20] sm:$0xff]
      %v8510 = vld [vmem:[%s17 + $0x28] sm:$0xff]
      %v8511 = vld [vmem:[%s17 + $0x30] sm:$0xff]
      %v8512 = vld [vmem:[%s17 + $0x38] sm:$0xff]
      %v8513 = vld [vmem:[%s17 + $0x40] sm:$0xff]
      %v8514 = vld [vmem:[%s17 + $0x48] sm:$0xff]
      %v8515 = vld [vmem:[%s17 + $0x50] sm:$0xff]
      %v8516 = vld [vmem:[%s17 + $0x58] sm:$0xff]
      %v8517 = vld [vmem:[%s17 + $0x60] sm:$0xff]
      %v8518 = vld [vmem:[%s17 + $0x68] sm:$0xff]
      %v8519 = vld [vmem:[%s17 + $0x70] sm:$0xff]
      %v8520 = vld [vmem:[%s17 + $0x78] sm:$0xff]
      %v8521 = vld [vmem:[%s17 + $0x80] sm:$0xff]
      %v8522 = vld [vmem:[%s17 + $0x88] sm:$0xff]
      %v8523 = vld [vmem:[%s17 + $0x90] sm:$0xff]
      %v8524 = vld [vmem:[%s17 + $0x98] sm:$0xff]
      %v8525 = vld [vmem:[%s17 + $0xa0] sm:$0xff]
      %v8526 = vld [vmem:[%s17 + $0xa8] sm:$0xff]
      %v8527 = vld [vmem:[%s17 + $0xb0] sm:$0xff]
      %v8528 = vld [vmem:[%s17 + $0xb8] sm:$0xff]
      %v8529 = vld [vmem:[%s17 + $0xc0] sm:$0xff]
      %v8530 = vld [vmem:[%s17 + $0xc8] sm:$0xff]
      %v8531 = vld [vmem:[%s17 + $0xd0] sm:$0xff]
      %v8532 = vld [vmem:[%s18] sm:$0x1]
      %v8534 = vperm.slane %v8532, 0
      %vm8536 = vcmask 719872
      %v8538 = vsel %vm8536, %v8473, 0
      %v8541 = vsel %vm8536, %v8474, 0
      %v8544 = vsel %vm8536, %v8475, 0
      %v8547 = vsel %vm8536, %v8476, 0
      %v8550 = vsel %vm8536, %v8477, 0
      %v8553 = vsel %vm8536, %v8478, 0
      %v8556 = vsel %vm8536, %v8479, 0
      %v8559 = vsel %vm8536, %v8480, 0
      %v8562 = vsel %vm8536, %v8481, 0
      %v8565 = vsel %vm8536, %v8482, 0
      %v8568 = vsel %vm8536, %v8483, 0
      %v8571 = vsel %vm8536, %v8484, 0
      %v8574 = vsel %vm8536, %v8485, 0
      %v8577 = vsel %vm8536, %v8486, 0
      %v8580 = vsel %vm8536, %v8487, 0
      %v8583 = vsel %vm8536, %v8488, 0
      %v8586 = vsel %vm8536, %v8489, 0
      %v8589 = vsel %vm8536, %v8490, 0
      %v8592 = vsel %vm8536, %v8491, 0
      %v8595 = vsel %vm8536, %v8492, 0
      %v8598 = vsel %vm8536, %v8493, 0
      %v8601 = vsel %vm8536, %v8494, 0
      %v8604 = vsel %vm8536, %v8495, 0
      %v8607 = vsel %vm8536, %v8496, 0
      %v8610 = vsel %vm8536, %v8497, 0
      %v8613 = vsel %vm8536, %v8498, 0
      %v8616 = vsel %vm8536, %v8499, 0
      %v8619 = vsel %vm8536, %v8500, 0
      %v8622 = vsel %vm8536, %v8501, 0
      %v8625 = vsel %vm8536, %v8502, 0
      %v8628 = vsel %vm8536, %v8503, 0
      %v8631 = vsel %vm8536, %v8504, 0
      %8633 = vmatpush.msra.mxu0 %v8520
      %8634 = vmatpush.msra.mxu0 %v8519
      %8635 = vmatpush.msra.mxu0 %v8518
      %8636 = vmatpush.msra.mxu0 %v8517
      %8637 = vmatpush.msra.mxu0 %v8516
      %8638 = vmatpush.msra.mxu0 %v8515
      %8639 = vmatpush.msra.mxu0 %v8514
      %8640 = vmatpush.msra.mxu0 %v8513
      %8641 = vmatpush.msra.mxu0 %v8512
      %8642 = vmatpush.msra.mxu0 %v8511
      %8643 = vmatpush.msra.mxu0 %v8510
      %8644 = vmatpush.msra.mxu0 %v8509
      %8645 = vmatpush.msra.mxu0 %v8508
      %8646 = vmatpush.msra.mxu0 %v8507
      %8647 = vmatpush.msra.mxu0 %v8506
      %8648 = vmatpush.msra.mxu0 %v8505
      %8649 = vmatmul.f32.gmra.mxu0 %v8377
      %v8650 = vpop.f32.mrf.mxu0
      %v8651 = vadd.f32 %v8534, %v8650
      %8652 = vmatmul.f32.gmra.mxu0 %v8378
      %v8653 = vpop.f32.mrf.mxu0
      %v8654 = vadd.f32 %v8534, %v8653
      %8655 = vmatmul.f32.gmra.mxu0 %v8379
      %v8656 = vpop.f32.mrf.mxu0
      %v8657 = vadd.f32 %v8534, %v8656
      %8658 = vmatmul.f32.gmra.mxu0 %v8380
      %v8659 = vpop.f32.mrf.mxu0
      %v8660 = vadd.f32 %v8534, %v8659
      %8661 = vmatmul.f32.gmra.mxu0 %v8381
      %v8662 = vpop.f32.mrf.mxu0
      %v8663 = vadd.f32 %v8534, %v8662
      %8664 = vmatmul.f32.gmra.mxu0 %v8382
      %v8665 = vpop.f32.mrf.mxu0
      %v8666 = vadd.f32 %v8534, %v8665
      %8667 = vmatmul.f32.gmra.mxu0 %v8383
      %v8668 = vpop.f32.mrf.mxu0
      %v8669 = vadd.f32 %v8534, %v8668
      %8670 = vmatmul.f32.gmra.mxu0 %v8384
      %v8671 = vpop.f32.mrf.mxu0
      %v8672 = vadd.f32 %v8534, %v8671
      %8673 = vmatmul.f32.gmra.mxu0 %v8385
      %v8674 = vpop.f32.mrf.mxu0
      %v8675 = vadd.f32 %v8534, %v8674
      %8676 = vmatmul.f32.gmra.mxu0 %v8386
      %v8677 = vpop.f32.mrf.mxu0
      %v8678 = vadd.f32 %v8534, %v8677
      %8679 = vmatmul.f32.gmra.mxu0 %v8387
      %v8680 = vpop.f32.mrf.mxu0
      %v8681 = vadd.f32 %v8534, %v8680
      %8682 = vmatmul.f32.gmra.mxu0 %v8388
      %v8683 = vpop.f32.mrf.mxu0
      %v8684 = vadd.f32 %v8534, %v8683
      %8685 = vmatmul.f32.gmra.mxu0 %v8389
      %v8686 = vpop.f32.mrf.mxu0
      %v8687 = vadd.f32 %v8534, %v8686
      %8688 = vmatmul.f32.gmra.mxu0 %v8390
      %v8689 = vpop.f32.mrf.mxu0
      %v8690 = vadd.f32 %v8534, %v8689
      %8691 = vmatmul.f32.gmra.mxu0 %v8391
      %v8692 = vpop.f32.mrf.mxu0
      %v8693 = vadd.f32 %v8534, %v8692
      %8694 = vmatmul.f32.gmra.mxu0 %v8392
      %v8695 = vpop.f32.mrf.mxu0
      %v8696 = vadd.f32 %v8534, %v8695
      %8697 = vmatmul.f32.gmra.mxu0 %v8393
      %v8698 = vpop.f32.mrf.mxu0
      %v8699 = vadd.f32 %v8534, %v8698
      %8700 = vmatmul.f32.gmra.mxu0 %v8394
      %v8701 = vpop.f32.mrf.mxu0
      %v8702 = vadd.f32 %v8534, %v8701
      %8703 = vmatmul.f32.gmra.mxu0 %v8395
      %v8704 = vpop.f32.mrf.mxu0
      %v8705 = vadd.f32 %v8534, %v8704
      %8706 = vmatmul.f32.gmra.mxu0 %v8396
      %v8707 = vpop.f32.mrf.mxu0
      %v8708 = vadd.f32 %v8534, %v8707
      %8709 = vmatmul.f32.gmra.mxu0 %v8397
      %v8710 = vpop.f32.mrf.mxu0
      %v8711 = vadd.f32 %v8534, %v8710
      %8712 = vmatmul.f32.gmra.mxu0 %v8398
      %v8713 = vpop.f32.mrf.mxu0
      %v8714 = vadd.f32 %v8534, %v8713
      %8715 = vmatmul.f32.gmra.mxu0 %v8399
      %v8716 = vpop.f32.mrf.mxu0
      %v8717 = vadd.f32 %v8534, %v8716
      %8718 = vmatmul.f32.gmra.mxu0 %v8400
      %v8719 = vpop.f32.mrf.mxu0
      %v8720 = vadd.f32 %v8534, %v8719
      %8721 = vmatmul.f32.gmra.mxu0 %v8401
      %v8722 = vpop.f32.mrf.mxu0
      %v8723 = vadd.f32 %v8534, %v8722
      %8724 = vmatmul.f32.gmra.mxu0 %v8402
      %v8725 = vpop.f32.mrf.mxu0
      %v8726 = vadd.f32 %v8534, %v8725
      %8727 = vmatmul.f32.gmra.mxu0 %v8403
      %v8728 = vpop.f32.mrf.mxu0
      %v8729 = vadd.f32 %v8534, %v8728
      %8730 = vmatmul.f32.gmra.mxu0 %v8404
      %v8731 = vpop.f32.mrf.mxu0
      %v8732 = vadd.f32 %v8534, %v8731
      %8733 = vmatmul.f32.gmra.mxu0 %v8405
      %v8734 = vpop.f32.mrf.mxu0
      %v8735 = vadd.f32 %v8534, %v8734
      %8736 = vmatmul.f32.gmra.mxu0 %v8406
      %v8737 = vpop.f32.mrf.mxu0
      %v8738 = vadd.f32 %v8534, %v8737
      %8739 = vmatmul.f32.gmra.mxu0 %v8407
      %v8740 = vpop.f32.mrf.mxu0
      %v8741 = vadd.f32 %v8534, %v8740
      %8742 = vmatmul.f32.gmra.mxu0 %v8408
      %v8743 = vpop.f32.mrf.mxu0
      %v8744 = vadd.f32 %v8534, %v8743
      %8745 = vdwg.mxu0
      %8746 = vmatpush.msra.mxu0 0.0
      %8747 = vmatpush.msra.mxu0 0.0
      %8748 = vmatpush.msra.mxu0 0.0
      %8749 = vmatpush.msra.mxu0 0.0
      %8750 = vmatpush.msra.mxu0 0.0
      %8751 = vmatpush.msra.mxu0 %v8531
      %8752 = vmatpush.msra.mxu0 %v8530
      %8753 = vmatpush.msra.mxu0 %v8529
      %8754 = vmatpush.msra.mxu0 %v8528
      %8755 = vmatpush.msra.mxu0 %v8527
      %8756 = vmatpush.msra.mxu0 %v8526
      %8757 = vmatpush.msra.mxu0 %v8525
      %8758 = vmatpush.msra.mxu0 %v8524
      %8759 = vmatpush.msra.mxu0 %v8523
      %8760 = vmatpush.msra.mxu0 %v8522
      %8761 = vmatpush.msra.mxu0 %v8521
      %8762 = vmatmul.f32.gmra.mxu0 %v8538
      %v8763 = vpop.f32.mrf.mxu0
      %v8764 = vadd.f32 %v8651, %v8763
      %8765 = vmatmul.f32.gmra.mxu0 %v8541
      %v8766 = vpop.f32.mrf.mxu0
      %v8767 = vadd.f32 %v8654, %v8766
      %8768 = vmatmul.f32.gmra.mxu0 %v8544
      %v8769 = vpop.f32.mrf.mxu0
      %v8770 = vadd.f32 %v8657, %v8769
      %8771 = vmatmul.f32.gmra.mxu0 %v8547
      %v8772 = vpop.f32.mrf.mxu0
      %v8773 = vadd.f32 %v8660, %v8772
      %8774 = vmatmul.f32.gmra.mxu0 %v8550
      %v8775 = vpop.f32.mrf.mxu0
      %v8776 = vadd.f32 %v8663, %v8775
      %8777 = vmatmul.f32.gmra.mxu0 %v8553
      %v8778 = vpop.f32.mrf.mxu0
      %v8779 = vadd.f32 %v8666, %v8778
      %8780 = vmatmul.f32.gmra.mxu0 %v8556
      %v8781 = vpop.f32.mrf.mxu0
      %v8782 = vadd.f32 %v8669, %v8781
      %8783 = vmatmul.f32.gmra.mxu0 %v8559
      %v8784 = vpop.f32.mrf.mxu0
      %v8785 = vadd.f32 %v8672, %v8784
      %8786 = vmatmul.f32.gmra.mxu0 %v8562
      %v8787 = vpop.f32.mrf.mxu0
      %v8788 = vadd.f32 %v8675, %v8787
      %8789 = vmatmul.f32.gmra.mxu0 %v8565
      %v8790 = vpop.f32.mrf.mxu0
      %v8791 = vadd.f32 %v8678, %v8790
      %8792 = vmatmul.f32.gmra.mxu0 %v8568
      %v8793 = vpop.f32.mrf.mxu0
      %v8794 = vadd.f32 %v8681, %v8793
      %8795 = vmatmul.f32.gmra.mxu0 %v8571
      %v8796 = vpop.f32.mrf.mxu0
      %v8797 = vadd.f32 %v8684, %v8796
      %8798 = vmatmul.f32.gmra.mxu0 %v8574
      %v8799 = vpop.f32.mrf.mxu0
      %v8800 = vadd.f32 %v8687, %v8799
      %8801 = vmatmul.f32.gmra.mxu0 %v8577
      %v8802 = vpop.f32.mrf.mxu0
      %v8803 = vadd.f32 %v8690, %v8802
      %8804 = vmatmul.f32.gmra.mxu0 %v8580
      %v8805 = vpop.f32.mrf.mxu0
      %v8806 = vadd.f32 %v8693, %v8805
      %8807 = vmatmul.f32.gmra.mxu0 %v8583
      %v8808 = vpop.f32.mrf.mxu0
      %v8809 = vadd.f32 %v8696, %v8808
      %8810 = vmatmul.f32.gmra.mxu0 %v8586
      %v8811 = vpop.f32.mrf.mxu0
      %v8812 = vadd.f32 %v8699, %v8811
      %8813 = vmatmul.f32.gmra.mxu0 %v8589
      %v8814 = vpop.f32.mrf.mxu0
      %v8815 = vadd.f32 %v8702, %v8814
      %8816 = vmatmul.f32.gmra.mxu0 %v8592
      %v8817 = vpop.f32.mrf.mxu0
      %v8818 = vadd.f32 %v8705, %v8817
      %8819 = vmatmul.f32.gmra.mxu0 %v8595
      %v8820 = vpop.f32.mrf.mxu0
      %v8821 = vadd.f32 %v8708, %v8820
      %8822 = vmatmul.f32.gmra.mxu0 %v8598
      %v8823 = vpop.f32.mrf.mxu0
      %v8824 = vadd.f32 %v8711, %v8823
      %8825 = vmatmul.f32.gmra.mxu0 %v8601
      %v8826 = vpop.f32.mrf.mxu0
      %v8827 = vadd.f32 %v8714, %v8826
      %8828 = vmatmul.f32.gmra.mxu0 %v8604
      %v8829 = vpop.f32.mrf.mxu0
      %v8830 = vadd.f32 %v8717, %v8829
      %8831 = vmatmul.f32.gmra.mxu0 %v8607
      %v8832 = vpop.f32.mrf.mxu0
      %v8833 = vadd.f32 %v8720, %v8832
      %8834 = vmatmul.f32.gmra.mxu0 %v8610
      %v8835 = vpop.f32.mrf.mxu0
      %v8836 = vadd.f32 %v8723, %v8835
      %8837 = vmatmul.f32.gmra.mxu0 %v8613
      %v8838 = vpop.f32.mrf.mxu0
      %v8839 = vadd.f32 %v8726, %v8838
      %8840 = vmatmul.f32.gmra.mxu0 %v8616
      %v8841 = vpop.f32.mrf.mxu0
      %v8842 = vadd.f32 %v8729, %v8841
      %8843 = vmatmul.f32.gmra.mxu0 %v8619
      %v8844 = vpop.f32.mrf.mxu0
      %v8845 = vadd.f32 %v8732, %v8844
      %8846 = vmatmul.f32.gmra.mxu0 %v8622
      %v8847 = vpop.f32.mrf.mxu0
      %v8848 = vadd.f32 %v8735, %v8847
      %8849 = vmatmul.f32.gmra.mxu0 %v8625
      %v8850 = vpop.f32.mrf.mxu0
      %v8851 = vadd.f32 %v8738, %v8850
      %8852 = vmatmul.f32.gmra.mxu0 %v8628
      %v8853 = vpop.f32.mrf.mxu0
      %v8854 = vadd.f32 %v8741, %v8853
      %8855 = vmatmul.f32.gmra.mxu0 %v8631
      %v8856 = vpop.f32.mrf.mxu0
      %v8857 = vadd.f32 %v8744, %v8856
      %8858 = vdwg.mxu0
      %v8859 = vmax.f32 %v8764, 0.0
      %v8860 = vmax.f32 %v8767, 0.0
      %v8861 = vmax.f32 %v8770, 0.0
      %v8862 = vmax.f32 %v8773, 0.0
      %v8863 = vmax.f32 %v8776, 0.0
      %v8864 = vmax.f32 %v8779, 0.0
      %v8865 = vmax.f32 %v8782, 0.0
      %v8866 = vmax.f32 %v8785, 0.0
      %v8867 = vmax.f32 %v8788, 0.0
      %v8868 = vmax.f32 %v8791, 0.0
      %v8869 = vmax.f32 %v8794, 0.0
      %v8870 = vmax.f32 %v8797, 0.0
      %v8871 = vmax.f32 %v8800, 0.0
      %v8872 = vmax.f32 %v8803, 0.0
      %v8873 = vmax.f32 %v8806, 0.0
      %v8874 = vmax.f32 %v8809, 0.0
      %v8875 = vmax.f32 %v8812, 0.0
      %v8876 = vmax.f32 %v8815, 0.0
      %v8877 = vmax.f32 %v8818, 0.0
      %v8878 = vmax.f32 %v8821, 0.0
      %v8879 = vmax.f32 %v8824, 0.0
      %v8880 = vmax.f32 %v8827, 0.0
      %v8881 = vmax.f32 %v8830, 0.0
      %v8882 = vmax.f32 %v8833, 0.0
      %v8883 = vmax.f32 %v8836, 0.0
      %v8884 = vmax.f32 %v8839, 0.0
      %v8885 = vmax.f32 %v8842, 0.0
      %v8886 = vmax.f32 %v8845, 0.0
      %v8887 = vmax.f32 %v8848, 0.0
      %v8888 = vmax.f32 %v8851, 0.0
      %v8889 = vmax.f32 %v8854, 0.0
      %v8890 = vmax.f32 %v8857, 0.0
      %v8923 = vrot.slane %v8859, 7
      %v8924 = vrot.slane %v8860, 7
      %v8925 = vsel %vm776, %v8923, %v8924
      %v8926 = vrot.slane %v8861, 7
      %v8927 = vrot.slane %v8862, 7
      %v8928 = vsel %vm776, %v8926, %v8927
      %v8929 = vrot.slane %v8863, 7
      %v8930 = vrot.slane %v8864, 7
      %v8931 = vsel %vm776, %v8929, %v8930
      %v8932 = vrot.slane %v8865, 7
      %v8933 = vrot.slane %v8866, 7
      %v8934 = vsel %vm776, %v8932, %v8933
      %v8935 = vrot.slane %v8867, 7
      %v8936 = vrot.slane %v8868, 7
      %v8937 = vsel %vm776, %v8935, %v8936
      %v8938 = vrot.slane %v8869, 7
      %v8939 = vrot.slane %v8870, 7
      %v8940 = vsel %vm776, %v8938, %v8939
      %v8941 = vrot.slane %v8871, 7
      %v8942 = vrot.slane %v8872, 7
      %v8943 = vsel %vm776, %v8941, %v8942
      %v8944 = vrot.slane %v8873, 7
      %v8945 = vrot.slane %v8874, 7
      %v8946 = vsel %vm776, %v8944, %v8945
      %v8947 = vrot.slane %v8875, 7
      %v8948 = vrot.slane %v8876, 7
      %v8949 = vsel %vm776, %v8947, %v8948
      %v8950 = vrot.slane %v8877, 7
      %v8951 = vrot.slane %v8878, 7
      %v8952 = vsel %vm776, %v8950, %v8951
      %v8953 = vrot.slane %v8879, 7
      %v8954 = vrot.slane %v8880, 7
      %v8955 = vsel %vm776, %v8953, %v8954
      %v8956 = vrot.slane %v8881, 7
      %v8957 = vrot.slane %v8882, 7
      %v8958 = vsel %vm776, %v8956, %v8957
      %v8959 = vrot.slane %v8883, 7
      %v8960 = vrot.slane %v8884, 7
      %v8961 = vsel %vm776, %v8959, %v8960
      %v8962 = vrot.slane %v8885, 7
      %v8963 = vrot.slane %v8886, 7
      %v8964 = vsel %vm776, %v8962, %v8963
      %v8965 = vrot.slane %v8887, 7
      %v8966 = vrot.slane %v8888, 7
      %v8967 = vsel %vm776, %v8965, %v8966
      %v8968 = vrot.slane %v8889, 7
      %v8969 = vrot.slane %v8890, 7
      %v8970 = vsel %vm776, %v8968, %v8969
      %v9018 = vsel %vm776, 0.0, %v8923
      %v9019 = vsel %vm776, 0.0, %v8926
      %v9020 = vsel %vm776, 0.0, %v8929
      %v9021 = vsel %vm776, 0.0, %v8932
      %v9022 = vsel %vm776, 0.0, %v8935
      %v9023 = vsel %vm776, 0.0, %v8938
      %v9024 = vsel %vm776, 0.0, %v8941
      %v9025 = vsel %vm776, 0.0, %v8944
      %v9026 = vsel %vm776, 0.0, %v8947
      %v9027 = vsel %vm776, 0.0, %v8950
      %v9028 = vsel %vm776, 0.0, %v8953
      %v9029 = vsel %vm776, 0.0, %v8956
      %v9030 = vsel %vm776, 0.0, %v8959
      %v9031 = vsel %vm776, 0.0, %v8962
      %v9032 = vsel %vm776, 0.0, %v8965
      %v9033 = vsel %vm776, 0.0, %v8968
      %v9034 = vsel %vm776, %v8924, 0.0
      %v9035 = vsel %vm776, %v8927, 0.0
      %v9036 = vsel %vm776, %v8930, 0.0
      %v9037 = vsel %vm776, %v8933, 0.0
      %v9038 = vsel %vm776, %v8936, 0.0
      %v9039 = vsel %vm776, %v8939, 0.0
      %v9040 = vsel %vm776, %v8942, 0.0
      %v9041 = vsel %vm776, %v8945, 0.0
      %v9042 = vsel %vm776, %v8948, 0.0
      %v9043 = vsel %vm776, %v8951, 0.0
      %v9044 = vsel %vm776, %v8954, 0.0
      %v9045 = vsel %vm776, %v8957, 0.0
      %v9046 = vsel %vm776, %v8960, 0.0
      %v9047 = vsel %vm776, %v8963, 0.0
      %v9048 = vsel %vm776, %v8966, 0.0
      %v9049 = vsel %vm776, %v8969, 0.0
      %v9080 = vrot.slane %v9018, 1
      %v9081 = vrot.slane %v8925, 1
      %v9082 = vsel %vm942, %v9080, %v9081
      %v9083 = vrot.slane %v9034, 1
      %v9084 = vsel %vm942, %v9081, %v9083
      %v9085 = vrot.slane %v9019, 1
      %v9086 = vrot.slane %v8928, 1
      %v9087 = vsel %vm942, %v9085, %v9086
      %v9088 = vrot.slane %v9035, 1
      %v9089 = vsel %vm942, %v9086, %v9088
      %v9090 = vrot.slane %v9020, 1
      %v9091 = vrot.slane %v8931, 1
      %v9092 = vsel %vm942, %v9090, %v9091
      %v9093 = vrot.slane %v9036, 1
      %v9094 = vsel %vm942, %v9091, %v9093
      %v9095 = vrot.slane %v9021, 1
      %v9096 = vrot.slane %v8934, 1
      %v9097 = vsel %vm942, %v9095, %v9096
      %v9098 = vrot.slane %v9037, 1
      %v9099 = vsel %vm942, %v9096, %v9098
      %v9100 = vrot.slane %v9022, 1
      %v9101 = vrot.slane %v8937, 1
      %v9102 = vsel %vm942, %v9100, %v9101
      %v9103 = vrot.slane %v9038, 1
      %v9104 = vsel %vm942, %v9101, %v9103
      %v9105 = vrot.slane %v9023, 1
      %v9106 = vrot.slane %v8940, 1
      %v9107 = vsel %vm942, %v9105, %v9106
      %v9108 = vrot.slane %v9039, 1
      %v9109 = vsel %vm942, %v9106, %v9108
      %v9110 = vrot.slane %v9024, 1
      %v9111 = vrot.slane %v8943, 1
      %v9112 = vsel %vm942, %v9110, %v9111
      %v9113 = vrot.slane %v9040, 1
      %v9114 = vsel %vm942, %v9111, %v9113
      %v9115 = vrot.slane %v9025, 1
      %v9116 = vrot.slane %v8946, 1
      %v9117 = vsel %vm942, %v9115, %v9116
      %v9118 = vrot.slane %v9041, 1
      %v9119 = vsel %vm942, %v9116, %v9118
      %v9120 = vrot.slane %v9026, 1
      %v9121 = vrot.slane %v8949, 1
      %v9122 = vsel %vm942, %v9120, %v9121
      %v9123 = vrot.slane %v9042, 1
      %v9124 = vsel %vm942, %v9121, %v9123
      %v9125 = vrot.slane %v9027, 1
      %v9126 = vrot.slane %v8952, 1
      %v9127 = vsel %vm942, %v9125, %v9126
      %v9128 = vrot.slane %v9043, 1
      %v9129 = vsel %vm942, %v9126, %v9128
      %v9130 = vrot.slane %v9028, 1
      %v9131 = vrot.slane %v8955, 1
      %v9132 = vsel %vm942, %v9130, %v9131
      %v9133 = vrot.slane %v9044, 1
      %v9134 = vsel %vm942, %v9131, %v9133
      %v9135 = vrot.slane %v9029, 1
      %v9136 = vrot.slane %v8958, 1
      %v9137 = vsel %vm942, %v9135, %v9136
      %v9138 = vrot.slane %v9045, 1
      %v9139 = vsel %vm942, %v9136, %v9138
      %v9140 = vrot.slane %v9030, 1
      %v9141 = vrot.slane %v8961, 1
      %v9142 = vsel %vm942, %v9140, %v9141
      %v9143 = vrot.slane %v9046, 1
      %v9144 = vsel %vm942, %v9141, %v9143
      %v9145 = vrot.slane %v9031, 1
      %v9146 = vrot.slane %v8964, 1
      %v9147 = vsel %vm942, %v9145, %v9146
      %v9148 = vrot.slane %v9047, 1
      %v9149 = vsel %vm942, %v9146, %v9148
      %v9150 = vrot.slane %v9032, 1
      %v9151 = vrot.slane %v8967, 1
      %v9152 = vsel %vm942, %v9150, %v9151
      %v9153 = vrot.slane %v9048, 1
      %v9154 = vsel %vm942, %v9151, %v9153
      %9155 = vrot.lane.b32.xlu0 %v9082, 8
      %v9156 = vpop.permute.xlu0 %9155
      %9157 = vrot.lane.b32.xlu0 %v9084, 8
      %v9158 = vpop.permute.xlu0 %9157
      %9159 = vrot.lane.b32.xlu0 %v9087, 8
      %v9160 = vpop.permute.xlu0 %9159
      %9161 = vrot.lane.b32.xlu0 %v9089, 8
      %v9162 = vpop.permute.xlu0 %9161
      %9163 = vrot.lane.b32.xlu0 %v9092, 8
      %v9164 = vpop.permute.xlu0 %9163
      %9165 = vrot.lane.b32.xlu0 %v9094, 8
      %v9166 = vpop.permute.xlu0 %9165
      %9167 = vrot.lane.b32.xlu0 %v9097, 8
      %v9168 = vpop.permute.xlu0 %9167
      %9169 = vrot.lane.b32.xlu0 %v9099, 8
      %v9170 = vpop.permute.xlu0 %9169
      %9171 = vrot.lane.b32.xlu0 %v9102, 8
      %v9172 = vpop.permute.xlu0 %9171
      %9173 = vrot.lane.b32.xlu0 %v9104, 8
      %v9174 = vpop.permute.xlu0 %9173
      %9175 = vrot.lane.b32.xlu0 %v9107, 8
      %v9176 = vpop.permute.xlu0 %9175
      %9177 = vrot.lane.b32.xlu0 %v9109, 8
      %v9178 = vpop.permute.xlu0 %9177
      %9179 = vrot.lane.b32.xlu0 %v9112, 8
      %v9180 = vpop.permute.xlu0 %9179
      %9181 = vrot.lane.b32.xlu0 %v9114, 8
      %v9182 = vpop.permute.xlu0 %9181
      %9183 = vrot.lane.b32.xlu0 %v9117, 8
      %v9184 = vpop.permute.xlu0 %9183
      %9185 = vrot.lane.b32.xlu0 %v9119, 8
      %v9186 = vpop.permute.xlu0 %9185
      %9187 = vrot.lane.b32.xlu0 %v9122, 8
      %v9188 = vpop.permute.xlu0 %9187
      %9189 = vrot.lane.b32.xlu0 %v9124, 8
      %v9190 = vpop.permute.xlu0 %9189
      %9191 = vrot.lane.b32.xlu0 %v9127, 8
      %v9192 = vpop.permute.xlu0 %9191
      %9193 = vrot.lane.b32.xlu0 %v9129, 8
      %v9194 = vpop.permute.xlu0 %9193
      %9195 = vrot.lane.b32.xlu0 %v9132, 8
      %v9196 = vpop.permute.xlu0 %9195
      %9197 = vrot.lane.b32.xlu0 %v9134, 8
      %v9198 = vpop.permute.xlu0 %9197
      %9199 = vrot.lane.b32.xlu0 %v9137, 8
      %v9200 = vpop.permute.xlu0 %9199
      %9201 = vrot.lane.b32.xlu0 %v9139, 8
      %v9202 = vpop.permute.xlu0 %9201
      %9203 = vrot.lane.b32.xlu0 %v9142, 8
      %v9204 = vpop.permute.xlu0 %9203
      %9205 = vrot.lane.b32.xlu0 %v9144, 8
      %v9206 = vpop.permute.xlu0 %9205
      %9207 = vrot.lane.b32.xlu0 %v9147, 8
      %v9208 = vpop.permute.xlu0 %9207
      %9209 = vrot.lane.b32.xlu0 %v9149, 8
      %v9210 = vpop.permute.xlu0 %9209
      %9211 = vrot.lane.b32.xlu0 %v9152, 8
      %v9212 = vpop.permute.xlu0 %9211
      %9213 = vrot.lane.b32.xlu0 %v9154, 8
      %v9214 = vpop.permute.xlu0 %9213
      %v9245 = vrot.slane %v9018, 2
      %v9246 = vrot.slane %v8925, 2
      %v9247 = vsel %vm1119, %v9245, %v9246
      %v9248 = vrot.slane %v9034, 2
      %v9249 = vsel %vm1119, %v9246, %v9248
      %v9250 = vrot.slane %v9019, 2
      %v9251 = vrot.slane %v8928, 2
      %v9252 = vsel %vm1119, %v9250, %v9251
      %v9253 = vrot.slane %v9035, 2
      %v9254 = vsel %vm1119, %v9251, %v9253
      %v9255 = vrot.slane %v9020, 2
      %v9256 = vrot.slane %v8931, 2
      %v9257 = vsel %vm1119, %v9255, %v9256
      %v9258 = vrot.slane %v9036, 2
      %v9259 = vsel %vm1119, %v9256, %v9258
      %v9260 = vrot.slane %v9021, 2
      %v9261 = vrot.slane %v8934, 2
      %v9262 = vsel %vm1119, %v9260, %v9261
      %v9263 = vrot.slane %v9037, 2
      %v9264 = vsel %vm1119, %v9261, %v9263
      %v9265 = vrot.slane %v9022, 2
      %v9266 = vrot.slane %v8937, 2
      %v9267 = vsel %vm1119, %v9265, %v9266
      %v9268 = vrot.slane %v9038, 2
      %v9269 = vsel %vm1119, %v9266, %v9268
      %v9270 = vrot.slane %v9023, 2
      %v9271 = vrot.slane %v8940, 2
      %v9272 = vsel %vm1119, %v9270, %v9271
      %v9273 = vrot.slane %v9039, 2
      %v9274 = vsel %vm1119, %v9271, %v9273
      %v9275 = vrot.slane %v9024, 2
      %v9276 = vrot.slane %v8943, 2
      %v9277 = vsel %vm1119, %v9275, %v9276
      %v9278 = vrot.slane %v9040, 2
      %v9279 = vsel %vm1119, %v9276, %v9278
      %v9280 = vrot.slane %v9025, 2
      %v9281 = vrot.slane %v8946, 2
      %v9282 = vsel %vm1119, %v9280, %v9281
      %v9283 = vrot.slane %v9041, 2
      %v9284 = vsel %vm1119, %v9281, %v9283
      %v9285 = vrot.slane %v9026, 2
      %v9286 = vrot.slane %v8949, 2
      %v9287 = vsel %vm1119, %v9285, %v9286
      %v9288 = vrot.slane %v9042, 2
      %v9289 = vsel %vm1119, %v9286, %v9288
      %v9290 = vrot.slane %v9027, 2
      %v9291 = vrot.slane %v8952, 2
      %v9292 = vsel %vm1119, %v9290, %v9291
      %v9293 = vrot.slane %v9043, 2
      %v9294 = vsel %vm1119, %v9291, %v9293
      %v9295 = vrot.slane %v9028, 2
      %v9296 = vrot.slane %v8955, 2
      %v9297 = vsel %vm1119, %v9295, %v9296
      %v9298 = vrot.slane %v9044, 2
      %v9299 = vsel %vm1119, %v9296, %v9298
      %v9300 = vrot.slane %v9029, 2
      %v9301 = vrot.slane %v8958, 2
      %v9302 = vsel %vm1119, %v9300, %v9301
      %v9303 = vrot.slane %v9045, 2
      %v9304 = vsel %vm1119, %v9301, %v9303
      %v9305 = vrot.slane %v9030, 2
      %v9306 = vrot.slane %v8961, 2
      %v9307 = vsel %vm1119, %v9305, %v9306
      %v9308 = vrot.slane %v9046, 2
      %v9309 = vsel %vm1119, %v9306, %v9308
      %v9310 = vrot.slane %v9031, 2
      %v9311 = vrot.slane %v8964, 2
      %v9312 = vsel %vm1119, %v9310, %v9311
      %v9313 = vrot.slane %v9047, 2
      %v9314 = vsel %vm1119, %v9311, %v9313
      %v9315 = vrot.slane %v9032, 2
      %v9316 = vrot.slane %v8967, 2
      %v9317 = vsel %vm1119, %v9315, %v9316
      %v9318 = vrot.slane %v9048, 2
      %v9319 = vsel %vm1119, %v9316, %v9318
      %9320 = vrot.lane.b32.xlu0 %v9247, 16
      %v9321 = vpop.permute.xlu0 %9320
      %9322 = vrot.lane.b32.xlu0 %v9249, 16
      %v9323 = vpop.permute.xlu0 %9322
      %9324 = vrot.lane.b32.xlu0 %v9252, 16
      %v9325 = vpop.permute.xlu0 %9324
      %9326 = vrot.lane.b32.xlu0 %v9254, 16
      %v9327 = vpop.permute.xlu0 %9326
      %9328 = vrot.lane.b32.xlu0 %v9257, 16
      %v9329 = vpop.permute.xlu0 %9328
      %9330 = vrot.lane.b32.xlu0 %v9259, 16
      %v9331 = vpop.permute.xlu0 %9330
      %9332 = vrot.lane.b32.xlu0 %v9262, 16
      %v9333 = vpop.permute.xlu0 %9332
      %9334 = vrot.lane.b32.xlu0 %v9264, 16
      %v9335 = vpop.permute.xlu0 %9334
      %9336 = vrot.lane.b32.xlu0 %v9267, 16
      %v9337 = vpop.permute.xlu0 %9336
      %9338 = vrot.lane.b32.xlu0 %v9269, 16
      %v9339 = vpop.permute.xlu0 %9338
      %9340 = vrot.lane.b32.xlu0 %v9272, 16
      %v9341 = vpop.permute.xlu0 %9340
      %9342 = vrot.lane.b32.xlu0 %v9274, 16
      %v9343 = vpop.permute.xlu0 %9342
      %9344 = vrot.lane.b32.xlu0 %v9277, 16
      %v9345 = vpop.permute.xlu0 %9344
      %9346 = vrot.lane.b32.xlu0 %v9279, 16
      %v9347 = vpop.permute.xlu0 %9346
      %9348 = vrot.lane.b32.xlu0 %v9282, 16
      %v9349 = vpop.permute.xlu0 %9348
      %9350 = vrot.lane.b32.xlu0 %v9284, 16
      %v9351 = vpop.permute.xlu0 %9350
      %9352 = vrot.lane.b32.xlu0 %v9287, 16
      %v9353 = vpop.permute.xlu0 %9352
      %9354 = vrot.lane.b32.xlu0 %v9289, 16
      %v9355 = vpop.permute.xlu0 %9354
      %9356 = vrot.lane.b32.xlu0 %v9292, 16
      %v9357 = vpop.permute.xlu0 %9356
      %9358 = vrot.lane.b32.xlu0 %v9294, 16
      %v9359 = vpop.permute.xlu0 %9358
      %9360 = vrot.lane.b32.xlu0 %v9297, 16
      %v9361 = vpop.permute.xlu0 %9360
      %9362 = vrot.lane.b32.xlu0 %v9299, 16
      %v9363 = vpop.permute.xlu0 %9362
      %9364 = vrot.lane.b32.xlu0 %v9302, 16
      %v9365 = vpop.permute.xlu0 %9364
      %9366 = vrot.lane.b32.xlu0 %v9304, 16
      %v9367 = vpop.permute.xlu0 %9366
      %9368 = vrot.lane.b32.xlu0 %v9307, 16
      %v9369 = vpop.permute.xlu0 %9368
      %9370 = vrot.lane.b32.xlu0 %v9309, 16
      %v9371 = vpop.permute.xlu0 %9370
      %9372 = vrot.lane.b32.xlu0 %v9312, 16
      %v9373 = vpop.permute.xlu0 %9372
      %9374 = vrot.lane.b32.xlu0 %v9314, 16
      %v9375 = vpop.permute.xlu0 %9374
      %9376 = vrot.lane.b32.xlu0 %v9317, 16
      %v9377 = vpop.permute.xlu0 %9376
      %9378 = vrot.lane.b32.xlu0 %v9319, 16
      %v9379 = vpop.permute.xlu0 %9378
      %9411 = vrot.lane.b32.xlu0 %v9018, 24
      %v9412 = vpop.permute.xlu0 %9411
      %9413 = vrot.lane.b32.xlu0 %v8925, 24
      %v9414 = vpop.permute.xlu0 %9413
      %9415 = vrot.lane.b32.xlu0 %v9019, 24
      %v9416 = vpop.permute.xlu0 %9415
      %9417 = vrot.lane.b32.xlu0 %v8928, 24
      %v9418 = vpop.permute.xlu0 %9417
      %9419 = vrot.lane.b32.xlu0 %v9020, 24
      %v9420 = vpop.permute.xlu0 %9419
      %9421 = vrot.lane.b32.xlu0 %v8931, 24
      %v9422 = vpop.permute.xlu0 %9421
      %9423 = vrot.lane.b32.xlu0 %v9021, 24
      %v9424 = vpop.permute.xlu0 %9423
      %9425 = vrot.lane.b32.xlu0 %v8934, 24
      %v9426 = vpop.permute.xlu0 %9425
      %9427 = vrot.lane.b32.xlu0 %v9022, 24
      %v9428 = vpop.permute.xlu0 %9427
      %9429 = vrot.lane.b32.xlu0 %v8937, 24
      %v9430 = vpop.permute.xlu0 %9429
      %9431 = vrot.lane.b32.xlu0 %v9023, 24
      %v9432 = vpop.permute.xlu0 %9431
      %9433 = vrot.lane.b32.xlu0 %v8940, 24
      %v9434 = vpop.permute.xlu0 %9433
      %9435 = vrot.lane.b32.xlu0 %v9024, 24
      %v9436 = vpop.permute.xlu0 %9435
      %9437 = vrot.lane.b32.xlu0 %v8943, 24
      %v9438 = vpop.permute.xlu0 %9437
      %9439 = vrot.lane.b32.xlu0 %v9025, 24
      %v9440 = vpop.permute.xlu0 %9439
      %9441 = vrot.lane.b32.xlu0 %v8946, 24
      %v9442 = vpop.permute.xlu0 %9441
      %9443 = vrot.lane.b32.xlu0 %v9026, 24
      %v9444 = vpop.permute.xlu0 %9443
      %9445 = vrot.lane.b32.xlu0 %v8949, 24
      %v9446 = vpop.permute.xlu0 %9445
      %9447 = vrot.lane.b32.xlu0 %v9027, 24
      %v9448 = vpop.permute.xlu0 %9447
      %9449 = vrot.lane.b32.xlu0 %v8952, 24
      %v9450 = vpop.permute.xlu0 %9449
      %9451 = vrot.lane.b32.xlu0 %v9028, 24
      %v9452 = vpop.permute.xlu0 %9451
      %9453 = vrot.lane.b32.xlu0 %v8955, 24
      %v9454 = vpop.permute.xlu0 %9453
      %9455 = vrot.lane.b32.xlu0 %v9029, 24
      %v9456 = vpop.permute.xlu0 %9455
      %9457 = vrot.lane.b32.xlu0 %v8958, 24
      %v9458 = vpop.permute.xlu0 %9457
      %9459 = vrot.lane.b32.xlu0 %v9030, 24
      %v9460 = vpop.permute.xlu0 %9459
      %9461 = vrot.lane.b32.xlu0 %v8961, 24
      %v9462 = vpop.permute.xlu0 %9461
      %9463 = vrot.lane.b32.xlu0 %v9031, 24
      %v9464 = vpop.permute.xlu0 %9463
      %9465 = vrot.lane.b32.xlu0 %v8964, 24
      %v9466 = vpop.permute.xlu0 %9465
      %9467 = vrot.lane.b32.xlu0 %v9032, 24
      %v9468 = vpop.permute.xlu0 %9467
      %9469 = vrot.lane.b32.xlu0 %v8967, 24
      %v9470 = vpop.permute.xlu0 %9469
      %9471 = vrot.lane.b32.xlu0 %v9033, 24
      %v9472 = vpop.permute.xlu0 %9471
      %9473 = vrot.lane.b32.xlu0 %v8970, 24
      %v9474 = vpop.permute.xlu0 %9473
      %v9508 = vrot.slane %v9033, 1
      %v9509 = vrot.slane %v8970, 1
      %v9510 = vsel %vm942, %v9508, %v9509
      %v9511 = vrot.slane %v9049, 1
      %v9512 = vsel %vm942, %v9509, %v9511
      %9513 = vrot.lane.b32.xlu0 %v9082, 32
      %v9514 = vpop.permute.xlu0 %9513
      %9515 = vrot.lane.b32.xlu0 %v9084, 32
      %v9516 = vpop.permute.xlu0 %9515
      %9517 = vrot.lane.b32.xlu0 %v9087, 32
      %v9518 = vpop.permute.xlu0 %9517
      %9519 = vrot.lane.b32.xlu0 %v9089, 32
      %v9520 = vpop.permute.xlu0 %9519
      %9521 = vrot.lane.b32.xlu0 %v9092, 32
      %v9522 = vpop.permute.xlu0 %9521
      %9523 = vrot.lane.b32.xlu0 %v9094, 32
      %v9524 = vpop.permute.xlu0 %9523
      %9525 = vrot.lane.b32.xlu0 %v9097, 32
      %v9526 = vpop.permute.xlu0 %9525
      %9527 = vrot.lane.b32.xlu0 %v9099, 32
      %v9528 = vpop.permute.xlu0 %9527
      %9529 = vrot.lane.b32.xlu0 %v9102, 32
      %v9530 = vpop.permute.xlu0 %9529
      %9531 = vrot.lane.b32.xlu0 %v9104, 32
      %v9532 = vpop.permute.xlu0 %9531
      %9533 = vrot.lane.b32.xlu0 %v9107, 32
      %v9534 = vpop.permute.xlu0 %9533
      %9535 = vrot.lane.b32.xlu0 %v9109, 32
      %v9536 = vpop.permute.xlu0 %9535
      %9537 = vrot.lane.b32.xlu0 %v9112, 32
      %v9538 = vpop.permute.xlu0 %9537
      %9539 = vrot.lane.b32.xlu0 %v9114, 32
      %v9540 = vpop.permute.xlu0 %9539
      %9541 = vrot.lane.b32.xlu0 %v9117, 32
      %v9542 = vpop.permute.xlu0 %9541
      %9543 = vrot.lane.b32.xlu0 %v9119, 32
      %v9544 = vpop.permute.xlu0 %9543
      %9545 = vrot.lane.b32.xlu0 %v9122, 32
      %v9546 = vpop.permute.xlu0 %9545
      %9547 = vrot.lane.b32.xlu0 %v9124, 32
      %v9548 = vpop.permute.xlu0 %9547
      %9549 = vrot.lane.b32.xlu0 %v9127, 32
      %v9550 = vpop.permute.xlu0 %9549
      %9551 = vrot.lane.b32.xlu0 %v9129, 32
      %v9552 = vpop.permute.xlu0 %9551
      %9553 = vrot.lane.b32.xlu0 %v9132, 32
      %v9554 = vpop.permute.xlu0 %9553
      %9555 = vrot.lane.b32.xlu0 %v9134, 32
      %v9556 = vpop.permute.xlu0 %9555
      %9557 = vrot.lane.b32.xlu0 %v9137, 32
      %v9558 = vpop.permute.xlu0 %9557
      %9559 = vrot.lane.b32.xlu0 %v9139, 32
      %v9560 = vpop.permute.xlu0 %9559
      %9561 = vrot.lane.b32.xlu0 %v9142, 32
      %v9562 = vpop.permute.xlu0 %9561
      %9563 = vrot.lane.b32.xlu0 %v9144, 32
      %v9564 = vpop.permute.xlu0 %9563
      %9565 = vrot.lane.b32.xlu0 %v9147, 32
      %v9566 = vpop.permute.xlu0 %9565
      %9567 = vrot.lane.b32.xlu0 %v9149, 32
      %v9568 = vpop.permute.xlu0 %9567
      %9569 = vrot.lane.b32.xlu0 %v9152, 32
      %v9570 = vpop.permute.xlu0 %9569
      %9571 = vrot.lane.b32.xlu0 %v9154, 32
      %v9572 = vpop.permute.xlu0 %9571
      %9573 = vrot.lane.b32.xlu0 %v9510, 32
      %v9574 = vpop.permute.xlu0 %9573
      %9575 = vrot.lane.b32.xlu0 %v9512, 32
      %v9576 = vpop.permute.xlu0 %9575
      %v9609 = vrot.slane %v9033, 2
      %v9610 = vrot.slane %v8970, 2
      %v9611 = vsel %vm1119, %v9609, %v9610
      %v9612 = vrot.slane %v9049, 2
      %v9613 = vsel %vm1119, %v9610, %v9612
      %9614 = vrot.lane.b32.xlu0 %v9247, 40
      %v9615 = vpop.permute.xlu0 %9614
      %9616 = vrot.lane.b32.xlu0 %v9249, 40
      %v9617 = vpop.permute.xlu0 %9616
      %9618 = vrot.lane.b32.xlu0 %v9252, 40
      %v9619 = vpop.permute.xlu0 %9618
      %9620 = vrot.lane.b32.xlu0 %v9254, 40
      %v9621 = vpop.permute.xlu0 %9620
      %9622 = vrot.lane.b32.xlu0 %v9257, 40
      %v9623 = vpop.permute.xlu0 %9622
      %9624 = vrot.lane.b32.xlu0 %v9259, 40
      %v9625 = vpop.permute.xlu0 %9624
      %9626 = vrot.lane.b32.xlu0 %v9262, 40
      %v9627 = vpop.permute.xlu0 %9626
      %9628 = vrot.lane.b32.xlu0 %v9264, 40
      %v9629 = vpop.permute.xlu0 %9628
      %9630 = vrot.lane.b32.xlu0 %v9267, 40
      %v9631 = vpop.permute.xlu0 %9630
      %9632 = vrot.lane.b32.xlu0 %v9269, 40
      %v9633 = vpop.permute.xlu0 %9632
      %9634 = vrot.lane.b32.xlu0 %v9272, 40
      %v9635 = vpop.permute.xlu0 %9634
      %9636 = vrot.lane.b32.xlu0 %v9274, 40
      %v9637 = vpop.permute.xlu0 %9636
      %9638 = vrot.lane.b32.xlu0 %v9277, 40
      %v9639 = vpop.permute.xlu0 %9638
      %9640 = vrot.lane.b32.xlu0 %v9279, 40
      %v9641 = vpop.permute.xlu0 %9640
      %9642 = vrot.lane.b32.xlu0 %v9282, 40
      %v9643 = vpop.permute.xlu0 %9642
      %9644 = vrot.lane.b32.xlu0 %v9284, 40
      %v9645 = vpop.permute.xlu0 %9644
      %9646 = vrot.lane.b32.xlu0 %v9287, 40
      %v9647 = vpop.permute.xlu0 %9646
      %9648 = vrot.lane.b32.xlu0 %v9289, 40
      %v9649 = vpop.permute.xlu0 %9648
      %9650 = vrot.lane.b32.xlu0 %v9292, 40
      %v9651 = vpop.permute.xlu0 %9650
      %9652 = vrot.lane.b32.xlu0 %v9294, 40
      %v9653 = vpop.permute.xlu0 %9652
      %9654 = vrot.lane.b32.xlu0 %v9297, 40
      %v9655 = vpop.permute.xlu0 %9654
      %9656 = vrot.lane.b32.xlu0 %v9299, 40
      %v9657 = vpop.permute.xlu0 %9656
      %9658 = vrot.lane.b32.xlu0 %v9302, 40
      %v9659 = vpop.permute.xlu0 %9658
      %9660 = vrot.lane.b32.xlu0 %v9304, 40
      %v9661 = vpop.permute.xlu0 %9660
      %9662 = vrot.lane.b32.xlu0 %v9307, 40
      %v9663 = vpop.permute.xlu0 %9662
      %9664 = vrot.lane.b32.xlu0 %v9309, 40
      %v9665 = vpop.permute.xlu0 %9664
      %9666 = vrot.lane.b32.xlu0 %v9312, 40
      %v9667 = vpop.permute.xlu0 %9666
      %9668 = vrot.lane.b32.xlu0 %v9314, 40
      %v9669 = vpop.permute.xlu0 %9668
      %9670 = vrot.lane.b32.xlu0 %v9317, 40
      %v9671 = vpop.permute.xlu0 %9670
      %9672 = vrot.lane.b32.xlu0 %v9319, 40
      %v9673 = vpop.permute.xlu0 %9672
      %9674 = vrot.lane.b32.xlu0 %v9611, 40
      %v9675 = vpop.permute.xlu0 %9674
      %9676 = vrot.lane.b32.xlu0 %v9613, 40
      %v9677 = vpop.permute.xlu0 %9676
      %9710 = vrot.lane.b32.xlu0 %v9019, 48
      %v9711 = vpop.permute.xlu0 %9710
      %9712 = vrot.lane.b32.xlu0 %v8928, 48
      %v9713 = vpop.permute.xlu0 %9712
      %9714 = vrot.lane.b32.xlu0 %v9020, 48
      %v9715 = vpop.permute.xlu0 %9714
      %9716 = vrot.lane.b32.xlu0 %v8931, 48
      %v9717 = vpop.permute.xlu0 %9716
      %9718 = vrot.lane.b32.xlu0 %v9021, 48
      %v9719 = vpop.permute.xlu0 %9718
      %9720 = vrot.lane.b32.xlu0 %v8934, 48
      %v9721 = vpop.permute.xlu0 %9720
      %9722 = vrot.lane.b32.xlu0 %v9022, 48
      %v9723 = vpop.permute.xlu0 %9722
      %9724 = vrot.lane.b32.xlu0 %v8937, 48
      %v9725 = vpop.permute.xlu0 %9724
      %9726 = vrot.lane.b32.xlu0 %v9023, 48
      %v9727 = vpop.permute.xlu0 %9726
      %9728 = vrot.lane.b32.xlu0 %v8940, 48
      %v9729 = vpop.permute.xlu0 %9728
      %9730 = vrot.lane.b32.xlu0 %v9024, 48
      %v9731 = vpop.permute.xlu0 %9730
      %9732 = vrot.lane.b32.xlu0 %v8943, 48
      %v9733 = vpop.permute.xlu0 %9732
      %9734 = vrot.lane.b32.xlu0 %v9025, 48
      %v9735 = vpop.permute.xlu0 %9734
      %9736 = vrot.lane.b32.xlu0 %v8946, 48
      %v9737 = vpop.permute.xlu0 %9736
      %9738 = vrot.lane.b32.xlu0 %v9026, 48
      %v9739 = vpop.permute.xlu0 %9738
      %9740 = vrot.lane.b32.xlu0 %v8949, 48
      %v9741 = vpop.permute.xlu0 %9740
      %9742 = vrot.lane.b32.xlu0 %v9027, 48
      %v9743 = vpop.permute.xlu0 %9742
      %9744 = vrot.lane.b32.xlu0 %v8952, 48
      %v9745 = vpop.permute.xlu0 %9744
      %9746 = vrot.lane.b32.xlu0 %v9028, 48
      %v9747 = vpop.permute.xlu0 %9746
      %9748 = vrot.lane.b32.xlu0 %v8955, 48
      %v9749 = vpop.permute.xlu0 %9748
      %9750 = vrot.lane.b32.xlu0 %v9029, 48
      %v9751 = vpop.permute.xlu0 %9750
      %9752 = vrot.lane.b32.xlu0 %v8958, 48
      %v9753 = vpop.permute.xlu0 %9752
      %9754 = vrot.lane.b32.xlu0 %v9030, 48
      %v9755 = vpop.permute.xlu0 %9754
      %9756 = vrot.lane.b32.xlu0 %v8961, 48
      %v9757 = vpop.permute.xlu0 %9756
      %9758 = vrot.lane.b32.xlu0 %v9031, 48
      %v9759 = vpop.permute.xlu0 %9758
      %9760 = vrot.lane.b32.xlu0 %v8964, 48
      %v9761 = vpop.permute.xlu0 %9760
      %9762 = vrot.lane.b32.xlu0 %v9032, 48
      %v9763 = vpop.permute.xlu0 %9762
      %9764 = vrot.lane.b32.xlu0 %v8967, 48
      %v9765 = vpop.permute.xlu0 %9764
      %9766 = vrot.lane.b32.xlu0 %v9033, 48
      %v9767 = vpop.permute.xlu0 %9766
      %9768 = vrot.lane.b32.xlu0 %v8970, 48
      %v9769 = vpop.permute.xlu0 %9768
      %9800 = vrot.lane.b32.xlu0 %v9087, 56
      %v9801 = vpop.permute.xlu0 %9800
      %9802 = vrot.lane.b32.xlu0 %v9089, 56
      %v9803 = vpop.permute.xlu0 %9802
      %9804 = vrot.lane.b32.xlu0 %v9092, 56
      %v9805 = vpop.permute.xlu0 %9804
      %9806 = vrot.lane.b32.xlu0 %v9094, 56
      %v9807 = vpop.permute.xlu0 %9806
      %9808 = vrot.lane.b32.xlu0 %v9097, 56
      %v9809 = vpop.permute.xlu0 %9808
      %9810 = vrot.lane.b32.xlu0 %v9099, 56
      %v9811 = vpop.permute.xlu0 %9810
      %9812 = vrot.lane.b32.xlu0 %v9102, 56
      %v9813 = vpop.permute.xlu0 %9812
      %9814 = vrot.lane.b32.xlu0 %v9104, 56
      %v9815 = vpop.permute.xlu0 %9814
      %9816 = vrot.lane.b32.xlu0 %v9107, 56
      %v9817 = vpop.permute.xlu0 %9816
      %9818 = vrot.lane.b32.xlu0 %v9109, 56
      %v9819 = vpop.permute.xlu0 %9818
      %9820 = vrot.lane.b32.xlu0 %v9112, 56
      %v9821 = vpop.permute.xlu0 %9820
      %9822 = vrot.lane.b32.xlu0 %v9114, 56
      %v9823 = vpop.permute.xlu0 %9822
      %9824 = vrot.lane.b32.xlu0 %v9117, 56
      %v9825 = vpop.permute.xlu0 %9824
      %9826 = vrot.lane.b32.xlu0 %v9119, 56
      %v9827 = vpop.permute.xlu0 %9826
      %9828 = vrot.lane.b32.xlu0 %v9122, 56
      %v9829 = vpop.permute.xlu0 %9828
      %9830 = vrot.lane.b32.xlu0 %v9124, 56
      %v9831 = vpop.permute.xlu0 %9830
      %9832 = vrot.lane.b32.xlu0 %v9127, 56
      %v9833 = vpop.permute.xlu0 %9832
      %9834 = vrot.lane.b32.xlu0 %v9129, 56
      %v9835 = vpop.permute.xlu0 %9834
      %9836 = vrot.lane.b32.xlu0 %v9132, 56
      %v9837 = vpop.permute.xlu0 %9836
      %9838 = vrot.lane.b32.xlu0 %v9134, 56
      %v9839 = vpop.permute.xlu0 %9838
      %9840 = vrot.lane.b32.xlu0 %v9137, 56
      %v9841 = vpop.permute.xlu0 %9840
      %9842 = vrot.lane.b32.xlu0 %v9139, 56
      %v9843 = vpop.permute.xlu0 %9842
      %9844 = vrot.lane.b32.xlu0 %v9142, 56
      %v9845 = vpop.permute.xlu0 %9844
      %9846 = vrot.lane.b32.xlu0 %v9144, 56
      %v9847 = vpop.permute.xlu0 %9846
      %9848 = vrot.lane.b32.xlu0 %v9147, 56
      %v9849 = vpop.permute.xlu0 %9848
      %9850 = vrot.lane.b32.xlu0 %v9149, 56
      %v9851 = vpop.permute.xlu0 %9850
      %9852 = vrot.lane.b32.xlu0 %v9152, 56
      %v9853 = vpop.permute.xlu0 %9852
      %9854 = vrot.lane.b32.xlu0 %v9154, 56
      %v9855 = vpop.permute.xlu0 %9854
      %9856 = vrot.lane.b32.xlu0 %v9510, 56
      %v9857 = vpop.permute.xlu0 %9856
      %9858 = vrot.lane.b32.xlu0 %v9512, 56
      %v9859 = vpop.permute.xlu0 %9858
      %9890 = vrot.lane.b32.xlu0 %v9252, 64
      %v9891 = vpop.permute.xlu0 %9890
      %9892 = vrot.lane.b32.xlu0 %v9254, 64
      %v9893 = vpop.permute.xlu0 %9892
      %9894 = vrot.lane.b32.xlu0 %v9257, 64
      %v9895 = vpop.permute.xlu0 %9894
      %9896 = vrot.lane.b32.xlu0 %v9259, 64
      %v9897 = vpop.permute.xlu0 %9896
      %9898 = vrot.lane.b32.xlu0 %v9262, 64
      %v9899 = vpop.permute.xlu0 %9898
      %9900 = vrot.lane.b32.xlu0 %v9264, 64
      %v9901 = vpop.permute.xlu0 %9900
      %9902 = vrot.lane.b32.xlu0 %v9267, 64
      %v9903 = vpop.permute.xlu0 %9902
      %9904 = vrot.lane.b32.xlu0 %v9269, 64
      %v9905 = vpop.permute.xlu0 %9904
      %9906 = vrot.lane.b32.xlu0 %v9272, 64
      %v9907 = vpop.permute.xlu0 %9906
      %9908 = vrot.lane.b32.xlu0 %v9274, 64
      %v9909 = vpop.permute.xlu0 %9908
      %9910 = vrot.lane.b32.xlu0 %v9277, 64
      %v9911 = vpop.permute.xlu0 %9910
      %9912 = vrot.lane.b32.xlu0 %v9279, 64
      %v9913 = vpop.permute.xlu0 %9912
      %9914 = vrot.lane.b32.xlu0 %v9282, 64
      %v9915 = vpop.permute.xlu0 %9914
      %9916 = vrot.lane.b32.xlu0 %v9284, 64
      %v9917 = vpop.permute.xlu0 %9916
      %9918 = vrot.lane.b32.xlu0 %v9287, 64
      %v9919 = vpop.permute.xlu0 %9918
      %9920 = vrot.lane.b32.xlu0 %v9289, 64
      %v9921 = vpop.permute.xlu0 %9920
      %9922 = vrot.lane.b32.xlu0 %v9292, 64
      %v9923 = vpop.permute.xlu0 %9922
      %9924 = vrot.lane.b32.xlu0 %v9294, 64
      %v9925 = vpop.permute.xlu0 %9924
      %9926 = vrot.lane.b32.xlu0 %v9297, 64
      %v9927 = vpop.permute.xlu0 %9926
      %9928 = vrot.lane.b32.xlu0 %v9299, 64
      %v9929 = vpop.permute.xlu0 %9928
      %9930 = vrot.lane.b32.xlu0 %v9302, 64
      %v9931 = vpop.permute.xlu0 %9930
      %9932 = vrot.lane.b32.xlu0 %v9304, 64
      %v9933 = vpop.permute.xlu0 %9932
      %9934 = vrot.lane.b32.xlu0 %v9307, 64
      %v9935 = vpop.permute.xlu0 %9934
      %9936 = vrot.lane.b32.xlu0 %v9309, 64
      %v9937 = vpop.permute.xlu0 %9936
      %9938 = vrot.lane.b32.xlu0 %v9312, 64
      %v9939 = vpop.permute.xlu0 %9938
      %9940 = vrot.lane.b32.xlu0 %v9314, 64
      %v9941 = vpop.permute.xlu0 %9940
      %9942 = vrot.lane.b32.xlu0 %v9317, 64
      %v9943 = vpop.permute.xlu0 %9942
      %9944 = vrot.lane.b32.xlu0 %v9319, 64
      %v9945 = vpop.permute.xlu0 %9944
      %9946 = vrot.lane.b32.xlu0 %v9611, 64
      %v9947 = vpop.permute.xlu0 %9946
      %9948 = vrot.lane.b32.xlu0 %v9613, 64
      %v9949 = vpop.permute.xlu0 %9948
      %v9980 = vsel %vm1917, %v9018, %v9156
      %v9981 = vsel %vm1917, %v8925, %v9158
      %v9982 = vsel %vm1917, %v9019, %v9160
      %v9983 = vsel %vm1917, %v8928, %v9162
      %v9984 = vsel %vm1917, %v9020, %v9164
      %v9985 = vsel %vm1917, %v8931, %v9166
      %v9986 = vsel %vm1917, %v9021, %v9168
      %v9987 = vsel %vm1917, %v8934, %v9170
      %v9988 = vsel %vm1917, %v9022, %v9172
      %v9989 = vsel %vm1917, %v8937, %v9174
      %v9990 = vsel %vm1917, %v9023, %v9176
      %v9991 = vsel %vm1917, %v8940, %v9178
      %v9992 = vsel %vm1917, %v9024, %v9180
      %v9993 = vsel %vm1917, %v8943, %v9182
      %v9994 = vsel %vm1917, %v9025, %v9184
      %v9995 = vsel %vm1917, %v8946, %v9186
      %v9996 = vsel %vm1917, %v9026, %v9188
      %v9997 = vsel %vm1917, %v8949, %v9190
      %v9998 = vsel %vm1917, %v9027, %v9192
      %v9999 = vsel %vm1917, %v8952, %v9194
      %v10000 = vsel %vm1917, %v9028, %v9196
      %v10001 = vsel %vm1917, %v8955, %v9198
      %v10002 = vsel %vm1917, %v9029, %v9200
      %v10003 = vsel %vm1917, %v8958, %v9202
      %v10004 = vsel %vm1917, %v9030, %v9204
      %v10005 = vsel %vm1917, %v8961, %v9206
      %v10006 = vsel %vm1917, %v9031, %v9208
      %v10007 = vsel %vm1917, %v8964, %v9210
      %v10008 = vsel %vm1917, %v9032, %v9212
      %v10009 = vsel %vm1917, %v8967, %v9214
      %v10010 = vsel %vm1983, %v9980, %v9321
      %v10011 = vsel %vm1983, %v9981, %v9323
      %v10012 = vsel %vm1983, %v9982, %v9325
      %v10013 = vsel %vm1983, %v9983, %v9327
      %v10014 = vsel %vm1983, %v9984, %v9329
      %v10015 = vsel %vm1983, %v9985, %v9331
      %v10016 = vsel %vm1983, %v9986, %v9333
      %v10017 = vsel %vm1983, %v9987, %v9335
      %v10018 = vsel %vm1983, %v9988, %v9337
      %v10019 = vsel %vm1983, %v9989, %v9339
      %v10020 = vsel %vm1983, %v9990, %v9341
      %v10021 = vsel %vm1983, %v9991, %v9343
      %v10022 = vsel %vm1983, %v9992, %v9345
      %v10023 = vsel %vm1983, %v9993, %v9347
      %v10024 = vsel %vm1983, %v9994, %v9349
      %v10025 = vsel %vm1983, %v9995, %v9351
      %v10026 = vsel %vm1983, %v9996, %v9353
      %v10027 = vsel %vm1983, %v9997, %v9355
      %v10028 = vsel %vm1983, %v9998, %v9357
      %v10029 = vsel %vm1983, %v9999, %v9359
      %v10030 = vsel %vm1983, %v10000, %v9361
      %v10031 = vsel %vm1983, %v10001, %v9363
      %v10032 = vsel %vm1983, %v10002, %v9365
      %v10033 = vsel %vm1983, %v10003, %v9367
      %v10034 = vsel %vm1983, %v10004, %v9369
      %v10035 = vsel %vm1983, %v10005, %v9371
      %v10036 = vsel %vm1983, %v10006, %v9373
      %v10037 = vsel %vm1983, %v10007, %v9375
      %v10038 = vsel %vm1983, %v10008, %v9377
      %v10039 = vsel %vm1983, %v10009, %v9379
      %v10040 = vsel %vm2049, %v3554, %v9412
      %v10041 = vsel %vm2049, %v3555, %v9414
      %v10042 = vsel %vm2049, %v10010, %v9416
      %v10043 = vsel %vm2049, %v10011, %v9418
      %v10044 = vsel %vm2049, %v10012, %v9420
      %v10045 = vsel %vm2049, %v10013, %v9422
      %v10046 = vsel %vm2049, %v10014, %v9424
      %v10047 = vsel %vm2049, %v10015, %v9426
      %v10048 = vsel %vm2049, %v10016, %v9428
      %v10049 = vsel %vm2049, %v10017, %v9430
      %v10050 = vsel %vm2049, %v10018, %v9432
      %v10051 = vsel %vm2049, %v10019, %v9434
      %v10052 = vsel %vm2049, %v10020, %v9436
      %v10053 = vsel %vm2049, %v10021, %v9438
      %v10054 = vsel %vm2049, %v10022, %v9440
      %v10055 = vsel %vm2049, %v10023, %v9442
      %v10056 = vsel %vm2049, %v10024, %v9444
      %v10057 = vsel %vm2049, %v10025, %v9446
      %v10058 = vsel %vm2049, %v10026, %v9448
      %v10059 = vsel %vm2049, %v10027, %v9450
      %v10060 = vsel %vm2049, %v10028, %v9452
      %v10061 = vsel %vm2049, %v10029, %v9454
      %v10062 = vsel %vm2049, %v10030, %v9456
      %v10063 = vsel %vm2049, %v10031, %v9458
      %v10064 = vsel %vm2049, %v10032, %v9460
      %v10065 = vsel %vm2049, %v10033, %v9462
      %v10066 = vsel %vm2049, %v10034, %v9464
      %v10067 = vsel %vm2049, %v10035, %v9466
      %v10068 = vsel %vm2049, %v10036, %v9468
      %v10069 = vsel %vm2049, %v10037, %v9470
      %v10070 = vsel %vm2049, %v10038, %v9472
      %v10071 = vsel %vm2049, %v10039, %v9474
      %v10072 = vsel %vm2115, %v10040, %v9514
      %v10073 = vsel %vm2115, %v10041, %v9516
      %v10074 = vsel %vm2115, %v10042, %v9518
      %v10075 = vsel %vm2115, %v10043, %v9520
      %v10076 = vsel %vm2115, %v10044, %v9522
      %v10077 = vsel %vm2115, %v10045, %v9524
      %v10078 = vsel %vm2115, %v10046, %v9526
      %v10079 = vsel %vm2115, %v10047, %v9528
      %v10080 = vsel %vm2115, %v10048, %v9530
      %v10081 = vsel %vm2115, %v10049, %v9532
      %v10082 = vsel %vm2115, %v10050, %v9534
      %v10083 = vsel %vm2115, %v10051, %v9536
      %v10084 = vsel %vm2115, %v10052, %v9538
      %v10085 = vsel %vm2115, %v10053, %v9540
      %v10086 = vsel %vm2115, %v10054, %v9542
      %v10087 = vsel %vm2115, %v10055, %v9544
      %v10088 = vsel %vm2115, %v10056, %v9546
      %v10089 = vsel %vm2115, %v10057, %v9548
      %v10090 = vsel %vm2115, %v10058, %v9550
      %v10091 = vsel %vm2115, %v10059, %v9552
      %v10092 = vsel %vm2115, %v10060, %v9554
      %v10093 = vsel %vm2115, %v10061, %v9556
      %v10094 = vsel %vm2115, %v10062, %v9558
      %v10095 = vsel %vm2115, %v10063, %v9560
      %v10096 = vsel %vm2115, %v10064, %v9562
      %v10097 = vsel %vm2115, %v10065, %v9564
      %v10098 = vsel %vm2115, %v10066, %v9566
      %v10099 = vsel %vm2115, %v10067, %v9568
      %v10100 = vsel %vm2115, %v10068, %v9570
      %v10101 = vsel %vm2115, %v10069, %v9572
      %v10102 = vsel %vm2115, %v10070, %v9574
      %v10103 = vsel %vm2115, %v10071, %v9576
      %v10104 = vsel %vm3650, %v10072, %v9615
      %v10105 = vsel %vm3650, %v10073, %v9617
      %v10106 = vsel %vm3650, %v10074, %v9619
      %v10107 = vsel %vm3650, %v10075, %v9621
      %v10108 = vsel %vm3650, %v10076, %v9623
      %v10109 = vsel %vm3650, %v10077, %v9625
      %v10110 = vsel %vm3650, %v10078, %v9627
      %v10111 = vsel %vm3650, %v10079, %v9629
      %v10112 = vsel %vm3650, %v10080, %v9631
      %v10113 = vsel %vm3650, %v10081, %v9633
      %v10114 = vsel %vm3650, %v10082, %v9635
      %v10115 = vsel %vm3650, %v10083, %v9637
      %v10116 = vsel %vm3650, %v10084, %v9639
      %v10117 = vsel %vm3650, %v10085, %v9641
      %v10118 = vsel %vm3650, %v10086, %v9643
      %v10119 = vsel %vm3650, %v10087, %v9645
      %v10120 = vsel %vm3650, %v10088, %v9647
      %v10121 = vsel %vm3650, %v10089, %v9649
      %v10122 = vsel %vm3650, %v10090, %v9651
      %v10123 = vsel %vm3650, %v10091, %v9653
      %v10124 = vsel %vm3650, %v10092, %v9655
      %v10125 = vsel %vm3650, %v10093, %v9657
      %v10126 = vsel %vm3650, %v10094, %v9659
      %v10127 = vsel %vm3650, %v10095, %v9661
      %v10128 = vsel %vm3650, %v10096, %v9663
      %v10129 = vsel %vm3650, %v10097, %v9665
      %v10130 = vsel %vm3650, %v10098, %v9667
      %v10131 = vsel %vm3650, %v10099, %v9669
      %v10132 = vsel %vm3650, %v10100, %v9671
      %v10133 = vsel %vm3650, %v10101, %v9673
      %v10134 = vsel %vm3650, %v10102, %v9675
      %v10135 = vsel %vm3650, %v10103, %v9677
      %v10136 = vsel %vm3683, %v10104, %v9711
      %v10137 = vsel %vm3683, %v10105, %v9713
      %v10138 = vsel %vm3683, %v10106, %v9715
      %v10139 = vsel %vm3683, %v10107, %v9717
      %v10140 = vsel %vm3683, %v10108, %v9719
      %v10141 = vsel %vm3683, %v10109, %v9721
      %v10142 = vsel %vm3683, %v10110, %v9723
      %v10143 = vsel %vm3683, %v10111, %v9725
      %v10144 = vsel %vm3683, %v10112, %v9727
      %v10145 = vsel %vm3683, %v10113, %v9729
      %v10146 = vsel %vm3683, %v10114, %v9731
      %v10147 = vsel %vm3683, %v10115, %v9733
      %v10148 = vsel %vm3683, %v10116, %v9735
      %v10149 = vsel %vm3683, %v10117, %v9737
      %v10150 = vsel %vm3683, %v10118, %v9739
      %v10151 = vsel %vm3683, %v10119, %v9741
      %v10152 = vsel %vm3683, %v10120, %v9743
      %v10153 = vsel %vm3683, %v10121, %v9745
      %v10154 = vsel %vm3683, %v10122, %v9747
      %v10155 = vsel %vm3683, %v10123, %v9749
      %v10156 = vsel %vm3683, %v10124, %v9751
      %v10157 = vsel %vm3683, %v10125, %v9753
      %v10158 = vsel %vm3683, %v10126, %v9755
      %v10159 = vsel %vm3683, %v10127, %v9757
      %v10160 = vsel %vm3683, %v10128, %v9759
      %v10161 = vsel %vm3683, %v10129, %v9761
      %v10162 = vsel %vm3683, %v10130, %v9763
      %v10163 = vsel %vm3683, %v10131, %v9765
      %v10164 = vsel %vm3683, %v10132, %v9767
      %v10165 = vsel %vm3683, %v10133, %v9769
      %v10166 = vsel %vm3683, %v10134, %v3295
      %v10167 = vsel %vm3683, %v10135, %v3297
      %v10168 = vsel %vm3716, %v10136, %v9801
      %v10169 = vsel %vm3716, %v10137, %v9803
      %v10170 = vsel %vm3716, %v10138, %v9805
      %v10171 = vsel %vm3716, %v10139, %v9807
      %v10172 = vsel %vm3716, %v10140, %v9809
      %v10173 = vsel %vm3716, %v10141, %v9811
      %v10174 = vsel %vm3716, %v10142, %v9813
      %v10175 = vsel %vm3716, %v10143, %v9815
      %v10176 = vsel %vm3716, %v10144, %v9817
      %v10177 = vsel %vm3716, %v10145, %v9819
      %v10178 = vsel %vm3716, %v10146, %v9821
      %v10179 = vsel %vm3716, %v10147, %v9823
      %v10180 = vsel %vm3716, %v10148, %v9825
      %v10181 = vsel %vm3716, %v10149, %v9827
      %v10182 = vsel %vm3716, %v10150, %v9829
      %v10183 = vsel %vm3716, %v10151, %v9831
      %v10184 = vsel %vm3716, %v10152, %v9833
      %v10185 = vsel %vm3716, %v10153, %v9835
      %v10186 = vsel %vm3716, %v10154, %v9837
      %v10187 = vsel %vm3716, %v10155, %v9839
      %v10188 = vsel %vm3716, %v10156, %v9841
      %v10189 = vsel %vm3716, %v10157, %v9843
      %v10190 = vsel %vm3716, %v10158, %v9845
      %v10191 = vsel %vm3716, %v10159, %v9847
      %v10192 = vsel %vm3716, %v10160, %v9849
      %v10193 = vsel %vm3716, %v10161, %v9851
      %v10194 = vsel %vm3716, %v10162, %v9853
      %v10195 = vsel %vm3716, %v10163, %v9855
      %v10196 = vsel %vm3716, %v10164, %v9857
      %v10197 = vsel %vm3716, %v10165, %v9859
      %v10198 = vsel %vm3716, %v10166, %v3391
      %v10199 = vsel %vm3716, %v10167, %v3393
      %v10200 = vsel %vm3749, %v10168, %v9891
      %v10201 = vsel %vm3749, %v10169, %v9893
      %v10202 = vsel %vm3749, %v10170, %v9895
      %v10203 = vsel %vm3749, %v10171, %v9897
      %v10204 = vsel %vm3749, %v10172, %v9899
      %v10205 = vsel %vm3749, %v10173, %v9901
      %v10206 = vsel %vm3749, %v10174, %v9903
      %v10207 = vsel %vm3749, %v10175, %v9905
      %v10208 = vsel %vm3749, %v10176, %v9907
      %v10209 = vsel %vm3749, %v10177, %v9909
      %v10210 = vsel %vm3749, %v10178, %v9911
      %v10211 = vsel %vm3749, %v10179, %v9913
      %v10212 = vsel %vm3749, %v10180, %v9915
      %v10213 = vsel %vm3749, %v10181, %v9917
      %v10214 = vsel %vm3749, %v10182, %v9919
      %v10215 = vsel %vm3749, %v10183, %v9921
      %v10216 = vsel %vm3749, %v10184, %v9923
      %v10217 = vsel %vm3749, %v10185, %v9925
      %v10218 = vsel %vm3749, %v10186, %v9927
      %v10219 = vsel %vm3749, %v10187, %v9929
      %v10220 = vsel %vm3749, %v10188, %v9931
      %v10221 = vsel %vm3749, %v10189, %v9933
      %v10222 = vsel %vm3749, %v10190, %v9935
      %v10223 = vsel %vm3749, %v10191, %v9937
      %v10224 = vsel %vm3749, %v10192, %v9939
      %v10225 = vsel %vm3749, %v10193, %v9941
      %v10226 = vsel %vm3749, %v10194, %v9943
      %v10227 = vsel %vm3749, %v10195, %v9945
      %v10228 = vsel %vm3749, %v10196, %v9947
      %v10229 = vsel %vm3749, %v10197, %v9949
      %v10230 = vsel %vm3749, %v10198, %v3487
      %v10231 = vsel %vm3749, %v10199, %v3489
      %v10232 = vld [vmem:[%s19] sm:$0xff]
      %v10233 = vld [vmem:[%s19 + $0x8] sm:$0xff]
      %v10234 = vld [vmem:[%s19 + $0x10] sm:$0xff]
      %v10235 = vld [vmem:[%s19 + $0x18] sm:$0xff]
      %v10236 = vld [vmem:[%s19 + $0x20] sm:$0xff]
      %v10237 = vld [vmem:[%s19 + $0x28] sm:$0xff]
      %v10238 = vld [vmem:[%s19 + $0x30] sm:$0xff]
      %v10239 = vld [vmem:[%s19 + $0x38] sm:$0xff]
      %v10240 = vld [vmem:[%s19 + $0x40] sm:$0xff]
      %v10241 = vld [vmem:[%s20] sm:$0x1]
      %v10243 = vperm.slane %v10241, 0
      %v10246 = vsel %vm3795, %v10200, 0
      %v10249 = vsel %vm3795, %v10201, 0
      %v10252 = vsel %vm3795, %v10202, 0
      %v10255 = vsel %vm3795, %v10203, 0
      %v10258 = vsel %vm3795, %v10204, 0
      %v10261 = vsel %vm3795, %v10205, 0
      %v10264 = vsel %vm3795, %v10206, 0
      %v10267 = vsel %vm3795, %v10207, 0
      %v10270 = vsel %vm3795, %v10208, 0
      %v10273 = vsel %vm3795, %v10209, 0
      %v10276 = vsel %vm3795, %v10210, 0
      %v10279 = vsel %vm3795, %v10211, 0
      %v10282 = vsel %vm3795, %v10212, 0
      %v10285 = vsel %vm3795, %v10213, 0
      %v10288 = vsel %vm3795, %v10214, 0
      %v10291 = vsel %vm3795, %v10215, 0
      %v10294 = vsel %vm3795, %v10216, 0
      %v10297 = vsel %vm3795, %v10217, 0
      %v10300 = vsel %vm3795, %v10218, 0
      %v10303 = vsel %vm3795, %v10219, 0
      %v10306 = vsel %vm3795, %v10220, 0
      %v10309 = vsel %vm3795, %v10221, 0
      %v10312 = vsel %vm3795, %v10222, 0
      %v10315 = vsel %vm3795, %v10223, 0
      %v10318 = vsel %vm3795, %v10224, 0
      %v10321 = vsel %vm3795, %v10225, 0
      %v10324 = vsel %vm3795, %v10226, 0
      %v10327 = vsel %vm3795, %v10227, 0
      %v10330 = vsel %vm3795, %v10228, 0
      %v10333 = vsel %vm3795, %v10229, 0
      %v10336 = vsel %vm3795, %v10230, 0
      %v10339 = vsel %vm3795, %v10231, 0
      %10341 = vmatpush.msra.mxu0 0.0
      %10342 = vmatpush.msra.mxu0 0.0
      %10343 = vmatpush.msra.mxu0 0.0
      %10344 = vmatpush.msra.mxu0 0.0
      %10345 = vmatpush.msra.mxu0 0.0
      %10346 = vmatpush.msra.mxu0 0.0
      %10347 = vmatpush.msra.mxu0 0.0
      %10348 = vmatpush.msra.mxu0 %v10240
      %10349 = vmatpush.msra.mxu0 %v10239
      %10350 = vmatpush.msra.mxu0 %v10238
      %10351 = vmatpush.msra.mxu0 %v10237
      %10352 = vmatpush.msra.mxu0 %v10236
      %10353 = vmatpush.msra.mxu0 %v10235
      %10354 = vmatpush.msra.mxu0 %v10234
      %10355 = vmatpush.msra.mxu0 %v10233
      %10356 = vmatpush.msra.mxu0 %v10232
      %10357 = vmatmul.f32.gmra.mxu0 %v10246
      %v10358 = vpop.f32.mrf.mxu0
      %v10359 = vadd.f32 %v10243, %v10358
      %10360 = vmatmul.f32.gmra.mxu0 %v10249
      %v10361 = vpop.f32.mrf.mxu0
      %v10362 = vadd.f32 %v10243, %v10361
      %10363 = vmatmul.f32.gmra.mxu0 %v10252
      %v10364 = vpop.f32.mrf.mxu0
      %v10365 = vadd.f32 %v10243, %v10364
      %10366 = vmatmul.f32.gmra.mxu0 %v10255
      %v10367 = vpop.f32.mrf.mxu0
      %v10368 = vadd.f32 %v10243, %v10367
      %10369 = vmatmul.f32.gmra.mxu0 %v10258
      %v10370 = vpop.f32.mrf.mxu0
      %v10371 = vadd.f32 %v10243, %v10370
      %10372 = vmatmul.f32.gmra.mxu0 %v10261
      %v10373 = vpop.f32.mrf.mxu0
      %v10374 = vadd.f32 %v10243, %v10373
      %10375 = vmatmul.f32.gmra.mxu0 %v10264
      %v10376 = vpop.f32.mrf.mxu0
      %v10377 = vadd.f32 %v10243, %v10376
      %10378 = vmatmul.f32.gmra.mxu0 %v10267
      %v10379 = vpop.f32.mrf.mxu0
      %v10380 = vadd.f32 %v10243, %v10379
      %10381 = vmatmul.f32.gmra.mxu0 %v10270
      %v10382 = vpop.f32.mrf.mxu0
      %v10383 = vadd.f32 %v10243, %v10382
      %10384 = vmatmul.f32.gmra.mxu0 %v10273
      %v10385 = vpop.f32.mrf.mxu0
      %v10386 = vadd.f32 %v10243, %v10385
      %10387 = vmatmul.f32.gmra.mxu0 %v10276
      %v10388 = vpop.f32.mrf.mxu0
      %v10389 = vadd.f32 %v10243, %v10388
      %10390 = vmatmul.f32.gmra.mxu0 %v10279
      %v10391 = vpop.f32.mrf.mxu0
      %v10392 = vadd.f32 %v10243, %v10391
      %10393 = vmatmul.f32.gmra.mxu0 %v10282
      %v10394 = vpop.f32.mrf.mxu0
      %v10395 = vadd.f32 %v10243, %v10394
      %10396 = vmatmul.f32.gmra.mxu0 %v10285
      %v10397 = vpop.f32.mrf.mxu0
      %v10398 = vadd.f32 %v10243, %v10397
      %10399 = vmatmul.f32.gmra.mxu0 %v10288
      %v10400 = vpop.f32.mrf.mxu0
      %v10401 = vadd.f32 %v10243, %v10400
      %10402 = vmatmul.f32.gmra.mxu0 %v10291
      %v10403 = vpop.f32.mrf.mxu0
      %v10404 = vadd.f32 %v10243, %v10403
      %10405 = vmatmul.f32.gmra.mxu0 %v10294
      %v10406 = vpop.f32.mrf.mxu0
      %v10407 = vadd.f32 %v10243, %v10406
      %10408 = vmatmul.f32.gmra.mxu0 %v10297
      %v10409 = vpop.f32.mrf.mxu0
      %v10410 = vadd.f32 %v10243, %v10409
      %10411 = vmatmul.f32.gmra.mxu0 %v10300
      %v10412 = vpop.f32.mrf.mxu0
      %v10413 = vadd.f32 %v10243, %v10412
      %10414 = vmatmul.f32.gmra.mxu0 %v10303
      %v10415 = vpop.f32.mrf.mxu0
      %v10416 = vadd.f32 %v10243, %v10415
      %10417 = vmatmul.f32.gmra.mxu0 %v10306
      %v10418 = vpop.f32.mrf.mxu0
      %v10419 = vadd.f32 %v10243, %v10418
      %10420 = vmatmul.f32.gmra.mxu0 %v10309
      %v10421 = vpop.f32.mrf.mxu0
      %v10422 = vadd.f32 %v10243, %v10421
      %10423 = vmatmul.f32.gmra.mxu0 %v10312
      %v10424 = vpop.f32.mrf.mxu0
      %v10425 = vadd.f32 %v10243, %v10424
      %10426 = vmatmul.f32.gmra.mxu0 %v10315
      %v10427 = vpop.f32.mrf.mxu0
      %v10428 = vadd.f32 %v10243, %v10427
      %10429 = vmatmul.f32.gmra.mxu0 %v10318
      %v10430 = vpop.f32.mrf.mxu0
      %v10431 = vadd.f32 %v10243, %v10430
      %10432 = vmatmul.f32.gmra.mxu0 %v10321
      %v10433 = vpop.f32.mrf.mxu0
      %v10434 = vadd.f32 %v10243, %v10433
      %10435 = vmatmul.f32.gmra.mxu0 %v10324
      %v10436 = vpop.f32.mrf.mxu0
      %v10437 = vadd.f32 %v10243, %v10436
      %10438 = vmatmul.f32.gmra.mxu0 %v10327
      %v10439 = vpop.f32.mrf.mxu0
      %v10440 = vadd.f32 %v10243, %v10439
      %10441 = vmatmul.f32.gmra.mxu0 %v10330
      %v10442 = vpop.f32.mrf.mxu0
      %v10443 = vadd.f32 %v10243, %v10442
      %10444 = vmatmul.f32.gmra.mxu0 %v10333
      %v10445 = vpop.f32.mrf.mxu0
      %v10446 = vadd.f32 %v10243, %v10445
      %10447 = vmatmul.f32.gmra.mxu0 %v10336
      %v10448 = vpop.f32.mrf.mxu0
      %v10449 = vadd.f32 %v10243, %v10448
      %10450 = vmatmul.f32.gmra.mxu0 %v10339
      %v10451 = vpop.f32.mrf.mxu0
      %v10452 = vadd.f32 %v10243, %v10451
      %10453 = vdwg.mxu0
      %v10454 = vmax.f32 %v10359, 0.0
      %v10455 = vmax.f32 %v10362, 0.0
      %v10456 = vmax.f32 %v10365, 0.0
      %v10457 = vmax.f32 %v10368, 0.0
      %v10458 = vmax.f32 %v10371, 0.0
      %v10459 = vmax.f32 %v10374, 0.0
      %v10460 = vmax.f32 %v10377, 0.0
      %v10461 = vmax.f32 %v10380, 0.0
      %v10462 = vmax.f32 %v10383, 0.0
      %v10463 = vmax.f32 %v10386, 0.0
      %v10464 = vmax.f32 %v10389, 0.0
      %v10465 = vmax.f32 %v10392, 0.0
      %v10466 = vmax.f32 %v10395, 0.0
      %v10467 = vmax.f32 %v10398, 0.0
      %v10468 = vmax.f32 %v10401, 0.0
      %v10469 = vmax.f32 %v10404, 0.0
      %v10470 = vmax.f32 %v10407, 0.0
      %v10471 = vmax.f32 %v10410, 0.0
      %v10472 = vmax.f32 %v10413, 0.0
      %v10473 = vmax.f32 %v10416, 0.0
      %v10474 = vmax.f32 %v10419, 0.0
      %v10475 = vmax.f32 %v10422, 0.0
      %v10476 = vmax.f32 %v10425, 0.0
      %v10477 = vmax.f32 %v10428, 0.0
      %v10478 = vmax.f32 %v10431, 0.0
      %v10479 = vmax.f32 %v10434, 0.0
      %v10480 = vmax.f32 %v10437, 0.0
      %v10481 = vmax.f32 %v10440, 0.0
      %v10482 = vmax.f32 %v10443, 0.0
      %v10483 = vmax.f32 %v10446, 0.0
      %v10484 = vmax.f32 %v10449, 0.0
      %v10485 = vmax.f32 %v10452, 0.0
      %v10486 = vld [vmem:[%s21] sm:$0xff]
      %v10487 = vld [vmem:[%s22] sm:$0x1]
      %v10489 = vperm.slane %v10487, 0
      %v10492 = vsel %vm1917, %v10454, 0
      %v10495 = vsel %vm1917, %v10455, 0
      %v10498 = vsel %vm1917, %v10456, 0
      %v10501 = vsel %vm1917, %v10457, 0
      %v10504 = vsel %vm1917, %v10458, 0
      %v10507 = vsel %vm1917, %v10459, 0
      %v10510 = vsel %vm1917, %v10460, 0
      %v10513 = vsel %vm1917, %v10461, 0
      %v10516 = vsel %vm1917, %v10462, 0
      %v10519 = vsel %vm1917, %v10463, 0
      %v10522 = vsel %vm1917, %v10464, 0
      %v10525 = vsel %vm1917, %v10465, 0
      %v10528 = vsel %vm1917, %v10466, 0
      %v10531 = vsel %vm1917, %v10467, 0
      %v10534 = vsel %vm1917, %v10468, 0
      %v10537 = vsel %vm1917, %v10469, 0
      %v10540 = vsel %vm1917, %v10470, 0
      %v10543 = vsel %vm1917, %v10471, 0
      %v10546 = vsel %vm1917, %v10472, 0
      %v10549 = vsel %vm1917, %v10473, 0
      %v10552 = vsel %vm1917, %v10474, 0
      %v10555 = vsel %vm1917, %v10475, 0
      %v10558 = vsel %vm1917, %v10476, 0
      %v10561 = vsel %vm1917, %v10477, 0
      %v10564 = vsel %vm1917, %v10478, 0
      %v10567 = vsel %vm1917, %v10479, 0
      %v10570 = vsel %vm1917, %v10480, 0
      %v10573 = vsel %vm1917, %v10481, 0
      %v10576 = vsel %vm1917, %v10482, 0
      %v10579 = vsel %vm1917, %v10483, 0
      %v10582 = vsel %vm1917, %v10484, 0
      %v10585 = vsel %vm1917, %v10485, 0
      %10587 = vmatpush.msra.mxu0 0.0
      %10588 = vmatpush.msra.mxu0 0.0
      %10589 = vmatpush.msra.mxu0 0.0
      %10590 = vmatpush.msra.mxu0 0.0
      %10591 = vmatpush.msra.mxu0 0.0
      %10592 = vmatpush.msra.mxu0 0.0
      %10593 = vmatpush.msra.mxu0 0.0
      %10594 = vmatpush.msra.mxu0 0.0
      %10595 = vmatpush.msra.mxu0 0.0
      %10596 = vmatpush.msra.mxu0 0.0
      %10597 = vmatpush.msra.mxu0 0.0
      %10598 = vmatpush.msra.mxu0 0.0
      %10599 = vmatpush.msra.mxu0 0.0
      %10600 = vmatpush.msra.mxu0 0.0
      %10601 = vmatpush.msra.mxu0 0.0
      %10602 = vmatpush.msra.mxu0 %v10486
      %10603 = vmatmul.f32.gmra.mxu0 %v10492
      %v10604 = vpop.f32.mrf.mxu0
      %v10605 = vadd.f32 %v10489, %v10604
      %10606 = vmatmul.f32.gmra.mxu0 %v10495
      %v10607 = vpop.f32.mrf.mxu0
      %v10608 = vadd.f32 %v10489, %v10607
      %10609 = vmatmul.f32.gmra.mxu0 %v10498
      %v10610 = vpop.f32.mrf.mxu0
      %v10611 = vadd.f32 %v10489, %v10610
      %10612 = vmatmul.f32.gmra.mxu0 %v10501
      %v10613 = vpop.f32.mrf.mxu0
      %v10614 = vadd.f32 %v10489, %v10613
      %10615 = vmatmul.f32.gmra.mxu0 %v10504
      %v10616 = vpop.f32.mrf.mxu0
      %v10617 = vadd.f32 %v10489, %v10616
      %10618 = vmatmul.f32.gmra.mxu0 %v10507
      %v10619 = vpop.f32.mrf.mxu0
      %v10620 = vadd.f32 %v10489, %v10619
      %10621 = vmatmul.f32.gmra.mxu0 %v10510
      %v10622 = vpop.f32.mrf.mxu0
      %v10623 = vadd.f32 %v10489, %v10622
      %10624 = vmatmul.f32.gmra.mxu0 %v10513
      %v10625 = vpop.f32.mrf.mxu0
      %v10626 = vadd.f32 %v10489, %v10625
      %10627 = vmatmul.f32.gmra.mxu0 %v10516
      %v10628 = vpop.f32.mrf.mxu0
      %v10629 = vadd.f32 %v10489, %v10628
      %10630 = vmatmul.f32.gmra.mxu0 %v10519
      %v10631 = vpop.f32.mrf.mxu0
      %v10632 = vadd.f32 %v10489, %v10631
      %10633 = vmatmul.f32.gmra.mxu0 %v10522
      %v10634 = vpop.f32.mrf.mxu0
      %v10635 = vadd.f32 %v10489, %v10634
      %10636 = vmatmul.f32.gmra.mxu0 %v10525
      %v10637 = vpop.f32.mrf.mxu0
      %v10638 = vadd.f32 %v10489, %v10637
      %10639 = vmatmul.f32.gmra.mxu0 %v10528
      %v10640 = vpop.f32.mrf.mxu0
      %v10641 = vadd.f32 %v10489, %v10640
      %10642 = vmatmul.f32.gmra.mxu0 %v10531
      %v10643 = vpop.f32.mrf.mxu0
      %v10644 = vadd.f32 %v10489, %v10643
      %10645 = vmatmul.f32.gmra.mxu0 %v10534
      %v10646 = vpop.f32.mrf.mxu0
      %v10647 = vadd.f32 %v10489, %v10646
      %10648 = vmatmul.f32.gmra.mxu0 %v10537
      %v10649 = vpop.f32.mrf.mxu0
      %v10650 = vadd.f32 %v10489, %v10649
      %10651 = vmatmul.f32.gmra.mxu0 %v10540
      %v10652 = vpop.f32.mrf.mxu0
      %v10653 = vadd.f32 %v10489, %v10652
      %10654 = vmatmul.f32.gmra.mxu0 %v10543
      %v10655 = vpop.f32.mrf.mxu0
      %v10656 = vadd.f32 %v10489, %v10655
      %10657 = vmatmul.f32.gmra.mxu0 %v10546
      %v10658 = vpop.f32.mrf.mxu0
      %v10659 = vadd.f32 %v10489, %v10658
      %10660 = vmatmul.f32.gmra.mxu0 %v10549
      %v10661 = vpop.f32.mrf.mxu0
      %v10662 = vadd.f32 %v10489, %v10661
      %10663 = vmatmul.f32.gmra.mxu0 %v10552
      %v10664 = vpop.f32.mrf.mxu0
      %v10665 = vadd.f32 %v10489, %v10664
      %10666 = vmatmul.f32.gmra.mxu0 %v10555
      %v10667 = vpop.f32.mrf.mxu0
      %v10668 = vadd.f32 %v10489, %v10667
      %10669 = vmatmul.f32.gmra.mxu0 %v10558
      %v10670 = vpop.f32.mrf.mxu0
      %v10671 = vadd.f32 %v10489, %v10670
      %10672 = vmatmul.f32.gmra.mxu0 %v10561
      %v10673 = vpop.f32.mrf.mxu0
      %v10674 = vadd.f32 %v10489, %v10673
      %10675 = vmatmul.f32.gmra.mxu0 %v10564
      %v10676 = vpop.f32.mrf.mxu0
      %v10677 = vadd.f32 %v10489, %v10676
      %10678 = vmatmul.f32.gmra.mxu0 %v10567
      %v10679 = vpop.f32.mrf.mxu0
      %v10680 = vadd.f32 %v10489, %v10679
      %10681 = vmatmul.f32.gmra.mxu0 %v10570
      %v10682 = vpop.f32.mrf.mxu0
      %v10683 = vadd.f32 %v10489, %v10682
      %10684 = vmatmul.f32.gmra.mxu0 %v10573
      %v10685 = vpop.f32.mrf.mxu0
      %v10686 = vadd.f32 %v10489, %v10685
      %10687 = vmatmul.f32.gmra.mxu0 %v10576
      %v10688 = vpop.f32.mrf.mxu0
      %v10689 = vadd.f32 %v10489, %v10688
      %10690 = vmatmul.f32.gmra.mxu0 %v10579
      %v10691 = vpop.f32.mrf.mxu0
      %v10692 = vadd.f32 %v10489, %v10691
      %10693 = vmatmul.f32.gmra.mxu0 %v10582
      %v10694 = vpop.f32.mrf.mxu0
      %v10695 = vadd.f32 %v10489, %v10694
      %10696 = vmatmul.f32.gmra.mxu0 %v10585
      %v10697 = vpop.f32.mrf.mxu0
      %v10698 = vadd.f32 %v10489, %v10697
      %10699 = vdwg.mxu0
      %vm10700 = vcmask 23552
      %10701 = vst.msk [vmem:[%s710] sm:$0xff] %vm10700, %v10605
      %10702 = vst.msk [vmem:[%s710 + $0x8] sm:$0xff] %vm10700, %v10608
      %10703 = vst.msk [vmem:[%s710 + $0x10] sm:$0xff] %vm10700, %v10611
      %10704 = vst.msk [vmem:[%s710 + $0x18] sm:$0xff] %vm10700, %v10614
      %10705 = vst.msk [vmem:[%s710 + $0x20] sm:$0xff] %vm10700, %v10617
      %10706 = vst.msk [vmem:[%s710 + $0x28] sm:$0xff] %vm10700, %v10620
      %10707 = vst.msk [vmem:[%s710 + $0x30] sm:$0xff] %vm10700, %v10623
      %10708 = vst.msk [vmem:[%s710 + $0x38] sm:$0xff] %vm10700, %v10626
      %10709 = vst.msk [vmem:[%s710 + $0x40] sm:$0xff] %vm10700, %v10629
      %10710 = vst.msk [vmem:[%s710 + $0x48] sm:$0xff] %vm10700, %v10632
      %10711 = vst.msk [vmem:[%s710 + $0x50] sm:$0xff] %vm10700, %v10635
      %10712 = vst.msk [vmem:[%s710 + $0x58] sm:$0xff] %vm10700, %v10638
      %10713 = vst.msk [vmem:[%s710 + $0x60] sm:$0xff] %vm10700, %v10641
      %10714 = vst.msk [vmem:[%s710 + $0x68] sm:$0xff] %vm10700, %v10644
      %10715 = vst.msk [vmem:[%s710 + $0x70] sm:$0xff] %vm10700, %v10647
      %10716 = vst.msk [vmem:[%s710 + $0x78] sm:$0xff] %vm10700, %v10650
      %10717 = vst.msk [vmem:[%s710 + $0x80] sm:$0xff] %vm10700, %v10653
      %10718 = vst.msk [vmem:[%s710 + $0x88] sm:$0xff] %vm10700, %v10656
      %10719 = vst.msk [vmem:[%s710 + $0x90] sm:$0xff] %vm10700, %v10659
      %10720 = vst.msk [vmem:[%s710 + $0x98] sm:$0xff] %vm10700, %v10662
      %10721 = vst.msk [vmem:[%s710 + $0xa0] sm:$0xff] %vm10700, %v10665
      %10722 = vst.msk [vmem:[%s710 + $0xa8] sm:$0xff] %vm10700, %v10668
      %10723 = vst.msk [vmem:[%s710 + $0xb0] sm:$0xff] %vm10700, %v10671
      %10724 = vst.msk [vmem:[%s710 + $0xb8] sm:$0xff] %vm10700, %v10674
      %10725 = vst.msk [vmem:[%s710 + $0xc0] sm:$0xff] %vm10700, %v10677
      %10726 = vst.msk [vmem:[%s710 + $0xc8] sm:$0xff] %vm10700, %v10680
      %10727 = vst.msk [vmem:[%s710 + $0xd0] sm:$0xff] %vm10700, %v10683
      %10728 = vst.msk [vmem:[%s710 + $0xd8] sm:$0xff] %vm10700, %v10686
      %10729 = vst.msk [vmem:[%s710 + $0xe0] sm:$0xff] %vm10700, %v10689
      %10730 = vst.msk [vmem:[%s710 + $0xe8] sm:$0xff] %vm10700, %v10692
      %10731 = vst.msk [vmem:[%s710 + $0xf0] sm:$0xff] %vm10700, %v10695
      %10732 = vst.msk [vmem:[%s710 + $0xf8] sm:$0xff] %vm10700, %v10698
      %p10733 = scmp.lt.s32.totalorder %s34, 1
      %s10734 = scalar_select %p10733, %s34, 1
      %s10735 = smul.addr %s10734, 32
      %s10736 = smul.addr %s10735, 8
      %s10737 = scalar_lea.vmem %s23, %s10736
      // Predicated region
      $region113: #{unet_forward.1} parent=111 // pred_check
        %p10738 = pneg %p540
      $region114: #{unet_forward.1} parent=111 // pred_check_branch
        %10740 = sbr.rel (%p10738) target = $region116
      $region115: #{unet_forward.1} parent=111 // pred_region
        _
      $region116: #{unet_forward.1} parent=111 // pred_fallthru
        _
    $region112: #{unet_forward.1} parent=5 // pred_fallthru
      _
    %p10741 = scmp.le.s32.totalorder 2, %s29
    // Predicated region
    $region117: #{unet_forward.1} parent=5 // pred_check
      %p10742 = pneg %p10741
    $region118: #{unet_forward.1} parent=5 // pred_check_branch
      %10744 = sbr.rel (%p10742) target = $region120
    $region119: #{unet_forward.1} parent=5 // pred_region
      %s10745 = ssub.s32 %s29, 2
      // Predicated region
      $region121: #{unet_forward.1} parent=119 // pred_check
        %p10746 = pneg %p546
      $region122: #{unet_forward.1} parent=119 // pred_check_branch
        %10748 = sbr.rel (%p10746) target = $region124
      $region123: #{unet_forward.1} parent=119 // pred_region
        %p10749 = scmp.lt.s32.totalorder %s35, 1
        %s10750 = scalar_select %p10749, %s35, 1
        %s10751 = smul.addr %s10750, 32
        %s10752 = smul.addr %s10751, 8
        %s10753 = scalar_lea.vmem %s23, %s10752
      $region124: #{unet_forward.1} parent=119 // pred_fallthru
        _
    $region120: #{unet_forward.1} parent=5 // pred_fallthru
      _
  $region6: #{unet_forward.1} parent=0 // loop_footer
    %s33 = sadd.s32 1, %s29
  $region7: #{unet_forward.1} parent=0 // loop_footer_branch
    %28 = sbr.rel target = $region3
  $region8: #{unet_forward.1} parent=0 // loop_exit
    _

</llo_original>
